<compile_context>
chip_gen: v7x
topology: tpu7x:2x2x1
jax: 0.10.0
libtpu: 0.0.40
codegen_flags: <defaults>
</compile_context>

<pallas_src>
import functools

import jax
import jax.numpy as jnp
from jax import lax
from jax.experimental import pallas as pl
from jax.experimental.pallas import tpu as pltpu

INPUT_HW = (28, 28)
IN_DIM = INPUT_HW[0] * INPUT_HW[1]      # 784
PAD_DIM = 896                           # 7 * 128 : lane-dense padding of 784
H1 = 512
H2 = 256
LATENT = 64
PAD_LATENT = 128                        # [mu | logvar] packed side by side (lane-dense)


def _vae_kernel(
    x_ref, eps_ref,
    w1_ref, b1_ref, w2_ref, b2_ref,
    wml_ref, bml_ref,
    wd1_ref, bd1_ref, wd2_ref, bd2_ref, wd3_ref, bd3_ref,
    xhat_ref, ml_ref,
):
    # ----- encoder: Linear(784->512)+ReLU, Linear(512->256)+ReLU (bf16 MXU, f32 accumulate) -----
    h = jnp.dot(x_ref[...], w1_ref[...], preferred_element_type=jnp.float32) + b1_ref[...]
    h = jnp.maximum(h, 0.0).astype(jnp.bfloat16)
    h = jnp.dot(h, w2_ref[...], preferred_element_type=jnp.float32) + b2_ref[...]
    h = jnp.maximum(h, 0.0).astype(jnp.bfloat16)

    # ----- fused latent heads: [mu | logvar] = h @ [Wmu | Wsig] + [bmu | bsig] -> (bt, 128) -----
    ml = jnp.dot(h, wml_ref[...], preferred_element_type=jnp.float32) + bml_ref[...]

    # ----- reparameterize: z = mu + eps * exp(0.5 * logvar), without sub-lane slicing -----
    # Rolling by 64 lanes puts logvar in lanes 0..63 (mu in 64..127). The exp argument is
    # lane-masked so the mu-half never hits the EUP (removes the exp-overflow -> NaN hazard).
    #   lanes  0..63 : mu + eps * exp(0.5*logvar) = z
    #   lanes 64..127: logvar + 0*exp(0) = logvar   (killed by the zero rows padded into wd1)
    ml_sw = pltpu.roll(ml, shift=LATENT, axis=1)
    lane = lax.broadcasted_iota(jnp.int32, ml.shape, 1)
    exp_arg = jnp.where(lane < LATENT, 0.5 * ml_sw, 0.0)
    z_full = ml + eps_ref[...] * jnp.exp(exp_arg)

    # ----- decoder: Linear(64->256)+ReLU, Linear(256->512)+ReLU, Linear(512->784)+Tanh -----
    d = jnp.dot(z_full.astype(jnp.bfloat16), wd1_ref[...],
                preferred_element_type=jnp.float32) + bd1_ref[...]
    d = jnp.maximum(d, 0.0).astype(jnp.bfloat16)
    d = jnp.dot(d, wd2_ref[...], preferred_element_type=jnp.float32) + bd2_ref[...]
    d = jnp.maximum(d, 0.0).astype(jnp.bfloat16)
    d = jnp.dot(d, wd3_ref[...], preferred_element_type=jnp.float32) + bd3_ref[...]

    # bf16 output: halves the dominant HBM writeback (wrapper casts back to f32).
    xhat_ref[...] = jnp.tanh(d).astype(xhat_ref.dtype)   # (bt, 896) bf16, full-lane store
    ml_ref[...] = ml                                      # (bt, 128) f32,  full-lane store


def _const_spec(arr):
    """Full-array spec for weights/biases (index_map constant across the grid)."""
    shape = arr.shape
    return pl.BlockSpec(shape, lambda i, _n=len(shape): (0,) * _n)


def _pick_batch_tile(b):
    """Batch-tile heuristic.

    Big tiles amortize the ~0.35 us per-grid-step overhead (single-TC v5e/v6e); the grid is
    kept >= 2 steps whenever the batch allows so the "parallel" axis shards across v7x's two
    TensorCores. VMEM per 512-row tile (bf16 x / bf16 x_hat / f32 intermediates + weights,
    double-buffered) is well under the 48 MiB scoped limit on every generation.
    """
    if b >= 1024:
        return 512
    if b >= 512:
        return 256
    if b >= 256:
        return 128
    return max(8, ((b + 7) // 8) * 8)   # tiny batches: one minimally-padded tile


def _pack_params(params):
    """Pad / fuse / bf16-cast the PyTorch-layout params for the kernel."""
    (w1, b1, w2, b2, wmu, bmu, wsig, bsig,
     wd1, bd1, wd2, bd2, wd3, bd3) = params
    f32, bf16 = jnp.float32, jnp.bfloat16
    pad_in = PAD_DIM - IN_DIM

    w1p = jnp.pad(w1.astype(f32), ((0, pad_in), (0, 0))).astype(bf16)                 # (896, 512)
    wml = jnp.concatenate([wmu, wsig], axis=1).astype(bf16)                           # (256, 128)
    bml = jnp.concatenate([bmu, bsig], axis=1).astype(f32)                            # (1, 128)
    wd1p = jnp.pad(wd1.astype(f32), ((0, PAD_LATENT - LATENT), (0, 0))).astype(bf16)  # (128, 256)
    wd3p = jnp.pad(wd3.astype(f32), ((0, 0), (0, pad_in))).astype(bf16)               # (512, 896)
    bd3p = jnp.pad(bd3.astype(f32), ((0, 0), (0, pad_in)))                            # (1, 896)

    # TODO(synk): optional v7x-only fp8 weight path for w1p/wd3p (~74% of FLOPs) left unexplored.
    return (w1p, b1.astype(f32), w2.astype(bf16), b2.astype(f32),
            wml, bml,
            wd1p, bd1.astype(f32), wd2.astype(bf16), bd2.astype(f32), wd3p, bd3p)


@functools.partial(jax.jit, static_argnames=("batch_tile",))
def vae_forward(x_nchw, eps, params, batch_tile=None):
    """VAE forward pass. Returns (x_hat, mu, logvar) matching the PyTorch module."""
    b = x_nchw.shape[0]
    bt = batch_tile if batch_tile is not None else _pick_batch_tile(b)
    b_pad = pl.cdiv(b, bt) * bt
    grid = (b_pad // bt,)

    # Pad in bf16 (not f32): avoids materializing an f32 padded copy in HBM.
    x = x_nchw.reshape(b, -1).astype(jnp.bfloat16)                                    # (B, 784)
    x = jnp.pad(x, ((0, b_pad - b), (0, PAD_DIM - IN_DIM)))                           # (Bp, 896)
    eps_p = jnp.pad(eps.astype(jnp.float32),
                    ((0, b_pad - b), (0, PAD_LATENT - LATENT)))                       # (Bp, 128)

    packed = _pack_params(params)

    batched = lambda feat: pl.BlockSpec((bt, feat), lambda i: (i, 0))
    in_specs = [batched(PAD_DIM), batched(PAD_LATENT)] + [_const_spec(p) for p in packed]
    out_specs = [batched(PAD_DIM), batched(PAD_LATENT)]
    out_shape = [
        jax.ShapeDtypeStruct((b_pad, PAD_DIM), jnp.bfloat16),   # x_hat (bf16 writeback)
        jax.ShapeDtypeStruct((b_pad, PAD_LATENT), jnp.float32), # [mu | logvar]
    ]

    # Advisory cost estimate (true fused-MLP flops, bf16 weight bytes, bf16 x/x_hat traffic).
    mm_terms = (PAD_DIM * H1 + H1 * H2 + H2 * PAD_LATENT
                + PAD_LATENT * H2 + H2 * H1 + H1 * PAD_DIM)
    weight_bytes = 2 * mm_terms + 4 * (H1 + H2 + PAD_LATENT + H2 + H1 + PAD_DIM)
    cost = pl.CostEstimate(
        flops=2 * b_pad * mm_terms,
        transcendentals=b_pad * (PAD_LATENT + PAD_DIM),
        bytes_accessed=b_pad * (2 * PAD_DIM + 4 * PAD_LATENT + 2 * PAD_DIM + 4 * PAD_LATENT)
        + weight_bytes,
    )

    xhat_p, ml = pl.pallas_call(
        _vae_kernel,
        out_shape=out_shape,
        grid_spec=pltpu.PrefetchScalarGridSpec(
            num_scalar_prefetch=0,
            grid=grid,
            in_specs=in_specs,
            out_specs=out_specs,
        ),
        compiler_params=pltpu.CompilerParams(
            dimension_semantics=("parallel",),
            vmem_limit_bytes=48 << 20,     # <= 56 MiB: safe on v7x's 64 MiB physical VMEM
        ),
        cost_estimate=cost,
    )(x, eps_p, *packed)

    x_hat = xhat_p[:b, :IN_DIM].astype(jnp.float32)
    mu = ml[:b, :LATENT]
    logvar = ml[:b, LATENT:]
    return x_hat, mu, logvar


def init_params(key):
    """Deterministic parameter init (PyTorch-like uniform(-1/sqrt(fan_in), 1/sqrt(fan_in)))."""
    def linear(key, fan_in, fan_out):
        kw, kb = jax.random.split(key)
        bound = 1.0 / jnp.sqrt(fan_in)
        w = jax.random.uniform(kw, (fan_in, fan_out), jnp.float32, -bound, bound)
        b = jax.random.uniform(kb, (1, fan_out), jnp.float32, -bound, bound)
        return w, b

    keys = jax.random.split(key, 7)
    w1, b1 = linear(keys[0], IN_DIM, H1)        # encoder.0
    w2, b2 = linear(keys[1], H1, H2)            # encoder.2
    wmu, bmu = linear(keys[2], H2, LATENT)      # mu
    wsig, bsig = linear(keys[3], H2, LATENT)    # sigma
    wd1, bd1 = linear(keys[4], LATENT, H2)      # decoder.0
    wd2, bd2 = linear(keys[5], H2, H1)          # decoder.2
    wd3, bd3 = linear(keys[6], H1, IN_DIM)      # decoder.4
    return (w1, b1, w2, b2, wmu, bmu, wsig, bsig,
            wd1, bd1, wd2, bd2, wd3, bd3)


def reference_forward(x_nchw, eps, params):
    """Pure-f32 JAX reference of the PyTorch forward (semantic check)."""
    (w1, b1, w2, b2, wmu, bmu, wsig, bsig,
     wd1, bd1, wd2, bd2, wd3, bd3) = params
    x = x_nchw.reshape(x_nchw.shape[0], -1).astype(jnp.float32)
    h = jnp.maximum(x @ w1 + b1, 0.0)
    h = jnp.maximum(h @ w2 + b2, 0.0)
    mu = h @ wmu + bmu
    logvar = h @ wsig + bsig
    z = mu + eps * jnp.exp(0.5 * logvar)
    d = jnp.maximum(z @ wd1 + bd1, 0.0)
    d = jnp.maximum(d @ wd2 + bd2, 0.0)
    x_hat = jnp.tanh(d @ wd3 + bd3)
    return x_hat, mu, logvar


def reference_forward_bf16(x_nchw, eps, params):
    """Reference replicating the kernel's bf16-MXU / f32-accumulate / bf16-output recipe."""
    (w1, b1, w2, b2, wmu, bmu, wsig, bsig,
     wd1, bd1, wd2, bd2, wd3, bd3) = params

    def mm(a, w):
        return jnp.dot(a.astype(jnp.bfloat16), w.astype(jnp.bfloat16),
                       preferred_element_type=jnp.float32)

    x = x_nchw.reshape(x_nchw.shape[0], -1).astype(jnp.float32)
    h = jnp.maximum(mm(x, w1) + b1, 0.0)
    h = jnp.maximum(mm(h, w2) + b2, 0.0)
    mu = mm(h, wmu) + bmu
    logvar = mm(h, wsig) + bsig
    z = mu + eps.astype(jnp.float32) * jnp.exp(0.5 * logvar)
    d = jnp.maximum(mm(z, wd1) + bd1, 0.0)
    d = jnp.maximum(mm(d, wd2) + bd2, 0.0)
    x_hat = jnp.tanh(mm(d, wd3) + bd3).astype(jnp.bfloat16).astype(jnp.float32)
    return x_hat, mu, logvar


if __name__ == "__main__":
    key = jax.random.PRNGKey(0)
    k_x, k_eps, k_p = jax.random.split(key, 3)

    params = init_params(k_p)

    # 512 rows -> tile heuristic picks 256-row tiles, grid of 2 "parallel" steps
    # (keeps both v7x TensorCores busy; big-enough tiles to amortize step overhead on v5e/v6e).
    B = 512
    x = jax.random.normal(k_x, (B, 1, *INPUT_HW), dtype=jnp.float32)   # NCHW, like torch
    eps = jax.random.normal(k_eps, (B, LATENT), dtype=jnp.float32)     # reparam noise (host-supplied)

    x_hat, mu, logvar = vae_forward(x, eps, params)
    jax.block_until_ready((x_hat, mu, logvar))

    assert x_hat.shape == (B, IN_DIM) and mu.shape == (B, LATENT) and logvar.shape == (B, LATENT)
    assert bool(jnp.all(jnp.isfinite(x_hat))) and bool(jnp.all(jnp.isfinite(mu)))

    # Tight check against a reference using the same bf16-MXU / f32-accumulate / bf16-out recipe.
    r_xhat, r_mu, r_logvar = reference_forward_bf16(x, eps, params)
    assert jnp.allclose(x_hat, r_xhat, atol=1e-2, rtol=1e-2)     # x_hat is bf16-quantized
    assert jnp.allclose(mu, r_mu, atol=1e-3, rtol=1e-3)
    assert jnp.allclose(logvar, r_logvar, atol=1e-3, rtol=1e-3)

    # Loose semantic check against the pure-f32 reference (bf16 matmul/output rounding only).
    f_xhat, f_mu, f_logvar = reference_forward(x, eps, params)
    assert float(jnp.max(jnp.abs(x_hat - f_xhat))) < 5e-2
    assert float(jnp.max(jnp.abs(mu - f_mu))) < 5e-2
    assert float(jnp.max(jnp.abs(logvar - f_logvar))) < 5e-2

    # Exercise the small-batch path (tiny minimally-padded tile, grid of 1).
    Bs = 8
    xs_hat, mus, lvs = vae_forward(x[:Bs], eps[:Bs], params)
    jax.block_until_ready((xs_hat, mus, lvs))
    assert jnp.allclose(xs_hat, x_hat[:Bs], atol=1e-2, rtol=1e-2)
    assert jnp.allclose(mus, mu[:Bs], atol=1e-4, rtol=1e-4)
    assert jnp.allclose(lvs, logvar[:Bs], atol=1e-4, rtol=1e-4)

    print("KERNEL_OK")
</pallas_src>

<mosaic_0001>
module attributes {stable_mosaic.version = 11 : i64} {
  func.func @_vae_kernel(%arg0: i32, %arg1: memref<256x896xbf16, #tpu.memory_space<vmem>>, %arg2: memref<256x128xf32, #tpu.memory_space<vmem>>, %arg3: memref<896x512xbf16, #tpu.memory_space<vmem>>, %arg4: memref<1x512xf32, #tpu.memory_space<vmem>>, %arg5: memref<512x256xbf16, #tpu.memory_space<vmem>>, %arg6: memref<1x256xf32, #tpu.memory_space<vmem>>, %arg7: memref<256x128xbf16, #tpu.memory_space<vmem>>, %arg8: memref<1x128xf32, #tpu.memory_space<vmem>>, %arg9: memref<128x256xbf16, #tpu.memory_space<vmem>>, %arg10: memref<1x256xf32, #tpu.memory_space<vmem>>, %arg11: memref<256x512xbf16, #tpu.memory_space<vmem>>, %arg12: memref<1x512xf32, #tpu.memory_space<vmem>>, %arg13: memref<512x896xbf16, #tpu.memory_space<vmem>>, %arg14: memref<1x896xf32, #tpu.memory_space<vmem>>, %arg15: memref<256x896xbf16, #tpu.memory_space<vmem>>, %arg16: memref<256x128xf32, #tpu.memory_space<vmem>>) attributes {dimension_semantics = [#tpu.dimension_semantics<parallel>], iteration_bounds = array<i64: 2>, scalar_prefetch = 0 : i64, scratch_operands = 0 : i64, tpu.core_type = #tpu.core_type<tc>, window_params = [{transform_indices = @transform_0, window_bounds = array<i64: 256, 896>}, {transform_indices = @transform_1, window_bounds = array<i64: 256, 128>}, {pipeline_mode = #tpu.pipeline_mode<synchronous>, transform_indices = @transform_2, window_bounds = array<i64: 896, 512>}, {pipeline_mode = #tpu.pipeline_mode<synchronous>, transform_indices = @transform_3, window_bounds = array<i64: 1, 512>}, {pipeline_mode = #tpu.pipeline_mode<synchronous>, transform_indices = @transform_4, window_bounds = array<i64: 512, 256>}, {pipeline_mode = #tpu.pipeline_mode<synchronous>, transform_indices = @transform_5, window_bounds = array<i64: 1, 256>}, {pipeline_mode = #tpu.pipeline_mode<synchronous>, transform_indices = @transform_6, window_bounds = array<i64: 256, 128>}, {pipeline_mode = #tpu.pipeline_mode<synchronous>, transform_indices = @transform_7, window_bounds = array<i64: 1, 128>}, {pipeline_mode = #tpu.pipeline_mode<synchronous>, transform_indices = @transform_8, window_bounds = array<i64: 128, 256>}, {pipeline_mode = #tpu.pipeline_mode<synchronous>, transform_indices = @transform_9, window_bounds = array<i64: 1, 256>}, {pipeline_mode = #tpu.pipeline_mode<synchronous>, transform_indices = @transform_10, window_bounds = array<i64: 256, 512>}, {pipeline_mode = #tpu.pipeline_mode<synchronous>, transform_indices = @transform_11, window_bounds = array<i64: 1, 512>}, {pipeline_mode = #tpu.pipeline_mode<synchronous>, transform_indices = @transform_12, window_bounds = array<i64: 512, 896>}, {pipeline_mode = #tpu.pipeline_mode<synchronous>, transform_indices = @transform_13, window_bounds = array<i64: 1, 896>}, {transform_indices = @transform_14, window_bounds = array<i64: 256, 896>}, {transform_indices = @transform_15, window_bounds = array<i64: 256, 128>}]} {
    %c0 = arith.constant 0 : index
    %c0_0 = arith.constant 0 : index
    %0 = vector.load %arg1[%c0, %c0_0] : memref<256x896xbf16, #tpu.memory_space<vmem>>, vector<256x896xbf16>
    %c0_1 = arith.constant 0 : index
    %c0_2 = arith.constant 0 : index
    %1 = vector.load %arg3[%c0_1, %c0_2] : memref<896x512xbf16, #tpu.memory_space<vmem>>, vector<896x512xbf16>
    %cst = arith.constant dense<0.000000e+00> : vector<256x512xf32>
    %2 = tpu.matmul %0, %1, %cst {dimension_numbers = #tpu.dot_dimension_numbers<[1], [0], [0], [1], [0, 0, 1, 1], [], []>} : vector<256x896xbf16>, vector<896x512xbf16>, vector<256x512xf32> -> vector<256x512xf32>
    %c0_3 = arith.constant 0 : index
    %c0_4 = arith.constant 0 : index
    %3 = vector.load %arg4[%c0_3, %c0_4] : memref<1x512xf32, #tpu.memory_space<vmem>>, vector<1x512xf32>
    %4 = vector.broadcast %3 : vector<1x512xf32> to vector<256x512xf32>
    %5 = arith.addf %2, %4 : vector<256x512xf32>
    %cst_5 = arith.constant 0.000000e+00 : f32
    %6 = vector.broadcast %cst_5 : f32 to vector<256x512xf32>
    %7 = arith.maximumf %5, %6 : vector<256x512xf32>
    %8 = arith.truncf %7 : vector<256x512xf32> to vector<256x512xbf16>
    %c0_6 = arith.constant 0 : index
    %c0_7 = arith.constant 0 : index
    %9 = vector.load %arg5[%c0_6, %c0_7] : memref<512x256xbf16, #tpu.memory_space<vmem>>, vector<512x256xbf16>
    %cst_8 = arith.constant dense<0.000000e+00> : vector<256x256xf32>
    %10 = tpu.matmul %8, %9, %cst_8 {dimension_numbers = #tpu.dot_dimension_numbers<[1], [0], [0], [1], [0, 0, 1, 1], [], []>} : vector<256x512xbf16>, vector<512x256xbf16>, vector<256x256xf32> -> vector<256x256xf32>
    %c0_9 = arith.constant 0 : index
    %c0_10 = arith.constant 0 : index
    %11 = vector.load %arg6[%c0_9, %c0_10] : memref<1x256xf32, #tpu.memory_space<vmem>>, vector<1x256xf32>
    %12 = vector.broadcast %11 : vector<1x256xf32> to vector<256x256xf32>
    %13 = arith.addf %10, %12 : vector<256x256xf32>
    %cst_11 = arith.constant 0.000000e+00 : f32
    %14 = vector.broadcast %cst_11 : f32 to vector<256x256xf32>
    %15 = arith.maximumf %13, %14 : vector<256x256xf32>
    %16 = arith.truncf %15 : vector<256x256xf32> to vector<256x256xbf16>
    %c0_12 = arith.constant 0 : index
    %c0_13 = arith.constant 0 : index
    %17 = vector.load %arg7[%c0_12, %c0_13] : memref<256x128xbf16, #tpu.memory_space<vmem>>, vector<256x128xbf16>
    %cst_14 = arith.constant dense<0.000000e+00> : vector<256x128xf32>
    %18 = tpu.matmul %16, %17, %cst_14 {dimension_numbers = #tpu.dot_dimension_numbers<[1], [0], [0], [1], [0, 0, 1, 1], [], []>} : vector<256x256xbf16>, vector<256x128xbf16>, vector<256x128xf32> -> vector<256x128xf32>
    %c0_15 = arith.constant 0 : index
    %c0_16 = arith.constant 0 : index
    %19 = vector.load %arg8[%c0_15, %c0_16] : memref<1x128xf32, #tpu.memory_space<vmem>>, vector<1x128xf32>
    %20 = vector.broadcast %19 : vector<1x128xf32> to vector<256x128xf32>
    %21 = arith.addf %18, %20 : vector<256x128xf32>
    %c64_i32 = arith.constant 64 : i32
    %22 = tpu.dynamic_rotate %21 by %c64_i32 dim 1 : vector<256x128xf32>, i32 -> vector<256x128xf32>
    %23 = tpu.iota {dimensions = array<i32: 1>} : vector<256x128xi32>
    %c64_i32_17 = arith.constant 64 : i32
    %24 = vector.broadcast %c64_i32_17 : i32 to vector<256x128xi32>
    %25 = arith.cmpi slt, %23, %24 : vector<256x128xi32>
    %cst_18 = arith.constant 5.000000e-01 : f32
    %26 = vector.broadcast %cst_18 : f32 to vector<256x128xf32>
    %27 = arith.mulf %26, %22 : vector<256x128xf32>
    %cst_19 = arith.constant 0.000000e+00 : f32
    %28 = vector.broadcast %cst_19 : f32 to vector<256x128xf32>
    %29 = arith.select %25, %27, %28 : vector<256x128xi1>, vector<256x128xf32>
    %c0_20 = arith.constant 0 : index
    %c0_21 = arith.constant 0 : index
    %30 = vector.load %arg2[%c0_20, %c0_21] : memref<256x128xf32, #tpu.memory_space<vmem>>, vector<256x128xf32>
    %31 = math.exp %29 : vector<256x128xf32>
    %32 = arith.mulf %30, %31 : vector<256x128xf32>
    %33 = arith.addf %21, %32 : vector<256x128xf32>
    %34 = arith.truncf %33 : vector<256x128xf32> to vector<256x128xbf16>
    %c0_22 = arith.constant 0 : index
    %c0_23 = arith.constant 0 : index
    %35 = vector.load %arg9[%c0_22, %c0_23] : memref<128x256xbf16, #tpu.memory_space<vmem>>, vector<128x256xbf16>
    %cst_24 = arith.constant dense<0.000000e+00> : vector<256x256xf32>
    %36 = tpu.matmul %34, %35, %cst_24 {dimension_numbers = #tpu.dot_dimension_numbers<[1], [0], [0], [1], [0, 0, 1, 1], [], []>} : vector<256x128xbf16>, vector<128x256xbf16>, vector<256x256xf32> -> vector<256x256xf32>
    %c0_25 = arith.constant 0 : index
    %c0_26 = arith.constant 0 : index
    %37 = vector.load %arg10[%c0_25, %c0_26] : memref<1x256xf32, #tpu.memory_space<vmem>>, vector<1x256xf32>
    %38 = vector.broadcast %37 : vector<1x256xf32> to vector<256x256xf32>
    %39 = arith.addf %36, %38 : vector<256x256xf32>
    %cst_27 = arith.constant 0.000000e+00 : f32
    %40 = vector.broadcast %cst_27 : f32 to vector<256x256xf32>
    %41 = arith.maximumf %39, %40 : vector<256x256xf32>
    %42 = arith.truncf %41 : vector<256x256xf32> to vector<256x256xbf16>
    %c0_28 = arith.constant 0 : index
    %c0_29 = arith.constant 0 : index
    %43 = vector.load %arg11[%c0_28, %c0_29] : memref<256x512xbf16, #tpu.memory_space<vmem>>, vector<256x512xbf16>
    %cst_30 = arith.constant dense<0.000000e+00> : vector<256x512xf32>
    %44 = tpu.matmul %42, %43, %cst_30 {dimension_numbers = #tpu.dot_dimension_numbers<[1], [0], [0], [1], [0, 0, 1, 1], [], []>} : vector<256x256xbf16>, vector<256x512xbf16>, vector<256x512xf32> -> vector<256x512xf32>
    %c0_31 = arith.constant 0 : index
    %c0_32 = arith.constant 0 : index
    %45 = vector.load %arg12[%c0_31, %c0_32] : memref<1x512xf32, #tpu.memory_space<vmem>>, vector<1x512xf32>
    %46 = vector.broadcast %45 : vector<1x512xf32> to vector<256x512xf32>
    %47 = arith.addf %44, %46 : vector<256x512xf32>
    %cst_33 = arith.constant 0.000000e+00 : f32
    %48 = vector.broadcast %cst_33 : f32 to vector<256x512xf32>
    %49 = arith.maximumf %47, %48 : vector<256x512xf32>
    %50 = arith.truncf %49 : vector<256x512xf32> to vector<256x512xbf16>
    %c0_34 = arith.constant 0 : index
    %c0_35 = arith.constant 0 : index
    %51 = vector.load %arg13[%c0_34, %c0_35] : memref<512x896xbf16, #tpu.memory_space<vmem>>, vector<512x896xbf16>
    %cst_36 = arith.constant dense<0.000000e+00> : vector<256x896xf32>
    %52 = tpu.matmul %50, %51, %cst_36 {dimension_numbers = #tpu.dot_dimension_numbers<[1], [0], [0], [1], [0, 0, 1, 1], [], []>} : vector<256x512xbf16>, vector<512x896xbf16>, vector<256x896xf32> -> vector<256x896xf32>
    %c0_37 = arith.constant 0 : index
    %c0_38 = arith.constant 0 : index
    %53 = vector.load %arg14[%c0_37, %c0_38] : memref<1x896xf32, #tpu.memory_space<vmem>>, vector<1x896xf32>
    %54 = vector.broadcast %53 : vector<1x896xf32> to vector<256x896xf32>
    %55 = arith.addf %52, %54 : vector<256x896xf32>
    %56 = math.tanh %55 : vector<256x896xf32>
    %57 = arith.truncf %56 : vector<256x896xf32> to vector<256x896xbf16>
    %c0_39 = arith.constant 0 : index
    %c0_40 = arith.constant 0 : index
    %58 = vector.load %arg15[%c0_39, %c0_40] : memref<256x896xbf16, #tpu.memory_space<vmem>>, vector<256x896xbf16>
    tpu.vector_store %arg15[%c0_39, %c0_40], %57 {strides = array<i32>} : memref<256x896xbf16, #tpu.memory_space<vmem>>, vector<256x896xbf16>,
    %c0_41 = arith.constant 0 : index
    %c0_42 = arith.constant 0 : index
    %59 = vector.load %arg16[%c0_41, %c0_42] : memref<256x128xf32, #tpu.memory_space<vmem>>, vector<256x128xf32>
    tpu.vector_store %arg16[%c0_41, %c0_42], %21 {strides = array<i32>} : memref<256x128xf32, #tpu.memory_space<vmem>>, vector<256x128xf32>,
    return
  }
  func.func @transform_0(%arg0: i32) -> (i32, i32) {
    %c0_i32 = arith.constant 0 : i32
    %c0_i32_0 = arith.constant 0 : i32
    return %arg0, %c0_i32 : i32, i32
  }
  func.func @transform_1(%arg0: i32) -> (i32, i32) {
    %c0_i32 = arith.constant 0 : i32
    %c0_i32_0 = arith.constant 0 : i32
    return %arg0, %c0_i32 : i32, i32
  }
  func.func @transform_2(%arg0: i32) -> (i32, i32) {
    %c0_i32 = arith.constant 0 : i32
    %c0_i32_0 = arith.constant 0 : i32
    %c0_i32_1 = arith.constant 0 : i32
    return %c0_i32, %c0_i32_0 : i32, i32
  }
  func.func @transform_3(%arg0: i32) -> (i32, i32) {
    %c0_i32 = arith.constant 0 : i32
    %c0_i32_0 = arith.constant 0 : i32
    %c0_i32_1 = arith.constant 0 : i32
    return %c0_i32, %c0_i32_0 : i32, i32
  }
  func.func @transform_4(%arg0: i32) -> (i32, i32) {
    %c0_i32 = arith.constant 0 : i32
    %c0_i32_0 = arith.constant 0 : i32
    %c0_i32_1 = arith.constant 0 : i32
    return %c0_i32, %c0_i32_0 : i32, i32
  }
  func.func @transform_5(%arg0: i32) -> (i32, i32) {
    %c0_i32 = arith.constant 0 : i32
    %c0_i32_0 = arith.constant 0 : i32
    %c0_i32_1 = arith.constant 0 : i32
    return %c0_i32, %c0_i32_0 : i32, i32
  }
  func.func @transform_6(%arg0: i32) -> (i32, i32) {
    %c0_i32 = arith.constant 0 : i32
    %c0_i32_0 = arith.constant 0 : i32
    %c0_i32_1 = arith.constant 0 : i32
    return %c0_i32, %c0_i32_0 : i32, i32
  }
  func.func @transform_7(%arg0: i32) -> (i32, i32) {
    %c0_i32 = arith.constant 0 : i32
    %c0_i32_0 = arith.constant 0 : i32
    %c0_i32_1 = arith.constant 0 : i32
    return %c0_i32, %c0_i32_0 : i32, i32
  }
  func.func @transform_8(%arg0: i32) -> (i32, i32) {
    %c0_i32 = arith.constant 0 : i32
    %c0_i32_0 = arith.constant 0 : i32
    %c0_i32_1 = arith.constant 0 : i32
    return %c0_i32, %c0_i32_0 : i32, i32
  }
  func.func @transform_9(%arg0: i32) -> (i32, i32) {
    %c0_i32 = arith.constant 0 : i32
    %c0_i32_0 = arith.constant 0 : i32
    %c0_i32_1 = arith.constant 0 : i32
    return %c0_i32, %c0_i32_0 : i32, i32
  }
  func.func @transform_10(%arg0: i32) -> (i32, i32) {
    %c0_i32 = arith.constant 0 : i32
    %c0_i32_0 = arith.constant 0 : i32
    %c0_i32_1 = arith.constant 0 : i32
    return %c0_i32, %c0_i32_0 : i32, i32
  }
  func.func @transform_11(%arg0: i32) -> (i32, i32) {
    %c0_i32 = arith.constant 0 : i32
    %c0_i32_0 = arith.constant 0 : i32
    %c0_i32_1 = arith.constant 0 : i32
    return %c0_i32, %c0_i32_0 : i32, i32
  }
  func.func @transform_12(%arg0: i32) -> (i32, i32) {
    %c0_i32 = arith.constant 0 : i32
    %c0_i32_0 = arith.constant 0 : i32
    %c0_i32_1 = arith.constant 0 : i32
    return %c0_i32, %c0_i32_0 : i32, i32
  }
  func.func @transform_13(%arg0: i32) -> (i32, i32) {
    %c0_i32 = arith.constant 0 : i32
    %c0_i32_0 = arith.constant 0 : i32
    %c0_i32_1 = arith.constant 0 : i32
    return %c0_i32, %c0_i32_0 : i32, i32
  }
  func.func @transform_14(%arg0: i32) -> (i32, i32) {
    %c0_i32 = arith.constant 0 : i32
    %c0_i32_0 = arith.constant 0 : i32
    return %arg0, %c0_i32 : i32, i32
  }
  func.func @transform_15(%arg0: i32) -> (i32, i32) {
    %c0_i32 = arith.constant 0 : i32
    %c0_i32_0 = arith.constant 0 : i32
    return %arg0, %c0_i32 : i32, i32
  }
}

</mosaic_0001>

<llo_original>
// kernel: vae_forward.1
$region0: #{vae_forward.1}
  #allocation0 [shape = 'u32[]', space=smem, size = 0x4, offset = 0x4, fixed_abs, tag = 'smem constant byte address 0x4 - core index']
  #allocation1 [shape = 'u32[144,128]{1,0:T(1,128)}', space=vmem, size = 0x12000, scoped, tag = 'internal scratch']
  %s0 = inlined_call_operand.vmem [shape: bf16[512,896], index: 0, kind: input, shape index: {}]
  %s1 = inlined_call_operand.vmem [shape: f32[512,128], index: 1, kind: input, shape index: {}]
  %s2 = inlined_call_operand.vmem [shape: bf16[896,512], index: 2, kind: input, shape index: {}]
  %s3 = inlined_call_operand.vmem [shape: f32[1,512], index: 3, kind: input, shape index: {}]
  %s4 = inlined_call_operand.vmem [shape: bf16[512,256], index: 4, kind: input, shape index: {}]
  %s5 = inlined_call_operand.vmem [shape: f32[1,256], index: 5, kind: input, shape index: {}]
  %s6 = inlined_call_operand.vmem [shape: bf16[256,128], index: 6, kind: input, shape index: {}]
  %s7 = inlined_call_operand.vmem [shape: f32[1,128], index: 7, kind: input, shape index: {}]
  %s8 = inlined_call_operand.vmem [shape: bf16[128,256], index: 8, kind: input, shape index: {}]
  %s9 = inlined_call_operand.vmem [shape: f32[1,256], index: 9, kind: input, shape index: {}]
  %s10 = inlined_call_operand.vmem [shape: bf16[256,512], index: 10, kind: input, shape index: {}]
  %s11 = inlined_call_operand.vmem [shape: f32[1,512], index: 11, kind: input, shape index: {}]
  %s12 = inlined_call_operand.vmem [shape: bf16[512,896], index: 12, kind: input, shape index: {}]
  %s13 = inlined_call_operand.vmem [shape: f32[1,896], index: 13, kind: input, shape index: {}]
  %s14 = inlined_call_operand.vmem [shape: bf16[512,896], index: 14, kind: output, shape index: {0}]
  %s15 = inlined_call_operand.vmem [shape: f32[512,128], index: 15, kind: output, shape index: {1}]
  %16 = xla_tuple %s14, %s15
  %s17 = sld [smem:[#allocation0]]
  $region97: #{vae_forward.1} parent=0
    _
  %s19 = ssub.s32 1, %s17
  %s20 = scalar_select 0, %s19, %s17
  loop: start=0, step=1, limit=4
  $region2: #{vae_forward.1} parent=0 // loop_pre_header
    _
  $region3: #{vae_forward.1} parent=0 // loop_header
    %s22 = sphi 0, %s26
    %p23 = scmp.ge.s32.totalorder %s22, 4
    %s32 = sphi 0, %s34
    %s35 = sphi 0, %s32
    %s36 = sphi 0, %s35
    %s52 = sphi 0, %s36
    %s58 = sphi 0, %s60
    %s61 = sphi 0, %s58
    %s62 = sphi 0, %s61
    %s78 = sphi 0, %s62
    %s82 = sphi 0, %s82
    %s84 = sphi 0, %s82
    %s85 = sphi 0, %s84
    %s99 = sphi 0, %s85
    %s103 = sphi 0, %s103
    %s105 = sphi 0, %s103
    %s106 = sphi 0, %s105
    %s120 = sphi 0, %s106
    %s124 = sphi 0, %s124
    %s126 = sphi 0, %s124
    %s127 = sphi 0, %s126
    %s141 = sphi 0, %s127
    %s145 = sphi 0, %s145
    %s147 = sphi 0, %s145
    %s148 = sphi 0, %s147
    %s162 = sphi 0, %s148
    %s166 = sphi 0, %s166
    %s168 = sphi 0, %s166
    %s169 = sphi 0, %s168
    %s183 = sphi 0, %s169
    %s187 = sphi 0, %s187
    %s189 = sphi 0, %s187
    %s190 = sphi 0, %s189
    %s204 = sphi 0, %s190
    %s208 = sphi 0, %s208
    %s210 = sphi 0, %s208
    %s211 = sphi 0, %s210
    %s225 = sphi 0, %s211
    %s229 = sphi 0, %s229
    %s231 = sphi 0, %s229
    %s232 = sphi 0, %s231
    %s246 = sphi 0, %s232
    %s250 = sphi 0, %s250
    %s252 = sphi 0, %s250
    %s253 = sphi 0, %s252
    %s267 = sphi 0, %s253
    %s271 = sphi 0, %s271
    %s273 = sphi 0, %s271
    %s274 = sphi 0, %s273
    %s288 = sphi 0, %s274
    %s292 = sphi 0, %s292
    %s294 = sphi 0, %s292
    %s295 = sphi 0, %s294
    %s309 = sphi 0, %s295
    %s313 = sphi 0, %s313
    %s315 = sphi 0, %s313
    %s316 = sphi 0, %s315
    %s330 = sphi 0, %s316
    %s336 = sphi 0, %s338
    %s339 = sphi 0, %s336
    %s340 = sphi 0, %s339
    %s356 = sphi 0, %s340
    %s362 = sphi 0, %s364
    %s365 = sphi 0, %s362
    %s366 = sphi 0, %s365
    %s382 = sphi 0, %s366
  $region4: #{vae_forward.1} parent=0 // loop_header_branch
    %25 = sbr.rel (%p23) target = $region8
  $region5: #{vae_forward.1} parent=0 // loop_body
    %s27 = ssub.s32 %s22, 1
    %s28 = ssub.s32 %s22, 2
    %s29 = sadd.s32 %s22, 1
    %s30 = ssub.s32 %s22, %s29
    %p31 = scmp.eq.s32.totalorder %s30, 0
    %s33 = sadd.s32 %s32, 1
    %s34 = scalar_select %p31, %s32, %s33
    %p37 = pneg %p31
    %p38 = scmp.eq.s32.totalorder %s22, 1
    %p39 = por %p37, %p38
    %p40 = scmp.ne.s32.totalorder %s32, %s35
    %p41 = scmp.eq.s32.totalorder %s22, 0
    %p42 = por %p40, %p41
    %p43 = scmp.ne.s32.totalorder %s32, %s35
    %p44 = scmp.eq.s32.totalorder %s27, 1
    %p45 = por %p43, %p44
    %p46 = scmp.ne.s32.totalorder %s35, %s36
    %p47 = scmp.eq.s32.totalorder %s27, 0
    %p48 = por %p46, %p47
    %p49 = scmp.ne.s32.totalorder %s35, %s36
    %p50 = scmp.eq.s32.totalorder %s28, 1
    %p51 = por %p49, %p50
    %p53 = scmp.ne.s32.totalorder %s36, %s52
    %p54 = scmp.eq.s32.totalorder %s28, 0
    %p55 = por %p53, %p54
    %s56 = ssub.s32 %s22, %s29
    %p57 = scmp.eq.s32.totalorder %s56, 0
    %s59 = sadd.s32 %s58, 1
    %s60 = scalar_select %p57, %s58, %s59
    %p63 = pneg %p57
    %p64 = scmp.eq.s32.totalorder %s22, 1
    %p65 = por %p63, %p64
    %p66 = scmp.ne.s32.totalorder %s58, %s61
    %p67 = scmp.eq.s32.totalorder %s22, 0
    %p68 = por %p66, %p67
    %p69 = scmp.ne.s32.totalorder %s58, %s61
    %p70 = scmp.eq.s32.totalorder %s27, 1
    %p71 = por %p69, %p70
    %p72 = scmp.ne.s32.totalorder %s61, %s62
    %p73 = scmp.eq.s32.totalorder %s27, 0
    %p74 = por %p72, %p73
    %p75 = scmp.ne.s32.totalorder %s61, %s62
    %p76 = scmp.eq.s32.totalorder %s28, 1
    %p77 = por %p75, %p76
    %p79 = scmp.ne.s32.totalorder %s62, %s78
    %p80 = scmp.eq.s32.totalorder %s28, 0
    %p81 = por %p79, %p80
    %s83 = sadd.s32 %s82, 1
    %p86 = scmp.eq.s32.totalorder %s22, 1
    %p87 = scmp.ne.s32.totalorder %s82, %s84
    %p88 = scmp.eq.s32.totalorder %s22, 0
    %p89 = por %p87, %p88
    %p90 = scmp.ne.s32.totalorder %s82, %s84
    %p91 = scmp.eq.s32.totalorder %s27, 1
    %p92 = por %p90, %p91
    %p93 = scmp.ne.s32.totalorder %s84, %s85
    %p94 = scmp.eq.s32.totalorder %s27, 0
    %p95 = por %p93, %p94
    %p96 = scmp.ne.s32.totalorder %s84, %s85
    %p97 = scmp.eq.s32.totalorder %s28, 1
    %p98 = por %p96, %p97
    %p100 = scmp.ne.s32.totalorder %s85, %s99
    %p101 = scmp.eq.s32.totalorder %s28, 0
    %p102 = por %p100, %p101
    %s104 = sadd.s32 %s103, 1
    %p107 = scmp.eq.s32.totalorder %s22, 1
    %p108 = scmp.ne.s32.totalorder %s103, %s105
    %p109 = scmp.eq.s32.totalorder %s22, 0
    %p110 = por %p108, %p109
    %p111 = scmp.ne.s32.totalorder %s103, %s105
    %p112 = scmp.eq.s32.totalorder %s27, 1
    %p113 = por %p111, %p112
    %p114 = scmp.ne.s32.totalorder %s105, %s106
    %p115 = scmp.eq.s32.totalorder %s27, 0
    %p116 = por %p114, %p115
    %p117 = scmp.ne.s32.totalorder %s105, %s106
    %p118 = scmp.eq.s32.totalorder %s28, 1
    %p119 = por %p117, %p118
    %p121 = scmp.ne.s32.totalorder %s106, %s120
    %p122 = scmp.eq.s32.totalorder %s28, 0
    %p123 = por %p121, %p122
    %s125 = sadd.s32 %s124, 1
    %p128 = scmp.eq.s32.totalorder %s22, 1
    %p129 = scmp.ne.s32.totalorder %s124, %s126
    %p130 = scmp.eq.s32.totalorder %s22, 0
    %p131 = por %p129, %p130
    %p132 = scmp.ne.s32.totalorder %s124, %s126
    %p133 = scmp.eq.s32.totalorder %s27, 1
    %p134 = por %p132, %p133
    %p135 = scmp.ne.s32.totalorder %s126, %s127
    %p136 = scmp.eq.s32.totalorder %s27, 0
    %p137 = por %p135, %p136
    %p138 = scmp.ne.s32.totalorder %s126, %s127
    %p139 = scmp.eq.s32.totalorder %s28, 1
    %p140 = por %p138, %p139
    %p142 = scmp.ne.s32.totalorder %s127, %s141
    %p143 = scmp.eq.s32.totalorder %s28, 0
    %p144 = por %p142, %p143
    %s146 = sadd.s32 %s145, 1
    %p149 = scmp.eq.s32.totalorder %s22, 1
    %p150 = scmp.ne.s32.totalorder %s145, %s147
    %p151 = scmp.eq.s32.totalorder %s22, 0
    %p152 = por %p150, %p151
    %p153 = scmp.ne.s32.totalorder %s145, %s147
    %p154 = scmp.eq.s32.totalorder %s27, 1
    %p155 = por %p153, %p154
    %p156 = scmp.ne.s32.totalorder %s147, %s148
    %p157 = scmp.eq.s32.totalorder %s27, 0
    %p158 = por %p156, %p157
    %p159 = scmp.ne.s32.totalorder %s147, %s148
    %p160 = scmp.eq.s32.totalorder %s28, 1
    %p161 = por %p159, %p160
    %p163 = scmp.ne.s32.totalorder %s148, %s162
    %p164 = scmp.eq.s32.totalorder %s28, 0
    %p165 = por %p163, %p164
    %s167 = sadd.s32 %s166, 1
    %p170 = scmp.eq.s32.totalorder %s22, 1
    %p171 = scmp.ne.s32.totalorder %s166, %s168
    %p172 = scmp.eq.s32.totalorder %s22, 0
    %p173 = por %p171, %p172
    %p174 = scmp.ne.s32.totalorder %s166, %s168
    %p175 = scmp.eq.s32.totalorder %s27, 1
    %p176 = por %p174, %p175
    %p177 = scmp.ne.s32.totalorder %s168, %s169
    %p178 = scmp.eq.s32.totalorder %s27, 0
    %p179 = por %p177, %p178
    %p180 = scmp.ne.s32.totalorder %s168, %s169
    %p181 = scmp.eq.s32.totalorder %s28, 1
    %p182 = por %p180, %p181
    %p184 = scmp.ne.s32.totalorder %s169, %s183
    %p185 = scmp.eq.s32.totalorder %s28, 0
    %p186 = por %p184, %p185
    %s188 = sadd.s32 %s187, 1
    %p191 = scmp.eq.s32.totalorder %s22, 1
    %p192 = scmp.ne.s32.totalorder %s187, %s189
    %p193 = scmp.eq.s32.totalorder %s22, 0
    %p194 = por %p192, %p193
    %p195 = scmp.ne.s32.totalorder %s187, %s189
    %p196 = scmp.eq.s32.totalorder %s27, 1
    %p197 = por %p195, %p196
    %p198 = scmp.ne.s32.totalorder %s189, %s190
    %p199 = scmp.eq.s32.totalorder %s27, 0
    %p200 = por %p198, %p199
    %p201 = scmp.ne.s32.totalorder %s189, %s190
    %p202 = scmp.eq.s32.totalorder %s28, 1
    %p203 = por %p201, %p202
    %p205 = scmp.ne.s32.totalorder %s190, %s204
    %p206 = scmp.eq.s32.totalorder %s28, 0
    %p207 = por %p205, %p206
    %s209 = sadd.s32 %s208, 1
    %p212 = scmp.eq.s32.totalorder %s22, 1
    %p213 = scmp.ne.s32.totalorder %s208, %s210
    %p214 = scmp.eq.s32.totalorder %s22, 0
    %p215 = por %p213, %p214
    %p216 = scmp.ne.s32.totalorder %s208, %s210
    %p217 = scmp.eq.s32.totalorder %s27, 1
    %p218 = por %p216, %p217
    %p219 = scmp.ne.s32.totalorder %s210, %s211
    %p220 = scmp.eq.s32.totalorder %s27, 0
    %p221 = por %p219, %p220
    %p222 = scmp.ne.s32.totalorder %s210, %s211
    %p223 = scmp.eq.s32.totalorder %s28, 1
    %p224 = por %p222, %p223
    %p226 = scmp.ne.s32.totalorder %s211, %s225
    %p227 = scmp.eq.s32.totalorder %s28, 0
    %p228 = por %p226, %p227
    %s230 = sadd.s32 %s229, 1
    %p233 = scmp.eq.s32.totalorder %s22, 1
    %p234 = scmp.ne.s32.totalorder %s229, %s231
    %p235 = scmp.eq.s32.totalorder %s22, 0
    %p236 = por %p234, %p235
    %p237 = scmp.ne.s32.totalorder %s229, %s231
    %p238 = scmp.eq.s32.totalorder %s27, 1
    %p239 = por %p237, %p238
    %p240 = scmp.ne.s32.totalorder %s231, %s232
    %p241 = scmp.eq.s32.totalorder %s27, 0
    %p242 = por %p240, %p241
    %p243 = scmp.ne.s32.totalorder %s231, %s232
    %p244 = scmp.eq.s32.totalorder %s28, 1
    %p245 = por %p243, %p244
    %p247 = scmp.ne.s32.totalorder %s232, %s246
    %p248 = scmp.eq.s32.totalorder %s28, 0
    %p249 = por %p247, %p248
    %s251 = sadd.s32 %s250, 1
    %p254 = scmp.eq.s32.totalorder %s22, 1
    %p255 = scmp.ne.s32.totalorder %s250, %s252
    %p256 = scmp.eq.s32.totalorder %s22, 0
    %p257 = por %p255, %p256
    %p258 = scmp.ne.s32.totalorder %s250, %s252
    %p259 = scmp.eq.s32.totalorder %s27, 1
    %p260 = por %p258, %p259
    %p261 = scmp.ne.s32.totalorder %s252, %s253
    %p262 = scmp.eq.s32.totalorder %s27, 0
    %p263 = por %p261, %p262
    %p264 = scmp.ne.s32.totalorder %s252, %s253
    %p265 = scmp.eq.s32.totalorder %s28, 1
    %p266 = por %p264, %p265
    %p268 = scmp.ne.s32.totalorder %s253, %s267
    %p269 = scmp.eq.s32.totalorder %s28, 0
    %p270 = por %p268, %p269
    %s272 = sadd.s32 %s271, 1
    %p275 = scmp.eq.s32.totalorder %s22, 1
    %p276 = scmp.ne.s32.totalorder %s271, %s273
    %p277 = scmp.eq.s32.totalorder %s22, 0
    %p278 = por %p276, %p277
    %p279 = scmp.ne.s32.totalorder %s271, %s273
    %p280 = scmp.eq.s32.totalorder %s27, 1
    %p281 = por %p279, %p280
    %p282 = scmp.ne.s32.totalorder %s273, %s274
    %p283 = scmp.eq.s32.totalorder %s27, 0
    %p284 = por %p282, %p283
    %p285 = scmp.ne.s32.totalorder %s273, %s274
    %p286 = scmp.eq.s32.totalorder %s28, 1
    %p287 = por %p285, %p286
    %p289 = scmp.ne.s32.totalorder %s274, %s288
    %p290 = scmp.eq.s32.totalorder %s28, 0
    %p291 = por %p289, %p290
    %s293 = sadd.s32 %s292, 1
    %p296 = scmp.eq.s32.totalorder %s22, 1
    %p297 = scmp.ne.s32.totalorder %s292, %s294
    %p298 = scmp.eq.s32.totalorder %s22, 0
    %p299 = por %p297, %p298
    %p300 = scmp.ne.s32.totalorder %s292, %s294
    %p301 = scmp.eq.s32.totalorder %s27, 1
    %p302 = por %p300, %p301
    %p303 = scmp.ne.s32.totalorder %s294, %s295
    %p304 = scmp.eq.s32.totalorder %s27, 0
    %p305 = por %p303, %p304
    %p306 = scmp.ne.s32.totalorder %s294, %s295
    %p307 = scmp.eq.s32.totalorder %s28, 1
    %p308 = por %p306, %p307
    %p310 = scmp.ne.s32.totalorder %s295, %s309
    %p311 = scmp.eq.s32.totalorder %s28, 0
    %p312 = por %p310, %p311
    %s314 = sadd.s32 %s313, 1
    %p317 = scmp.eq.s32.totalorder %s22, 1
    %p318 = scmp.ne.s32.totalorder %s313, %s315
    %p319 = scmp.eq.s32.totalorder %s22, 0
    %p320 = por %p318, %p319
    %p321 = scmp.ne.s32.totalorder %s313, %s315
    %p322 = scmp.eq.s32.totalorder %s27, 1
    %p323 = por %p321, %p322
    %p324 = scmp.ne.s32.totalorder %s315, %s316
    %p325 = scmp.eq.s32.totalorder %s27, 0
    %p326 = por %p324, %p325
    %p327 = scmp.ne.s32.totalorder %s315, %s316
    %p328 = scmp.eq.s32.totalorder %s28, 1
    %p329 = por %p327, %p328
    %p331 = scmp.ne.s32.totalorder %s316, %s330
    %p332 = scmp.eq.s32.totalorder %s28, 0
    %p333 = por %p331, %p332
    %s334 = ssub.s32 %s22, %s29
    %p335 = scmp.eq.s32.totalorder %s334, 0
    %s337 = sadd.s32 %s336, 1
    %s338 = scalar_select %p335, %s336, %s337
    %p341 = pneg %p335
    %p342 = scmp.eq.s32.totalorder %s22, 1
    %p343 = por %p341, %p342
    %p344 = scmp.ne.s32.totalorder %s336, %s339
    %p345 = scmp.eq.s32.totalorder %s22, 0
    %p346 = por %p344, %p345
    %p347 = scmp.ne.s32.totalorder %s336, %s339
    %p348 = scmp.eq.s32.totalorder %s27, 1
    %p349 = por %p347, %p348
    %p350 = scmp.ne.s32.totalorder %s339, %s340
    %p351 = scmp.eq.s32.totalorder %s27, 0
    %p352 = por %p350, %p351
    %p353 = scmp.ne.s32.totalorder %s339, %s340
    %p354 = scmp.eq.s32.totalorder %s28, 1
    %p355 = por %p353, %p354
    %p357 = scmp.ne.s32.totalorder %s340, %s356
    %p358 = scmp.eq.s32.totalorder %s28, 0
    %p359 = por %p357, %p358
    %s360 = ssub.s32 %s22, %s29
    %p361 = scmp.eq.s32.totalorder %s360, 0
    %s363 = sadd.s32 %s362, 1
    %s364 = scalar_select %p361, %s362, %s363
    %p367 = pneg %p361
    %p368 = scmp.eq.s32.totalorder %s22, 1
    %p369 = por %p367, %p368
    %p370 = scmp.ne.s32.totalorder %s362, %s365
    %p371 = scmp.eq.s32.totalorder %s22, 0
    %p372 = por %p370, %p371
    %p373 = scmp.ne.s32.totalorder %s362, %s365
    %p374 = scmp.eq.s32.totalorder %s27, 1
    %p375 = por %p373, %p374
    %p376 = scmp.ne.s32.totalorder %s365, %s366
    %p377 = scmp.eq.s32.totalorder %s27, 0
    %p378 = por %p376, %p377
    %p379 = scmp.ne.s32.totalorder %s365, %s366
    %p380 = scmp.eq.s32.totalorder %s28, 1
    %p381 = por %p379, %p380
    %p383 = scmp.ne.s32.totalorder %s366, %s382
    %p384 = scmp.eq.s32.totalorder %s28, 0
    %p385 = por %p383, %p384
    %p386 = scmp.le.s32.totalorder 1, %s22
    %p387 = scmp.lt.s32.totalorder %s22, 3
    %p388 = pnand %p386, %p387
    %p389 = pneg %p388
    // Predicated region
    $region9: #{vae_forward.1} parent=5 // pred_check
      _
    $region10: #{vae_forward.1} parent=5 // pred_check_branch
      %391 = sbr.rel (%p388) target = $region12
    $region11: #{vae_forward.1} parent=5 // pred_region
      %s392 = ssub.s32 %s22, 1
      // Predicated region
      $region13: #{vae_forward.1} parent=11 // pred_check
        %p393 = pneg %p95
      $region14: #{vae_forward.1} parent=11 // pred_check_branch
        %395 = sbr.rel (%p393) target = $region16
      $region15: #{vae_forward.1} parent=11 // pred_region
        _
      $region16: #{vae_forward.1} parent=11 // pred_fallthru
        _
      // Predicated region
      $region17: #{vae_forward.1} parent=11 // pred_check
        %p396 = pneg %p116
      $region18: #{vae_forward.1} parent=11 // pred_check_branch
        %398 = sbr.rel (%p396) target = $region20
      $region19: #{vae_forward.1} parent=11 // pred_region
        _
      $region20: #{vae_forward.1} parent=11 // pred_fallthru
        _
      // Predicated region
      $region21: #{vae_forward.1} parent=11 // pred_check
        %p399 = pneg %p137
      $region22: #{vae_forward.1} parent=11 // pred_check_branch
        %401 = sbr.rel (%p399) target = $region24
      $region23: #{vae_forward.1} parent=11 // pred_region
        _
      $region24: #{vae_forward.1} parent=11 // pred_fallthru
        _
      // Predicated region
      $region25: #{vae_forward.1} parent=11 // pred_check
        %p402 = pneg %p158
      $region26: #{vae_forward.1} parent=11 // pred_check_branch
        %404 = sbr.rel (%p402) target = $region28
      $region27: #{vae_forward.1} parent=11 // pred_region
        _
      $region28: #{vae_forward.1} parent=11 // pred_fallthru
        _
      // Predicated region
      $region29: #{vae_forward.1} parent=11 // pred_check
        %p405 = pneg %p179
      $region30: #{vae_forward.1} parent=11 // pred_check_branch
        %407 = sbr.rel (%p405) target = $region32
      $region31: #{vae_forward.1} parent=11 // pred_region
        _
      $region32: #{vae_forward.1} parent=11 // pred_fallthru
        _
      // Predicated region
      $region33: #{vae_forward.1} parent=11 // pred_check
        %p408 = pneg %p200
      $region34: #{vae_forward.1} parent=11 // pred_check_branch
        %410 = sbr.rel (%p408) target = $region36
      $region35: #{vae_forward.1} parent=11 // pred_region
        _
      $region36: #{vae_forward.1} parent=11 // pred_fallthru
        _
      // Predicated region
      $region37: #{vae_forward.1} parent=11 // pred_check
        %p411 = pneg %p221
      $region38: #{vae_forward.1} parent=11 // pred_check_branch
        %413 = sbr.rel (%p411) target = $region40
      $region39: #{vae_forward.1} parent=11 // pred_region
        _
      $region40: #{vae_forward.1} parent=11 // pred_fallthru
        _
      // Predicated region
      $region41: #{vae_forward.1} parent=11 // pred_check
        %p414 = pneg %p242
      $region42: #{vae_forward.1} parent=11 // pred_check_branch
        %416 = sbr.rel (%p414) target = $region44
      $region43: #{vae_forward.1} parent=11 // pred_region
        _
      $region44: #{vae_forward.1} parent=11 // pred_fallthru
        _
      // Predicated region
      $region45: #{vae_forward.1} parent=11 // pred_check
        %p417 = pneg %p263
      $region46: #{vae_forward.1} parent=11 // pred_check_branch
        %419 = sbr.rel (%p417) target = $region48
      $region47: #{vae_forward.1} parent=11 // pred_region
        _
      $region48: #{vae_forward.1} parent=11 // pred_fallthru
        _
      // Predicated region
      $region49: #{vae_forward.1} parent=11 // pred_check
        %p420 = pneg %p284
      $region50: #{vae_forward.1} parent=11 // pred_check_branch
        %422 = sbr.rel (%p420) target = $region52
      $region51: #{vae_forward.1} parent=11 // pred_region
        _
      $region52: #{vae_forward.1} parent=11 // pred_fallthru
        _
      // Predicated region
      $region53: #{vae_forward.1} parent=11 // pred_check
        %p423 = pneg %p305
      $region54: #{vae_forward.1} parent=11 // pred_check_branch
        %425 = sbr.rel (%p423) target = $region56
      $region55: #{vae_forward.1} parent=11 // pred_region
        _
      $region56: #{vae_forward.1} parent=11 // pred_fallthru
        _
      // Predicated region
      $region57: #{vae_forward.1} parent=11 // pred_check
        %p426 = pneg %p326
      $region58: #{vae_forward.1} parent=11 // pred_check_branch
        %428 = sbr.rel (%p426) target = $region60
      $region59: #{vae_forward.1} parent=11 // pred_region
        _
      $region60: #{vae_forward.1} parent=11 // pred_fallthru
        _
    $region12: #{vae_forward.1} parent=5 // pred_fallthru
      _
    %p429 = scmp.lt.s32.totalorder %s22, 2
    // Predicated region
    $region61: #{vae_forward.1} parent=5 // pred_check
      %p430 = pneg %p429
    $region62: #{vae_forward.1} parent=5 // pred_check_branch
      %432 = sbr.rel (%p430) target = $region64
    $region63: #{vae_forward.1} parent=5 // pred_region
      // Predicated region
      $region65: #{vae_forward.1} parent=63 // pred_check
        %p433 = pneg %p42
      $region66: #{vae_forward.1} parent=63 // pred_check_branch
        %435 = sbr.rel (%p433) target = $region68
      $region67: #{vae_forward.1} parent=63 // pred_region
        %s436 = smul.u32 32, %s22
        %p437 = scmp.lt.s32.totalorder %s436, 63
        %s438 = scalar_select %p437, %s436, 63
        %s439 = smul.addr %s438, 7
        %s440 = smul.addr %s439, 4
        %s441 = scalar_lea.vmem %s0, %s440
        %s442 = smul.u32 32, %s22
      $region68: #{vae_forward.1} parent=63 // pred_fallthru
        _
      // Predicated region
      $region69: #{vae_forward.1} parent=63 // pred_check
        %p443 = pneg %p68
      $region70: #{vae_forward.1} parent=63 // pred_check_branch
        %445 = sbr.rel (%p443) target = $region72
      $region71: #{vae_forward.1} parent=63 // pred_region
        %s446 = smul.u32 32, %s22
        %p447 = scmp.lt.s32.totalorder %s446, 63
        %s448 = scalar_select %p447, %s446, 63
        %s449 = smul.addr %s448, 8
        %s450 = scalar_lea.vmem %s1, %s449
        %s451 = smul.u32 32, %s22
      $region72: #{vae_forward.1} parent=63 // pred_fallthru
        _
    $region64: #{vae_forward.1} parent=5 // pred_fallthru
      _
    %p452 = scmp.le.s32.totalorder 1, %s22
    %p453 = scmp.lt.s32.totalorder %s22, 3
    %p454 = pnand %p452, %p453
    %p455 = pneg %p454
    // Predicated region
    $region73: #{vae_forward.1} parent=5 // pred_check
      _
    $region74: #{vae_forward.1} parent=5 // pred_check_branch
      %457 = sbr.rel (%p454) target = $region76
    $region75: #{vae_forward.1} parent=5 // pred_region
      %s458 = ssub.s32 %s22, 1
      %s459 = smul.u32 32, %s27
      %p460 = scmp.lt.s32.totalorder %s459, 63
      %s461 = scalar_select %p460, %s459, 63
      %s462 = smul.addr %s461, 7
      %s463 = smul.addr %s462, 4
      %s464 = scalar_lea.vmem %s0, %s463
      %p465 = pneg %p48
      %p466 = pneg %p45
      %s467 = smul.u32 32, %s27
      %p468 = scmp.lt.s32.totalorder %s467, 63
      %s469 = scalar_select %p468, %s467, 63
      %s470 = smul.addr %s469, 8
      %s471 = scalar_lea.vmem %s1, %s470
      %p472 = pneg %p74
      %p473 = pneg %p71
      %p474 = pneg %p95
      %p475 = pneg %p92
      %p476 = pneg %p116
      %p477 = pneg %p113
      %p478 = pneg %p137
      %p479 = pneg %p134
      %p480 = pneg %p158
      %p481 = pneg %p155
      %p482 = pneg %p179
      %p483 = pneg %p176
      %p484 = pneg %p200
      %p485 = pneg %p197
      %p486 = pneg %p221
      %p487 = pneg %p218
      %p488 = pneg %p242
      %p489 = pneg %p239
      %p490 = pneg %p263
      %p491 = pneg %p260
      %p492 = pneg %p284
      %p493 = pneg %p281
      %p494 = pneg %p305
      %p495 = pneg %p302
      %p496 = pneg %p326
      %p497 = pneg %p323
      %p498 = pneg %p352
      %p499 = pneg %p349
      %s500 = smul.u32 32, %s27
      %p501 = scmp.lt.s32.totalorder %s500, 63
      %s502 = scalar_select %p501, %s500, 63
      %s503 = smul.addr %s502, 7
      %s504 = smul.addr %s503, 4
      %s505 = scalar_lea.vmem %s14, %s504
      %p506 = pneg %p378
      %p507 = pneg %p375
      %s508 = smul.u32 32, %s27
      %p509 = scmp.lt.s32.totalorder %s508, 63
      %s510 = scalar_select %p509, %s508, 63
      %s511 = smul.addr %s510, 8
      %s512 = scalar_lea.vmem %s15, %s511
      %s513 = smul.u32 32, %s27
      %p514 = scmp.lt.s32.totalorder %s513, 63
      %s515 = scalar_select %p514, %s513, 63
      %s516 = smul.addr %s515, 7
      %s517 = smul.addr %s516, 4
      %s518 = scalar_lea.vmem %s0, %s517
      %s519 = smul.u32 32, %s27
      %s520 = smul.u32 32, %s27
      %p521 = scmp.lt.s32.totalorder %s520, 63
      %s522 = scalar_select %p521, %s520, 63
      %s523 = smul.addr %s522, 8
      %s524 = scalar_lea.vmem %s1, %s523
      %s525 = smul.u32 32, %s27
      %s526 = smul.u32 32, %s27
      %p527 = scmp.lt.s32.totalorder %s526, 63
      %s528 = scalar_select %p527, %s526, 63
      %s529 = smul.addr %s528, 7
      %s530 = smul.addr %s529, 4
      %s531 = scalar_lea.vmem %s14, %s530
      %s532 = smul.u32 32, %s27
      %s533 = smul.u32 32, %s27
      %p534 = scmp.lt.s32.totalorder %s533, 63
      %s535 = scalar_select %p534, %s533, 63
      %s536 = smul.addr %s535, 8
      %s537 = scalar_lea.vmem %s15, %s536
      %s538 = smul.u32 32, %s27
      %v540 = vld [vmem:[%s518] sm:$0xff]
      %v541 = vld [vmem:[%s518 + $0x8] sm:$0xff]
      %v542 = vld [vmem:[%s518 + $0x10] sm:$0xff]
      %v543 = vld [vmem:[%s518 + $0x18] sm:$0xf]
      %v544 = vld [vmem:[%s518 + $0x1c] sm:$0xff]
      %v545 = vld [vmem:[%s518 + $0x24] sm:$0xff]
      %v546 = vld [vmem:[%s518 + $0x2c] sm:$0xff]
      %v547 = vld [vmem:[%s518 + $0x34] sm:$0xf]
      %v548 = vld [vmem:[%s518 + $0x38] sm:$0xff]
      %v549 = vld [vmem:[%s518 + $0x40] sm:$0xff]
      %v550 = vld [vmem:[%s518 + $0x48] sm:$0xff]
      %v551 = vld [vmem:[%s518 + $0x50] sm:$0xf]
      %v552 = vld [vmem:[%s518 + $0x54] sm:$0xff]
      %v553 = vld [vmem:[%s518 + $0x5c] sm:$0xff]
      %v554 = vld [vmem:[%s518 + $0x64] sm:$0xff]
      %v555 = vld [vmem:[%s518 + $0x6c] sm:$0xf]
      %v556 = vld [vmem:[%s518 + $0x70] sm:$0xff]
      %v557 = vld [vmem:[%s518 + $0x78] sm:$0xff]
      %v558 = vld [vmem:[%s518 + $0x80] sm:$0xff]
      %v559 = vld [vmem:[%s518 + $0x88] sm:$0xf]
      %v560 = vld [vmem:[%s518 + $0x8c] sm:$0xff]
      %v561 = vld [vmem:[%s518 + $0x94] sm:$0xff]
      %v562 = vld [vmem:[%s518 + $0x9c] sm:$0xff]
      %v563 = vld [vmem:[%s518 + $0xa4] sm:$0xf]
      %v564 = vld [vmem:[%s518 + $0xa8] sm:$0xff]
      %v565 = vld [vmem:[%s518 + $0xb0] sm:$0xff]
      %v566 = vld [vmem:[%s518 + $0xb8] sm:$0xff]
      %v567 = vld [vmem:[%s518 + $0xc0] sm:$0xf]
      %v568 = vld [vmem:[%s518 + $0xc4] sm:$0xff]
      %v569 = vld [vmem:[%s518 + $0xcc] sm:$0xff]
      %v570 = vld [vmem:[%s518 + $0xd4] sm:$0xff]
      %v571 = vld [vmem:[%s518 + $0xdc] sm:$0xf]
      %v572 = vld [vmem:[%s518 + $0xe0] sm:$0xff]
      %v573 = vld [vmem:[%s518 + $0xe8] sm:$0xff]
      %v574 = vld [vmem:[%s518 + $0xf0] sm:$0xff]
      %v575 = vld [vmem:[%s518 + $0xf8] sm:$0xf]
      %v576 = vld [vmem:[%s518 + $0xfc] sm:$0xff]
      %v577 = vld [vmem:[%s518 + $0x104] sm:$0xff]
      %v578 = vld [vmem:[%s518 + $0x10c] sm:$0xff]
      %v579 = vld [vmem:[%s518 + $0x114] sm:$0xf]
      %v580 = vld [vmem:[%s518 + $0x118] sm:$0xff]
      %v581 = vld [vmem:[%s518 + $0x120] sm:$0xff]
      %v582 = vld [vmem:[%s518 + $0x128] sm:$0xff]
      %v583 = vld [vmem:[%s518 + $0x130] sm:$0xf]
      %v584 = vld [vmem:[%s518 + $0x134] sm:$0xff]
      %v585 = vld [vmem:[%s518 + $0x13c] sm:$0xff]
      %v586 = vld [vmem:[%s518 + $0x144] sm:$0xff]
      %v587 = vld [vmem:[%s518 + $0x14c] sm:$0xf]
      %v588 = vld [vmem:[%s518 + $0x150] sm:$0xff]
      %v589 = vld [vmem:[%s518 + $0x158] sm:$0xff]
      %v590 = vld [vmem:[%s518 + $0x160] sm:$0xff]
      %v591 = vld [vmem:[%s518 + $0x168] sm:$0xf]
      %v592 = vld [vmem:[%s518 + $0x16c] sm:$0xff]
      %v593 = vld [vmem:[%s518 + $0x174] sm:$0xff]
      %v594 = vld [vmem:[%s518 + $0x17c] sm:$0xff]
      %v595 = vld [vmem:[%s518 + $0x184] sm:$0xf]
      %v596 = vld [vmem:[%s518 + $0x188] sm:$0xff]
      %v597 = vld [vmem:[%s518 + $0x190] sm:$0xff]
      %v598 = vld [vmem:[%s518 + $0x198] sm:$0xff]
      %v599 = vld [vmem:[%s518 + $0x1a0] sm:$0xf]
      %v600 = vld [vmem:[%s518 + $0x1a4] sm:$0xff]
      %v601 = vld [vmem:[%s518 + $0x1ac] sm:$0xff]
      %v602 = vld [vmem:[%s518 + $0x1b4] sm:$0xff]
      %v603 = vld [vmem:[%s518 + $0x1bc] sm:$0xf]
      %v604 = vld [vmem:[%s518 + $0x1c0] sm:$0xff]
      %v605 = vld [vmem:[%s518 + $0x1c8] sm:$0xff]
      %v606 = vld [vmem:[%s518 + $0x1d0] sm:$0xff]
      %v607 = vld [vmem:[%s518 + $0x1d8] sm:$0xf]
      %v608 = vld [vmem:[%s518 + $0x1dc] sm:$0xff]
      %v609 = vld [vmem:[%s518 + $0x1e4] sm:$0xff]
      %v610 = vld [vmem:[%s518 + $0x1ec] sm:$0xff]
      %v611 = vld [vmem:[%s518 + $0x1f4] sm:$0xf]
      %v612 = vld [vmem:[%s518 + $0x1f8] sm:$0xff]
      %v613 = vld [vmem:[%s518 + $0x200] sm:$0xff]
      %v614 = vld [vmem:[%s518 + $0x208] sm:$0xff]
      %v615 = vld [vmem:[%s518 + $0x210] sm:$0xf]
      %v616 = vld [vmem:[%s518 + $0x214] sm:$0xff]
      %v617 = vld [vmem:[%s518 + $0x21c] sm:$0xff]
      %v618 = vld [vmem:[%s518 + $0x224] sm:$0xff]
      %v619 = vld [vmem:[%s518 + $0x22c] sm:$0xf]
      %v620 = vld [vmem:[%s518 + $0x230] sm:$0xff]
      %v621 = vld [vmem:[%s518 + $0x238] sm:$0xff]
      %v622 = vld [vmem:[%s518 + $0x240] sm:$0xff]
      %v623 = vld [vmem:[%s518 + $0x248] sm:$0xf]
      %v624 = vld [vmem:[%s518 + $0x24c] sm:$0xff]
      %v625 = vld [vmem:[%s518 + $0x254] sm:$0xff]
      %v626 = vld [vmem:[%s518 + $0x25c] sm:$0xff]
      %v627 = vld [vmem:[%s518 + $0x264] sm:$0xf]
      %v628 = vld [vmem:[%s518 + $0x268] sm:$0xff]
      %v629 = vld [vmem:[%s518 + $0x270] sm:$0xff]
      %v630 = vld [vmem:[%s518 + $0x278] sm:$0xff]
      %v631 = vld [vmem:[%s518 + $0x280] sm:$0xf]
      %v632 = vld [vmem:[%s518 + $0x284] sm:$0xff]
      %v633 = vld [vmem:[%s518 + $0x28c] sm:$0xff]
      %v634 = vld [vmem:[%s518 + $0x294] sm:$0xff]
      %v635 = vld [vmem:[%s518 + $0x29c] sm:$0xf]
      %v636 = vld [vmem:[%s518 + $0x2a0] sm:$0xff]
      %v637 = vld [vmem:[%s518 + $0x2a8] sm:$0xff]
      %v638 = vld [vmem:[%s518 + $0x2b0] sm:$0xff]
      %v639 = vld [vmem:[%s518 + $0x2b8] sm:$0xf]
      %v640 = vld [vmem:[%s518 + $0x2bc] sm:$0xff]
      %v641 = vld [vmem:[%s518 + $0x2c4] sm:$0xff]
      %v642 = vld [vmem:[%s518 + $0x2cc] sm:$0xff]
      %v643 = vld [vmem:[%s518 + $0x2d4] sm:$0xf]
      %v644 = vld [vmem:[%s518 + $0x2d8] sm:$0xff]
      %v645 = vld [vmem:[%s518 + $0x2e0] sm:$0xff]
      %v646 = vld [vmem:[%s518 + $0x2e8] sm:$0xff]
      %v647 = vld [vmem:[%s518 + $0x2f0] sm:$0xf]
      %v648 = vld [vmem:[%s518 + $0x2f4] sm:$0xff]
      %v649 = vld [vmem:[%s518 + $0x2fc] sm:$0xff]
      %v650 = vld [vmem:[%s518 + $0x304] sm:$0xff]
      %v651 = vld [vmem:[%s518 + $0x30c] sm:$0xf]
      %v652 = vld [vmem:[%s518 + $0x310] sm:$0xff]
      %v653 = vld [vmem:[%s518 + $0x318] sm:$0xff]
      %v654 = vld [vmem:[%s518 + $0x320] sm:$0xff]
      %v655 = vld [vmem:[%s518 + $0x328] sm:$0xf]
      %v656 = vld [vmem:[%s518 + $0x32c] sm:$0xff]
      %v657 = vld [vmem:[%s518 + $0x334] sm:$0xff]
      %v658 = vld [vmem:[%s518 + $0x33c] sm:$0xff]
      %v659 = vld [vmem:[%s518 + $0x344] sm:$0xf]
      %v660 = vld [vmem:[%s518 + $0x348] sm:$0xff]
      %v661 = vld [vmem:[%s518 + $0x350] sm:$0xff]
      %v662 = vld [vmem:[%s518 + $0x358] sm:$0xff]
      %v663 = vld [vmem:[%s518 + $0x360] sm:$0xf]
      %v664 = vld [vmem:[%s518 + $0x364] sm:$0xff]
      %v665 = vld [vmem:[%s518 + $0x36c] sm:$0xff]
      %v666 = vld [vmem:[%s518 + $0x374] sm:$0xff]
      %v667 = vld [vmem:[%s518 + $0x37c] sm:$0xf]
      %v668 = vld [vmem:[%s2] sm:$0xff]
      %v669 = vld [vmem:[%s2 + $0x8] sm:$0xff]
      %v670 = vld [vmem:[%s2 + $0x10] sm:$0xff]
      %v671 = vld [vmem:[%s2 + $0x18] sm:$0xff]
      %v672 = vld [vmem:[%s2 + $0x20] sm:$0xff]
      %v673 = vld [vmem:[%s2 + $0x28] sm:$0xff]
      %v674 = vld [vmem:[%s2 + $0x30] sm:$0xff]
      %v675 = vld [vmem:[%s2 + $0x38] sm:$0xff]
      %v676 = vld [vmem:[%s2 + $0x40] sm:$0xff]
      %v677 = vld [vmem:[%s2 + $0x48] sm:$0xff]
      %v678 = vld [vmem:[%s2 + $0x50] sm:$0xff]
      %v679 = vld [vmem:[%s2 + $0x58] sm:$0xff]
      %v680 = vld [vmem:[%s2 + $0x60] sm:$0xff]
      %v681 = vld [vmem:[%s2 + $0x68] sm:$0xff]
      %v682 = vld [vmem:[%s2 + $0x70] sm:$0xff]
      %v683 = vld [vmem:[%s2 + $0x78] sm:$0xff]
      %v684 = vld [vmem:[%s2 + $0x80] sm:$0xff]
      %v685 = vld [vmem:[%s2 + $0x88] sm:$0xff]
      %v686 = vld [vmem:[%s2 + $0x90] sm:$0xff]
      %v687 = vld [vmem:[%s2 + $0x98] sm:$0xff]
      %v688 = vld [vmem:[%s2 + $0xa0] sm:$0xff]
      %v689 = vld [vmem:[%s2 + $0xa8] sm:$0xff]
      %v690 = vld [vmem:[%s2 + $0xb0] sm:$0xff]
      %v691 = vld [vmem:[%s2 + $0xb8] sm:$0xff]
      %v692 = vld [vmem:[%s2 + $0xc0] sm:$0xff]
      %v693 = vld [vmem:[%s2 + $0xc8] sm:$0xff]
      %v694 = vld [vmem:[%s2 + $0xd0] sm:$0xff]
      %v695 = vld [vmem:[%s2 + $0xd8] sm:$0xff]
      %v696 = vld [vmem:[%s2 + $0xe0] sm:$0xff]
      %v697 = vld [vmem:[%s2 + $0xe8] sm:$0xff]
      %v698 = vld [vmem:[%s2 + $0xf0] sm:$0xff]
      %v699 = vld [vmem:[%s2 + $0xf8] sm:$0xff]
      %v700 = vld [vmem:[%s2 + $0x100] sm:$0xff]
      %v701 = vld [vmem:[%s2 + $0x108] sm:$0xff]
      %v702 = vld [vmem:[%s2 + $0x110] sm:$0xff]
      %v703 = vld [vmem:[%s2 + $0x118] sm:$0xff]
      %v704 = vld [vmem:[%s2 + $0x120] sm:$0xff]
      %v705 = vld [vmem:[%s2 + $0x128] sm:$0xff]
      %v706 = vld [vmem:[%s2 + $0x130] sm:$0xff]
      %v707 = vld [vmem:[%s2 + $0x138] sm:$0xff]
      %v708 = vld [vmem:[%s2 + $0x140] sm:$0xff]
      %v709 = vld [vmem:[%s2 + $0x148] sm:$0xff]
      %v710 = vld [vmem:[%s2 + $0x150] sm:$0xff]
      %v711 = vld [vmem:[%s2 + $0x158] sm:$0xff]
      %v712 = vld [vmem:[%s2 + $0x160] sm:$0xff]
      %v713 = vld [vmem:[%s2 + $0x168] sm:$0xff]
      %v714 = vld [vmem:[%s2 + $0x170] sm:$0xff]
      %v715 = vld [vmem:[%s2 + $0x178] sm:$0xff]
      %v716 = vld [vmem:[%s2 + $0x180] sm:$0xff]
      %v717 = vld [vmem:[%s2 + $0x188] sm:$0xff]
      %v718 = vld [vmem:[%s2 + $0x190] sm:$0xff]
      %v719 = vld [vmem:[%s2 + $0x198] sm:$0xff]
      %v720 = vld [vmem:[%s2 + $0x1a0] sm:$0xff]
      %v721 = vld [vmem:[%s2 + $0x1a8] sm:$0xff]
      %v722 = vld [vmem:[%s2 + $0x1b0] sm:$0xff]
      %v723 = vld [vmem:[%s2 + $0x1b8] sm:$0xff]
      %v724 = vld [vmem:[%s2 + $0x1c0] sm:$0xff]
      %v725 = vld [vmem:[%s2 + $0x1c8] sm:$0xff]
      %v726 = vld [vmem:[%s2 + $0x1d0] sm:$0xff]
      %v727 = vld [vmem:[%s2 + $0x1d8] sm:$0xff]
      %v728 = vld [vmem:[%s2 + $0x1e0] sm:$0xff]
      %v729 = vld [vmem:[%s2 + $0x1e8] sm:$0xff]
      %v730 = vld [vmem:[%s2 + $0x1f0] sm:$0xff]
      %v731 = vld [vmem:[%s2 + $0x1f8] sm:$0xff]
      %v732 = vld [vmem:[%s2 + $0x200] sm:$0xff]
      %v733 = vld [vmem:[%s2 + $0x208] sm:$0xff]
      %v734 = vld [vmem:[%s2 + $0x210] sm:$0xff]
      %v735 = vld [vmem:[%s2 + $0x218] sm:$0xff]
      %v736 = vld [vmem:[%s2 + $0x220] sm:$0xff]
      %v737 = vld [vmem:[%s2 + $0x228] sm:$0xff]
      %v738 = vld [vmem:[%s2 + $0x230] sm:$0xff]
      %v739 = vld [vmem:[%s2 + $0x238] sm:$0xff]
      %v740 = vld [vmem:[%s2 + $0x240] sm:$0xff]
      %v741 = vld [vmem:[%s2 + $0x248] sm:$0xff]
      %v742 = vld [vmem:[%s2 + $0x250] sm:$0xff]
      %v743 = vld [vmem:[%s2 + $0x258] sm:$0xff]
      %v744 = vld [vmem:[%s2 + $0x260] sm:$0xff]
      %v745 = vld [vmem:[%s2 + $0x268] sm:$0xff]
      %v746 = vld [vmem:[%s2 + $0x270] sm:$0xff]
      %v747 = vld [vmem:[%s2 + $0x278] sm:$0xff]
      %v748 = vld [vmem:[%s2 + $0x280] sm:$0xff]
      %v749 = vld [vmem:[%s2 + $0x288] sm:$0xff]
      %v750 = vld [vmem:[%s2 + $0x290] sm:$0xff]
      %v751 = vld [vmem:[%s2 + $0x298] sm:$0xff]
      %v752 = vld [vmem:[%s2 + $0x2a0] sm:$0xff]
      %v753 = vld [vmem:[%s2 + $0x2a8] sm:$0xff]
      %v754 = vld [vmem:[%s2 + $0x2b0] sm:$0xff]
      %v755 = vld [vmem:[%s2 + $0x2b8] sm:$0xff]
      %v756 = vld [vmem:[%s2 + $0x2c0] sm:$0xff]
      %v757 = vld [vmem:[%s2 + $0x2c8] sm:$0xff]
      %v758 = vld [vmem:[%s2 + $0x2d0] sm:$0xff]
      %v759 = vld [vmem:[%s2 + $0x2d8] sm:$0xff]
      %v760 = vld [vmem:[%s2 + $0x2e0] sm:$0xff]
      %v761 = vld [vmem:[%s2 + $0x2e8] sm:$0xff]
      %v762 = vld [vmem:[%s2 + $0x2f0] sm:$0xff]
      %v763 = vld [vmem:[%s2 + $0x2f8] sm:$0xff]
      %v764 = vld [vmem:[%s2 + $0x300] sm:$0xff]
      %v765 = vld [vmem:[%s2 + $0x308] sm:$0xff]
      %v766 = vld [vmem:[%s2 + $0x310] sm:$0xff]
      %v767 = vld [vmem:[%s2 + $0x318] sm:$0xff]
      %v768 = vld [vmem:[%s2 + $0x320] sm:$0xff]
      %v769 = vld [vmem:[%s2 + $0x328] sm:$0xff]
      %v770 = vld [vmem:[%s2 + $0x330] sm:$0xff]
      %v771 = vld [vmem:[%s2 + $0x338] sm:$0xff]
      %v772 = vld [vmem:[%s2 + $0x340] sm:$0xff]
      %v773 = vld [vmem:[%s2 + $0x348] sm:$0xff]
      %v774 = vld [vmem:[%s2 + $0x350] sm:$0xff]
      %v775 = vld [vmem:[%s2 + $0x358] sm:$0xff]
      %v776 = vld [vmem:[%s2 + $0x360] sm:$0xff]
      %v777 = vld [vmem:[%s2 + $0x368] sm:$0xff]
      %v778 = vld [vmem:[%s2 + $0x370] sm:$0xff]
      %v779 = vld [vmem:[%s2 + $0x378] sm:$0xff]
      %v780 = vld [vmem:[%s2 + $0x380] sm:$0xff]
      %v781 = vld [vmem:[%s2 + $0x388] sm:$0xff]
      %v782 = vld [vmem:[%s2 + $0x390] sm:$0xff]
      %v783 = vld [vmem:[%s2 + $0x398] sm:$0xff]
      %v784 = vld [vmem:[%s2 + $0x3a0] sm:$0xff]
      %v785 = vld [vmem:[%s2 + $0x3a8] sm:$0xff]
      %v786 = vld [vmem:[%s2 + $0x3b0] sm:$0xff]
      %v787 = vld [vmem:[%s2 + $0x3b8] sm:$0xff]
      %v788 = vld [vmem:[%s2 + $0x3c0] sm:$0xff]
      %v789 = vld [vmem:[%s2 + $0x3c8] sm:$0xff]
      %v790 = vld [vmem:[%s2 + $0x3d0] sm:$0xff]
      %v791 = vld [vmem:[%s2 + $0x3d8] sm:$0xff]
      %v792 = vld [vmem:[%s2 + $0x3e0] sm:$0xff]
      %v793 = vld [vmem:[%s2 + $0x3e8] sm:$0xff]
      %v794 = vld [vmem:[%s2 + $0x3f0] sm:$0xff]
      %v795 = vld [vmem:[%s2 + $0x3f8] sm:$0xff]
      %v796 = vld [vmem:[%s2 + $0x400] sm:$0xff]
      %v797 = vld [vmem:[%s2 + $0x408] sm:$0xff]
      %v798 = vld [vmem:[%s2 + $0x410] sm:$0xff]
      %v799 = vld [vmem:[%s2 + $0x418] sm:$0xff]
      %v800 = vld [vmem:[%s2 + $0x420] sm:$0xff]
      %v801 = vld [vmem:[%s2 + $0x428] sm:$0xff]
      %v802 = vld [vmem:[%s2 + $0x430] sm:$0xff]
      %v803 = vld [vmem:[%s2 + $0x438] sm:$0xff]
      %v804 = vld [vmem:[%s2 + $0x440] sm:$0xff]
      %v805 = vld [vmem:[%s2 + $0x448] sm:$0xff]
      %v806 = vld [vmem:[%s2 + $0x450] sm:$0xff]
      %v807 = vld [vmem:[%s2 + $0x458] sm:$0xff]
      %v808 = vld [vmem:[%s2 + $0x460] sm:$0xff]
      %v809 = vld [vmem:[%s2 + $0x468] sm:$0xff]
      %v810 = vld [vmem:[%s2 + $0x470] sm:$0xff]
      %v811 = vld [vmem:[%s2 + $0x478] sm:$0xff]
      %v812 = vld [vmem:[%s2 + $0x480] sm:$0xff]
      %v813 = vld [vmem:[%s2 + $0x488] sm:$0xff]
      %v814 = vld [vmem:[%s2 + $0x490] sm:$0xff]
      %v815 = vld [vmem:[%s2 + $0x498] sm:$0xff]
      %v816 = vld [vmem:[%s2 + $0x4a0] sm:$0xff]
      %v817 = vld [vmem:[%s2 + $0x4a8] sm:$0xff]
      %v818 = vld [vmem:[%s2 + $0x4b0] sm:$0xff]
      %v819 = vld [vmem:[%s2 + $0x4b8] sm:$0xff]
      %v820 = vld [vmem:[%s2 + $0x4c0] sm:$0xff]
      %v821 = vld [vmem:[%s2 + $0x4c8] sm:$0xff]
      %v822 = vld [vmem:[%s2 + $0x4d0] sm:$0xff]
      %v823 = vld [vmem:[%s2 + $0x4d8] sm:$0xff]
      %v824 = vld [vmem:[%s2 + $0x4e0] sm:$0xff]
      %v825 = vld [vmem:[%s2 + $0x4e8] sm:$0xff]
      %v826 = vld [vmem:[%s2 + $0x4f0] sm:$0xff]
      %v827 = vld [vmem:[%s2 + $0x4f8] sm:$0xff]
      %v828 = vld [vmem:[%s2 + $0x500] sm:$0xff]
      %v829 = vld [vmem:[%s2 + $0x508] sm:$0xff]
      %v830 = vld [vmem:[%s2 + $0x510] sm:$0xff]
      %v831 = vld [vmem:[%s2 + $0x518] sm:$0xff]
      %v832 = vld [vmem:[%s2 + $0x520] sm:$0xff]
      %v833 = vld [vmem:[%s2 + $0x528] sm:$0xff]
      %v834 = vld [vmem:[%s2 + $0x530] sm:$0xff]
      %v835 = vld [vmem:[%s2 + $0x538] sm:$0xff]
      %v836 = vld [vmem:[%s2 + $0x540] sm:$0xff]
      %v837 = vld [vmem:[%s2 + $0x548] sm:$0xff]
      %v838 = vld [vmem:[%s2 + $0x550] sm:$0xff]
      %v839 = vld [vmem:[%s2 + $0x558] sm:$0xff]
      %v840 = vld [vmem:[%s2 + $0x560] sm:$0xff]
      %v841 = vld [vmem:[%s2 + $0x568] sm:$0xff]
      %v842 = vld [vmem:[%s2 + $0x570] sm:$0xff]
      %v843 = vld [vmem:[%s2 + $0x578] sm:$0xff]
      %v844 = vld [vmem:[%s2 + $0x580] sm:$0xff]
      %v845 = vld [vmem:[%s2 + $0x588] sm:$0xff]
      %v846 = vld [vmem:[%s2 + $0x590] sm:$0xff]
      %v847 = vld [vmem:[%s2 + $0x598] sm:$0xff]
      %v848 = vld [vmem:[%s2 + $0x5a0] sm:$0xff]
      %v849 = vld [vmem:[%s2 + $0x5a8] sm:$0xff]
      %v850 = vld [vmem:[%s2 + $0x5b0] sm:$0xff]
      %v851 = vld [vmem:[%s2 + $0x5b8] sm:$0xff]
      %v852 = vld [vmem:[%s2 + $0x5c0] sm:$0xff]
      %v853 = vld [vmem:[%s2 + $0x5c8] sm:$0xff]
      %v854 = vld [vmem:[%s2 + $0x5d0] sm:$0xff]
      %v855 = vld [vmem:[%s2 + $0x5d8] sm:$0xff]
      %v856 = vld [vmem:[%s2 + $0x5e0] sm:$0xff]
      %v857 = vld [vmem:[%s2 + $0x5e8] sm:$0xff]
      %v858 = vld [vmem:[%s2 + $0x5f0] sm:$0xff]
      %v859 = vld [vmem:[%s2 + $0x5f8] sm:$0xff]
      %v860 = vld [vmem:[%s2 + $0x600] sm:$0xff]
      %v861 = vld [vmem:[%s2 + $0x608] sm:$0xff]
      %v862 = vld [vmem:[%s2 + $0x610] sm:$0xff]
      %v863 = vld [vmem:[%s2 + $0x618] sm:$0xff]
      %v864 = vld [vmem:[%s2 + $0x620] sm:$0xff]
      %v865 = vld [vmem:[%s2 + $0x628] sm:$0xff]
      %v866 = vld [vmem:[%s2 + $0x630] sm:$0xff]
      %v867 = vld [vmem:[%s2 + $0x638] sm:$0xff]
      %v868 = vld [vmem:[%s2 + $0x640] sm:$0xff]
      %v869 = vld [vmem:[%s2 + $0x648] sm:$0xff]
      %v870 = vld [vmem:[%s2 + $0x650] sm:$0xff]
      %v871 = vld [vmem:[%s2 + $0x658] sm:$0xff]
      %v872 = vld [vmem:[%s2 + $0x660] sm:$0xff]
      %v873 = vld [vmem:[%s2 + $0x668] sm:$0xff]
      %v874 = vld [vmem:[%s2 + $0x670] sm:$0xff]
      %v875 = vld [vmem:[%s2 + $0x678] sm:$0xff]
      %v876 = vld [vmem:[%s2 + $0x680] sm:$0xff]
      %v877 = vld [vmem:[%s2 + $0x688] sm:$0xff]
      %v878 = vld [vmem:[%s2 + $0x690] sm:$0xff]
      %v879 = vld [vmem:[%s2 + $0x698] sm:$0xff]
      %v880 = vld [vmem:[%s2 + $0x6a0] sm:$0xff]
      %v881 = vld [vmem:[%s2 + $0x6a8] sm:$0xff]
      %v882 = vld [vmem:[%s2 + $0x6b0] sm:$0xff]
      %v883 = vld [vmem:[%s2 + $0x6b8] sm:$0xff]
      %v884 = vld [vmem:[%s2 + $0x6c0] sm:$0xff]
      %v885 = vld [vmem:[%s2 + $0x6c8] sm:$0xff]
      %v886 = vld [vmem:[%s2 + $0x6d0] sm:$0xff]
      %v887 = vld [vmem:[%s2 + $0x6d8] sm:$0xff]
      %v888 = vld [vmem:[%s2 + $0x6e0] sm:$0xff]
      %v889 = vld [vmem:[%s2 + $0x6e8] sm:$0xff]
      %v890 = vld [vmem:[%s2 + $0x6f0] sm:$0xff]
      %v891 = vld [vmem:[%s2 + $0x6f8] sm:$0xff]
      %v892 = vld [vmem:[%s3] sm:$0xf]
      %v894 = vlaneseq
      %v895 = vshrl.u32 %v894, 7
      %v896 = vsub.s32 0, %v895
      %v897 = vrot.slane %v892, %v896
      %v898 = vlaneseq
      %v899 = vshrl.u32 %v898, 7
      %v900 = vsub.s32 1, %v899
      %v901 = vrot.slane %v892, %v900
      %v902 = vlaneseq
      %v903 = vshrl.u32 %v902, 7
      %v904 = vsub.s32 2, %v903
      %v905 = vrot.slane %v892, %v904
      %v906 = vlaneseq
      %v907 = vshrl.u32 %v906, 7
      %v908 = vsub.s32 3, %v907
      %v909 = vrot.slane %v892, %v908
      %v1042 = vunpack.c.l.b16 %v540
      %v1043 = vunpack.c.h.b16 %v540
      %v1044 = vunpack.c.l.b16 %v541
      %v1045 = vunpack.c.h.b16 %v541
      %v1046 = vunpack.c.l.b16 %v542
      %v1047 = vunpack.c.h.b16 %v542
      %v1048 = vunpack.c.l.b16 %v543
      %v1049 = vunpack.c.l.b16 %v544
      %v1050 = vunpack.c.h.b16 %v544
      %v1051 = vunpack.c.l.b16 %v545
      %v1052 = vunpack.c.h.b16 %v545
      %v1053 = vunpack.c.l.b16 %v546
      %v1054 = vunpack.c.h.b16 %v546
      %v1055 = vunpack.c.l.b16 %v547
      %v1056 = vunpack.c.l.b16 %v548
      %v1057 = vunpack.c.h.b16 %v548
      %v1058 = vunpack.c.l.b16 %v549
      %v1059 = vunpack.c.h.b16 %v549
      %v1060 = vunpack.c.l.b16 %v550
      %v1061 = vunpack.c.h.b16 %v550
      %v1062 = vunpack.c.l.b16 %v551
      %v1063 = vunpack.c.l.b16 %v552
      %v1064 = vunpack.c.h.b16 %v552
      %v1065 = vunpack.c.l.b16 %v553
      %v1066 = vunpack.c.h.b16 %v553
      %v1067 = vunpack.c.l.b16 %v554
      %v1068 = vunpack.c.h.b16 %v554
      %v1069 = vunpack.c.l.b16 %v555
      %v1070 = vunpack.c.l.b16 %v556
      %v1071 = vunpack.c.h.b16 %v556
      %v1072 = vunpack.c.l.b16 %v557
      %v1073 = vunpack.c.h.b16 %v557
      %v1074 = vunpack.c.l.b16 %v558
      %v1075 = vunpack.c.h.b16 %v558
      %v1076 = vunpack.c.l.b16 %v559
      %v1077 = vunpack.c.l.b16 %v560
      %v1078 = vunpack.c.h.b16 %v560
      %v1079 = vunpack.c.l.b16 %v561
      %v1080 = vunpack.c.h.b16 %v561
      %v1081 = vunpack.c.l.b16 %v562
      %v1082 = vunpack.c.h.b16 %v562
      %v1083 = vunpack.c.l.b16 %v563
      %v1084 = vunpack.c.l.b16 %v564
      %v1085 = vunpack.c.h.b16 %v564
      %v1086 = vunpack.c.l.b16 %v565
      %v1087 = vunpack.c.h.b16 %v565
      %v1088 = vunpack.c.l.b16 %v566
      %v1089 = vunpack.c.h.b16 %v566
      %v1090 = vunpack.c.l.b16 %v567
      %v1091 = vunpack.c.l.b16 %v568
      %v1092 = vunpack.c.h.b16 %v568
      %v1093 = vunpack.c.l.b16 %v569
      %v1094 = vunpack.c.h.b16 %v569
      %v1095 = vunpack.c.l.b16 %v570
      %v1096 = vunpack.c.h.b16 %v570
      %v1097 = vunpack.c.l.b16 %v571
      %v1098 = vunpack.c.l.b16 %v572
      %v1099 = vunpack.c.h.b16 %v572
      %v1100 = vunpack.c.l.b16 %v573
      %v1101 = vunpack.c.h.b16 %v573
      %v1102 = vunpack.c.l.b16 %v574
      %v1103 = vunpack.c.h.b16 %v574
      %v1104 = vunpack.c.l.b16 %v575
      %v1105 = vunpack.c.l.b16 %v576
      %v1106 = vunpack.c.h.b16 %v576
      %v1107 = vunpack.c.l.b16 %v577
      %v1108 = vunpack.c.h.b16 %v577
      %v1109 = vunpack.c.l.b16 %v578
      %v1110 = vunpack.c.h.b16 %v578
      %v1111 = vunpack.c.l.b16 %v579
      %v1112 = vunpack.c.l.b16 %v580
      %v1113 = vunpack.c.h.b16 %v580
      %v1114 = vunpack.c.l.b16 %v581
      %v1115 = vunpack.c.h.b16 %v581
      %v1116 = vunpack.c.l.b16 %v582
      %v1117 = vunpack.c.h.b16 %v582
      %v1118 = vunpack.c.l.b16 %v583
      %v1119 = vunpack.c.l.b16 %v584
      %v1120 = vunpack.c.h.b16 %v584
      %v1121 = vunpack.c.l.b16 %v585
      %v1122 = vunpack.c.h.b16 %v585
      %v1123 = vunpack.c.l.b16 %v586
      %v1124 = vunpack.c.h.b16 %v586
      %v1125 = vunpack.c.l.b16 %v587
      %v1126 = vunpack.c.l.b16 %v588
      %v1127 = vunpack.c.h.b16 %v588
      %v1128 = vunpack.c.l.b16 %v589
      %v1129 = vunpack.c.h.b16 %v589
      %v1130 = vunpack.c.l.b16 %v590
      %v1131 = vunpack.c.h.b16 %v590
      %v1132 = vunpack.c.l.b16 %v591
      %v1133 = vunpack.c.l.b16 %v592
      %v1134 = vunpack.c.h.b16 %v592
      %v1135 = vunpack.c.l.b16 %v593
      %v1136 = vunpack.c.h.b16 %v593
      %v1137 = vunpack.c.l.b16 %v594
      %v1138 = vunpack.c.h.b16 %v594
      %v1139 = vunpack.c.l.b16 %v595
      %v1140 = vunpack.c.l.b16 %v596
      %v1141 = vunpack.c.h.b16 %v596
      %v1142 = vunpack.c.l.b16 %v597
      %v1143 = vunpack.c.h.b16 %v597
      %v1144 = vunpack.c.l.b16 %v598
      %v1145 = vunpack.c.h.b16 %v598
      %v1146 = vunpack.c.l.b16 %v599
      %v1147 = vunpack.c.l.b16 %v600
      %v1148 = vunpack.c.h.b16 %v600
      %v1149 = vunpack.c.l.b16 %v601
      %v1150 = vunpack.c.h.b16 %v601
      %v1151 = vunpack.c.l.b16 %v602
      %v1152 = vunpack.c.h.b16 %v602
      %v1153 = vunpack.c.l.b16 %v603
      %v1154 = vunpack.c.l.b16 %v604
      %v1155 = vunpack.c.h.b16 %v604
      %v1156 = vunpack.c.l.b16 %v605
      %v1157 = vunpack.c.h.b16 %v605
      %v1158 = vunpack.c.l.b16 %v606
      %v1159 = vunpack.c.h.b16 %v606
      %v1160 = vunpack.c.l.b16 %v607
      %v1161 = vunpack.c.l.b16 %v608
      %v1162 = vunpack.c.h.b16 %v608
      %v1163 = vunpack.c.l.b16 %v609
      %v1164 = vunpack.c.h.b16 %v609
      %v1165 = vunpack.c.l.b16 %v610
      %v1166 = vunpack.c.h.b16 %v610
      %v1167 = vunpack.c.l.b16 %v611
      %v1168 = vunpack.c.l.b16 %v612
      %v1169 = vunpack.c.h.b16 %v612
      %v1170 = vunpack.c.l.b16 %v613
      %v1171 = vunpack.c.h.b16 %v613
      %v1172 = vunpack.c.l.b16 %v614
      %v1173 = vunpack.c.h.b16 %v614
      %v1174 = vunpack.c.l.b16 %v615
      %v1175 = vunpack.c.l.b16 %v616
      %v1176 = vunpack.c.h.b16 %v616
      %v1177 = vunpack.c.l.b16 %v617
      %v1178 = vunpack.c.h.b16 %v617
      %v1179 = vunpack.c.l.b16 %v618
      %v1180 = vunpack.c.h.b16 %v618
      %v1181 = vunpack.c.l.b16 %v619
      %v1182 = vunpack.c.l.b16 %v620
      %v1183 = vunpack.c.h.b16 %v620
      %v1184 = vunpack.c.l.b16 %v621
      %v1185 = vunpack.c.h.b16 %v621
      %v1186 = vunpack.c.l.b16 %v622
      %v1187 = vunpack.c.h.b16 %v622
      %v1188 = vunpack.c.l.b16 %v623
      %v1189 = vunpack.c.l.b16 %v624
      %v1190 = vunpack.c.h.b16 %v624
      %v1191 = vunpack.c.l.b16 %v625
      %v1192 = vunpack.c.h.b16 %v625
      %v1193 = vunpack.c.l.b16 %v626
      %v1194 = vunpack.c.h.b16 %v626
      %v1195 = vunpack.c.l.b16 %v627
      %v1196 = vunpack.c.l.b16 %v628
      %v1197 = vunpack.c.h.b16 %v628
      %v1198 = vunpack.c.l.b16 %v629
      %v1199 = vunpack.c.h.b16 %v629
      %v1200 = vunpack.c.l.b16 %v630
      %v1201 = vunpack.c.h.b16 %v630
      %v1202 = vunpack.c.l.b16 %v631
      %v1203 = vunpack.c.l.b16 %v632
      %v1204 = vunpack.c.h.b16 %v632
      %v1205 = vunpack.c.l.b16 %v633
      %v1206 = vunpack.c.h.b16 %v633
      %v1207 = vunpack.c.l.b16 %v634
      %v1208 = vunpack.c.h.b16 %v634
      %v1209 = vunpack.c.l.b16 %v635
      %v1210 = vunpack.c.l.b16 %v636
      %v1211 = vunpack.c.h.b16 %v636
      %v1212 = vunpack.c.l.b16 %v637
      %v1213 = vunpack.c.h.b16 %v637
      %v1214 = vunpack.c.l.b16 %v638
      %v1215 = vunpack.c.h.b16 %v638
      %v1216 = vunpack.c.l.b16 %v639
      %v1217 = vunpack.c.l.b16 %v640
      %v1218 = vunpack.c.h.b16 %v640
      %v1219 = vunpack.c.l.b16 %v641
      %v1220 = vunpack.c.h.b16 %v641
      %v1221 = vunpack.c.l.b16 %v642
      %v1222 = vunpack.c.h.b16 %v642
      %v1223 = vunpack.c.l.b16 %v643
      %v1224 = vunpack.c.l.b16 %v644
      %v1225 = vunpack.c.h.b16 %v644
      %v1226 = vunpack.c.l.b16 %v645
      %v1227 = vunpack.c.h.b16 %v645
      %v1228 = vunpack.c.l.b16 %v646
      %v1229 = vunpack.c.h.b16 %v646
      %v1230 = vunpack.c.l.b16 %v647
      %v1231 = vunpack.c.l.b16 %v648
      %v1232 = vunpack.c.h.b16 %v648
      %v1233 = vunpack.c.l.b16 %v649
      %v1234 = vunpack.c.h.b16 %v649
      %v1235 = vunpack.c.l.b16 %v650
      %v1236 = vunpack.c.h.b16 %v650
      %v1237 = vunpack.c.l.b16 %v651
      %v1238 = vunpack.c.l.b16 %v652
      %v1239 = vunpack.c.h.b16 %v652
      %v1240 = vunpack.c.l.b16 %v653
      %v1241 = vunpack.c.h.b16 %v653
      %v1242 = vunpack.c.l.b16 %v654
      %v1243 = vunpack.c.h.b16 %v654
      %v1244 = vunpack.c.l.b16 %v655
      %v1245 = vunpack.c.l.b16 %v656
      %v1246 = vunpack.c.h.b16 %v656
      %v1247 = vunpack.c.l.b16 %v657
      %v1248 = vunpack.c.h.b16 %v657
      %v1249 = vunpack.c.l.b16 %v658
      %v1250 = vunpack.c.h.b16 %v658
      %v1251 = vunpack.c.l.b16 %v659
      %v1252 = vunpack.c.l.b16 %v660
      %v1253 = vunpack.c.h.b16 %v660
      %v1254 = vunpack.c.l.b16 %v661
      %v1255 = vunpack.c.h.b16 %v661
      %v1256 = vunpack.c.l.b16 %v662
      %v1257 = vunpack.c.h.b16 %v662
      %v1258 = vunpack.c.l.b16 %v663
      %v1259 = vunpack.c.l.b16 %v664
      %v1260 = vunpack.c.h.b16 %v664
      %v1261 = vunpack.c.l.b16 %v665
      %v1262 = vunpack.c.h.b16 %v665
      %v1263 = vunpack.c.l.b16 %v666
      %v1264 = vunpack.c.h.b16 %v666
      %v1265 = vunpack.c.l.b16 %v667
      %v1266 = vpack.c.b16 %v1049, %v1042
      %v1267 = vpack.c.b16 %v1050, %v1043
      %v1268 = vpack.c.b16 %v1051, %v1044
      %v1269 = vpack.c.b16 %v1052, %v1045
      %v1270 = vpack.c.b16 %v1053, %v1046
      %v1271 = vpack.c.b16 %v1054, %v1047
      %v1272 = vpack.c.b16 %v1055, %v1048
      %v1273 = vpack.c.b16 %v1063, %v1056
      %v1274 = vpack.c.b16 %v1064, %v1057
      %v1275 = vpack.c.b16 %v1065, %v1058
      %v1276 = vpack.c.b16 %v1066, %v1059
      %v1277 = vpack.c.b16 %v1067, %v1060
      %v1278 = vpack.c.b16 %v1068, %v1061
      %v1279 = vpack.c.b16 %v1069, %v1062
      %v1280 = vpack.c.b16 %v1077, %v1070
      %v1281 = vpack.c.b16 %v1078, %v1071
      %v1282 = vpack.c.b16 %v1079, %v1072
      %v1283 = vpack.c.b16 %v1080, %v1073
      %v1284 = vpack.c.b16 %v1081, %v1074
      %v1285 = vpack.c.b16 %v1082, %v1075
      %v1286 = vpack.c.b16 %v1083, %v1076
      %v1287 = vpack.c.b16 %v1091, %v1084
      %v1288 = vpack.c.b16 %v1092, %v1085
      %v1289 = vpack.c.b16 %v1093, %v1086
      %v1290 = vpack.c.b16 %v1094, %v1087
      %v1291 = vpack.c.b16 %v1095, %v1088
      %v1292 = vpack.c.b16 %v1096, %v1089
      %v1293 = vpack.c.b16 %v1097, %v1090
      %v1294 = vpack.c.b16 %v1105, %v1098
      %v1295 = vpack.c.b16 %v1106, %v1099
      %v1296 = vpack.c.b16 %v1107, %v1100
      %v1297 = vpack.c.b16 %v1108, %v1101
      %v1298 = vpack.c.b16 %v1109, %v1102
      %v1299 = vpack.c.b16 %v1110, %v1103
      %v1300 = vpack.c.b16 %v1111, %v1104
      %v1301 = vpack.c.b16 %v1119, %v1112
      %v1302 = vpack.c.b16 %v1120, %v1113
      %v1303 = vpack.c.b16 %v1121, %v1114
      %v1304 = vpack.c.b16 %v1122, %v1115
      %v1305 = vpack.c.b16 %v1123, %v1116
      %v1306 = vpack.c.b16 %v1124, %v1117
      %v1307 = vpack.c.b16 %v1125, %v1118
      %v1308 = vpack.c.b16 %v1133, %v1126
      %v1309 = vpack.c.b16 %v1134, %v1127
      %v1310 = vpack.c.b16 %v1135, %v1128
      %v1311 = vpack.c.b16 %v1136, %v1129
      %v1312 = vpack.c.b16 %v1137, %v1130
      %v1313 = vpack.c.b16 %v1138, %v1131
      %v1314 = vpack.c.b16 %v1139, %v1132
      %v1315 = vpack.c.b16 %v1147, %v1140
      %v1316 = vpack.c.b16 %v1148, %v1141
      %v1317 = vpack.c.b16 %v1149, %v1142
      %v1318 = vpack.c.b16 %v1150, %v1143
      %v1319 = vpack.c.b16 %v1151, %v1144
      %v1320 = vpack.c.b16 %v1152, %v1145
      %v1321 = vpack.c.b16 %v1153, %v1146
      %v1322 = vpack.c.b16 %v1161, %v1154
      %v1323 = vpack.c.b16 %v1162, %v1155
      %v1324 = vpack.c.b16 %v1163, %v1156
      %v1325 = vpack.c.b16 %v1164, %v1157
      %v1326 = vpack.c.b16 %v1165, %v1158
      %v1327 = vpack.c.b16 %v1166, %v1159
      %v1328 = vpack.c.b16 %v1167, %v1160
      %v1329 = vpack.c.b16 %v1175, %v1168
      %v1330 = vpack.c.b16 %v1176, %v1169
      %v1331 = vpack.c.b16 %v1177, %v1170
      %v1332 = vpack.c.b16 %v1178, %v1171
      %v1333 = vpack.c.b16 %v1179, %v1172
      %v1334 = vpack.c.b16 %v1180, %v1173
      %v1335 = vpack.c.b16 %v1181, %v1174
      %v1336 = vpack.c.b16 %v1189, %v1182
      %v1337 = vpack.c.b16 %v1190, %v1183
      %v1338 = vpack.c.b16 %v1191, %v1184
      %v1339 = vpack.c.b16 %v1192, %v1185
      %v1340 = vpack.c.b16 %v1193, %v1186
      %v1341 = vpack.c.b16 %v1194, %v1187
      %v1342 = vpack.c.b16 %v1195, %v1188
      %v1343 = vpack.c.b16 %v1203, %v1196
      %v1344 = vpack.c.b16 %v1204, %v1197
      %v1345 = vpack.c.b16 %v1205, %v1198
      %v1346 = vpack.c.b16 %v1206, %v1199
      %v1347 = vpack.c.b16 %v1207, %v1200
      %v1348 = vpack.c.b16 %v1208, %v1201
      %v1349 = vpack.c.b16 %v1209, %v1202
      %v1350 = vpack.c.b16 %v1217, %v1210
      %v1351 = vpack.c.b16 %v1218, %v1211
      %v1352 = vpack.c.b16 %v1219, %v1212
      %v1353 = vpack.c.b16 %v1220, %v1213
      %v1354 = vpack.c.b16 %v1221, %v1214
      %v1355 = vpack.c.b16 %v1222, %v1215
      %v1356 = vpack.c.b16 %v1223, %v1216
      %v1357 = vpack.c.b16 %v1231, %v1224
      %v1358 = vpack.c.b16 %v1232, %v1225
      %v1359 = vpack.c.b16 %v1233, %v1226
      %v1360 = vpack.c.b16 %v1234, %v1227
      %v1361 = vpack.c.b16 %v1235, %v1228
      %v1362 = vpack.c.b16 %v1236, %v1229
      %v1363 = vpack.c.b16 %v1237, %v1230
      %v1364 = vpack.c.b16 %v1245, %v1238
      %v1365 = vpack.c.b16 %v1246, %v1239
      %v1366 = vpack.c.b16 %v1247, %v1240
      %v1367 = vpack.c.b16 %v1248, %v1241
      %v1368 = vpack.c.b16 %v1249, %v1242
      %v1369 = vpack.c.b16 %v1250, %v1243
      %v1370 = vpack.c.b16 %v1251, %v1244
      %v1371 = vpack.c.b16 %v1259, %v1252
      %v1372 = vpack.c.b16 %v1260, %v1253
      %v1373 = vpack.c.b16 %v1261, %v1254
      %v1374 = vpack.c.b16 %v1262, %v1255
      %v1375 = vpack.c.b16 %v1263, %v1256
      %v1376 = vpack.c.b16 %v1264, %v1257
      %v1377 = vpack.c.b16 %v1265, %v1258
      %v1714 = vunpack.c.l.b16 %v668
      %v1715 = vunpack.c.h.b16 %v668
      %v1716 = vunpack.c.l.b16 %v669
      %v1717 = vunpack.c.h.b16 %v669
      %v1718 = vunpack.c.l.b16 %v670
      %v1719 = vunpack.c.h.b16 %v670
      %v1720 = vunpack.c.l.b16 %v671
      %v1721 = vunpack.c.h.b16 %v671
      %v1722 = vunpack.c.l.b16 %v672
      %v1723 = vunpack.c.h.b16 %v672
      %v1724 = vunpack.c.l.b16 %v673
      %v1725 = vunpack.c.h.b16 %v673
      %v1726 = vunpack.c.l.b16 %v674
      %v1727 = vunpack.c.h.b16 %v674
      %v1728 = vunpack.c.l.b16 %v675
      %v1729 = vunpack.c.h.b16 %v675
      %v1730 = vunpack.c.l.b16 %v676
      %v1731 = vunpack.c.h.b16 %v676
      %v1732 = vunpack.c.l.b16 %v677
      %v1733 = vunpack.c.h.b16 %v677
      %v1734 = vunpack.c.l.b16 %v678
      %v1735 = vunpack.c.h.b16 %v678
      %v1736 = vunpack.c.l.b16 %v679
      %v1737 = vunpack.c.h.b16 %v679
      %v1738 = vunpack.c.l.b16 %v680
      %v1739 = vunpack.c.h.b16 %v680
      %v1740 = vunpack.c.l.b16 %v681
      %v1741 = vunpack.c.h.b16 %v681
      %v1742 = vunpack.c.l.b16 %v682
      %v1743 = vunpack.c.h.b16 %v682
      %v1744 = vunpack.c.l.b16 %v683
      %v1745 = vunpack.c.h.b16 %v683
      %v1746 = vunpack.c.l.b16 %v684
      %v1747 = vunpack.c.h.b16 %v684
      %v1748 = vunpack.c.l.b16 %v685
      %v1749 = vunpack.c.h.b16 %v685
      %v1750 = vunpack.c.l.b16 %v686
      %v1751 = vunpack.c.h.b16 %v686
      %v1752 = vunpack.c.l.b16 %v687
      %v1753 = vunpack.c.h.b16 %v687
      %v1754 = vunpack.c.l.b16 %v688
      %v1755 = vunpack.c.h.b16 %v688
      %v1756 = vunpack.c.l.b16 %v689
      %v1757 = vunpack.c.h.b16 %v689
      %v1758 = vunpack.c.l.b16 %v690
      %v1759 = vunpack.c.h.b16 %v690
      %v1760 = vunpack.c.l.b16 %v691
      %v1761 = vunpack.c.h.b16 %v691
      %v1762 = vunpack.c.l.b16 %v692
      %v1763 = vunpack.c.h.b16 %v692
      %v1764 = vunpack.c.l.b16 %v693
      %v1765 = vunpack.c.h.b16 %v693
      %v1766 = vunpack.c.l.b16 %v694
      %v1767 = vunpack.c.h.b16 %v694
      %v1768 = vunpack.c.l.b16 %v695
      %v1769 = vunpack.c.h.b16 %v695
      %v1770 = vunpack.c.l.b16 %v696
      %v1771 = vunpack.c.h.b16 %v696
      %v1772 = vunpack.c.l.b16 %v697
      %v1773 = vunpack.c.h.b16 %v697
      %v1774 = vunpack.c.l.b16 %v698
      %v1775 = vunpack.c.h.b16 %v698
      %v1776 = vunpack.c.l.b16 %v699
      %v1777 = vunpack.c.h.b16 %v699
      %v1778 = vunpack.c.l.b16 %v700
      %v1779 = vunpack.c.h.b16 %v700
      %v1780 = vunpack.c.l.b16 %v701
      %v1781 = vunpack.c.h.b16 %v701
      %v1782 = vunpack.c.l.b16 %v702
      %v1783 = vunpack.c.h.b16 %v702
      %v1784 = vunpack.c.l.b16 %v703
      %v1785 = vunpack.c.h.b16 %v703
      %v1786 = vunpack.c.l.b16 %v704
      %v1787 = vunpack.c.h.b16 %v704
      %v1788 = vunpack.c.l.b16 %v705
      %v1789 = vunpack.c.h.b16 %v705
      %v1790 = vunpack.c.l.b16 %v706
      %v1791 = vunpack.c.h.b16 %v706
      %v1792 = vunpack.c.l.b16 %v707
      %v1793 = vunpack.c.h.b16 %v707
      %v1794 = vunpack.c.l.b16 %v708
      %v1795 = vunpack.c.h.b16 %v708
      %v1796 = vunpack.c.l.b16 %v709
      %v1797 = vunpack.c.h.b16 %v709
      %v1798 = vunpack.c.l.b16 %v710
      %v1799 = vunpack.c.h.b16 %v710
      %v1800 = vunpack.c.l.b16 %v711
      %v1801 = vunpack.c.h.b16 %v711
      %v1802 = vunpack.c.l.b16 %v712
      %v1803 = vunpack.c.h.b16 %v712
      %v1804 = vunpack.c.l.b16 %v713
      %v1805 = vunpack.c.h.b16 %v713
      %v1806 = vunpack.c.l.b16 %v714
      %v1807 = vunpack.c.h.b16 %v714
      %v1808 = vunpack.c.l.b16 %v715
      %v1809 = vunpack.c.h.b16 %v715
      %v1810 = vunpack.c.l.b16 %v716
      %v1811 = vunpack.c.h.b16 %v716
      %v1812 = vunpack.c.l.b16 %v717
      %v1813 = vunpack.c.h.b16 %v717
      %v1814 = vunpack.c.l.b16 %v718
      %v1815 = vunpack.c.h.b16 %v718
      %v1816 = vunpack.c.l.b16 %v719
      %v1817 = vunpack.c.h.b16 %v719
      %v1818 = vunpack.c.l.b16 %v720
      %v1819 = vunpack.c.h.b16 %v720
      %v1820 = vunpack.c.l.b16 %v721
      %v1821 = vunpack.c.h.b16 %v721
      %v1822 = vunpack.c.l.b16 %v722
      %v1823 = vunpack.c.h.b16 %v722
      %v1824 = vunpack.c.l.b16 %v723
      %v1825 = vunpack.c.h.b16 %v723
      %v1826 = vunpack.c.l.b16 %v724
      %v1827 = vunpack.c.h.b16 %v724
      %v1828 = vunpack.c.l.b16 %v725
      %v1829 = vunpack.c.h.b16 %v725
      %v1830 = vunpack.c.l.b16 %v726
      %v1831 = vunpack.c.h.b16 %v726
      %v1832 = vunpack.c.l.b16 %v727
      %v1833 = vunpack.c.h.b16 %v727
      %v1834 = vunpack.c.l.b16 %v728
      %v1835 = vunpack.c.h.b16 %v728
      %v1836 = vunpack.c.l.b16 %v729
      %v1837 = vunpack.c.h.b16 %v729
      %v1838 = vunpack.c.l.b16 %v730
      %v1839 = vunpack.c.h.b16 %v730
      %v1840 = vunpack.c.l.b16 %v731
      %v1841 = vunpack.c.h.b16 %v731
      %v1842 = vunpack.c.l.b16 %v732
      %v1843 = vunpack.c.h.b16 %v732
      %v1844 = vunpack.c.l.b16 %v733
      %v1845 = vunpack.c.h.b16 %v733
      %v1846 = vunpack.c.l.b16 %v734
      %v1847 = vunpack.c.h.b16 %v734
      %v1848 = vunpack.c.l.b16 %v735
      %v1849 = vunpack.c.h.b16 %v735
      %v1850 = vunpack.c.l.b16 %v736
      %v1851 = vunpack.c.h.b16 %v736
      %v1852 = vunpack.c.l.b16 %v737
      %v1853 = vunpack.c.h.b16 %v737
      %v1854 = vunpack.c.l.b16 %v738
      %v1855 = vunpack.c.h.b16 %v738
      %v1856 = vunpack.c.l.b16 %v739
      %v1857 = vunpack.c.h.b16 %v739
      %v1858 = vunpack.c.l.b16 %v740
      %v1859 = vunpack.c.h.b16 %v740
      %v1860 = vunpack.c.l.b16 %v741
      %v1861 = vunpack.c.h.b16 %v741
      %v1862 = vunpack.c.l.b16 %v742
      %v1863 = vunpack.c.h.b16 %v742
      %v1864 = vunpack.c.l.b16 %v743
      %v1865 = vunpack.c.h.b16 %v743
      %v1866 = vunpack.c.l.b16 %v744
      %v1867 = vunpack.c.h.b16 %v744
      %v1868 = vunpack.c.l.b16 %v745
      %v1869 = vunpack.c.h.b16 %v745
      %v1870 = vunpack.c.l.b16 %v746
      %v1871 = vunpack.c.h.b16 %v746
      %v1872 = vunpack.c.l.b16 %v747
      %v1873 = vunpack.c.h.b16 %v747
      %v1874 = vunpack.c.l.b16 %v748
      %v1875 = vunpack.c.h.b16 %v748
      %v1876 = vunpack.c.l.b16 %v749
      %v1877 = vunpack.c.h.b16 %v749
      %v1878 = vunpack.c.l.b16 %v750
      %v1879 = vunpack.c.h.b16 %v750
      %v1880 = vunpack.c.l.b16 %v751
      %v1881 = vunpack.c.h.b16 %v751
      %v1882 = vunpack.c.l.b16 %v752
      %v1883 = vunpack.c.h.b16 %v752
      %v1884 = vunpack.c.l.b16 %v753
      %v1885 = vunpack.c.h.b16 %v753
      %v1886 = vunpack.c.l.b16 %v754
      %v1887 = vunpack.c.h.b16 %v754
      %v1888 = vunpack.c.l.b16 %v755
      %v1889 = vunpack.c.h.b16 %v755
      %v1890 = vunpack.c.l.b16 %v756
      %v1891 = vunpack.c.h.b16 %v756
      %v1892 = vunpack.c.l.b16 %v757
      %v1893 = vunpack.c.h.b16 %v757
      %v1894 = vunpack.c.l.b16 %v758
      %v1895 = vunpack.c.h.b16 %v758
      %v1896 = vunpack.c.l.b16 %v759
      %v1897 = vunpack.c.h.b16 %v759
      %v1898 = vunpack.c.l.b16 %v760
      %v1899 = vunpack.c.h.b16 %v760
      %v1900 = vunpack.c.l.b16 %v761
      %v1901 = vunpack.c.h.b16 %v761
      %v1902 = vunpack.c.l.b16 %v762
      %v1903 = vunpack.c.h.b16 %v762
      %v1904 = vunpack.c.l.b16 %v763
      %v1905 = vunpack.c.h.b16 %v763
      %v1906 = vunpack.c.l.b16 %v764
      %v1907 = vunpack.c.h.b16 %v764
      %v1908 = vunpack.c.l.b16 %v765
      %v1909 = vunpack.c.h.b16 %v765
      %v1910 = vunpack.c.l.b16 %v766
      %v1911 = vunpack.c.h.b16 %v766
      %v1912 = vunpack.c.l.b16 %v767
      %v1913 = vunpack.c.h.b16 %v767
      %v1914 = vunpack.c.l.b16 %v768
      %v1915 = vunpack.c.h.b16 %v768
      %v1916 = vunpack.c.l.b16 %v769
      %v1917 = vunpack.c.h.b16 %v769
      %v1918 = vunpack.c.l.b16 %v770
      %v1919 = vunpack.c.h.b16 %v770
      %v1920 = vunpack.c.l.b16 %v771
      %v1921 = vunpack.c.h.b16 %v771
      %v1922 = vunpack.c.l.b16 %v772
      %v1923 = vunpack.c.h.b16 %v772
      %v1924 = vunpack.c.l.b16 %v773
      %v1925 = vunpack.c.h.b16 %v773
      %v1926 = vunpack.c.l.b16 %v774
      %v1927 = vunpack.c.h.b16 %v774
      %v1928 = vunpack.c.l.b16 %v775
      %v1929 = vunpack.c.h.b16 %v775
      %v1930 = vunpack.c.l.b16 %v776
      %v1931 = vunpack.c.h.b16 %v776
      %v1932 = vunpack.c.l.b16 %v777
      %v1933 = vunpack.c.h.b16 %v777
      %v1934 = vunpack.c.l.b16 %v778
      %v1935 = vunpack.c.h.b16 %v778
      %v1936 = vunpack.c.l.b16 %v779
      %v1937 = vunpack.c.h.b16 %v779
      %v1938 = vunpack.c.l.b16 %v780
      %v1939 = vunpack.c.h.b16 %v780
      %v1940 = vunpack.c.l.b16 %v781
      %v1941 = vunpack.c.h.b16 %v781
      %v1942 = vunpack.c.l.b16 %v782
      %v1943 = vunpack.c.h.b16 %v782
      %v1944 = vunpack.c.l.b16 %v783
      %v1945 = vunpack.c.h.b16 %v783
      %v1946 = vunpack.c.l.b16 %v784
      %v1947 = vunpack.c.h.b16 %v784
      %v1948 = vunpack.c.l.b16 %v785
      %v1949 = vunpack.c.h.b16 %v785
      %v1950 = vunpack.c.l.b16 %v786
      %v1951 = vunpack.c.h.b16 %v786
      %v1952 = vunpack.c.l.b16 %v787
      %v1953 = vunpack.c.h.b16 %v787
      %v1954 = vunpack.c.l.b16 %v788
      %v1955 = vunpack.c.h.b16 %v788
      %v1956 = vunpack.c.l.b16 %v789
      %v1957 = vunpack.c.h.b16 %v789
      %v1958 = vunpack.c.l.b16 %v790
      %v1959 = vunpack.c.h.b16 %v790
      %v1960 = vunpack.c.l.b16 %v791
      %v1961 = vunpack.c.h.b16 %v791
      %v1962 = vunpack.c.l.b16 %v792
      %v1963 = vunpack.c.h.b16 %v792
      %v1964 = vunpack.c.l.b16 %v793
      %v1965 = vunpack.c.h.b16 %v793
      %v1966 = vunpack.c.l.b16 %v794
      %v1967 = vunpack.c.h.b16 %v794
      %v1968 = vunpack.c.l.b16 %v795
      %v1969 = vunpack.c.h.b16 %v795
      %v1970 = vunpack.c.l.b16 %v796
      %v1971 = vunpack.c.h.b16 %v796
      %v1972 = vunpack.c.l.b16 %v797
      %v1973 = vunpack.c.h.b16 %v797
      %v1974 = vunpack.c.l.b16 %v798
      %v1975 = vunpack.c.h.b16 %v798
      %v1976 = vunpack.c.l.b16 %v799
      %v1977 = vunpack.c.h.b16 %v799
      %v1978 = vunpack.c.l.b16 %v800
      %v1979 = vunpack.c.h.b16 %v800
      %v1980 = vunpack.c.l.b16 %v801
      %v1981 = vunpack.c.h.b16 %v801
      %v1982 = vunpack.c.l.b16 %v802
      %v1983 = vunpack.c.h.b16 %v802
      %v1984 = vunpack.c.l.b16 %v803
      %v1985 = vunpack.c.h.b16 %v803
      %v1986 = vunpack.c.l.b16 %v804
      %v1987 = vunpack.c.h.b16 %v804
      %v1988 = vunpack.c.l.b16 %v805
      %v1989 = vunpack.c.h.b16 %v805
      %v1990 = vunpack.c.l.b16 %v806
      %v1991 = vunpack.c.h.b16 %v806
      %v1992 = vunpack.c.l.b16 %v807
      %v1993 = vunpack.c.h.b16 %v807
      %v1994 = vunpack.c.l.b16 %v808
      %v1995 = vunpack.c.h.b16 %v808
      %v1996 = vunpack.c.l.b16 %v809
      %v1997 = vunpack.c.h.b16 %v809
      %v1998 = vunpack.c.l.b16 %v810
      %v1999 = vunpack.c.h.b16 %v810
      %v2000 = vunpack.c.l.b16 %v811
      %v2001 = vunpack.c.h.b16 %v811
      %v2002 = vunpack.c.l.b16 %v812
      %v2003 = vunpack.c.h.b16 %v812
      %v2004 = vunpack.c.l.b16 %v813
      %v2005 = vunpack.c.h.b16 %v813
      %v2006 = vunpack.c.l.b16 %v814
      %v2007 = vunpack.c.h.b16 %v814
      %v2008 = vunpack.c.l.b16 %v815
      %v2009 = vunpack.c.h.b16 %v815
      %v2010 = vunpack.c.l.b16 %v816
      %v2011 = vunpack.c.h.b16 %v816
      %v2012 = vunpack.c.l.b16 %v817
      %v2013 = vunpack.c.h.b16 %v817
      %v2014 = vunpack.c.l.b16 %v818
      %v2015 = vunpack.c.h.b16 %v818
      %v2016 = vunpack.c.l.b16 %v819
      %v2017 = vunpack.c.h.b16 %v819
      %v2018 = vunpack.c.l.b16 %v820
      %v2019 = vunpack.c.h.b16 %v820
      %v2020 = vunpack.c.l.b16 %v821
      %v2021 = vunpack.c.h.b16 %v821
      %v2022 = vunpack.c.l.b16 %v822
      %v2023 = vunpack.c.h.b16 %v822
      %v2024 = vunpack.c.l.b16 %v823
      %v2025 = vunpack.c.h.b16 %v823
      %v2026 = vunpack.c.l.b16 %v824
      %v2027 = vunpack.c.h.b16 %v824
      %v2028 = vunpack.c.l.b16 %v825
      %v2029 = vunpack.c.h.b16 %v825
      %v2030 = vunpack.c.l.b16 %v826
      %v2031 = vunpack.c.h.b16 %v826
      %v2032 = vunpack.c.l.b16 %v827
      %v2033 = vunpack.c.h.b16 %v827
      %v2034 = vunpack.c.l.b16 %v828
      %v2035 = vunpack.c.h.b16 %v828
      %v2036 = vunpack.c.l.b16 %v829
      %v2037 = vunpack.c.h.b16 %v829
      %v2038 = vunpack.c.l.b16 %v830
      %v2039 = vunpack.c.h.b16 %v830
      %v2040 = vunpack.c.l.b16 %v831
      %v2041 = vunpack.c.h.b16 %v831
      %v2042 = vunpack.c.l.b16 %v832
      %v2043 = vunpack.c.h.b16 %v832
      %v2044 = vunpack.c.l.b16 %v833
      %v2045 = vunpack.c.h.b16 %v833
      %v2046 = vunpack.c.l.b16 %v834
      %v2047 = vunpack.c.h.b16 %v834
      %v2048 = vunpack.c.l.b16 %v835
      %v2049 = vunpack.c.h.b16 %v835
      %v2050 = vunpack.c.l.b16 %v836
      %v2051 = vunpack.c.h.b16 %v836
      %v2052 = vunpack.c.l.b16 %v837
      %v2053 = vunpack.c.h.b16 %v837
      %v2054 = vunpack.c.l.b16 %v838
      %v2055 = vunpack.c.h.b16 %v838
      %v2056 = vunpack.c.l.b16 %v839
      %v2057 = vunpack.c.h.b16 %v839
      %v2058 = vunpack.c.l.b16 %v840
      %v2059 = vunpack.c.h.b16 %v840
      %v2060 = vunpack.c.l.b16 %v841
      %v2061 = vunpack.c.h.b16 %v841
      %v2062 = vunpack.c.l.b16 %v842
      %v2063 = vunpack.c.h.b16 %v842
      %v2064 = vunpack.c.l.b16 %v843
      %v2065 = vunpack.c.h.b16 %v843
      %v2066 = vunpack.c.l.b16 %v844
      %v2067 = vunpack.c.h.b16 %v844
      %v2068 = vunpack.c.l.b16 %v845
      %v2069 = vunpack.c.h.b16 %v845
      %v2070 = vunpack.c.l.b16 %v846
      %v2071 = vunpack.c.h.b16 %v846
      %v2072 = vunpack.c.l.b16 %v847
      %v2073 = vunpack.c.h.b16 %v847
      %v2074 = vunpack.c.l.b16 %v848
      %v2075 = vunpack.c.h.b16 %v848
      %v2076 = vunpack.c.l.b16 %v849
      %v2077 = vunpack.c.h.b16 %v849
      %v2078 = vunpack.c.l.b16 %v850
      %v2079 = vunpack.c.h.b16 %v850
      %v2080 = vunpack.c.l.b16 %v851
      %v2081 = vunpack.c.h.b16 %v851
      %v2082 = vunpack.c.l.b16 %v852
      %v2083 = vunpack.c.h.b16 %v852
      %v2084 = vunpack.c.l.b16 %v853
      %v2085 = vunpack.c.h.b16 %v853
      %v2086 = vunpack.c.l.b16 %v854
      %v2087 = vunpack.c.h.b16 %v854
      %v2088 = vunpack.c.l.b16 %v855
      %v2089 = vunpack.c.h.b16 %v855
      %v2090 = vunpack.c.l.b16 %v856
      %v2091 = vunpack.c.h.b16 %v856
      %v2092 = vunpack.c.l.b16 %v857
      %v2093 = vunpack.c.h.b16 %v857
      %v2094 = vunpack.c.l.b16 %v858
      %v2095 = vunpack.c.h.b16 %v858
      %v2096 = vunpack.c.l.b16 %v859
      %v2097 = vunpack.c.h.b16 %v859
      %v2098 = vunpack.c.l.b16 %v860
      %v2099 = vunpack.c.h.b16 %v860
      %v2100 = vunpack.c.l.b16 %v861
      %v2101 = vunpack.c.h.b16 %v861
      %v2102 = vunpack.c.l.b16 %v862
      %v2103 = vunpack.c.h.b16 %v862
      %v2104 = vunpack.c.l.b16 %v863
      %v2105 = vunpack.c.h.b16 %v863
      %v2106 = vunpack.c.l.b16 %v864
      %v2107 = vunpack.c.h.b16 %v864
      %v2108 = vunpack.c.l.b16 %v865
      %v2109 = vunpack.c.h.b16 %v865
      %v2110 = vunpack.c.l.b16 %v866
      %v2111 = vunpack.c.h.b16 %v866
      %v2112 = vunpack.c.l.b16 %v867
      %v2113 = vunpack.c.h.b16 %v867
      %v2114 = vunpack.c.l.b16 %v868
      %v2115 = vunpack.c.h.b16 %v868
      %v2116 = vunpack.c.l.b16 %v869
      %v2117 = vunpack.c.h.b16 %v869
      %v2118 = vunpack.c.l.b16 %v870
      %v2119 = vunpack.c.h.b16 %v870
      %v2120 = vunpack.c.l.b16 %v871
      %v2121 = vunpack.c.h.b16 %v871
      %v2122 = vunpack.c.l.b16 %v872
      %v2123 = vunpack.c.h.b16 %v872
      %v2124 = vunpack.c.l.b16 %v873
      %v2125 = vunpack.c.h.b16 %v873
      %v2126 = vunpack.c.l.b16 %v874
      %v2127 = vunpack.c.h.b16 %v874
      %v2128 = vunpack.c.l.b16 %v875
      %v2129 = vunpack.c.h.b16 %v875
      %v2130 = vunpack.c.l.b16 %v876
      %v2131 = vunpack.c.h.b16 %v876
      %v2132 = vunpack.c.l.b16 %v877
      %v2133 = vunpack.c.h.b16 %v877
      %v2134 = vunpack.c.l.b16 %v878
      %v2135 = vunpack.c.h.b16 %v878
      %v2136 = vunpack.c.l.b16 %v879
      %v2137 = vunpack.c.h.b16 %v879
      %v2138 = vunpack.c.l.b16 %v880
      %v2139 = vunpack.c.h.b16 %v880
      %v2140 = vunpack.c.l.b16 %v881
      %v2141 = vunpack.c.h.b16 %v881
      %v2142 = vunpack.c.l.b16 %v882
      %v2143 = vunpack.c.h.b16 %v882
      %v2144 = vunpack.c.l.b16 %v883
      %v2145 = vunpack.c.h.b16 %v883
      %v2146 = vunpack.c.l.b16 %v884
      %v2147 = vunpack.c.h.b16 %v884
      %v2148 = vunpack.c.l.b16 %v885
      %v2149 = vunpack.c.h.b16 %v885
      %v2150 = vunpack.c.l.b16 %v886
      %v2151 = vunpack.c.h.b16 %v886
      %v2152 = vunpack.c.l.b16 %v887
      %v2153 = vunpack.c.h.b16 %v887
      %v2154 = vunpack.c.l.b16 %v888
      %v2155 = vunpack.c.h.b16 %v888
      %v2156 = vunpack.c.l.b16 %v889
      %v2157 = vunpack.c.h.b16 %v889
      %v2158 = vunpack.c.l.b16 %v890
      %v2159 = vunpack.c.h.b16 %v890
      %v2160 = vunpack.c.l.b16 %v891
      %v2161 = vunpack.c.h.b16 %v891
      %v2162 = vpack.c.b16 %v1718, %v1714
      %v2163 = vpack.c.b16 %v1719, %v1715
      %v2164 = vpack.c.b16 %v1720, %v1716
      %v2165 = vpack.c.b16 %v1721, %v1717
      %v2166 = vpack.c.b16 %v1726, %v1722
      %v2167 = vpack.c.b16 %v1727, %v1723
      %v2168 = vpack.c.b16 %v1728, %v1724
      %v2169 = vpack.c.b16 %v1729, %v1725
      %v2170 = vpack.c.b16 %v1734, %v1730
      %v2171 = vpack.c.b16 %v1735, %v1731
      %v2172 = vpack.c.b16 %v1736, %v1732
      %v2173 = vpack.c.b16 %v1737, %v1733
      %v2174 = vpack.c.b16 %v1742, %v1738
      %v2175 = vpack.c.b16 %v1743, %v1739
      %v2176 = vpack.c.b16 %v1744, %v1740
      %v2177 = vpack.c.b16 %v1745, %v1741
      %v2178 = vpack.c.b16 %v1750, %v1746
      %v2179 = vpack.c.b16 %v1751, %v1747
      %v2180 = vpack.c.b16 %v1752, %v1748
      %v2181 = vpack.c.b16 %v1753, %v1749
      %v2182 = vpack.c.b16 %v1758, %v1754
      %v2183 = vpack.c.b16 %v1759, %v1755
      %v2184 = vpack.c.b16 %v1760, %v1756
      %v2185 = vpack.c.b16 %v1761, %v1757
      %v2186 = vpack.c.b16 %v1766, %v1762
      %v2187 = vpack.c.b16 %v1767, %v1763
      %v2188 = vpack.c.b16 %v1768, %v1764
      %v2189 = vpack.c.b16 %v1769, %v1765
      %v2190 = vpack.c.b16 %v1774, %v1770
      %v2191 = vpack.c.b16 %v1775, %v1771
      %v2192 = vpack.c.b16 %v1776, %v1772
      %v2193 = vpack.c.b16 %v1777, %v1773
      %v2194 = vpack.c.b16 %v1782, %v1778
      %v2195 = vpack.c.b16 %v1783, %v1779
      %v2196 = vpack.c.b16 %v1784, %v1780
      %v2197 = vpack.c.b16 %v1785, %v1781
      %v2198 = vpack.c.b16 %v1790, %v1786
      %v2199 = vpack.c.b16 %v1791, %v1787
      %v2200 = vpack.c.b16 %v1792, %v1788
      %v2201 = vpack.c.b16 %v1793, %v1789
      %v2202 = vpack.c.b16 %v1798, %v1794
      %v2203 = vpack.c.b16 %v1799, %v1795
      %v2204 = vpack.c.b16 %v1800, %v1796
      %v2205 = vpack.c.b16 %v1801, %v1797
      %v2206 = vpack.c.b16 %v1806, %v1802
      %v2207 = vpack.c.b16 %v1807, %v1803
      %v2208 = vpack.c.b16 %v1808, %v1804
      %v2209 = vpack.c.b16 %v1809, %v1805
      %v2210 = vpack.c.b16 %v1814, %v1810
      %v2211 = vpack.c.b16 %v1815, %v1811
      %v2212 = vpack.c.b16 %v1816, %v1812
      %v2213 = vpack.c.b16 %v1817, %v1813
      %v2214 = vpack.c.b16 %v1822, %v1818
      %v2215 = vpack.c.b16 %v1823, %v1819
      %v2216 = vpack.c.b16 %v1824, %v1820
      %v2217 = vpack.c.b16 %v1825, %v1821
      %v2218 = vpack.c.b16 %v1830, %v1826
      %v2219 = vpack.c.b16 %v1831, %v1827
      %v2220 = vpack.c.b16 %v1832, %v1828
      %v2221 = vpack.c.b16 %v1833, %v1829
      %v2222 = vpack.c.b16 %v1838, %v1834
      %v2223 = vpack.c.b16 %v1839, %v1835
      %v2224 = vpack.c.b16 %v1840, %v1836
      %v2225 = vpack.c.b16 %v1841, %v1837
      %v2226 = vpack.c.b16 %v1846, %v1842
      %v2227 = vpack.c.b16 %v1847, %v1843
      %v2228 = vpack.c.b16 %v1848, %v1844
      %v2229 = vpack.c.b16 %v1849, %v1845
      %v2230 = vpack.c.b16 %v1854, %v1850
      %v2231 = vpack.c.b16 %v1855, %v1851
      %v2232 = vpack.c.b16 %v1856, %v1852
      %v2233 = vpack.c.b16 %v1857, %v1853
      %v2234 = vpack.c.b16 %v1862, %v1858
      %v2235 = vpack.c.b16 %v1863, %v1859
      %v2236 = vpack.c.b16 %v1864, %v1860
      %v2237 = vpack.c.b16 %v1865, %v1861
      %v2238 = vpack.c.b16 %v1870, %v1866
      %v2239 = vpack.c.b16 %v1871, %v1867
      %v2240 = vpack.c.b16 %v1872, %v1868
      %v2241 = vpack.c.b16 %v1873, %v1869
      %v2242 = vpack.c.b16 %v1878, %v1874
      %v2243 = vpack.c.b16 %v1879, %v1875
      %v2244 = vpack.c.b16 %v1880, %v1876
      %v2245 = vpack.c.b16 %v1881, %v1877
      %v2246 = vpack.c.b16 %v1886, %v1882
      %v2247 = vpack.c.b16 %v1887, %v1883
      %v2248 = vpack.c.b16 %v1888, %v1884
      %v2249 = vpack.c.b16 %v1889, %v1885
      %v2250 = vpack.c.b16 %v1894, %v1890
      %v2251 = vpack.c.b16 %v1895, %v1891
      %v2252 = vpack.c.b16 %v1896, %v1892
      %v2253 = vpack.c.b16 %v1897, %v1893
      %v2254 = vpack.c.b16 %v1902, %v1898
      %v2255 = vpack.c.b16 %v1903, %v1899
      %v2256 = vpack.c.b16 %v1904, %v1900
      %v2257 = vpack.c.b16 %v1905, %v1901
      %v2258 = vpack.c.b16 %v1910, %v1906
      %v2259 = vpack.c.b16 %v1911, %v1907
      %v2260 = vpack.c.b16 %v1912, %v1908
      %v2261 = vpack.c.b16 %v1913, %v1909
      %v2262 = vpack.c.b16 %v1918, %v1914
      %v2263 = vpack.c.b16 %v1919, %v1915
      %v2264 = vpack.c.b16 %v1920, %v1916
      %v2265 = vpack.c.b16 %v1921, %v1917
      %v2266 = vpack.c.b16 %v1926, %v1922
      %v2267 = vpack.c.b16 %v1927, %v1923
      %v2268 = vpack.c.b16 %v1928, %v1924
      %v2269 = vpack.c.b16 %v1929, %v1925
      %v2270 = vpack.c.b16 %v1934, %v1930
      %v2271 = vpack.c.b16 %v1935, %v1931
      %v2272 = vpack.c.b16 %v1936, %v1932
      %v2273 = vpack.c.b16 %v1937, %v1933
      %v2274 = vpack.c.b16 %v1942, %v1938
      %v2275 = vpack.c.b16 %v1943, %v1939
      %v2276 = vpack.c.b16 %v1944, %v1940
      %v2277 = vpack.c.b16 %v1945, %v1941
      %v2278 = vpack.c.b16 %v1950, %v1946
      %v2279 = vpack.c.b16 %v1951, %v1947
      %v2280 = vpack.c.b16 %v1952, %v1948
      %v2281 = vpack.c.b16 %v1953, %v1949
      %v2282 = vpack.c.b16 %v1958, %v1954
      %v2283 = vpack.c.b16 %v1959, %v1955
      %v2284 = vpack.c.b16 %v1960, %v1956
      %v2285 = vpack.c.b16 %v1961, %v1957
      %v2286 = vpack.c.b16 %v1966, %v1962
      %v2287 = vpack.c.b16 %v1967, %v1963
      %v2288 = vpack.c.b16 %v1968, %v1964
      %v2289 = vpack.c.b16 %v1969, %v1965
      %v2290 = vpack.c.b16 %v1974, %v1970
      %v2291 = vpack.c.b16 %v1975, %v1971
      %v2292 = vpack.c.b16 %v1976, %v1972
      %v2293 = vpack.c.b16 %v1977, %v1973
      %v2294 = vpack.c.b16 %v1982, %v1978
      %v2295 = vpack.c.b16 %v1983, %v1979
      %v2296 = vpack.c.b16 %v1984, %v1980
      %v2297 = vpack.c.b16 %v1985, %v1981
      %v2298 = vpack.c.b16 %v1990, %v1986
      %v2299 = vpack.c.b16 %v1991, %v1987
      %v2300 = vpack.c.b16 %v1992, %v1988
      %v2301 = vpack.c.b16 %v1993, %v1989
      %v2302 = vpack.c.b16 %v1998, %v1994
      %v2303 = vpack.c.b16 %v1999, %v1995
      %v2304 = vpack.c.b16 %v2000, %v1996
      %v2305 = vpack.c.b16 %v2001, %v1997
      %v2306 = vpack.c.b16 %v2006, %v2002
      %v2307 = vpack.c.b16 %v2007, %v2003
      %v2308 = vpack.c.b16 %v2008, %v2004
      %v2309 = vpack.c.b16 %v2009, %v2005
      %v2310 = vpack.c.b16 %v2014, %v2010
      %v2311 = vpack.c.b16 %v2015, %v2011
      %v2312 = vpack.c.b16 %v2016, %v2012
      %v2313 = vpack.c.b16 %v2017, %v2013
      %v2314 = vpack.c.b16 %v2022, %v2018
      %v2315 = vpack.c.b16 %v2023, %v2019
      %v2316 = vpack.c.b16 %v2024, %v2020
      %v2317 = vpack.c.b16 %v2025, %v2021
      %v2318 = vpack.c.b16 %v2030, %v2026
      %v2319 = vpack.c.b16 %v2031, %v2027
      %v2320 = vpack.c.b16 %v2032, %v2028
      %v2321 = vpack.c.b16 %v2033, %v2029
      %v2322 = vpack.c.b16 %v2038, %v2034
      %v2323 = vpack.c.b16 %v2039, %v2035
      %v2324 = vpack.c.b16 %v2040, %v2036
      %v2325 = vpack.c.b16 %v2041, %v2037
      %v2326 = vpack.c.b16 %v2046, %v2042
      %v2327 = vpack.c.b16 %v2047, %v2043
      %v2328 = vpack.c.b16 %v2048, %v2044
      %v2329 = vpack.c.b16 %v2049, %v2045
      %v2330 = vpack.c.b16 %v2054, %v2050
      %v2331 = vpack.c.b16 %v2055, %v2051
      %v2332 = vpack.c.b16 %v2056, %v2052
      %v2333 = vpack.c.b16 %v2057, %v2053
      %v2334 = vpack.c.b16 %v2062, %v2058
      %v2335 = vpack.c.b16 %v2063, %v2059
      %v2336 = vpack.c.b16 %v2064, %v2060
      %v2337 = vpack.c.b16 %v2065, %v2061
      %v2338 = vpack.c.b16 %v2070, %v2066
      %v2339 = vpack.c.b16 %v2071, %v2067
      %v2340 = vpack.c.b16 %v2072, %v2068
      %v2341 = vpack.c.b16 %v2073, %v2069
      %v2342 = vpack.c.b16 %v2078, %v2074
      %v2343 = vpack.c.b16 %v2079, %v2075
      %v2344 = vpack.c.b16 %v2080, %v2076
      %v2345 = vpack.c.b16 %v2081, %v2077
      %v2346 = vpack.c.b16 %v2086, %v2082
      %v2347 = vpack.c.b16 %v2087, %v2083
      %v2348 = vpack.c.b16 %v2088, %v2084
      %v2349 = vpack.c.b16 %v2089, %v2085
      %v2350 = vpack.c.b16 %v2094, %v2090
      %v2351 = vpack.c.b16 %v2095, %v2091
      %v2352 = vpack.c.b16 %v2096, %v2092
      %v2353 = vpack.c.b16 %v2097, %v2093
      %v2354 = vpack.c.b16 %v2102, %v2098
      %v2355 = vpack.c.b16 %v2103, %v2099
      %v2356 = vpack.c.b16 %v2104, %v2100
      %v2357 = vpack.c.b16 %v2105, %v2101
      %v2358 = vpack.c.b16 %v2110, %v2106
      %v2359 = vpack.c.b16 %v2111, %v2107
      %v2360 = vpack.c.b16 %v2112, %v2108
      %v2361 = vpack.c.b16 %v2113, %v2109
      %v2362 = vpack.c.b16 %v2118, %v2114
      %v2363 = vpack.c.b16 %v2119, %v2115
      %v2364 = vpack.c.b16 %v2120, %v2116
      %v2365 = vpack.c.b16 %v2121, %v2117
      %v2366 = vpack.c.b16 %v2126, %v2122
      %v2367 = vpack.c.b16 %v2127, %v2123
      %v2368 = vpack.c.b16 %v2128, %v2124
      %v2369 = vpack.c.b16 %v2129, %v2125
      %v2370 = vpack.c.b16 %v2134, %v2130
      %v2371 = vpack.c.b16 %v2135, %v2131
      %v2372 = vpack.c.b16 %v2136, %v2132
      %v2373 = vpack.c.b16 %v2137, %v2133
      %v2374 = vpack.c.b16 %v2142, %v2138
      %v2375 = vpack.c.b16 %v2143, %v2139
      %v2376 = vpack.c.b16 %v2144, %v2140
      %v2377 = vpack.c.b16 %v2145, %v2141
      %v2378 = vpack.c.b16 %v2150, %v2146
      %v2379 = vpack.c.b16 %v2151, %v2147
      %v2380 = vpack.c.b16 %v2152, %v2148
      %v2381 = vpack.c.b16 %v2153, %v2149
      %v2382 = vpack.c.b16 %v2158, %v2154
      %v2383 = vpack.c.b16 %v2159, %v2155
      %v2384 = vpack.c.b16 %v2160, %v2156
      %v2385 = vpack.c.b16 %v2161, %v2157
      %2610 = vmatprep.subr.bf16.mxu0 %v2163
      %2611 = vmatpush1.bf16.msra.mxu0 %v2162
      %2612 = vmatprep.subr.bf16.mxu0 %v2167
      %2613 = vmatpush1.bf16.msra.mxu0 %v2166
      %2614 = vmatprep.subr.bf16.mxu0 %v2171
      %2615 = vmatpush1.bf16.msra.mxu0 %v2170
      %2616 = vmatprep.subr.bf16.mxu0 %v2175
      %2617 = vmatpush1.bf16.msra.mxu0 %v2174
      %2618 = vmatprep.subr.bf16.mxu0 %v2179
      %2619 = vmatpush1.bf16.msra.mxu0 %v2178
      %2620 = vmatprep.subr.bf16.mxu0 %v2183
      %2621 = vmatpush1.bf16.msra.mxu0 %v2182
      %2622 = vmatprep.subr.bf16.mxu0 %v2187
      %2623 = vmatpush1.bf16.msra.mxu0 %v2186
      %2624 = vmatprep.subr.bf16.mxu0 %v2191
      %2625 = vmatpush1.bf16.msra.mxu0 %v2190
      %2626 = vmatprep.subr.bf16.mxu0 %v2195
      %2627 = vmatpush1.bf16.msra.mxu0 %v2194
      %2628 = vmatprep.subr.bf16.mxu0 %v2199
      %2629 = vmatpush1.bf16.msra.mxu0 %v2198
      %2630 = vmatprep.subr.bf16.mxu0 %v2203
      %2631 = vmatpush1.bf16.msra.mxu0 %v2202
      %2632 = vmatprep.subr.bf16.mxu0 %v2207
      %2633 = vmatpush1.bf16.msra.mxu0 %v2206
      %2634 = vmatprep.subr.bf16.mxu0 %v2211
      %2635 = vmatpush1.bf16.msra.mxu0 %v2210
      %2636 = vmatprep.subr.bf16.mxu0 %v2215
      %2637 = vmatpush1.bf16.msra.mxu0 %v2214
      %2638 = vmatprep.subr.bf16.mxu0 %v2219
      %2639 = vmatpush1.bf16.msra.mxu0 %v2218
      %2640 = vmatprep.subr.bf16.mxu0 %v2223
      %2641 = vmatpush1.bf16.msra.mxu0 %v2222
      %2642 = vmatprep.mubr.bf16.mxu0 %v1267
      %2643 = vmatmul.mubr.bf16.gmra.mrb[0].mxu0 %v1266
      %v2644 = vpop.f32.mrb[0].mxu0
      %v2645 = vadd.f32 %v897, %v2644
      %v2646 = vpop.f32.mrb[0].mxu0
      %v2647 = vadd.f32 %v901, %v2646
      %v2648 = vpop.f32.mrb[0].mxu0
      %v2649 = vadd.f32 %v897, %v2648
      %v2650 = vpop.f32.mrb[0].mxu0
      %v2651 = vadd.f32 %v901, %v2650
      %2652 = vmatprep.mubr.bf16.mxu0 %v1274
      %2653 = vmatmul.mubr.bf16.gmra.mrb[0].mxu0 %v1273
      %v2654 = vpop.f32.mrb[0].mxu0
      %v2655 = vadd.f32 %v897, %v2654
      %v2656 = vpop.f32.mrb[0].mxu0
      %v2657 = vadd.f32 %v901, %v2656
      %v2658 = vpop.f32.mrb[0].mxu0
      %v2659 = vadd.f32 %v897, %v2658
      %v2660 = vpop.f32.mrb[0].mxu0
      %v2661 = vadd.f32 %v901, %v2660
      %2662 = vmatprep.mubr.bf16.mxu0 %v1281
      %2663 = vmatmul.mubr.bf16.gmra.mrb[0].mxu0 %v1280
      %v2664 = vpop.f32.mrb[0].mxu0
      %v2665 = vadd.f32 %v897, %v2664
      %v2666 = vpop.f32.mrb[0].mxu0
      %v2667 = vadd.f32 %v901, %v2666
      %v2668 = vpop.f32.mrb[0].mxu0
      %v2669 = vadd.f32 %v897, %v2668
      %v2670 = vpop.f32.mrb[0].mxu0
      %v2671 = vadd.f32 %v901, %v2670
      %2672 = vmatprep.mubr.bf16.mxu0 %v1288
      %2673 = vmatmul.mubr.bf16.gmra.mrb[0].mxu0 %v1287
      %v2674 = vpop.f32.mrb[0].mxu0
      %v2675 = vadd.f32 %v897, %v2674
      %v2676 = vpop.f32.mrb[0].mxu0
      %v2677 = vadd.f32 %v901, %v2676
      %v2678 = vpop.f32.mrb[0].mxu0
      %v2679 = vadd.f32 %v897, %v2678
      %v2680 = vpop.f32.mrb[0].mxu0
      %v2681 = vadd.f32 %v901, %v2680
      %2682 = vmatprep.mubr.bf16.mxu0 %v1295
      %2683 = vmatmul.mubr.bf16.gmra.mrb[0].mxu0 %v1294
      %v2684 = vpop.f32.mrb[0].mxu0
      %v2685 = vadd.f32 %v897, %v2684
      %v2686 = vpop.f32.mrb[0].mxu0
      %v2687 = vadd.f32 %v901, %v2686
      %v2688 = vpop.f32.mrb[0].mxu0
      %v2689 = vadd.f32 %v897, %v2688
      %v2690 = vpop.f32.mrb[0].mxu0
      %v2691 = vadd.f32 %v901, %v2690
      %2692 = vmatprep.mubr.bf16.mxu0 %v1302
      %2693 = vmatmul.mubr.bf16.gmra.mrb[0].mxu0 %v1301
      %v2694 = vpop.f32.mrb[0].mxu0
      %v2695 = vadd.f32 %v897, %v2694
      %v2696 = vpop.f32.mrb[0].mxu0
      %v2697 = vadd.f32 %v901, %v2696
      %v2698 = vpop.f32.mrb[0].mxu0
      %v2699 = vadd.f32 %v897, %v2698
      %v2700 = vpop.f32.mrb[0].mxu0
      %v2701 = vadd.f32 %v901, %v2700
      %2702 = vmatprep.mubr.bf16.mxu0 %v1309
      %2703 = vmatmul.mubr.bf16.gmra.mrb[0].mxu0 %v1308
      %v2704 = vpop.f32.mrb[0].mxu0
      %v2705 = vadd.f32 %v897, %v2704
      %v2706 = vpop.f32.mrb[0].mxu0
      %v2707 = vadd.f32 %v901, %v2706
      %v2708 = vpop.f32.mrb[0].mxu0
      %v2709 = vadd.f32 %v897, %v2708
      %v2710 = vpop.f32.mrb[0].mxu0
      %v2711 = vadd.f32 %v901, %v2710
      %2712 = vmatprep.mubr.bf16.mxu0 %v1316
      %2713 = vmatmul.mubr.bf16.gmra.mrb[0].mxu0 %v1315
      %v2714 = vpop.f32.mrb[0].mxu0
      %v2715 = vadd.f32 %v897, %v2714
      %v2716 = vpop.f32.mrb[0].mxu0
      %v2717 = vadd.f32 %v901, %v2716
      %v2718 = vpop.f32.mrb[0].mxu0
      %v2719 = vadd.f32 %v897, %v2718
      %v2720 = vpop.f32.mrb[0].mxu0
      %v2721 = vadd.f32 %v901, %v2720
      %2722 = vmatprep.mubr.bf16.mxu0 %v1323
      %2723 = vmatmul.mubr.bf16.gmra.mrb[0].mxu0 %v1322
      %v2724 = vpop.f32.mrb[0].mxu0
      %v2725 = vadd.f32 %v897, %v2724
      %v2726 = vpop.f32.mrb[0].mxu0
      %v2727 = vadd.f32 %v901, %v2726
      %v2728 = vpop.f32.mrb[0].mxu0
      %v2729 = vadd.f32 %v897, %v2728
      %v2730 = vpop.f32.mrb[0].mxu0
      %v2731 = vadd.f32 %v901, %v2730
      %2732 = vmatprep.mubr.bf16.mxu0 %v1330
      %2733 = vmatmul.mubr.bf16.gmra.mrb[0].mxu0 %v1329
      %v2734 = vpop.f32.mrb[0].mxu0
      %v2735 = vadd.f32 %v897, %v2734
      %v2736 = vpop.f32.mrb[0].mxu0
      %v2737 = vadd.f32 %v901, %v2736
      %v2738 = vpop.f32.mrb[0].mxu0
      %v2739 = vadd.f32 %v897, %v2738
      %v2740 = vpop.f32.mrb[0].mxu0
      %v2741 = vadd.f32 %v901, %v2740
      %2742 = vmatprep.mubr.bf16.mxu0 %v1337
      %2743 = vmatmul.mubr.bf16.gmra.mrb[0].mxu0 %v1336
      %v2744 = vpop.f32.mrb[0].mxu0
      %v2745 = vadd.f32 %v897, %v2744
      %v2746 = vpop.f32.mrb[0].mxu0
      %v2747 = vadd.f32 %v901, %v2746
      %v2748 = vpop.f32.mrb[0].mxu0
      %v2749 = vadd.f32 %v897, %v2748
      %v2750 = vpop.f32.mrb[0].mxu0
      %v2751 = vadd.f32 %v901, %v2750
      %2752 = vmatprep.mubr.bf16.mxu0 %v1344
      %2753 = vmatmul.mubr.bf16.gmra.mrb[0].mxu0 %v1343
      %v2754 = vpop.f32.mrb[0].mxu0
      %v2755 = vadd.f32 %v897, %v2754
      %v2756 = vpop.f32.mrb[0].mxu0
      %v2757 = vadd.f32 %v901, %v2756
      %v2758 = vpop.f32.mrb[0].mxu0
      %v2759 = vadd.f32 %v897, %v2758
      %v2760 = vpop.f32.mrb[0].mxu0
      %v2761 = vadd.f32 %v901, %v2760
      %2762 = vmatprep.mubr.bf16.mxu0 %v1351
      %2763 = vmatmul.mubr.bf16.gmra.mrb[0].mxu0 %v1350
      %v2764 = vpop.f32.mrb[0].mxu0
      %v2765 = vadd.f32 %v897, %v2764
      %v2766 = vpop.f32.mrb[0].mxu0
      %v2767 = vadd.f32 %v901, %v2766
      %v2768 = vpop.f32.mrb[0].mxu0
      %v2769 = vadd.f32 %v897, %v2768
      %v2770 = vpop.f32.mrb[0].mxu0
      %v2771 = vadd.f32 %v901, %v2770
      %2772 = vmatprep.mubr.bf16.mxu0 %v1358
      %2773 = vmatmul.mubr.bf16.gmra.mrb[0].mxu0 %v1357
      %v2774 = vpop.f32.mrb[0].mxu0
      %v2775 = vadd.f32 %v897, %v2774
      %v2776 = vpop.f32.mrb[0].mxu0
      %v2777 = vadd.f32 %v901, %v2776
      %v2778 = vpop.f32.mrb[0].mxu0
      %v2779 = vadd.f32 %v897, %v2778
      %v2780 = vpop.f32.mrb[0].mxu0
      %v2781 = vadd.f32 %v901, %v2780
      %2782 = vmatprep.mubr.bf16.mxu0 %v1365
      %2783 = vmatmul.mubr.bf16.gmra.mrb[0].mxu0 %v1364
      %v2784 = vpop.f32.mrb[0].mxu0
      %v2785 = vadd.f32 %v897, %v2784
      %v2786 = vpop.f32.mrb[0].mxu0
      %v2787 = vadd.f32 %v901, %v2786
      %v2788 = vpop.f32.mrb[0].mxu0
      %v2789 = vadd.f32 %v897, %v2788
      %v2790 = vpop.f32.mrb[0].mxu0
      %v2791 = vadd.f32 %v901, %v2790
      %2792 = vmatprep.mubr.bf16.mxu0 %v1372
      %2793 = vmatmul.mubr.bf16.gmra.mrb[0].mxu0 %v1371
      %v2794 = vpop.f32.mrb[0].mxu0
      %v2795 = vadd.f32 %v897, %v2794
      %v2796 = vpop.f32.mrb[0].mxu0
      %v2797 = vadd.f32 %v901, %v2796
      %v2798 = vpop.f32.mrb[0].mxu0
      %v2799 = vadd.f32 %v897, %v2798
      %v2800 = vpop.f32.mrb[0].mxu0
      %v2801 = vadd.f32 %v901, %v2800
      %2802 = vdwg.mxu0
      %2803 = vmatprep.subr.bf16.mxu0 %v2227
      %2804 = vmatpush1.bf16.msra.mxu0 %v2226
      %2805 = vmatprep.subr.bf16.mxu0 %v2231
      %2806 = vmatpush1.bf16.msra.mxu0 %v2230
      %2807 = vmatprep.subr.bf16.mxu0 %v2235
      %2808 = vmatpush1.bf16.msra.mxu0 %v2234
      %2809 = vmatprep.subr.bf16.mxu0 %v2239
      %2810 = vmatpush1.bf16.msra.mxu0 %v2238
      %2811 = vmatprep.subr.bf16.mxu0 %v2243
      %2812 = vmatpush1.bf16.msra.mxu0 %v2242
      %2813 = vmatprep.subr.bf16.mxu0 %v2247
      %2814 = vmatpush1.bf16.msra.mxu0 %v2246
      %2815 = vmatprep.subr.bf16.mxu0 %v2251
      %2816 = vmatpush1.bf16.msra.mxu0 %v2250
      %2817 = vmatprep.subr.bf16.mxu0 %v2255
      %2818 = vmatpush1.bf16.msra.mxu0 %v2254
      %2819 = vmatprep.subr.bf16.mxu0 %v2259
      %2820 = vmatpush1.bf16.msra.mxu0 %v2258
      %2821 = vmatprep.subr.bf16.mxu0 %v2263
      %2822 = vmatpush1.bf16.msra.mxu0 %v2262
      %2823 = vmatprep.subr.bf16.mxu0 %v2267
      %2824 = vmatpush1.bf16.msra.mxu0 %v2266
      %2825 = vmatprep.subr.bf16.mxu0 %v2271
      %2826 = vmatpush1.bf16.msra.mxu0 %v2270
      %2827 = vmatprep.subr.bf16.mxu0 %v2275
      %2828 = vmatpush1.bf16.msra.mxu0 %v2274
      %2829 = vmatprep.subr.bf16.mxu0 %v2279
      %2830 = vmatpush1.bf16.msra.mxu0 %v2278
      %2831 = vmatprep.subr.bf16.mxu0 %v2283
      %2832 = vmatpush1.bf16.msra.mxu0 %v2282
      %2833 = vmatprep.subr.bf16.mxu0 %v2287
      %2834 = vmatpush1.bf16.msra.mxu0 %v2286
      %2835 = vmatprep.mubr.bf16.mxu0 %v1269
      %2836 = vmatmul.mubr.bf16.gmra.mrb[0].mxu0 %v1268
      %v2837 = vpop.f32.mrb[0].mxu0
      %v2838 = vadd.f32 %v2645, %v2837
      %v2839 = vpop.f32.mrb[0].mxu0
      %v2840 = vadd.f32 %v2647, %v2839
      %v2841 = vpop.f32.mrb[0].mxu0
      %v2842 = vadd.f32 %v2649, %v2841
      %v2843 = vpop.f32.mrb[0].mxu0
      %v2844 = vadd.f32 %v2651, %v2843
      %2845 = vmatprep.mubr.bf16.mxu0 %v1276
      %2846 = vmatmul.mubr.bf16.gmra.mrb[0].mxu0 %v1275
      %v2847 = vpop.f32.mrb[0].mxu0
      %v2848 = vadd.f32 %v2655, %v2847
      %v2849 = vpop.f32.mrb[0].mxu0
      %v2850 = vadd.f32 %v2657, %v2849
      %v2851 = vpop.f32.mrb[0].mxu0
      %v2852 = vadd.f32 %v2659, %v2851
      %v2853 = vpop.f32.mrb[0].mxu0
      %v2854 = vadd.f32 %v2661, %v2853
      %2855 = vmatprep.mubr.bf16.mxu0 %v1283
      %2856 = vmatmul.mubr.bf16.gmra.mrb[0].mxu0 %v1282
      %v2857 = vpop.f32.mrb[0].mxu0
      %v2858 = vadd.f32 %v2665, %v2857
      %v2859 = vpop.f32.mrb[0].mxu0
      %v2860 = vadd.f32 %v2667, %v2859
      %v2861 = vpop.f32.mrb[0].mxu0
      %v2862 = vadd.f32 %v2669, %v2861
      %v2863 = vpop.f32.mrb[0].mxu0
      %v2864 = vadd.f32 %v2671, %v2863
      %2865 = vmatprep.mubr.bf16.mxu0 %v1290
      %2866 = vmatmul.mubr.bf16.gmra.mrb[0].mxu0 %v1289
      %v2867 = vpop.f32.mrb[0].mxu0
      %v2868 = vadd.f32 %v2675, %v2867
      %v2869 = vpop.f32.mrb[0].mxu0
      %v2870 = vadd.f32 %v2677, %v2869
      %v2871 = vpop.f32.mrb[0].mxu0
      %v2872 = vadd.f32 %v2679, %v2871
      %v2873 = vpop.f32.mrb[0].mxu0
      %v2874 = vadd.f32 %v2681, %v2873
      %2875 = vmatprep.mubr.bf16.mxu0 %v1297
      %2876 = vmatmul.mubr.bf16.gmra.mrb[0].mxu0 %v1296
      %v2877 = vpop.f32.mrb[0].mxu0
      %v2878 = vadd.f32 %v2685, %v2877
      %v2879 = vpop.f32.mrb[0].mxu0
      %v2880 = vadd.f32 %v2687, %v2879
      %v2881 = vpop.f32.mrb[0].mxu0
      %v2882 = vadd.f32 %v2689, %v2881
      %v2883 = vpop.f32.mrb[0].mxu0
      %v2884 = vadd.f32 %v2691, %v2883
      %2885 = vmatprep.mubr.bf16.mxu0 %v1304
      %2886 = vmatmul.mubr.bf16.gmra.mrb[0].mxu0 %v1303
      %v2887 = vpop.f32.mrb[0].mxu0
      %v2888 = vadd.f32 %v2695, %v2887
      %v2889 = vpop.f32.mrb[0].mxu0
      %v2890 = vadd.f32 %v2697, %v2889
      %v2891 = vpop.f32.mrb[0].mxu0
      %v2892 = vadd.f32 %v2699, %v2891
      %v2893 = vpop.f32.mrb[0].mxu0
      %v2894 = vadd.f32 %v2701, %v2893
      %2895 = vmatprep.mubr.bf16.mxu0 %v1311
      %2896 = vmatmul.mubr.bf16.gmra.mrb[0].mxu0 %v1310
      %v2897 = vpop.f32.mrb[0].mxu0
      %v2898 = vadd.f32 %v2705, %v2897
      %v2899 = vpop.f32.mrb[0].mxu0
      %v2900 = vadd.f32 %v2707, %v2899
      %v2901 = vpop.f32.mrb[0].mxu0
      %v2902 = vadd.f32 %v2709, %v2901
      %v2903 = vpop.f32.mrb[0].mxu0
      %v2904 = vadd.f32 %v2711, %v2903
      %2905 = vmatprep.mubr.bf16.mxu0 %v1318
      %2906 = vmatmul.mubr.bf16.gmra.mrb[0].mxu0 %v1317
      %v2907 = vpop.f32.mrb[0].mxu0
      %v2908 = vadd.f32 %v2715, %v2907
      %v2909 = vpop.f32.mrb[0].mxu0
      %v2910 = vadd.f32 %v2717, %v2909
      %v2911 = vpop.f32.mrb[0].mxu0
      %v2912 = vadd.f32 %v2719, %v2911
      %v2913 = vpop.f32.mrb[0].mxu0
      %v2914 = vadd.f32 %v2721, %v2913
      %2915 = vmatprep.mubr.bf16.mxu0 %v1325
      %2916 = vmatmul.mubr.bf16.gmra.mrb[0].mxu0 %v1324
      %v2917 = vpop.f32.mrb[0].mxu0
      %v2918 = vadd.f32 %v2725, %v2917
      %v2919 = vpop.f32.mrb[0].mxu0
      %v2920 = vadd.f32 %v2727, %v2919
      %v2921 = vpop.f32.mrb[0].mxu0
      %v2922 = vadd.f32 %v2729, %v2921
      %v2923 = vpop.f32.mrb[0].mxu0
      %v2924 = vadd.f32 %v2731, %v2923
      %2925 = vmatprep.mubr.bf16.mxu0 %v1332
      %2926 = vmatmul.mubr.bf16.gmra.mrb[0].mxu0 %v1331
      %v2927 = vpop.f32.mrb[0].mxu0
      %v2928 = vadd.f32 %v2735, %v2927
      %v2929 = vpop.f32.mrb[0].mxu0
      %v2930 = vadd.f32 %v2737, %v2929
      %v2931 = vpop.f32.mrb[0].mxu0
      %v2932 = vadd.f32 %v2739, %v2931
      %v2933 = vpop.f32.mrb[0].mxu0
      %v2934 = vadd.f32 %v2741, %v2933
      %2935 = vmatprep.mubr.bf16.mxu0 %v1339
      %2936 = vmatmul.mubr.bf16.gmra.mrb[0].mxu0 %v1338
      %v2937 = vpop.f32.mrb[0].mxu0
      %v2938 = vadd.f32 %v2745, %v2937
      %v2939 = vpop.f32.mrb[0].mxu0
      %v2940 = vadd.f32 %v2747, %v2939
      %v2941 = vpop.f32.mrb[0].mxu0
      %v2942 = vadd.f32 %v2749, %v2941
      %v2943 = vpop.f32.mrb[0].mxu0
      %v2944 = vadd.f32 %v2751, %v2943
      %2945 = vmatprep.mubr.bf16.mxu0 %v1346
      %2946 = vmatmul.mubr.bf16.gmra.mrb[0].mxu0 %v1345
      %v2947 = vpop.f32.mrb[0].mxu0
      %v2948 = vadd.f32 %v2755, %v2947
      %v2949 = vpop.f32.mrb[0].mxu0
      %v2950 = vadd.f32 %v2757, %v2949
      %v2951 = vpop.f32.mrb[0].mxu0
      %v2952 = vadd.f32 %v2759, %v2951
      %v2953 = vpop.f32.mrb[0].mxu0
      %v2954 = vadd.f32 %v2761, %v2953
      %2955 = vmatprep.mubr.bf16.mxu0 %v1353
      %2956 = vmatmul.mubr.bf16.gmra.mrb[0].mxu0 %v1352
      %v2957 = vpop.f32.mrb[0].mxu0
      %v2958 = vadd.f32 %v2765, %v2957
      %v2959 = vpop.f32.mrb[0].mxu0
      %v2960 = vadd.f32 %v2767, %v2959
      %v2961 = vpop.f32.mrb[0].mxu0
      %v2962 = vadd.f32 %v2769, %v2961
      %v2963 = vpop.f32.mrb[0].mxu0
      %v2964 = vadd.f32 %v2771, %v2963
      %2965 = vmatprep.mubr.bf16.mxu0 %v1360
      %2966 = vmatmul.mubr.bf16.gmra.mrb[0].mxu0 %v1359
      %v2967 = vpop.f32.mrb[0].mxu0
      %v2968 = vadd.f32 %v2775, %v2967
      %v2969 = vpop.f32.mrb[0].mxu0
      %v2970 = vadd.f32 %v2777, %v2969
      %v2971 = vpop.f32.mrb[0].mxu0
      %v2972 = vadd.f32 %v2779, %v2971
      %v2973 = vpop.f32.mrb[0].mxu0
      %v2974 = vadd.f32 %v2781, %v2973
      %2975 = vmatprep.mubr.bf16.mxu0 %v1367
      %2976 = vmatmul.mubr.bf16.gmra.mrb[0].mxu0 %v1366
      %v2977 = vpop.f32.mrb[0].mxu0
      %v2978 = vadd.f32 %v2785, %v2977
      %v2979 = vpop.f32.mrb[0].mxu0
      %v2980 = vadd.f32 %v2787, %v2979
      %v2981 = vpop.f32.mrb[0].mxu0
      %v2982 = vadd.f32 %v2789, %v2981
      %v2983 = vpop.f32.mrb[0].mxu0
      %v2984 = vadd.f32 %v2791, %v2983
      %2985 = vmatprep.mubr.bf16.mxu0 %v1374
      %2986 = vmatmul.mubr.bf16.gmra.mrb[0].mxu0 %v1373
      %v2987 = vpop.f32.mrb[0].mxu0
      %v2988 = vadd.f32 %v2795, %v2987
      %v2989 = vpop.f32.mrb[0].mxu0
      %v2990 = vadd.f32 %v2797, %v2989
      %v2991 = vpop.f32.mrb[0].mxu0
      %v2992 = vadd.f32 %v2799, %v2991
      %v2993 = vpop.f32.mrb[0].mxu0
      %v2994 = vadd.f32 %v2801, %v2993
      %2995 = vdwg.mxu0
      %2996 = vmatprep.subr.bf16.mxu0 %v2291
      %2997 = vmatpush1.bf16.msra.mxu0 %v2290
      %2998 = vmatprep.subr.bf16.mxu0 %v2295
      %2999 = vmatpush1.bf16.msra.mxu0 %v2294
      %3000 = vmatprep.subr.bf16.mxu0 %v2299
      %3001 = vmatpush1.bf16.msra.mxu0 %v2298
      %3002 = vmatprep.subr.bf16.mxu0 %v2303
      %3003 = vmatpush1.bf16.msra.mxu0 %v2302
      %3004 = vmatprep.subr.bf16.mxu0 %v2307
      %3005 = vmatpush1.bf16.msra.mxu0 %v2306
      %3006 = vmatprep.subr.bf16.mxu0 %v2311
      %3007 = vmatpush1.bf16.msra.mxu0 %v2310
      %3008 = vmatprep.subr.bf16.mxu0 %v2315
      %3009 = vmatpush1.bf16.msra.mxu0 %v2314
      %3010 = vmatprep.subr.bf16.mxu0 %v2319
      %3011 = vmatpush1.bf16.msra.mxu0 %v2318
      %3012 = vmatprep.subr.bf16.mxu0 %v2323
      %3013 = vmatpush1.bf16.msra.mxu0 %v2322
      %3014 = vmatprep.subr.bf16.mxu0 %v2327
      %3015 = vmatpush1.bf16.msra.mxu0 %v2326
      %3016 = vmatprep.subr.bf16.mxu0 %v2331
      %3017 = vmatpush1.bf16.msra.mxu0 %v2330
      %3018 = vmatprep.subr.bf16.mxu0 %v2335
      %3019 = vmatpush1.bf16.msra.mxu0 %v2334
      %3020 = vmatprep.subr.bf16.mxu0 %v2339
      %3021 = vmatpush1.bf16.msra.mxu0 %v2338
      %3022 = vmatprep.subr.bf16.mxu0 %v2343
      %3023 = vmatpush1.bf16.msra.mxu0 %v2342
      %3024 = vmatprep.subr.bf16.mxu0 %v2347
      %3025 = vmatpush1.bf16.msra.mxu0 %v2346
      %3026 = vmatprep.subr.bf16.mxu0 %v2351
      %3027 = vmatpush1.bf16.msra.mxu0 %v2350
      %3028 = vmatprep.mubr.bf16.mxu0 %v1271
      %3029 = vmatmul.mubr.bf16.gmra.mrb[0].mxu0 %v1270
      %v3030 = vpop.f32.mrb[0].mxu0
      %v3031 = vadd.f32 %v2838, %v3030
      %v3032 = vpop.f32.mrb[0].mxu0
      %v3033 = vadd.f32 %v2840, %v3032
      %v3034 = vpop.f32.mrb[0].mxu0
      %v3035 = vadd.f32 %v2842, %v3034
      %v3036 = vpop.f32.mrb[0].mxu0
      %v3037 = vadd.f32 %v2844, %v3036
      %3038 = vmatprep.mubr.bf16.mxu0 %v1278
      %3039 = vmatmul.mubr.bf16.gmra.mrb[0].mxu0 %v1277
      %v3040 = vpop.f32.mrb[0].mxu0
      %v3041 = vadd.f32 %v2848, %v3040
      %v3042 = vpop.f32.mrb[0].mxu0
      %v3043 = vadd.f32 %v2850, %v3042
      %v3044 = vpop.f32.mrb[0].mxu0
      %v3045 = vadd.f32 %v2852, %v3044
      %v3046 = vpop.f32.mrb[0].mxu0
      %v3047 = vadd.f32 %v2854, %v3046
      %3048 = vmatprep.mubr.bf16.mxu0 %v1285
      %3049 = vmatmul.mubr.bf16.gmra.mrb[0].mxu0 %v1284
      %v3050 = vpop.f32.mrb[0].mxu0
      %v3051 = vadd.f32 %v2858, %v3050
      %v3052 = vpop.f32.mrb[0].mxu0
      %v3053 = vadd.f32 %v2860, %v3052
      %v3054 = vpop.f32.mrb[0].mxu0
      %v3055 = vadd.f32 %v2862, %v3054
      %v3056 = vpop.f32.mrb[0].mxu0
      %v3057 = vadd.f32 %v2864, %v3056
      %3058 = vmatprep.mubr.bf16.mxu0 %v1292
      %3059 = vmatmul.mubr.bf16.gmra.mrb[0].mxu0 %v1291
      %v3060 = vpop.f32.mrb[0].mxu0
      %v3061 = vadd.f32 %v2868, %v3060
      %v3062 = vpop.f32.mrb[0].mxu0
      %v3063 = vadd.f32 %v2870, %v3062
      %v3064 = vpop.f32.mrb[0].mxu0
      %v3065 = vadd.f32 %v2872, %v3064
      %v3066 = vpop.f32.mrb[0].mxu0
      %v3067 = vadd.f32 %v2874, %v3066
      %3068 = vmatprep.mubr.bf16.mxu0 %v1299
      %3069 = vmatmul.mubr.bf16.gmra.mrb[0].mxu0 %v1298
      %v3070 = vpop.f32.mrb[0].mxu0
      %v3071 = vadd.f32 %v2878, %v3070
      %v3072 = vpop.f32.mrb[0].mxu0
      %v3073 = vadd.f32 %v2880, %v3072
      %v3074 = vpop.f32.mrb[0].mxu0
      %v3075 = vadd.f32 %v2882, %v3074
      %v3076 = vpop.f32.mrb[0].mxu0
      %v3077 = vadd.f32 %v2884, %v3076
      %3078 = vmatprep.mubr.bf16.mxu0 %v1306
      %3079 = vmatmul.mubr.bf16.gmra.mrb[0].mxu0 %v1305
      %v3080 = vpop.f32.mrb[0].mxu0
      %v3081 = vadd.f32 %v2888, %v3080
      %v3082 = vpop.f32.mrb[0].mxu0
      %v3083 = vadd.f32 %v2890, %v3082
      %v3084 = vpop.f32.mrb[0].mxu0
      %v3085 = vadd.f32 %v2892, %v3084
      %v3086 = vpop.f32.mrb[0].mxu0
      %v3087 = vadd.f32 %v2894, %v3086
      %3088 = vmatprep.mubr.bf16.mxu0 %v1313
      %3089 = vmatmul.mubr.bf16.gmra.mrb[0].mxu0 %v1312
      %v3090 = vpop.f32.mrb[0].mxu0
      %v3091 = vadd.f32 %v2898, %v3090
      %v3092 = vpop.f32.mrb[0].mxu0
      %v3093 = vadd.f32 %v2900, %v3092
      %v3094 = vpop.f32.mrb[0].mxu0
      %v3095 = vadd.f32 %v2902, %v3094
      %v3096 = vpop.f32.mrb[0].mxu0
      %v3097 = vadd.f32 %v2904, %v3096
      %3098 = vmatprep.mubr.bf16.mxu0 %v1320
      %3099 = vmatmul.mubr.bf16.gmra.mrb[0].mxu0 %v1319
      %v3100 = vpop.f32.mrb[0].mxu0
      %v3101 = vadd.f32 %v2908, %v3100
      %v3102 = vpop.f32.mrb[0].mxu0
      %v3103 = vadd.f32 %v2910, %v3102
      %v3104 = vpop.f32.mrb[0].mxu0
      %v3105 = vadd.f32 %v2912, %v3104
      %v3106 = vpop.f32.mrb[0].mxu0
      %v3107 = vadd.f32 %v2914, %v3106
      %3108 = vmatprep.mubr.bf16.mxu0 %v1327
      %3109 = vmatmul.mubr.bf16.gmra.mrb[0].mxu0 %v1326
      %v3110 = vpop.f32.mrb[0].mxu0
      %v3111 = vadd.f32 %v2918, %v3110
      %v3112 = vpop.f32.mrb[0].mxu0
      %v3113 = vadd.f32 %v2920, %v3112
      %v3114 = vpop.f32.mrb[0].mxu0
      %v3115 = vadd.f32 %v2922, %v3114
      %v3116 = vpop.f32.mrb[0].mxu0
      %v3117 = vadd.f32 %v2924, %v3116
      %3118 = vmatprep.mubr.bf16.mxu0 %v1334
      %3119 = vmatmul.mubr.bf16.gmra.mrb[0].mxu0 %v1333
      %v3120 = vpop.f32.mrb[0].mxu0
      %v3121 = vadd.f32 %v2928, %v3120
      %v3122 = vpop.f32.mrb[0].mxu0
      %v3123 = vadd.f32 %v2930, %v3122
      %v3124 = vpop.f32.mrb[0].mxu0
      %v3125 = vadd.f32 %v2932, %v3124
      %v3126 = vpop.f32.mrb[0].mxu0
      %v3127 = vadd.f32 %v2934, %v3126
      %3128 = vmatprep.mubr.bf16.mxu0 %v1341
      %3129 = vmatmul.mubr.bf16.gmra.mrb[0].mxu0 %v1340
      %v3130 = vpop.f32.mrb[0].mxu0
      %v3131 = vadd.f32 %v2938, %v3130
      %v3132 = vpop.f32.mrb[0].mxu0
      %v3133 = vadd.f32 %v2940, %v3132
      %v3134 = vpop.f32.mrb[0].mxu0
      %v3135 = vadd.f32 %v2942, %v3134
      %v3136 = vpop.f32.mrb[0].mxu0
      %v3137 = vadd.f32 %v2944, %v3136
      %3138 = vmatprep.mubr.bf16.mxu0 %v1348
      %3139 = vmatmul.mubr.bf16.gmra.mrb[0].mxu0 %v1347
      %v3140 = vpop.f32.mrb[0].mxu0
      %v3141 = vadd.f32 %v2948, %v3140
      %v3142 = vpop.f32.mrb[0].mxu0
      %v3143 = vadd.f32 %v2950, %v3142
      %v3144 = vpop.f32.mrb[0].mxu0
      %v3145 = vadd.f32 %v2952, %v3144
      %v3146 = vpop.f32.mrb[0].mxu0
      %v3147 = vadd.f32 %v2954, %v3146
      %3148 = vmatprep.mubr.bf16.mxu0 %v1355
      %3149 = vmatmul.mubr.bf16.gmra.mrb[0].mxu0 %v1354
      %v3150 = vpop.f32.mrb[0].mxu0
      %v3151 = vadd.f32 %v2958, %v3150
      %v3152 = vpop.f32.mrb[0].mxu0
      %v3153 = vadd.f32 %v2960, %v3152
      %v3154 = vpop.f32.mrb[0].mxu0
      %v3155 = vadd.f32 %v2962, %v3154
      %v3156 = vpop.f32.mrb[0].mxu0
      %v3157 = vadd.f32 %v2964, %v3156
      %3158 = vmatprep.mubr.bf16.mxu0 %v1362
      %3159 = vmatmul.mubr.bf16.gmra.mrb[0].mxu0 %v1361
      %v3160 = vpop.f32.mrb[0].mxu0
      %v3161 = vadd.f32 %v2968, %v3160
      %v3162 = vpop.f32.mrb[0].mxu0
      %v3163 = vadd.f32 %v2970, %v3162
      %v3164 = vpop.f32.mrb[0].mxu0
      %v3165 = vadd.f32 %v2972, %v3164
      %v3166 = vpop.f32.mrb[0].mxu0
      %v3167 = vadd.f32 %v2974, %v3166
      %3168 = vmatprep.mubr.bf16.mxu0 %v1369
      %3169 = vmatmul.mubr.bf16.gmra.mrb[0].mxu0 %v1368
      %v3170 = vpop.f32.mrb[0].mxu0
      %v3171 = vadd.f32 %v2978, %v3170
      %v3172 = vpop.f32.mrb[0].mxu0
      %v3173 = vadd.f32 %v2980, %v3172
      %v3174 = vpop.f32.mrb[0].mxu0
      %v3175 = vadd.f32 %v2982, %v3174
      %v3176 = vpop.f32.mrb[0].mxu0
      %v3177 = vadd.f32 %v2984, %v3176
      %3178 = vmatprep.mubr.bf16.mxu0 %v1376
      %3179 = vmatmul.mubr.bf16.gmra.mrb[0].mxu0 %v1375
      %v3180 = vpop.f32.mrb[0].mxu0
      %v3181 = vadd.f32 %v2988, %v3180
      %v3182 = vpop.f32.mrb[0].mxu0
      %v3183 = vadd.f32 %v2990, %v3182
      %v3184 = vpop.f32.mrb[0].mxu0
      %v3185 = vadd.f32 %v2992, %v3184
      %v3186 = vpop.f32.mrb[0].mxu0
      %v3187 = vadd.f32 %v2994, %v3186
      %3188 = vdwg.mxu0
      %3189 = vmatprep.subr.bf16.mxu0 %v2355
      %3190 = vmatpush1.bf16.msra.mxu0 %v2354
      %3191 = vmatprep.subr.bf16.mxu0 %v2359
      %3192 = vmatpush1.bf16.msra.mxu0 %v2358
      %3193 = vmatprep.subr.bf16.mxu0 %v2363
      %3194 = vmatpush1.bf16.msra.mxu0 %v2362
      %3195 = vmatprep.subr.bf16.mxu0 %v2367
      %3196 = vmatpush1.bf16.msra.mxu0 %v2366
      %3197 = vmatprep.subr.bf16.mxu0 %v2371
      %3198 = vmatpush1.bf16.msra.mxu0 %v2370
      %3199 = vmatprep.subr.bf16.mxu0 %v2375
      %3200 = vmatpush1.bf16.msra.mxu0 %v2374
      %3201 = vmatprep.subr.bf16.mxu0 %v2379
      %3202 = vmatpush1.bf16.msra.mxu0 %v2378
      %3203 = vmatprep.subr.bf16.mxu0 %v2383
      %3204 = vmatpush1.bf16.msra.mxu0 %v2382
      %3205 = vmatprep.subr.bf16.mxu0 0
      %3206 = vmatpush1.bf16.msra.mxu0 0
      %3207 = vmatprep.subr.bf16.mxu0 0
      %3208 = vmatpush1.bf16.msra.mxu0 0
      %3209 = vmatprep.subr.bf16.mxu0 0
      %3210 = vmatpush1.bf16.msra.mxu0 0
      %3211 = vmatprep.subr.bf16.mxu0 0
      %3212 = vmatpush1.bf16.msra.mxu0 0
      %3213 = vmatprep.subr.bf16.mxu0 0
      %3214 = vmatpush1.bf16.msra.mxu0 0
      %3215 = vmatprep.subr.bf16.mxu0 0
      %3216 = vmatpush1.bf16.msra.mxu0 0
      %3217 = vmatprep.subr.bf16.mxu0 0
      %3218 = vmatpush1.bf16.msra.mxu0 0
      %3219 = vmatprep.subr.bf16.mxu0 0
      %3220 = vmatpush1.bf16.msra.mxu0 0
      %3221 = vmatprep.mubr.bf16.mxu0 0
      %3222 = vmatmul.mubr.bf16.gmra.mrb[0].mxu0 %v1272
      %v3223 = vpop.f32.mrb[0].mxu0
      %v3224 = vadd.f32 %v3031, %v3223
      %v3225 = vpop.f32.mrb[0].mxu0
      %v3226 = vadd.f32 %v3033, %v3225
      %v3227 = vpop.f32.mrb[0].mxu0
      %v3228 = vadd.f32 %v3035, %v3227
      %v3229 = vpop.f32.mrb[0].mxu0
      %v3230 = vadd.f32 %v3037, %v3229
      %3231 = vmatprep.mubr.bf16.mxu0 0
      %3232 = vmatmul.mubr.bf16.gmra.mrb[0].mxu0 %v1279
      %v3233 = vpop.f32.mrb[0].mxu0
      %v3234 = vadd.f32 %v3041, %v3233
      %v3235 = vpop.f32.mrb[0].mxu0
      %v3236 = vadd.f32 %v3043, %v3235
      %v3237 = vpop.f32.mrb[0].mxu0
      %v3238 = vadd.f32 %v3045, %v3237
      %v3239 = vpop.f32.mrb[0].mxu0
      %v3240 = vadd.f32 %v3047, %v3239
      %3241 = vmatprep.mubr.bf16.mxu0 0
      %3242 = vmatmul.mubr.bf16.gmra.mrb[0].mxu0 %v1286
      %v3243 = vpop.f32.mrb[0].mxu0
      %v3244 = vadd.f32 %v3051, %v3243
      %v3245 = vpop.f32.mrb[0].mxu0
      %v3246 = vadd.f32 %v3053, %v3245
      %v3247 = vpop.f32.mrb[0].mxu0
      %v3248 = vadd.f32 %v3055, %v3247
      %v3249 = vpop.f32.mrb[0].mxu0
      %v3250 = vadd.f32 %v3057, %v3249
      %3251 = vmatprep.mubr.bf16.mxu0 0
      %3252 = vmatmul.mubr.bf16.gmra.mrb[0].mxu0 %v1293
      %v3253 = vpop.f32.mrb[0].mxu0
      %v3254 = vadd.f32 %v3061, %v3253
      %v3255 = vpop.f32.mrb[0].mxu0
      %v3256 = vadd.f32 %v3063, %v3255
      %v3257 = vpop.f32.mrb[0].mxu0
      %v3258 = vadd.f32 %v3065, %v3257
      %v3259 = vpop.f32.mrb[0].mxu0
      %v3260 = vadd.f32 %v3067, %v3259
      %3261 = vmatprep.mubr.bf16.mxu0 0
      %3262 = vmatmul.mubr.bf16.gmra.mrb[0].mxu0 %v1300
      %v3263 = vpop.f32.mrb[0].mxu0
      %v3264 = vadd.f32 %v3071, %v3263
      %v3265 = vpop.f32.mrb[0].mxu0
      %v3266 = vadd.f32 %v3073, %v3265
      %v3267 = vpop.f32.mrb[0].mxu0
      %v3268 = vadd.f32 %v3075, %v3267
      %v3269 = vpop.f32.mrb[0].mxu0
      %v3270 = vadd.f32 %v3077, %v3269
      %3271 = vmatprep.mubr.bf16.mxu0 0
      %3272 = vmatmul.mubr.bf16.gmra.mrb[0].mxu0 %v1307
      %v3273 = vpop.f32.mrb[0].mxu0
      %v3274 = vadd.f32 %v3081, %v3273
      %v3275 = vpop.f32.mrb[0].mxu0
      %v3276 = vadd.f32 %v3083, %v3275
      %v3277 = vpop.f32.mrb[0].mxu0
      %v3278 = vadd.f32 %v3085, %v3277
      %v3279 = vpop.f32.mrb[0].mxu0
      %v3280 = vadd.f32 %v3087, %v3279
      %3281 = vmatprep.mubr.bf16.mxu0 0
      %3282 = vmatmul.mubr.bf16.gmra.mrb[0].mxu0 %v1314
      %v3283 = vpop.f32.mrb[0].mxu0
      %v3284 = vadd.f32 %v3091, %v3283
      %v3285 = vpop.f32.mrb[0].mxu0
      %v3286 = vadd.f32 %v3093, %v3285
      %v3287 = vpop.f32.mrb[0].mxu0
      %v3288 = vadd.f32 %v3095, %v3287
      %v3289 = vpop.f32.mrb[0].mxu0
      %v3290 = vadd.f32 %v3097, %v3289
      %3291 = vmatprep.mubr.bf16.mxu0 0
      %3292 = vmatmul.mubr.bf16.gmra.mrb[0].mxu0 %v1321
      %v3293 = vpop.f32.mrb[0].mxu0
      %v3294 = vadd.f32 %v3101, %v3293
      %v3295 = vpop.f32.mrb[0].mxu0
      %v3296 = vadd.f32 %v3103, %v3295
      %v3297 = vpop.f32.mrb[0].mxu0
      %v3298 = vadd.f32 %v3105, %v3297
      %v3299 = vpop.f32.mrb[0].mxu0
      %v3300 = vadd.f32 %v3107, %v3299
      %3301 = vmatprep.mubr.bf16.mxu0 0
      %3302 = vmatmul.mubr.bf16.gmra.mrb[0].mxu0 %v1328
      %v3303 = vpop.f32.mrb[0].mxu0
      %v3304 = vadd.f32 %v3111, %v3303
      %v3305 = vpop.f32.mrb[0].mxu0
      %v3306 = vadd.f32 %v3113, %v3305
      %v3307 = vpop.f32.mrb[0].mxu0
      %v3308 = vadd.f32 %v3115, %v3307
      %v3309 = vpop.f32.mrb[0].mxu0
      %v3310 = vadd.f32 %v3117, %v3309
      %3311 = vmatprep.mubr.bf16.mxu0 0
      %3312 = vmatmul.mubr.bf16.gmra.mrb[0].mxu0 %v1335
      %v3313 = vpop.f32.mrb[0].mxu0
      %v3314 = vadd.f32 %v3121, %v3313
      %v3315 = vpop.f32.mrb[0].mxu0
      %v3316 = vadd.f32 %v3123, %v3315
      %v3317 = vpop.f32.mrb[0].mxu0
      %v3318 = vadd.f32 %v3125, %v3317
      %v3319 = vpop.f32.mrb[0].mxu0
      %v3320 = vadd.f32 %v3127, %v3319
      %3321 = vmatprep.mubr.bf16.mxu0 0
      %3322 = vmatmul.mubr.bf16.gmra.mrb[0].mxu0 %v1342
      %v3323 = vpop.f32.mrb[0].mxu0
      %v3324 = vadd.f32 %v3131, %v3323
      %v3325 = vpop.f32.mrb[0].mxu0
      %v3326 = vadd.f32 %v3133, %v3325
      %v3327 = vpop.f32.mrb[0].mxu0
      %v3328 = vadd.f32 %v3135, %v3327
      %v3329 = vpop.f32.mrb[0].mxu0
      %v3330 = vadd.f32 %v3137, %v3329
      %3331 = vmatprep.mubr.bf16.mxu0 0
      %3332 = vmatmul.mubr.bf16.gmra.mrb[0].mxu0 %v1349
      %v3333 = vpop.f32.mrb[0].mxu0
      %v3334 = vadd.f32 %v3141, %v3333
      %v3335 = vpop.f32.mrb[0].mxu0
      %v3336 = vadd.f32 %v3143, %v3335
      %v3337 = vpop.f32.mrb[0].mxu0
      %v3338 = vadd.f32 %v3145, %v3337
      %v3339 = vpop.f32.mrb[0].mxu0
      %v3340 = vadd.f32 %v3147, %v3339
      %3341 = vmatprep.mubr.bf16.mxu0 0
      %3342 = vmatmul.mubr.bf16.gmra.mrb[0].mxu0 %v1356
      %v3343 = vpop.f32.mrb[0].mxu0
      %v3344 = vadd.f32 %v3151, %v3343
      %v3345 = vpop.f32.mrb[0].mxu0
      %v3346 = vadd.f32 %v3153, %v3345
      %v3347 = vpop.f32.mrb[0].mxu0
      %v3348 = vadd.f32 %v3155, %v3347
      %v3349 = vpop.f32.mrb[0].mxu0
      %v3350 = vadd.f32 %v3157, %v3349
      %3351 = vmatprep.mubr.bf16.mxu0 0
      %3352 = vmatmul.mubr.bf16.gmra.mrb[0].mxu0 %v1363
      %v3353 = vpop.f32.mrb[0].mxu0
      %v3354 = vadd.f32 %v3161, %v3353
      %v3355 = vpop.f32.mrb[0].mxu0
      %v3356 = vadd.f32 %v3163, %v3355
      %v3357 = vpop.f32.mrb[0].mxu0
      %v3358 = vadd.f32 %v3165, %v3357
      %v3359 = vpop.f32.mrb[0].mxu0
      %v3360 = vadd.f32 %v3167, %v3359
      %3361 = vmatprep.mubr.bf16.mxu0 0
      %3362 = vmatmul.mubr.bf16.gmra.mrb[0].mxu0 %v1370
      %v3363 = vpop.f32.mrb[0].mxu0
      %v3364 = vadd.f32 %v3171, %v3363
      %v3365 = vpop.f32.mrb[0].mxu0
      %v3366 = vadd.f32 %v3173, %v3365
      %v3367 = vpop.f32.mrb[0].mxu0
      %v3368 = vadd.f32 %v3175, %v3367
      %v3369 = vpop.f32.mrb[0].mxu0
      %v3370 = vadd.f32 %v3177, %v3369
      %3371 = vmatprep.mubr.bf16.mxu0 0
      %3372 = vmatmul.mubr.bf16.gmra.mrb[0].mxu0 %v1377
      %v3373 = vpop.f32.mrb[0].mxu0
      %v3374 = vadd.f32 %v3181, %v3373
      %v3375 = vpop.f32.mrb[0].mxu0
      %v3376 = vadd.f32 %v3183, %v3375
      %v3377 = vpop.f32.mrb[0].mxu0
      %v3378 = vadd.f32 %v3185, %v3377
      %v3379 = vpop.f32.mrb[0].mxu0
      %v3380 = vadd.f32 %v3187, %v3379
      %3381 = vdwg.mxu0
      %3382 = vmatprep.subr.bf16.mxu0 %v2165
      %3383 = vmatpush1.bf16.msra.mxu0 %v2164
      %3384 = vmatprep.subr.bf16.mxu0 %v2169
      %3385 = vmatpush1.bf16.msra.mxu0 %v2168
      %3386 = vmatprep.subr.bf16.mxu0 %v2173
      %3387 = vmatpush1.bf16.msra.mxu0 %v2172
      %3388 = vmatprep.subr.bf16.mxu0 %v2177
      %3389 = vmatpush1.bf16.msra.mxu0 %v2176
      %3390 = vmatprep.subr.bf16.mxu0 %v2181
      %3391 = vmatpush1.bf16.msra.mxu0 %v2180
      %3392 = vmatprep.subr.bf16.mxu0 %v2185
      %3393 = vmatpush1.bf16.msra.mxu0 %v2184
      %3394 = vmatprep.subr.bf16.mxu0 %v2189
      %3395 = vmatpush1.bf16.msra.mxu0 %v2188
      %3396 = vmatprep.subr.bf16.mxu0 %v2193
      %3397 = vmatpush1.bf16.msra.mxu0 %v2192
      %3398 = vmatprep.subr.bf16.mxu0 %v2197
      %3399 = vmatpush1.bf16.msra.mxu0 %v2196
      %3400 = vmatprep.subr.bf16.mxu0 %v2201
      %3401 = vmatpush1.bf16.msra.mxu0 %v2200
      %3402 = vmatprep.subr.bf16.mxu0 %v2205
      %3403 = vmatpush1.bf16.msra.mxu0 %v2204
      %3404 = vmatprep.subr.bf16.mxu0 %v2209
      %3405 = vmatpush1.bf16.msra.mxu0 %v2208
      %3406 = vmatprep.subr.bf16.mxu0 %v2213
      %3407 = vmatpush1.bf16.msra.mxu0 %v2212
      %3408 = vmatprep.subr.bf16.mxu0 %v2217
      %3409 = vmatpush1.bf16.msra.mxu0 %v2216
      %3410 = vmatprep.subr.bf16.mxu0 %v2221
      %3411 = vmatpush1.bf16.msra.mxu0 %v2220
      %3412 = vmatprep.subr.bf16.mxu0 %v2225
      %3413 = vmatpush1.bf16.msra.mxu0 %v2224
      %3414 = vmatprep.mubr.bf16.mxu0 %v1267
      %3415 = vmatmul.mubr.bf16.gmra.mrb[0].mxu0 %v1266
      %v3416 = vpop.f32.mrb[0].mxu0
      %v3417 = vadd.f32 %v905, %v3416
      %v3418 = vpop.f32.mrb[0].mxu0
      %v3419 = vadd.f32 %v909, %v3418
      %v3420 = vpop.f32.mrb[0].mxu0
      %v3421 = vadd.f32 %v905, %v3420
      %v3422 = vpop.f32.mrb[0].mxu0
      %v3423 = vadd.f32 %v909, %v3422
      %3424 = vmatprep.mubr.bf16.mxu0 %v1274
      %3425 = vmatmul.mubr.bf16.gmra.mrb[0].mxu0 %v1273
      %v3426 = vpop.f32.mrb[0].mxu0
      %v3427 = vadd.f32 %v905, %v3426
      %v3428 = vpop.f32.mrb[0].mxu0
      %v3429 = vadd.f32 %v909, %v3428
      %v3430 = vpop.f32.mrb[0].mxu0
      %v3431 = vadd.f32 %v905, %v3430
      %v3432 = vpop.f32.mrb[0].mxu0
      %v3433 = vadd.f32 %v909, %v3432
      %3434 = vmatprep.mubr.bf16.mxu0 %v1281
      %3435 = vmatmul.mubr.bf16.gmra.mrb[0].mxu0 %v1280
      %v3436 = vpop.f32.mrb[0].mxu0
      %v3437 = vadd.f32 %v905, %v3436
      %v3438 = vpop.f32.mrb[0].mxu0
      %v3439 = vadd.f32 %v909, %v3438
      %v3440 = vpop.f32.mrb[0].mxu0
      %v3441 = vadd.f32 %v905, %v3440
      %v3442 = vpop.f32.mrb[0].mxu0
      %v3443 = vadd.f32 %v909, %v3442
      %3444 = vmatprep.mubr.bf16.mxu0 %v1288
      %3445 = vmatmul.mubr.bf16.gmra.mrb[0].mxu0 %v1287
      %v3446 = vpop.f32.mrb[0].mxu0
      %v3447 = vadd.f32 %v905, %v3446
      %v3448 = vpop.f32.mrb[0].mxu0
      %v3449 = vadd.f32 %v909, %v3448
      %v3450 = vpop.f32.mrb[0].mxu0
      %v3451 = vadd.f32 %v905, %v3450
      %v3452 = vpop.f32.mrb[0].mxu0
      %v3453 = vadd.f32 %v909, %v3452
      %3454 = vmatprep.mubr.bf16.mxu0 %v1295
      %3455 = vmatmul.mubr.bf16.gmra.mrb[0].mxu0 %v1294
      %v3456 = vpop.f32.mrb[0].mxu0
      %v3457 = vadd.f32 %v905, %v3456
      %v3458 = vpop.f32.mrb[0].mxu0
      %v3459 = vadd.f32 %v909, %v3458
      %v3460 = vpop.f32.mrb[0].mxu0
      %v3461 = vadd.f32 %v905, %v3460
      %v3462 = vpop.f32.mrb[0].mxu0
      %v3463 = vadd.f32 %v909, %v3462
      %3464 = vmatprep.mubr.bf16.mxu0 %v1302
      %3465 = vmatmul.mubr.bf16.gmra.mrb[0].mxu0 %v1301
      %v3466 = vpop.f32.mrb[0].mxu0
      %v3467 = vadd.f32 %v905, %v3466
      %v3468 = vpop.f32.mrb[0].mxu0
      %v3469 = vadd.f32 %v909, %v3468
      %v3470 = vpop.f32.mrb[0].mxu0
      %v3471 = vadd.f32 %v905, %v3470
      %v3472 = vpop.f32.mrb[0].mxu0
      %v3473 = vadd.f32 %v909, %v3472
      %3474 = vmatprep.mubr.bf16.mxu0 %v1309
      %3475 = vmatmul.mubr.bf16.gmra.mrb[0].mxu0 %v1308
      %v3476 = vpop.f32.mrb[0].mxu0
      %v3477 = vadd.f32 %v905, %v3476
      %v3478 = vpop.f32.mrb[0].mxu0
      %v3479 = vadd.f32 %v909, %v3478
      %v3480 = vpop.f32.mrb[0].mxu0
      %v3481 = vadd.f32 %v905, %v3480
      %v3482 = vpop.f32.mrb[0].mxu0
      %v3483 = vadd.f32 %v909, %v3482
      %3484 = vmatprep.mubr.bf16.mxu0 %v1316
      %3485 = vmatmul.mubr.bf16.gmra.mrb[0].mxu0 %v1315
      %v3486 = vpop.f32.mrb[0].mxu0
      %v3487 = vadd.f32 %v905, %v3486
      %v3488 = vpop.f32.mrb[0].mxu0
      %v3489 = vadd.f32 %v909, %v3488
      %v3490 = vpop.f32.mrb[0].mxu0
      %v3491 = vadd.f32 %v905, %v3490
      %v3492 = vpop.f32.mrb[0].mxu0
      %v3493 = vadd.f32 %v909, %v3492
      %3494 = vmatprep.mubr.bf16.mxu0 %v1323
      %3495 = vmatmul.mubr.bf16.gmra.mrb[0].mxu0 %v1322
      %v3496 = vpop.f32.mrb[0].mxu0
      %v3497 = vadd.f32 %v905, %v3496
      %v3498 = vpop.f32.mrb[0].mxu0
      %v3499 = vadd.f32 %v909, %v3498
      %v3500 = vpop.f32.mrb[0].mxu0
      %v3501 = vadd.f32 %v905, %v3500
      %v3502 = vpop.f32.mrb[0].mxu0
      %v3503 = vadd.f32 %v909, %v3502
      %3504 = vmatprep.mubr.bf16.mxu0 %v1330
      %3505 = vmatmul.mubr.bf16.gmra.mrb[0].mxu0 %v1329
      %v3506 = vpop.f32.mrb[0].mxu0
      %v3507 = vadd.f32 %v905, %v3506
      %v3508 = vpop.f32.mrb[0].mxu0
      %v3509 = vadd.f32 %v909, %v3508
      %v3510 = vpop.f32.mrb[0].mxu0
      %v3511 = vadd.f32 %v905, %v3510
      %v3512 = vpop.f32.mrb[0].mxu0
      %v3513 = vadd.f32 %v909, %v3512
      %3514 = vmatprep.mubr.bf16.mxu0 %v1337
      %3515 = vmatmul.mubr.bf16.gmra.mrb[0].mxu0 %v1336
      %v3516 = vpop.f32.mrb[0].mxu0
      %v3517 = vadd.f32 %v905, %v3516
      %v3518 = vpop.f32.mrb[0].mxu0
      %v3519 = vadd.f32 %v909, %v3518
      %v3520 = vpop.f32.mrb[0].mxu0
      %v3521 = vadd.f32 %v905, %v3520
      %v3522 = vpop.f32.mrb[0].mxu0
      %v3523 = vadd.f32 %v909, %v3522
      %3524 = vmatprep.mubr.bf16.mxu0 %v1344
      %3525 = vmatmul.mubr.bf16.gmra.mrb[0].mxu0 %v1343
      %v3526 = vpop.f32.mrb[0].mxu0
      %v3527 = vadd.f32 %v905, %v3526
      %v3528 = vpop.f32.mrb[0].mxu0
      %v3529 = vadd.f32 %v909, %v3528
      %v3530 = vpop.f32.mrb[0].mxu0
      %v3531 = vadd.f32 %v905, %v3530
      %v3532 = vpop.f32.mrb[0].mxu0
      %v3533 = vadd.f32 %v909, %v3532
      %3534 = vmatprep.mubr.bf16.mxu0 %v1351
      %3535 = vmatmul.mubr.bf16.gmra.mrb[0].mxu0 %v1350
      %v3536 = vpop.f32.mrb[0].mxu0
      %v3537 = vadd.f32 %v905, %v3536
      %v3538 = vpop.f32.mrb[0].mxu0
      %v3539 = vadd.f32 %v909, %v3538
      %v3540 = vpop.f32.mrb[0].mxu0
      %v3541 = vadd.f32 %v905, %v3540
      %v3542 = vpop.f32.mrb[0].mxu0
      %v3543 = vadd.f32 %v909, %v3542
      %3544 = vmatprep.mubr.bf16.mxu0 %v1358
      %3545 = vmatmul.mubr.bf16.gmra.mrb[0].mxu0 %v1357
      %v3546 = vpop.f32.mrb[0].mxu0
      %v3547 = vadd.f32 %v905, %v3546
      %v3548 = vpop.f32.mrb[0].mxu0
      %v3549 = vadd.f32 %v909, %v3548
      %v3550 = vpop.f32.mrb[0].mxu0
      %v3551 = vadd.f32 %v905, %v3550
      %v3552 = vpop.f32.mrb[0].mxu0
      %v3553 = vadd.f32 %v909, %v3552
      %3554 = vmatprep.mubr.bf16.mxu0 %v1365
      %3555 = vmatmul.mubr.bf16.gmra.mrb[0].mxu0 %v1364
      %v3556 = vpop.f32.mrb[0].mxu0
      %v3557 = vadd.f32 %v905, %v3556
      %v3558 = vpop.f32.mrb[0].mxu0
      %v3559 = vadd.f32 %v909, %v3558
      %v3560 = vpop.f32.mrb[0].mxu0
      %v3561 = vadd.f32 %v905, %v3560
      %v3562 = vpop.f32.mrb[0].mxu0
      %v3563 = vadd.f32 %v909, %v3562
      %3564 = vmatprep.mubr.bf16.mxu0 %v1372
      %3565 = vmatmul.mubr.bf16.gmra.mrb[0].mxu0 %v1371
      %v3566 = vpop.f32.mrb[0].mxu0
      %v3567 = vadd.f32 %v905, %v3566
      %v3568 = vpop.f32.mrb[0].mxu0
      %v3569 = vadd.f32 %v909, %v3568
      %v3570 = vpop.f32.mrb[0].mxu0
      %v3571 = vadd.f32 %v905, %v3570
      %v3572 = vpop.f32.mrb[0].mxu0
      %v3573 = vadd.f32 %v909, %v3572
      %3574 = vdwg.mxu0
      %3575 = vmatprep.subr.bf16.mxu0 %v2229
      %3576 = vmatpush1.bf16.msra.mxu0 %v2228
      %3577 = vmatprep.subr.bf16.mxu0 %v2233
      %3578 = vmatpush1.bf16.msra.mxu0 %v2232
      %3579 = vmatprep.subr.bf16.mxu0 %v2237
      %3580 = vmatpush1.bf16.msra.mxu0 %v2236
      %3581 = vmatprep.subr.bf16.mxu0 %v2241
      %3582 = vmatpush1.bf16.msra.mxu0 %v2240
      %3583 = vmatprep.subr.bf16.mxu0 %v2245
      %3584 = vmatpush1.bf16.msra.mxu0 %v2244
      %3585 = vmatprep.subr.bf16.mxu0 %v2249
      %3586 = vmatpush1.bf16.msra.mxu0 %v2248
      %3587 = vmatprep.subr.bf16.mxu0 %v2253
      %3588 = vmatpush1.bf16.msra.mxu0 %v2252
      %3589 = vmatprep.subr.bf16.mxu0 %v2257
      %3590 = vmatpush1.bf16.msra.mxu0 %v2256
      %3591 = vmatprep.subr.bf16.mxu0 %v2261
      %3592 = vmatpush1.bf16.msra.mxu0 %v2260
      %3593 = vmatprep.subr.bf16.mxu0 %v2265
      %3594 = vmatpush1.bf16.msra.mxu0 %v2264
      %3595 = vmatprep.subr.bf16.mxu0 %v2269
      %3596 = vmatpush1.bf16.msra.mxu0 %v2268
      %3597 = vmatprep.subr.bf16.mxu0 %v2273
      %3598 = vmatpush1.bf16.msra.mxu0 %v2272
      %3599 = vmatprep.subr.bf16.mxu0 %v2277
      %3600 = vmatpush1.bf16.msra.mxu0 %v2276
      %3601 = vmatprep.subr.bf16.mxu0 %v2281
      %3602 = vmatpush1.bf16.msra.mxu0 %v2280
      %3603 = vmatprep.subr.bf16.mxu0 %v2285
      %3604 = vmatpush1.bf16.msra.mxu0 %v2284
      %3605 = vmatprep.subr.bf16.mxu0 %v2289
      %3606 = vmatpush1.bf16.msra.mxu0 %v2288
      %3607 = vmatprep.mubr.bf16.mxu0 %v1269
      %3608 = vmatmul.mubr.bf16.gmra.mrb[0].mxu0 %v1268
      %v3609 = vpop.f32.mrb[0].mxu0
      %v3610 = vadd.f32 %v3417, %v3609
      %v3611 = vpop.f32.mrb[0].mxu0
      %v3612 = vadd.f32 %v3419, %v3611
      %v3613 = vpop.f32.mrb[0].mxu0
      %v3614 = vadd.f32 %v3421, %v3613
      %v3615 = vpop.f32.mrb[0].mxu0
      %v3616 = vadd.f32 %v3423, %v3615
      %3617 = vmatprep.mubr.bf16.mxu0 %v1276
      %3618 = vmatmul.mubr.bf16.gmra.mrb[0].mxu0 %v1275
      %v3619 = vpop.f32.mrb[0].mxu0
      %v3620 = vadd.f32 %v3427, %v3619
      %v3621 = vpop.f32.mrb[0].mxu0
      %v3622 = vadd.f32 %v3429, %v3621
      %v3623 = vpop.f32.mrb[0].mxu0
      %v3624 = vadd.f32 %v3431, %v3623
      %v3625 = vpop.f32.mrb[0].mxu0
      %v3626 = vadd.f32 %v3433, %v3625
      %3627 = vmatprep.mubr.bf16.mxu0 %v1283
      %3628 = vmatmul.mubr.bf16.gmra.mrb[0].mxu0 %v1282
      %v3629 = vpop.f32.mrb[0].mxu0
      %v3630 = vadd.f32 %v3437, %v3629
      %v3631 = vpop.f32.mrb[0].mxu0
      %v3632 = vadd.f32 %v3439, %v3631
      %v3633 = vpop.f32.mrb[0].mxu0
      %v3634 = vadd.f32 %v3441, %v3633
      %v3635 = vpop.f32.mrb[0].mxu0
      %v3636 = vadd.f32 %v3443, %v3635
      %3637 = vmatprep.mubr.bf16.mxu0 %v1290
      %3638 = vmatmul.mubr.bf16.gmra.mrb[0].mxu0 %v1289
      %v3639 = vpop.f32.mrb[0].mxu0
      %v3640 = vadd.f32 %v3447, %v3639
      %v3641 = vpop.f32.mrb[0].mxu0
      %v3642 = vadd.f32 %v3449, %v3641
      %v3643 = vpop.f32.mrb[0].mxu0
      %v3644 = vadd.f32 %v3451, %v3643
      %v3645 = vpop.f32.mrb[0].mxu0
      %v3646 = vadd.f32 %v3453, %v3645
      %3647 = vmatprep.mubr.bf16.mxu0 %v1297
      %3648 = vmatmul.mubr.bf16.gmra.mrb[0].mxu0 %v1296
      %v3649 = vpop.f32.mrb[0].mxu0
      %v3650 = vadd.f32 %v3457, %v3649
      %v3651 = vpop.f32.mrb[0].mxu0
      %v3652 = vadd.f32 %v3459, %v3651
      %v3653 = vpop.f32.mrb[0].mxu0
      %v3654 = vadd.f32 %v3461, %v3653
      %v3655 = vpop.f32.mrb[0].mxu0
      %v3656 = vadd.f32 %v3463, %v3655
      %3657 = vmatprep.mubr.bf16.mxu0 %v1304
      %3658 = vmatmul.mubr.bf16.gmra.mrb[0].mxu0 %v1303
      %v3659 = vpop.f32.mrb[0].mxu0
      %v3660 = vadd.f32 %v3467, %v3659
      %v3661 = vpop.f32.mrb[0].mxu0
      %v3662 = vadd.f32 %v3469, %v3661
      %v3663 = vpop.f32.mrb[0].mxu0
      %v3664 = vadd.f32 %v3471, %v3663
      %v3665 = vpop.f32.mrb[0].mxu0
      %v3666 = vadd.f32 %v3473, %v3665
      %3667 = vmatprep.mubr.bf16.mxu0 %v1311
      %3668 = vmatmul.mubr.bf16.gmra.mrb[0].mxu0 %v1310
      %v3669 = vpop.f32.mrb[0].mxu0
      %v3670 = vadd.f32 %v3477, %v3669
      %v3671 = vpop.f32.mrb[0].mxu0
      %v3672 = vadd.f32 %v3479, %v3671
      %v3673 = vpop.f32.mrb[0].mxu0
      %v3674 = vadd.f32 %v3481, %v3673
      %v3675 = vpop.f32.mrb[0].mxu0
      %v3676 = vadd.f32 %v3483, %v3675
      %3677 = vmatprep.mubr.bf16.mxu0 %v1318
      %3678 = vmatmul.mubr.bf16.gmra.mrb[0].mxu0 %v1317
      %v3679 = vpop.f32.mrb[0].mxu0
      %v3680 = vadd.f32 %v3487, %v3679
      %v3681 = vpop.f32.mrb[0].mxu0
      %v3682 = vadd.f32 %v3489, %v3681
      %v3683 = vpop.f32.mrb[0].mxu0
      %v3684 = vadd.f32 %v3491, %v3683
      %v3685 = vpop.f32.mrb[0].mxu0
      %v3686 = vadd.f32 %v3493, %v3685
      %3687 = vmatprep.mubr.bf16.mxu0 %v1325
      %3688 = vmatmul.mubr.bf16.gmra.mrb[0].mxu0 %v1324
      %v3689 = vpop.f32.mrb[0].mxu0
      %v3690 = vadd.f32 %v3497, %v3689
      %v3691 = vpop.f32.mrb[0].mxu0
      %v3692 = vadd.f32 %v3499, %v3691
      %v3693 = vpop.f32.mrb[0].mxu0
      %v3694 = vadd.f32 %v3501, %v3693
      %v3695 = vpop.f32.mrb[0].mxu0
      %v3696 = vadd.f32 %v3503, %v3695
      %3697 = vmatprep.mubr.bf16.mxu0 %v1332
      %3698 = vmatmul.mubr.bf16.gmra.mrb[0].mxu0 %v1331
      %v3699 = vpop.f32.mrb[0].mxu0
      %v3700 = vadd.f32 %v3507, %v3699
      %v3701 = vpop.f32.mrb[0].mxu0
      %v3702 = vadd.f32 %v3509, %v3701
      %v3703 = vpop.f32.mrb[0].mxu0
      %v3704 = vadd.f32 %v3511, %v3703
      %v3705 = vpop.f32.mrb[0].mxu0
      %v3706 = vadd.f32 %v3513, %v3705
      %3707 = vmatprep.mubr.bf16.mxu0 %v1339
      %3708 = vmatmul.mubr.bf16.gmra.mrb[0].mxu0 %v1338
      %v3709 = vpop.f32.mrb[0].mxu0
      %v3710 = vadd.f32 %v3517, %v3709
      %v3711 = vpop.f32.mrb[0].mxu0
      %v3712 = vadd.f32 %v3519, %v3711
      %v3713 = vpop.f32.mrb[0].mxu0
      %v3714 = vadd.f32 %v3521, %v3713
      %v3715 = vpop.f32.mrb[0].mxu0
      %v3716 = vadd.f32 %v3523, %v3715
      %3717 = vmatprep.mubr.bf16.mxu0 %v1346
      %3718 = vmatmul.mubr.bf16.gmra.mrb[0].mxu0 %v1345
      %v3719 = vpop.f32.mrb[0].mxu0
      %v3720 = vadd.f32 %v3527, %v3719
      %v3721 = vpop.f32.mrb[0].mxu0
      %v3722 = vadd.f32 %v3529, %v3721
      %v3723 = vpop.f32.mrb[0].mxu0
      %v3724 = vadd.f32 %v3531, %v3723
      %v3725 = vpop.f32.mrb[0].mxu0
      %v3726 = vadd.f32 %v3533, %v3725
      %3727 = vmatprep.mubr.bf16.mxu0 %v1353
      %3728 = vmatmul.mubr.bf16.gmra.mrb[0].mxu0 %v1352
      %v3729 = vpop.f32.mrb[0].mxu0
      %v3730 = vadd.f32 %v3537, %v3729
      %v3731 = vpop.f32.mrb[0].mxu0
      %v3732 = vadd.f32 %v3539, %v3731
      %v3733 = vpop.f32.mrb[0].mxu0
      %v3734 = vadd.f32 %v3541, %v3733
      %v3735 = vpop.f32.mrb[0].mxu0
      %v3736 = vadd.f32 %v3543, %v3735
      %3737 = vmatprep.mubr.bf16.mxu0 %v1360
      %3738 = vmatmul.mubr.bf16.gmra.mrb[0].mxu0 %v1359
      %v3739 = vpop.f32.mrb[0].mxu0
      %v3740 = vadd.f32 %v3547, %v3739
      %v3741 = vpop.f32.mrb[0].mxu0
      %v3742 = vadd.f32 %v3549, %v3741
      %v3743 = vpop.f32.mrb[0].mxu0
      %v3744 = vadd.f32 %v3551, %v3743
      %v3745 = vpop.f32.mrb[0].mxu0
      %v3746 = vadd.f32 %v3553, %v3745
      %3747 = vmatprep.mubr.bf16.mxu0 %v1367
      %3748 = vmatmul.mubr.bf16.gmra.mrb[0].mxu0 %v1366
      %v3749 = vpop.f32.mrb[0].mxu0
      %v3750 = vadd.f32 %v3557, %v3749
      %v3751 = vpop.f32.mrb[0].mxu0
      %v3752 = vadd.f32 %v3559, %v3751
      %v3753 = vpop.f32.mrb[0].mxu0
      %v3754 = vadd.f32 %v3561, %v3753
      %v3755 = vpop.f32.mrb[0].mxu0
      %v3756 = vadd.f32 %v3563, %v3755
      %3757 = vmatprep.mubr.bf16.mxu0 %v1374
      %3758 = vmatmul.mubr.bf16.gmra.mrb[0].mxu0 %v1373
      %v3759 = vpop.f32.mrb[0].mxu0
      %v3760 = vadd.f32 %v3567, %v3759
      %v3761 = vpop.f32.mrb[0].mxu0
      %v3762 = vadd.f32 %v3569, %v3761
      %v3763 = vpop.f32.mrb[0].mxu0
      %v3764 = vadd.f32 %v3571, %v3763
      %v3765 = vpop.f32.mrb[0].mxu0
      %v3766 = vadd.f32 %v3573, %v3765
      %3767 = vdwg.mxu0
      %3768 = vmatprep.subr.bf16.mxu0 %v2293
      %3769 = vmatpush1.bf16.msra.mxu0 %v2292
      %3770 = vmatprep.subr.bf16.mxu0 %v2297
      %3771 = vmatpush1.bf16.msra.mxu0 %v2296
      %3772 = vmatprep.subr.bf16.mxu0 %v2301
      %3773 = vmatpush1.bf16.msra.mxu0 %v2300
      %3774 = vmatprep.subr.bf16.mxu0 %v2305
      %3775 = vmatpush1.bf16.msra.mxu0 %v2304
      %3776 = vmatprep.subr.bf16.mxu0 %v2309
      %3777 = vmatpush1.bf16.msra.mxu0 %v2308
      %3778 = vmatprep.subr.bf16.mxu0 %v2313
      %3779 = vmatpush1.bf16.msra.mxu0 %v2312
      %3780 = vmatprep.subr.bf16.mxu0 %v2317
      %3781 = vmatpush1.bf16.msra.mxu0 %v2316
      %3782 = vmatprep.subr.bf16.mxu0 %v2321
      %3783 = vmatpush1.bf16.msra.mxu0 %v2320
      %3784 = vmatprep.subr.bf16.mxu0 %v2325
      %3785 = vmatpush1.bf16.msra.mxu0 %v2324
      %3786 = vmatprep.subr.bf16.mxu0 %v2329
      %3787 = vmatpush1.bf16.msra.mxu0 %v2328
      %3788 = vmatprep.subr.bf16.mxu0 %v2333
      %3789 = vmatpush1.bf16.msra.mxu0 %v2332
      %3790 = vmatprep.subr.bf16.mxu0 %v2337
      %3791 = vmatpush1.bf16.msra.mxu0 %v2336
      %3792 = vmatprep.subr.bf16.mxu0 %v2341
      %3793 = vmatpush1.bf16.msra.mxu0 %v2340
      %3794 = vmatprep.subr.bf16.mxu0 %v2345
      %3795 = vmatpush1.bf16.msra.mxu0 %v2344
      %3796 = vmatprep.subr.bf16.mxu0 %v2349
      %3797 = vmatpush1.bf16.msra.mxu0 %v2348
      %3798 = vmatprep.subr.bf16.mxu0 %v2353
      %3799 = vmatpush1.bf16.msra.mxu0 %v2352
      %3800 = vmatprep.mubr.bf16.mxu0 %v1271
      %3801 = vmatmul.mubr.bf16.gmra.mrb[0].mxu0 %v1270
      %v3802 = vpop.f32.mrb[0].mxu0
      %v3803 = vadd.f32 %v3610, %v3802
      %v3804 = vpop.f32.mrb[0].mxu0
      %v3805 = vadd.f32 %v3612, %v3804
      %v3806 = vpop.f32.mrb[0].mxu0
      %v3807 = vadd.f32 %v3614, %v3806
      %v3808 = vpop.f32.mrb[0].mxu0
      %v3809 = vadd.f32 %v3616, %v3808
      %3810 = vmatprep.mubr.bf16.mxu0 %v1278
      %3811 = vmatmul.mubr.bf16.gmra.mrb[0].mxu0 %v1277
      %v3812 = vpop.f32.mrb[0].mxu0
      %v3813 = vadd.f32 %v3620, %v3812
      %v3814 = vpop.f32.mrb[0].mxu0
      %v3815 = vadd.f32 %v3622, %v3814
      %v3816 = vpop.f32.mrb[0].mxu0
      %v3817 = vadd.f32 %v3624, %v3816
      %v3818 = vpop.f32.mrb[0].mxu0
      %v3819 = vadd.f32 %v3626, %v3818
      %3820 = vmatprep.mubr.bf16.mxu0 %v1285
      %3821 = vmatmul.mubr.bf16.gmra.mrb[0].mxu0 %v1284
      %v3822 = vpop.f32.mrb[0].mxu0
      %v3823 = vadd.f32 %v3630, %v3822
      %v3824 = vpop.f32.mrb[0].mxu0
      %v3825 = vadd.f32 %v3632, %v3824
      %v3826 = vpop.f32.mrb[0].mxu0
      %v3827 = vadd.f32 %v3634, %v3826
      %v3828 = vpop.f32.mrb[0].mxu0
      %v3829 = vadd.f32 %v3636, %v3828
      %3830 = vmatprep.mubr.bf16.mxu0 %v1292
      %3831 = vmatmul.mubr.bf16.gmra.mrb[0].mxu0 %v1291
      %v3832 = vpop.f32.mrb[0].mxu0
      %v3833 = vadd.f32 %v3640, %v3832
      %v3834 = vpop.f32.mrb[0].mxu0
      %v3835 = vadd.f32 %v3642, %v3834
      %v3836 = vpop.f32.mrb[0].mxu0
      %v3837 = vadd.f32 %v3644, %v3836
      %v3838 = vpop.f32.mrb[0].mxu0
      %v3839 = vadd.f32 %v3646, %v3838
      %3840 = vmatprep.mubr.bf16.mxu0 %v1299
      %3841 = vmatmul.mubr.bf16.gmra.mrb[0].mxu0 %v1298
      %v3842 = vpop.f32.mrb[0].mxu0
      %v3843 = vadd.f32 %v3650, %v3842
      %v3844 = vpop.f32.mrb[0].mxu0
      %v3845 = vadd.f32 %v3652, %v3844
      %v3846 = vpop.f32.mrb[0].mxu0
      %v3847 = vadd.f32 %v3654, %v3846
      %v3848 = vpop.f32.mrb[0].mxu0
      %v3849 = vadd.f32 %v3656, %v3848
      %3850 = vmatprep.mubr.bf16.mxu0 %v1306
      %3851 = vmatmul.mubr.bf16.gmra.mrb[0].mxu0 %v1305
      %v3852 = vpop.f32.mrb[0].mxu0
      %v3853 = vadd.f32 %v3660, %v3852
      %v3854 = vpop.f32.mrb[0].mxu0
      %v3855 = vadd.f32 %v3662, %v3854
      %v3856 = vpop.f32.mrb[0].mxu0
      %v3857 = vadd.f32 %v3664, %v3856
      %v3858 = vpop.f32.mrb[0].mxu0
      %v3859 = vadd.f32 %v3666, %v3858
      %3860 = vmatprep.mubr.bf16.mxu0 %v1313
      %3861 = vmatmul.mubr.bf16.gmra.mrb[0].mxu0 %v1312
      %v3862 = vpop.f32.mrb[0].mxu0
      %v3863 = vadd.f32 %v3670, %v3862
      %v3864 = vpop.f32.mrb[0].mxu0
      %v3865 = vadd.f32 %v3672, %v3864
      %v3866 = vpop.f32.mrb[0].mxu0
      %v3867 = vadd.f32 %v3674, %v3866
      %v3868 = vpop.f32.mrb[0].mxu0
      %v3869 = vadd.f32 %v3676, %v3868
      %3870 = vmatprep.mubr.bf16.mxu0 %v1320
      %3871 = vmatmul.mubr.bf16.gmra.mrb[0].mxu0 %v1319
      %v3872 = vpop.f32.mrb[0].mxu0
      %v3873 = vadd.f32 %v3680, %v3872
      %v3874 = vpop.f32.mrb[0].mxu0
      %v3875 = vadd.f32 %v3682, %v3874
      %v3876 = vpop.f32.mrb[0].mxu0
      %v3877 = vadd.f32 %v3684, %v3876
      %v3878 = vpop.f32.mrb[0].mxu0
      %v3879 = vadd.f32 %v3686, %v3878
      %3880 = vmatprep.mubr.bf16.mxu0 %v1327
      %3881 = vmatmul.mubr.bf16.gmra.mrb[0].mxu0 %v1326
      %v3882 = vpop.f32.mrb[0].mxu0
      %v3883 = vadd.f32 %v3690, %v3882
      %v3884 = vpop.f32.mrb[0].mxu0
      %v3885 = vadd.f32 %v3692, %v3884
      %v3886 = vpop.f32.mrb[0].mxu0
      %v3887 = vadd.f32 %v3694, %v3886
      %v3888 = vpop.f32.mrb[0].mxu0
      %v3889 = vadd.f32 %v3696, %v3888
      %3890 = vmatprep.mubr.bf16.mxu0 %v1334
      %3891 = vmatmul.mubr.bf16.gmra.mrb[0].mxu0 %v1333
      %v3892 = vpop.f32.mrb[0].mxu0
      %v3893 = vadd.f32 %v3700, %v3892
      %v3894 = vpop.f32.mrb[0].mxu0
      %v3895 = vadd.f32 %v3702, %v3894
      %v3896 = vpop.f32.mrb[0].mxu0
      %v3897 = vadd.f32 %v3704, %v3896
      %v3898 = vpop.f32.mrb[0].mxu0
      %v3899 = vadd.f32 %v3706, %v3898
      %3900 = vmatprep.mubr.bf16.mxu0 %v1341
      %3901 = vmatmul.mubr.bf16.gmra.mrb[0].mxu0 %v1340
      %v3902 = vpop.f32.mrb[0].mxu0
      %v3903 = vadd.f32 %v3710, %v3902
      %v3904 = vpop.f32.mrb[0].mxu0
      %v3905 = vadd.f32 %v3712, %v3904
      %v3906 = vpop.f32.mrb[0].mxu0
      %v3907 = vadd.f32 %v3714, %v3906
      %v3908 = vpop.f32.mrb[0].mxu0
      %v3909 = vadd.f32 %v3716, %v3908
      %3910 = vmatprep.mubr.bf16.mxu0 %v1348
      %3911 = vmatmul.mubr.bf16.gmra.mrb[0].mxu0 %v1347
      %v3912 = vpop.f32.mrb[0].mxu0
      %v3913 = vadd.f32 %v3720, %v3912
      %v3914 = vpop.f32.mrb[0].mxu0
      %v3915 = vadd.f32 %v3722, %v3914
      %v3916 = vpop.f32.mrb[0].mxu0
      %v3917 = vadd.f32 %v3724, %v3916
      %v3918 = vpop.f32.mrb[0].mxu0
      %v3919 = vadd.f32 %v3726, %v3918
      %3920 = vmatprep.mubr.bf16.mxu0 %v1355
      %3921 = vmatmul.mubr.bf16.gmra.mrb[0].mxu0 %v1354
      %v3922 = vpop.f32.mrb[0].mxu0
      %v3923 = vadd.f32 %v3730, %v3922
      %v3924 = vpop.f32.mrb[0].mxu0
      %v3925 = vadd.f32 %v3732, %v3924
      %v3926 = vpop.f32.mrb[0].mxu0
      %v3927 = vadd.f32 %v3734, %v3926
      %v3928 = vpop.f32.mrb[0].mxu0
      %v3929 = vadd.f32 %v3736, %v3928
      %3930 = vmatprep.mubr.bf16.mxu0 %v1362
      %3931 = vmatmul.mubr.bf16.gmra.mrb[0].mxu0 %v1361
      %v3932 = vpop.f32.mrb[0].mxu0
      %v3933 = vadd.f32 %v3740, %v3932
      %v3934 = vpop.f32.mrb[0].mxu0
      %v3935 = vadd.f32 %v3742, %v3934
      %v3936 = vpop.f32.mrb[0].mxu0
      %v3937 = vadd.f32 %v3744, %v3936
      %v3938 = vpop.f32.mrb[0].mxu0
      %v3939 = vadd.f32 %v3746, %v3938
      %3940 = vmatprep.mubr.bf16.mxu0 %v1369
      %3941 = vmatmul.mubr.bf16.gmra.mrb[0].mxu0 %v1368
      %v3942 = vpop.f32.mrb[0].mxu0
      %v3943 = vadd.f32 %v3750, %v3942
      %v3944 = vpop.f32.mrb[0].mxu0
      %v3945 = vadd.f32 %v3752, %v3944
      %v3946 = vpop.f32.mrb[0].mxu0
      %v3947 = vadd.f32 %v3754, %v3946
      %v3948 = vpop.f32.mrb[0].mxu0
      %v3949 = vadd.f32 %v3756, %v3948
      %3950 = vmatprep.mubr.bf16.mxu0 %v1376
      %3951 = vmatmul.mubr.bf16.gmra.mrb[0].mxu0 %v1375
      %v3952 = vpop.f32.mrb[0].mxu0
      %v3953 = vadd.f32 %v3760, %v3952
      %v3954 = vpop.f32.mrb[0].mxu0
      %v3955 = vadd.f32 %v3762, %v3954
      %v3956 = vpop.f32.mrb[0].mxu0
      %v3957 = vadd.f32 %v3764, %v3956
      %v3958 = vpop.f32.mrb[0].mxu0
      %v3959 = vadd.f32 %v3766, %v3958
      %3960 = vdwg.mxu0
      %3961 = vmatprep.subr.bf16.mxu0 %v2357
      %3962 = vmatpush1.bf16.msra.mxu0 %v2356
      %3963 = vmatprep.subr.bf16.mxu0 %v2361
      %3964 = vmatpush1.bf16.msra.mxu0 %v2360
      %3965 = vmatprep.subr.bf16.mxu0 %v2365
      %3966 = vmatpush1.bf16.msra.mxu0 %v2364
      %3967 = vmatprep.subr.bf16.mxu0 %v2369
      %3968 = vmatpush1.bf16.msra.mxu0 %v2368
      %3969 = vmatprep.subr.bf16.mxu0 %v2373
      %3970 = vmatpush1.bf16.msra.mxu0 %v2372
      %3971 = vmatprep.subr.bf16.mxu0 %v2377
      %3972 = vmatpush1.bf16.msra.mxu0 %v2376
      %3973 = vmatprep.subr.bf16.mxu0 %v2381
      %3974 = vmatpush1.bf16.msra.mxu0 %v2380
      %3975 = vmatprep.subr.bf16.mxu0 %v2385
      %3976 = vmatpush1.bf16.msra.mxu0 %v2384
      %3977 = vmatprep.subr.bf16.mxu0 0
      %3978 = vmatpush1.bf16.msra.mxu0 0
      %3979 = vmatprep.subr.bf16.mxu0 0
      %3980 = vmatpush1.bf16.msra.mxu0 0
      %3981 = vmatprep.subr.bf16.mxu0 0
      %3982 = vmatpush1.bf16.msra.mxu0 0
      %3983 = vmatprep.subr.bf16.mxu0 0
      %3984 = vmatpush1.bf16.msra.mxu0 0
      %3985 = vmatprep.subr.bf16.mxu0 0
      %3986 = vmatpush1.bf16.msra.mxu0 0
      %3987 = vmatprep.subr.bf16.mxu0 0
      %3988 = vmatpush1.bf16.msra.mxu0 0
      %3989 = vmatprep.subr.bf16.mxu0 0
      %3990 = vmatpush1.bf16.msra.mxu0 0
      %3991 = vmatprep.subr.bf16.mxu0 0
      %3992 = vmatpush1.bf16.msra.mxu0 0
      %3993 = vmatprep.mubr.bf16.mxu0 0
      %3994 = vmatmul.mubr.bf16.gmra.mrb[0].mxu0 %v1272
      %v3995 = vpop.f32.mrb[0].mxu0
      %v3996 = vadd.f32 %v3803, %v3995
      %v3997 = vpop.f32.mrb[0].mxu0
      %v3998 = vadd.f32 %v3805, %v3997
      %v3999 = vpop.f32.mrb[0].mxu0
      %v4000 = vadd.f32 %v3807, %v3999
      %v4001 = vpop.f32.mrb[0].mxu0
      %v4002 = vadd.f32 %v3809, %v4001
      %4003 = vmatprep.mubr.bf16.mxu0 0
      %4004 = vmatmul.mubr.bf16.gmra.mrb[0].mxu0 %v1279
      %v4005 = vpop.f32.mrb[0].mxu0
      %v4006 = vadd.f32 %v3813, %v4005
      %v4007 = vpop.f32.mrb[0].mxu0
      %v4008 = vadd.f32 %v3815, %v4007
      %v4009 = vpop.f32.mrb[0].mxu0
      %v4010 = vadd.f32 %v3817, %v4009
      %v4011 = vpop.f32.mrb[0].mxu0
      %v4012 = vadd.f32 %v3819, %v4011
      %4013 = vmatprep.mubr.bf16.mxu0 0
      %4014 = vmatmul.mubr.bf16.gmra.mrb[0].mxu0 %v1286
      %v4015 = vpop.f32.mrb[0].mxu0
      %v4016 = vadd.f32 %v3823, %v4015
      %v4017 = vpop.f32.mrb[0].mxu0
      %v4018 = vadd.f32 %v3825, %v4017
      %v4019 = vpop.f32.mrb[0].mxu0
      %v4020 = vadd.f32 %v3827, %v4019
      %v4021 = vpop.f32.mrb[0].mxu0
      %v4022 = vadd.f32 %v3829, %v4021
      %4023 = vmatprep.mubr.bf16.mxu0 0
      %4024 = vmatmul.mubr.bf16.gmra.mrb[0].mxu0 %v1293
      %v4025 = vpop.f32.mrb[0].mxu0
      %v4026 = vadd.f32 %v3833, %v4025
      %v4027 = vpop.f32.mrb[0].mxu0
      %v4028 = vadd.f32 %v3835, %v4027
      %v4029 = vpop.f32.mrb[0].mxu0
      %v4030 = vadd.f32 %v3837, %v4029
      %v4031 = vpop.f32.mrb[0].mxu0
      %v4032 = vadd.f32 %v3839, %v4031
      %4033 = vmatprep.mubr.bf16.mxu0 0
      %4034 = vmatmul.mubr.bf16.gmra.mrb[0].mxu0 %v1300
      %v4035 = vpop.f32.mrb[0].mxu0
      %v4036 = vadd.f32 %v3843, %v4035
      %v4037 = vpop.f32.mrb[0].mxu0
      %v4038 = vadd.f32 %v3845, %v4037
      %v4039 = vpop.f32.mrb[0].mxu0
      %v4040 = vadd.f32 %v3847, %v4039
      %v4041 = vpop.f32.mrb[0].mxu0
      %v4042 = vadd.f32 %v3849, %v4041
      %4043 = vmatprep.mubr.bf16.mxu0 0
      %4044 = vmatmul.mubr.bf16.gmra.mrb[0].mxu0 %v1307
      %v4045 = vpop.f32.mrb[0].mxu0
      %v4046 = vadd.f32 %v3853, %v4045
      %v4047 = vpop.f32.mrb[0].mxu0
      %v4048 = vadd.f32 %v3855, %v4047
      %v4049 = vpop.f32.mrb[0].mxu0
      %v4050 = vadd.f32 %v3857, %v4049
      %v4051 = vpop.f32.mrb[0].mxu0
      %v4052 = vadd.f32 %v3859, %v4051
      %4053 = vmatprep.mubr.bf16.mxu0 0
      %4054 = vmatmul.mubr.bf16.gmra.mrb[0].mxu0 %v1314
      %v4055 = vpop.f32.mrb[0].mxu0
      %v4056 = vadd.f32 %v3863, %v4055
      %v4057 = vpop.f32.mrb[0].mxu0
      %v4058 = vadd.f32 %v3865, %v4057
      %v4059 = vpop.f32.mrb[0].mxu0
      %v4060 = vadd.f32 %v3867, %v4059
      %v4061 = vpop.f32.mrb[0].mxu0
      %v4062 = vadd.f32 %v3869, %v4061
      %4063 = vmatprep.mubr.bf16.mxu0 0
      %4064 = vmatmul.mubr.bf16.gmra.mrb[0].mxu0 %v1321
      %v4065 = vpop.f32.mrb[0].mxu0
      %v4066 = vadd.f32 %v3873, %v4065
      %v4067 = vpop.f32.mrb[0].mxu0
      %v4068 = vadd.f32 %v3875, %v4067
      %v4069 = vpop.f32.mrb[0].mxu0
      %v4070 = vadd.f32 %v3877, %v4069
      %v4071 = vpop.f32.mrb[0].mxu0
      %v4072 = vadd.f32 %v3879, %v4071
      %4073 = vmatprep.mubr.bf16.mxu0 0
      %4074 = vmatmul.mubr.bf16.gmra.mrb[0].mxu0 %v1328
      %v4075 = vpop.f32.mrb[0].mxu0
      %v4076 = vadd.f32 %v3883, %v4075
      %v4077 = vpop.f32.mrb[0].mxu0
      %v4078 = vadd.f32 %v3885, %v4077
      %v4079 = vpop.f32.mrb[0].mxu0
      %v4080 = vadd.f32 %v3887, %v4079
      %v4081 = vpop.f32.mrb[0].mxu0
      %v4082 = vadd.f32 %v3889, %v4081
      %4083 = vmatprep.mubr.bf16.mxu0 0
      %4084 = vmatmul.mubr.bf16.gmra.mrb[0].mxu0 %v1335
      %v4085 = vpop.f32.mrb[0].mxu0
      %v4086 = vadd.f32 %v3893, %v4085
      %v4087 = vpop.f32.mrb[0].mxu0
      %v4088 = vadd.f32 %v3895, %v4087
      %v4089 = vpop.f32.mrb[0].mxu0
      %v4090 = vadd.f32 %v3897, %v4089
      %v4091 = vpop.f32.mrb[0].mxu0
      %v4092 = vadd.f32 %v3899, %v4091
      %4093 = vmatprep.mubr.bf16.mxu0 0
      %4094 = vmatmul.mubr.bf16.gmra.mrb[0].mxu0 %v1342
      %v4095 = vpop.f32.mrb[0].mxu0
      %v4096 = vadd.f32 %v3903, %v4095
      %v4097 = vpop.f32.mrb[0].mxu0
      %v4098 = vadd.f32 %v3905, %v4097
      %v4099 = vpop.f32.mrb[0].mxu0
      %v4100 = vadd.f32 %v3907, %v4099
      %v4101 = vpop.f32.mrb[0].mxu0
      %v4102 = vadd.f32 %v3909, %v4101
      %4103 = vmatprep.mubr.bf16.mxu0 0
      %4104 = vmatmul.mubr.bf16.gmra.mrb[0].mxu0 %v1349
      %v4105 = vpop.f32.mrb[0].mxu0
      %v4106 = vadd.f32 %v3913, %v4105
      %v4107 = vpop.f32.mrb[0].mxu0
      %v4108 = vadd.f32 %v3915, %v4107
      %v4109 = vpop.f32.mrb[0].mxu0
      %v4110 = vadd.f32 %v3917, %v4109
      %v4111 = vpop.f32.mrb[0].mxu0
      %v4112 = vadd.f32 %v3919, %v4111
      %4113 = vmatprep.mubr.bf16.mxu0 0
      %4114 = vmatmul.mubr.bf16.gmra.mrb[0].mxu0 %v1356
      %v4115 = vpop.f32.mrb[0].mxu0
      %v4116 = vadd.f32 %v3923, %v4115
      %v4117 = vpop.f32.mrb[0].mxu0
      %v4118 = vadd.f32 %v3925, %v4117
      %v4119 = vpop.f32.mrb[0].mxu0
      %v4120 = vadd.f32 %v3927, %v4119
      %v4121 = vpop.f32.mrb[0].mxu0
      %v4122 = vadd.f32 %v3929, %v4121
      %4123 = vmatprep.mubr.bf16.mxu0 0
      %4124 = vmatmul.mubr.bf16.gmra.mrb[0].mxu0 %v1363
      %v4125 = vpop.f32.mrb[0].mxu0
      %v4126 = vadd.f32 %v3933, %v4125
      %v4127 = vpop.f32.mrb[0].mxu0
      %v4128 = vadd.f32 %v3935, %v4127
      %v4129 = vpop.f32.mrb[0].mxu0
      %v4130 = vadd.f32 %v3937, %v4129
      %v4131 = vpop.f32.mrb[0].mxu0
      %v4132 = vadd.f32 %v3939, %v4131
      %4133 = vmatprep.mubr.bf16.mxu0 0
      %4134 = vmatmul.mubr.bf16.gmra.mrb[0].mxu0 %v1370
      %v4135 = vpop.f32.mrb[0].mxu0
      %v4136 = vadd.f32 %v3943, %v4135
      %v4137 = vpop.f32.mrb[0].mxu0
      %v4138 = vadd.f32 %v3945, %v4137
      %v4139 = vpop.f32.mrb[0].mxu0
      %v4140 = vadd.f32 %v3947, %v4139
      %v4141 = vpop.f32.mrb[0].mxu0
      %v4142 = vadd.f32 %v3949, %v4141
      %4143 = vmatprep.mubr.bf16.mxu0 0
      %4144 = vmatmul.mubr.bf16.gmra.mrb[0].mxu0 %v1377
      %v4145 = vpop.f32.mrb[0].mxu0
      %v4146 = vadd.f32 %v3953, %v4145
      %v4147 = vpop.f32.mrb[0].mxu0
      %v4148 = vadd.f32 %v3955, %v4147
      %v4149 = vpop.f32.mrb[0].mxu0
      %v4150 = vadd.f32 %v3957, %v4149
      %v4151 = vpop.f32.mrb[0].mxu0
      %v4152 = vadd.f32 %v3959, %v4151
      %4153 = vdwg.mxu0
      %v4154 = vmax.f32 %v3224, 0.0
      %v4155 = vmax.f32 %v3226, 0.0
      %v4156 = vmax.f32 %v3996, 0.0
      %v4157 = vmax.f32 %v3998, 0.0
      %v4158 = vmax.f32 %v3228, 0.0
      %v4159 = vmax.f32 %v3230, 0.0
      %v4160 = vmax.f32 %v4000, 0.0
      %v4161 = vmax.f32 %v4002, 0.0
      %v4162 = vmax.f32 %v3234, 0.0
      %v4163 = vmax.f32 %v3236, 0.0
      %v4164 = vmax.f32 %v4006, 0.0
      %v4165 = vmax.f32 %v4008, 0.0
      %v4166 = vmax.f32 %v3238, 0.0
      %v4167 = vmax.f32 %v3240, 0.0
      %v4168 = vmax.f32 %v4010, 0.0
      %v4169 = vmax.f32 %v4012, 0.0
      %v4170 = vmax.f32 %v3244, 0.0
      %v4171 = vmax.f32 %v3246, 0.0
      %v4172 = vmax.f32 %v4016, 0.0
      %v4173 = vmax.f32 %v4018, 0.0
      %v4174 = vmax.f32 %v3248, 0.0
      %v4175 = vmax.f32 %v3250, 0.0
      %v4176 = vmax.f32 %v4020, 0.0
      %v4177 = vmax.f32 %v4022, 0.0
      %v4178 = vmax.f32 %v3254, 0.0
      %v4179 = vmax.f32 %v3256, 0.0
      %v4180 = vmax.f32 %v4026, 0.0
      %v4181 = vmax.f32 %v4028, 0.0
      %v4182 = vmax.f32 %v3258, 0.0
      %v4183 = vmax.f32 %v3260, 0.0
      %v4184 = vmax.f32 %v4030, 0.0
      %v4185 = vmax.f32 %v4032, 0.0
      %v4186 = vmax.f32 %v3264, 0.0
      %v4187 = vmax.f32 %v3266, 0.0
      %v4188 = vmax.f32 %v4036, 0.0
      %v4189 = vmax.f32 %v4038, 0.0
      %v4190 = vmax.f32 %v3268, 0.0
      %v4191 = vmax.f32 %v3270, 0.0
      %v4192 = vmax.f32 %v4040, 0.0
      %v4193 = vmax.f32 %v4042, 0.0
      %v4194 = vmax.f32 %v3274, 0.0
      %v4195 = vmax.f32 %v3276, 0.0
      %v4196 = vmax.f32 %v4046, 0.0
      %v4197 = vmax.f32 %v4048, 0.0
      %v4198 = vmax.f32 %v3278, 0.0
      %v4199 = vmax.f32 %v3280, 0.0
      %v4200 = vmax.f32 %v4050, 0.0
      %v4201 = vmax.f32 %v4052, 0.0
      %v4202 = vmax.f32 %v3284, 0.0
      %v4203 = vmax.f32 %v3286, 0.0
      %v4204 = vmax.f32 %v4056, 0.0
      %v4205 = vmax.f32 %v4058, 0.0
      %v4206 = vmax.f32 %v3288, 0.0
      %v4207 = vmax.f32 %v3290, 0.0
      %v4208 = vmax.f32 %v4060, 0.0
      %v4209 = vmax.f32 %v4062, 0.0
      %v4210 = vmax.f32 %v3294, 0.0
      %v4211 = vmax.f32 %v3296, 0.0
      %v4212 = vmax.f32 %v4066, 0.0
      %v4213 = vmax.f32 %v4068, 0.0
      %v4214 = vmax.f32 %v3298, 0.0
      %v4215 = vmax.f32 %v3300, 0.0
      %v4216 = vmax.f32 %v4070, 0.0
      %v4217 = vmax.f32 %v4072, 0.0
      %v4218 = vmax.f32 %v3304, 0.0
      %v4219 = vmax.f32 %v3306, 0.0
      %v4220 = vmax.f32 %v4076, 0.0
      %v4221 = vmax.f32 %v4078, 0.0
      %v4222 = vmax.f32 %v3308, 0.0
      %v4223 = vmax.f32 %v3310, 0.0
      %v4224 = vmax.f32 %v4080, 0.0
      %v4225 = vmax.f32 %v4082, 0.0
      %v4226 = vmax.f32 %v3314, 0.0
      %v4227 = vmax.f32 %v3316, 0.0
      %v4228 = vmax.f32 %v4086, 0.0
      %v4229 = vmax.f32 %v4088, 0.0
      %v4230 = vmax.f32 %v3318, 0.0
      %v4231 = vmax.f32 %v3320, 0.0
      %v4232 = vmax.f32 %v4090, 0.0
      %v4233 = vmax.f32 %v4092, 0.0
      %v4234 = vmax.f32 %v3324, 0.0
      %v4235 = vmax.f32 %v3326, 0.0
      %v4236 = vmax.f32 %v4096, 0.0
      %v4237 = vmax.f32 %v4098, 0.0
      %v4238 = vmax.f32 %v3328, 0.0
      %v4239 = vmax.f32 %v3330, 0.0
      %v4240 = vmax.f32 %v4100, 0.0
      %v4241 = vmax.f32 %v4102, 0.0
      %v4242 = vmax.f32 %v3334, 0.0
      %v4243 = vmax.f32 %v3336, 0.0
      %v4244 = vmax.f32 %v4106, 0.0
      %v4245 = vmax.f32 %v4108, 0.0
      %v4246 = vmax.f32 %v3338, 0.0
      %v4247 = vmax.f32 %v3340, 0.0
      %v4248 = vmax.f32 %v4110, 0.0
      %v4249 = vmax.f32 %v4112, 0.0
      %v4250 = vmax.f32 %v3344, 0.0
      %v4251 = vmax.f32 %v3346, 0.0
      %v4252 = vmax.f32 %v4116, 0.0
      %v4253 = vmax.f32 %v4118, 0.0
      %v4254 = vmax.f32 %v3348, 0.0
      %v4255 = vmax.f32 %v3350, 0.0
      %v4256 = vmax.f32 %v4120, 0.0
      %v4257 = vmax.f32 %v4122, 0.0
      %v4258 = vmax.f32 %v3354, 0.0
      %v4259 = vmax.f32 %v3356, 0.0
      %v4260 = vmax.f32 %v4126, 0.0
      %v4261 = vmax.f32 %v4128, 0.0
      %v4262 = vmax.f32 %v3358, 0.0
      %v4263 = vmax.f32 %v3360, 0.0
      %v4264 = vmax.f32 %v4130, 0.0
      %v4265 = vmax.f32 %v4132, 0.0
      %v4266 = vmax.f32 %v3364, 0.0
      %v4267 = vmax.f32 %v3366, 0.0
      %v4268 = vmax.f32 %v4136, 0.0
      %v4269 = vmax.f32 %v4138, 0.0
      %v4270 = vmax.f32 %v3368, 0.0
      %v4271 = vmax.f32 %v3370, 0.0
      %v4272 = vmax.f32 %v4140, 0.0
      %v4273 = vmax.f32 %v4142, 0.0
      %v4274 = vmax.f32 %v3374, 0.0
      %v4275 = vmax.f32 %v3376, 0.0
      %v4276 = vmax.f32 %v4146, 0.0
      %v4277 = vmax.f32 %v4148, 0.0
      %v4278 = vmax.f32 %v3378, 0.0
      %v4279 = vmax.f32 %v3380, 0.0
      %v4280 = vmax.f32 %v4150, 0.0
      %v4281 = vmax.f32 %v4152, 0.0
      %v4282 = vpack.c.bf16 %v4158, %v4154
      %v4283 = vpack.c.bf16 %v4159, %v4155
      %v4284 = vpack.c.bf16 %v4160, %v4156
      %v4285 = vpack.c.bf16 %v4161, %v4157
      %v4286 = vpack.c.bf16 %v4166, %v4162
      %v4287 = vpack.c.bf16 %v4167, %v4163
      %v4288 = vpack.c.bf16 %v4168, %v4164
      %v4289 = vpack.c.bf16 %v4169, %v4165
      %v4290 = vpack.c.bf16 %v4174, %v4170
      %v4291 = vpack.c.bf16 %v4175, %v4171
      %v4292 = vpack.c.bf16 %v4176, %v4172
      %v4293 = vpack.c.bf16 %v4177, %v4173
      %v4294 = vpack.c.bf16 %v4182, %v4178
      %v4295 = vpack.c.bf16 %v4183, %v4179
      %v4296 = vpack.c.bf16 %v4184, %v4180
      %v4297 = vpack.c.bf16 %v4185, %v4181
      %v4298 = vpack.c.bf16 %v4190, %v4186
      %v4299 = vpack.c.bf16 %v4191, %v4187
      %v4300 = vpack.c.bf16 %v4192, %v4188
      %v4301 = vpack.c.bf16 %v4193, %v4189
      %v4302 = vpack.c.bf16 %v4198, %v4194
      %v4303 = vpack.c.bf16 %v4199, %v4195
      %v4304 = vpack.c.bf16 %v4200, %v4196
      %v4305 = vpack.c.bf16 %v4201, %v4197
      %v4306 = vpack.c.bf16 %v4206, %v4202
      %v4307 = vpack.c.bf16 %v4207, %v4203
      %v4308 = vpack.c.bf16 %v4208, %v4204
      %v4309 = vpack.c.bf16 %v4209, %v4205
      %v4310 = vpack.c.bf16 %v4214, %v4210
      %v4311 = vpack.c.bf16 %v4215, %v4211
      %v4312 = vpack.c.bf16 %v4216, %v4212
      %v4313 = vpack.c.bf16 %v4217, %v4213
      %v4314 = vpack.c.bf16 %v4222, %v4218
      %v4315 = vpack.c.bf16 %v4223, %v4219
      %v4316 = vpack.c.bf16 %v4224, %v4220
      %v4317 = vpack.c.bf16 %v4225, %v4221
      %v4318 = vpack.c.bf16 %v4230, %v4226
      %v4319 = vpack.c.bf16 %v4231, %v4227
      %v4320 = vpack.c.bf16 %v4232, %v4228
      %v4321 = vpack.c.bf16 %v4233, %v4229
      %v4322 = vpack.c.bf16 %v4238, %v4234
      %v4323 = vpack.c.bf16 %v4239, %v4235
      %v4324 = vpack.c.bf16 %v4240, %v4236
      %v4325 = vpack.c.bf16 %v4241, %v4237
      %v4326 = vpack.c.bf16 %v4246, %v4242
      %v4327 = vpack.c.bf16 %v4247, %v4243
      %v4328 = vpack.c.bf16 %v4248, %v4244
      %v4329 = vpack.c.bf16 %v4249, %v4245
      %v4330 = vpack.c.bf16 %v4254, %v4250
      %v4331 = vpack.c.bf16 %v4255, %v4251
      %v4332 = vpack.c.bf16 %v4256, %v4252
      %v4333 = vpack.c.bf16 %v4257, %v4253
      %v4334 = vpack.c.bf16 %v4262, %v4258
      %v4335 = vpack.c.bf16 %v4263, %v4259
      %v4336 = vpack.c.bf16 %v4264, %v4260
      %v4337 = vpack.c.bf16 %v4265, %v4261
      %v4338 = vpack.c.bf16 %v4270, %v4266
      %v4339 = vpack.c.bf16 %v4271, %v4267
      %v4340 = vpack.c.bf16 %v4272, %v4268
      %v4341 = vpack.c.bf16 %v4273, %v4269
      %v4342 = vpack.c.bf16 %v4278, %v4274
      %v4343 = vpack.c.bf16 %v4279, %v4275
      %v4344 = vpack.c.bf16 %v4280, %v4276
      %v4345 = vpack.c.bf16 %v4281, %v4277
      %v4346 = vld [vmem:[%s4] sm:$0xff]
      %v4347 = vld [vmem:[%s4 + $0x8] sm:$0xff]
      %v4348 = vld [vmem:[%s4 + $0x10] sm:$0xff]
      %v4349 = vld [vmem:[%s4 + $0x18] sm:$0xff]
      %v4350 = vld [vmem:[%s4 + $0x20] sm:$0xff]
      %v4351 = vld [vmem:[%s4 + $0x28] sm:$0xff]
      %v4352 = vld [vmem:[%s4 + $0x30] sm:$0xff]
      %v4353 = vld [vmem:[%s4 + $0x38] sm:$0xff]
      %v4354 = vld [vmem:[%s4 + $0x40] sm:$0xff]
      %v4355 = vld [vmem:[%s4 + $0x48] sm:$0xff]
      %v4356 = vld [vmem:[%s4 + $0x50] sm:$0xff]
      %v4357 = vld [vmem:[%s4 + $0x58] sm:$0xff]
      %v4358 = vld [vmem:[%s4 + $0x60] sm:$0xff]
      %v4359 = vld [vmem:[%s4 + $0x68] sm:$0xff]
      %v4360 = vld [vmem:[%s4 + $0x70] sm:$0xff]
      %v4361 = vld [vmem:[%s4 + $0x78] sm:$0xff]
      %v4362 = vld [vmem:[%s4 + $0x80] sm:$0xff]
      %v4363 = vld [vmem:[%s4 + $0x88] sm:$0xff]
      %v4364 = vld [vmem:[%s4 + $0x90] sm:$0xff]
      %v4365 = vld [vmem:[%s4 + $0x98] sm:$0xff]
      %v4366 = vld [vmem:[%s4 + $0xa0] sm:$0xff]
      %v4367 = vld [vmem:[%s4 + $0xa8] sm:$0xff]
      %v4368 = vld [vmem:[%s4 + $0xb0] sm:$0xff]
      %v4369 = vld [vmem:[%s4 + $0xb8] sm:$0xff]
      %v4370 = vld [vmem:[%s4 + $0xc0] sm:$0xff]
      %v4371 = vld [vmem:[%s4 + $0xc8] sm:$0xff]
      %v4372 = vld [vmem:[%s4 + $0xd0] sm:$0xff]
      %v4373 = vld [vmem:[%s4 + $0xd8] sm:$0xff]
      %v4374 = vld [vmem:[%s4 + $0xe0] sm:$0xff]
      %v4375 = vld [vmem:[%s4 + $0xe8] sm:$0xff]
      %v4376 = vld [vmem:[%s4 + $0xf0] sm:$0xff]
      %v4377 = vld [vmem:[%s4 + $0xf8] sm:$0xff]
      %v4378 = vld [vmem:[%s4 + $0x100] sm:$0xff]
      %v4379 = vld [vmem:[%s4 + $0x108] sm:$0xff]
      %v4380 = vld [vmem:[%s4 + $0x110] sm:$0xff]
      %v4381 = vld [vmem:[%s4 + $0x118] sm:$0xff]
      %v4382 = vld [vmem:[%s4 + $0x120] sm:$0xff]
      %v4383 = vld [vmem:[%s4 + $0x128] sm:$0xff]
      %v4384 = vld [vmem:[%s4 + $0x130] sm:$0xff]
      %v4385 = vld [vmem:[%s4 + $0x138] sm:$0xff]
      %v4386 = vld [vmem:[%s4 + $0x140] sm:$0xff]
      %v4387 = vld [vmem:[%s4 + $0x148] sm:$0xff]
      %v4388 = vld [vmem:[%s4 + $0x150] sm:$0xff]
      %v4389 = vld [vmem:[%s4 + $0x158] sm:$0xff]
      %v4390 = vld [vmem:[%s4 + $0x160] sm:$0xff]
      %v4391 = vld [vmem:[%s4 + $0x168] sm:$0xff]
      %v4392 = vld [vmem:[%s4 + $0x170] sm:$0xff]
      %v4393 = vld [vmem:[%s4 + $0x178] sm:$0xff]
      %v4394 = vld [vmem:[%s4 + $0x180] sm:$0xff]
      %v4395 = vld [vmem:[%s4 + $0x188] sm:$0xff]
      %v4396 = vld [vmem:[%s4 + $0x190] sm:$0xff]
      %v4397 = vld [vmem:[%s4 + $0x198] sm:$0xff]
      %v4398 = vld [vmem:[%s4 + $0x1a0] sm:$0xff]
      %v4399 = vld [vmem:[%s4 + $0x1a8] sm:$0xff]
      %v4400 = vld [vmem:[%s4 + $0x1b0] sm:$0xff]
      %v4401 = vld [vmem:[%s4 + $0x1b8] sm:$0xff]
      %v4402 = vld [vmem:[%s4 + $0x1c0] sm:$0xff]
      %v4403 = vld [vmem:[%s4 + $0x1c8] sm:$0xff]
      %v4404 = vld [vmem:[%s4 + $0x1d0] sm:$0xff]
      %v4405 = vld [vmem:[%s4 + $0x1d8] sm:$0xff]
      %v4406 = vld [vmem:[%s4 + $0x1e0] sm:$0xff]
      %v4407 = vld [vmem:[%s4 + $0x1e8] sm:$0xff]
      %v4408 = vld [vmem:[%s4 + $0x1f0] sm:$0xff]
      %v4409 = vld [vmem:[%s4 + $0x1f8] sm:$0xff]
      %v4410 = vld [vmem:[%s5] sm:$0x3]
      %v4412 = vlaneseq
      %v4413 = vshrl.u32 %v4412, 7
      %v4414 = vsub.s32 0, %v4413
      %v4415 = vrot.slane %v4410, %v4414
      %v4416 = vlaneseq
      %v4417 = vshrl.u32 %v4416, 7
      %v4418 = vsub.s32 1, %v4417
      %v4419 = vrot.slane %v4410, %v4418
      %v4486 = vunpack.c.l.b16 %v4346
      %v4487 = vunpack.c.h.b16 %v4346
      %v4488 = vunpack.c.l.b16 %v4347
      %v4489 = vunpack.c.h.b16 %v4347
      %v4490 = vunpack.c.l.b16 %v4348
      %v4491 = vunpack.c.h.b16 %v4348
      %v4492 = vunpack.c.l.b16 %v4349
      %v4493 = vunpack.c.h.b16 %v4349
      %v4494 = vunpack.c.l.b16 %v4350
      %v4495 = vunpack.c.h.b16 %v4350
      %v4496 = vunpack.c.l.b16 %v4351
      %v4497 = vunpack.c.h.b16 %v4351
      %v4498 = vunpack.c.l.b16 %v4352
      %v4499 = vunpack.c.h.b16 %v4352
      %v4500 = vunpack.c.l.b16 %v4353
      %v4501 = vunpack.c.h.b16 %v4353
      %v4502 = vunpack.c.l.b16 %v4354
      %v4503 = vunpack.c.h.b16 %v4354
      %v4504 = vunpack.c.l.b16 %v4355
      %v4505 = vunpack.c.h.b16 %v4355
      %v4506 = vunpack.c.l.b16 %v4356
      %v4507 = vunpack.c.h.b16 %v4356
      %v4508 = vunpack.c.l.b16 %v4357
      %v4509 = vunpack.c.h.b16 %v4357
      %v4510 = vunpack.c.l.b16 %v4358
      %v4511 = vunpack.c.h.b16 %v4358
      %v4512 = vunpack.c.l.b16 %v4359
      %v4513 = vunpack.c.h.b16 %v4359
      %v4514 = vunpack.c.l.b16 %v4360
      %v4515 = vunpack.c.h.b16 %v4360
      %v4516 = vunpack.c.l.b16 %v4361
      %v4517 = vunpack.c.h.b16 %v4361
      %v4518 = vunpack.c.l.b16 %v4362
      %v4519 = vunpack.c.h.b16 %v4362
      %v4520 = vunpack.c.l.b16 %v4363
      %v4521 = vunpack.c.h.b16 %v4363
      %v4522 = vunpack.c.l.b16 %v4364
      %v4523 = vunpack.c.h.b16 %v4364
      %v4524 = vunpack.c.l.b16 %v4365
      %v4525 = vunpack.c.h.b16 %v4365
      %v4526 = vunpack.c.l.b16 %v4366
      %v4527 = vunpack.c.h.b16 %v4366
      %v4528 = vunpack.c.l.b16 %v4367
      %v4529 = vunpack.c.h.b16 %v4367
      %v4530 = vunpack.c.l.b16 %v4368
      %v4531 = vunpack.c.h.b16 %v4368
      %v4532 = vunpack.c.l.b16 %v4369
      %v4533 = vunpack.c.h.b16 %v4369
      %v4534 = vunpack.c.l.b16 %v4370
      %v4535 = vunpack.c.h.b16 %v4370
      %v4536 = vunpack.c.l.b16 %v4371
      %v4537 = vunpack.c.h.b16 %v4371
      %v4538 = vunpack.c.l.b16 %v4372
      %v4539 = vunpack.c.h.b16 %v4372
      %v4540 = vunpack.c.l.b16 %v4373
      %v4541 = vunpack.c.h.b16 %v4373
      %v4542 = vunpack.c.l.b16 %v4374
      %v4543 = vunpack.c.h.b16 %v4374
      %v4544 = vunpack.c.l.b16 %v4375
      %v4545 = vunpack.c.h.b16 %v4375
      %v4546 = vunpack.c.l.b16 %v4376
      %v4547 = vunpack.c.h.b16 %v4376
      %v4548 = vunpack.c.l.b16 %v4377
      %v4549 = vunpack.c.h.b16 %v4377
      %v4550 = vunpack.c.l.b16 %v4378
      %v4551 = vunpack.c.h.b16 %v4378
      %v4552 = vunpack.c.l.b16 %v4379
      %v4553 = vunpack.c.h.b16 %v4379
      %v4554 = vunpack.c.l.b16 %v4380
      %v4555 = vunpack.c.h.b16 %v4380
      %v4556 = vunpack.c.l.b16 %v4381
      %v4557 = vunpack.c.h.b16 %v4381
      %v4558 = vunpack.c.l.b16 %v4382
      %v4559 = vunpack.c.h.b16 %v4382
      %v4560 = vunpack.c.l.b16 %v4383
      %v4561 = vunpack.c.h.b16 %v4383
      %v4562 = vunpack.c.l.b16 %v4384
      %v4563 = vunpack.c.h.b16 %v4384
      %v4564 = vunpack.c.l.b16 %v4385
      %v4565 = vunpack.c.h.b16 %v4385
      %v4566 = vunpack.c.l.b16 %v4386
      %v4567 = vunpack.c.h.b16 %v4386
      %v4568 = vunpack.c.l.b16 %v4387
      %v4569 = vunpack.c.h.b16 %v4387
      %v4570 = vunpack.c.l.b16 %v4388
      %v4571 = vunpack.c.h.b16 %v4388
      %v4572 = vunpack.c.l.b16 %v4389
      %v4573 = vunpack.c.h.b16 %v4389
      %v4574 = vunpack.c.l.b16 %v4390
      %v4575 = vunpack.c.h.b16 %v4390
      %v4576 = vunpack.c.l.b16 %v4391
      %v4577 = vunpack.c.h.b16 %v4391
      %v4578 = vunpack.c.l.b16 %v4392
      %v4579 = vunpack.c.h.b16 %v4392
      %v4580 = vunpack.c.l.b16 %v4393
      %v4581 = vunpack.c.h.b16 %v4393
      %v4582 = vunpack.c.l.b16 %v4394
      %v4583 = vunpack.c.h.b16 %v4394
      %v4584 = vunpack.c.l.b16 %v4395
      %v4585 = vunpack.c.h.b16 %v4395
      %v4586 = vunpack.c.l.b16 %v4396
      %v4587 = vunpack.c.h.b16 %v4396
      %v4588 = vunpack.c.l.b16 %v4397
      %v4589 = vunpack.c.h.b16 %v4397
      %v4590 = vunpack.c.l.b16 %v4398
      %v4591 = vunpack.c.h.b16 %v4398
      %v4592 = vunpack.c.l.b16 %v4399
      %v4593 = vunpack.c.h.b16 %v4399
      %v4594 = vunpack.c.l.b16 %v4400
      %v4595 = vunpack.c.h.b16 %v4400
      %v4596 = vunpack.c.l.b16 %v4401
      %v4597 = vunpack.c.h.b16 %v4401
      %v4598 = vunpack.c.l.b16 %v4402
      %v4599 = vunpack.c.h.b16 %v4402
      %v4600 = vunpack.c.l.b16 %v4403
      %v4601 = vunpack.c.h.b16 %v4403
      %v4602 = vunpack.c.l.b16 %v4404
      %v4603 = vunpack.c.h.b16 %v4404
      %v4604 = vunpack.c.l.b16 %v4405
      %v4605 = vunpack.c.h.b16 %v4405
      %v4606 = vunpack.c.l.b16 %v4406
      %v4607 = vunpack.c.h.b16 %v4406
      %v4608 = vunpack.c.l.b16 %v4407
      %v4609 = vunpack.c.h.b16 %v4407
      %v4610 = vunpack.c.l.b16 %v4408
      %v4611 = vunpack.c.h.b16 %v4408
      %v4612 = vunpack.c.l.b16 %v4409
      %v4613 = vunpack.c.h.b16 %v4409
      %v4614 = vpack.c.b16 %v4488, %v4486
      %v4615 = vpack.c.b16 %v4489, %v4487
      %v4616 = vpack.c.b16 %v4492, %v4490
      %v4617 = vpack.c.b16 %v4493, %v4491
      %v4618 = vpack.c.b16 %v4496, %v4494
      %v4619 = vpack.c.b16 %v4497, %v4495
      %v4620 = vpack.c.b16 %v4500, %v4498
      %v4621 = vpack.c.b16 %v4501, %v4499
      %v4622 = vpack.c.b16 %v4504, %v4502
      %v4623 = vpack.c.b16 %v4505, %v4503
      %v4624 = vpack.c.b16 %v4508, %v4506
      %v4625 = vpack.c.b16 %v4509, %v4507
      %v4626 = vpack.c.b16 %v4512, %v4510
      %v4627 = vpack.c.b16 %v4513, %v4511
      %v4628 = vpack.c.b16 %v4516, %v4514
      %v4629 = vpack.c.b16 %v4517, %v4515
      %v4630 = vpack.c.b16 %v4520, %v4518
      %v4631 = vpack.c.b16 %v4521, %v4519
      %v4632 = vpack.c.b16 %v4524, %v4522
      %v4633 = vpack.c.b16 %v4525, %v4523
      %v4634 = vpack.c.b16 %v4528, %v4526
      %v4635 = vpack.c.b16 %v4529, %v4527
      %v4636 = vpack.c.b16 %v4532, %v4530
      %v4637 = vpack.c.b16 %v4533, %v4531
      %v4638 = vpack.c.b16 %v4536, %v4534
      %v4639 = vpack.c.b16 %v4537, %v4535
      %v4640 = vpack.c.b16 %v4540, %v4538
      %v4641 = vpack.c.b16 %v4541, %v4539
      %v4642 = vpack.c.b16 %v4544, %v4542
      %v4643 = vpack.c.b16 %v4545, %v4543
      %v4644 = vpack.c.b16 %v4548, %v4546
      %v4645 = vpack.c.b16 %v4549, %v4547
      %v4646 = vpack.c.b16 %v4552, %v4550
      %v4647 = vpack.c.b16 %v4553, %v4551
      %v4648 = vpack.c.b16 %v4556, %v4554
      %v4649 = vpack.c.b16 %v4557, %v4555
      %v4650 = vpack.c.b16 %v4560, %v4558
      %v4651 = vpack.c.b16 %v4561, %v4559
      %v4652 = vpack.c.b16 %v4564, %v4562
      %v4653 = vpack.c.b16 %v4565, %v4563
      %v4654 = vpack.c.b16 %v4568, %v4566
      %v4655 = vpack.c.b16 %v4569, %v4567
      %v4656 = vpack.c.b16 %v4572, %v4570
      %v4657 = vpack.c.b16 %v4573, %v4571
      %v4658 = vpack.c.b16 %v4576, %v4574
      %v4659 = vpack.c.b16 %v4577, %v4575
      %v4660 = vpack.c.b16 %v4580, %v4578
      %v4661 = vpack.c.b16 %v4581, %v4579
      %v4662 = vpack.c.b16 %v4584, %v4582
      %v4663 = vpack.c.b16 %v4585, %v4583
      %v4664 = vpack.c.b16 %v4588, %v4586
      %v4665 = vpack.c.b16 %v4589, %v4587
      %v4666 = vpack.c.b16 %v4592, %v4590
      %v4667 = vpack.c.b16 %v4593, %v4591
      %v4668 = vpack.c.b16 %v4596, %v4594
      %v4669 = vpack.c.b16 %v4597, %v4595
      %v4670 = vpack.c.b16 %v4600, %v4598
      %v4671 = vpack.c.b16 %v4601, %v4599
      %v4672 = vpack.c.b16 %v4604, %v4602
      %v4673 = vpack.c.b16 %v4605, %v4603
      %v4674 = vpack.c.b16 %v4608, %v4606
      %v4675 = vpack.c.b16 %v4609, %v4607
      %v4676 = vpack.c.b16 %v4612, %v4610
      %v4677 = vpack.c.b16 %v4613, %v4611
      %4742 = vmatprep.subr.bf16.mxu0 %v4615
      %4743 = vmatpush1.bf16.msra.mxu0 %v4614
      %4744 = vmatprep.subr.bf16.mxu0 %v4617
      %4745 = vmatpush1.bf16.msra.mxu0 %v4616
      %4746 = vmatprep.subr.bf16.mxu0 %v4619
      %4747 = vmatpush1.bf16.msra.mxu0 %v4618
      %4748 = vmatprep.subr.bf16.mxu0 %v4621
      %4749 = vmatpush1.bf16.msra.mxu0 %v4620
      %4750 = vmatprep.subr.bf16.mxu0 %v4623
      %4751 = vmatpush1.bf16.msra.mxu0 %v4622
      %4752 = vmatprep.subr.bf16.mxu0 %v4625
      %4753 = vmatpush1.bf16.msra.mxu0 %v4624
      %4754 = vmatprep.subr.bf16.mxu0 %v4627
      %4755 = vmatpush1.bf16.msra.mxu0 %v4626
      %4756 = vmatprep.subr.bf16.mxu0 %v4629
      %4757 = vmatpush1.bf16.msra.mxu0 %v4628
      %4758 = vmatprep.subr.bf16.mxu0 %v4631
      %4759 = vmatpush1.bf16.msra.mxu0 %v4630
      %4760 = vmatprep.subr.bf16.mxu0 %v4633
      %4761 = vmatpush1.bf16.msra.mxu0 %v4632
      %4762 = vmatprep.subr.bf16.mxu0 %v4635
      %4763 = vmatpush1.bf16.msra.mxu0 %v4634
      %4764 = vmatprep.subr.bf16.mxu0 %v4637
      %4765 = vmatpush1.bf16.msra.mxu0 %v4636
      %4766 = vmatprep.subr.bf16.mxu0 %v4639
      %4767 = vmatpush1.bf16.msra.mxu0 %v4638
      %4768 = vmatprep.subr.bf16.mxu0 %v4641
      %4769 = vmatpush1.bf16.msra.mxu0 %v4640
      %4770 = vmatprep.subr.bf16.mxu0 %v4643
      %4771 = vmatpush1.bf16.msra.mxu0 %v4642
      %4772 = vmatprep.subr.bf16.mxu0 %v4645
      %4773 = vmatpush1.bf16.msra.mxu0 %v4644
      %4774 = vmatprep.mubr.bf16.mxu0 %v4283
      %4775 = vmatmul.mubr.bf16.gmra.mrb[0].mxu0 %v4282
      %v4776 = vpop.f32.mrb[0].mxu0
      %v4777 = vadd.f32 %v4415, %v4776
      %v4778 = vpop.f32.mrb[0].mxu0
      %v4779 = vadd.f32 %v4419, %v4778
      %v4780 = vpop.f32.mrb[0].mxu0
      %v4781 = vadd.f32 %v4415, %v4780
      %v4782 = vpop.f32.mrb[0].mxu0
      %v4783 = vadd.f32 %v4419, %v4782
      %4784 = vmatprep.mubr.bf16.mxu0 %v4287
      %4785 = vmatmul.mubr.bf16.gmra.mrb[0].mxu0 %v4286
      %v4786 = vpop.f32.mrb[0].mxu0
      %v4787 = vadd.f32 %v4415, %v4786
      %v4788 = vpop.f32.mrb[0].mxu0
      %v4789 = vadd.f32 %v4419, %v4788
      %v4790 = vpop.f32.mrb[0].mxu0
      %v4791 = vadd.f32 %v4415, %v4790
      %v4792 = vpop.f32.mrb[0].mxu0
      %v4793 = vadd.f32 %v4419, %v4792
      %4794 = vmatprep.mubr.bf16.mxu0 %v4291
      %4795 = vmatmul.mubr.bf16.gmra.mrb[0].mxu0 %v4290
      %v4796 = vpop.f32.mrb[0].mxu0
      %v4797 = vadd.f32 %v4415, %v4796
      %v4798 = vpop.f32.mrb[0].mxu0
      %v4799 = vadd.f32 %v4419, %v4798
      %v4800 = vpop.f32.mrb[0].mxu0
      %v4801 = vadd.f32 %v4415, %v4800
      %v4802 = vpop.f32.mrb[0].mxu0
      %v4803 = vadd.f32 %v4419, %v4802
      %4804 = vmatprep.mubr.bf16.mxu0 %v4295
      %4805 = vmatmul.mubr.bf16.gmra.mrb[0].mxu0 %v4294
      %v4806 = vpop.f32.mrb[0].mxu0
      %v4807 = vadd.f32 %v4415, %v4806
      %v4808 = vpop.f32.mrb[0].mxu0
      %v4809 = vadd.f32 %v4419, %v4808
      %v4810 = vpop.f32.mrb[0].mxu0
      %v4811 = vadd.f32 %v4415, %v4810
      %v4812 = vpop.f32.mrb[0].mxu0
      %v4813 = vadd.f32 %v4419, %v4812
      %4814 = vmatprep.mubr.bf16.mxu0 %v4299
      %4815 = vmatmul.mubr.bf16.gmra.mrb[0].mxu0 %v4298
      %v4816 = vpop.f32.mrb[0].mxu0
      %v4817 = vadd.f32 %v4415, %v4816
      %v4818 = vpop.f32.mrb[0].mxu0
      %v4819 = vadd.f32 %v4419, %v4818
      %v4820 = vpop.f32.mrb[0].mxu0
      %v4821 = vadd.f32 %v4415, %v4820
      %v4822 = vpop.f32.mrb[0].mxu0
      %v4823 = vadd.f32 %v4419, %v4822
      %4824 = vmatprep.mubr.bf16.mxu0 %v4303
      %4825 = vmatmul.mubr.bf16.gmra.mrb[0].mxu0 %v4302
      %v4826 = vpop.f32.mrb[0].mxu0
      %v4827 = vadd.f32 %v4415, %v4826
      %v4828 = vpop.f32.mrb[0].mxu0
      %v4829 = vadd.f32 %v4419, %v4828
      %v4830 = vpop.f32.mrb[0].mxu0
      %v4831 = vadd.f32 %v4415, %v4830
      %v4832 = vpop.f32.mrb[0].mxu0
      %v4833 = vadd.f32 %v4419, %v4832
      %4834 = vmatprep.mubr.bf16.mxu0 %v4307
      %4835 = vmatmul.mubr.bf16.gmra.mrb[0].mxu0 %v4306
      %v4836 = vpop.f32.mrb[0].mxu0
      %v4837 = vadd.f32 %v4415, %v4836
      %v4838 = vpop.f32.mrb[0].mxu0
      %v4839 = vadd.f32 %v4419, %v4838
      %v4840 = vpop.f32.mrb[0].mxu0
      %v4841 = vadd.f32 %v4415, %v4840
      %v4842 = vpop.f32.mrb[0].mxu0
      %v4843 = vadd.f32 %v4419, %v4842
      %4844 = vmatprep.mubr.bf16.mxu0 %v4311
      %4845 = vmatmul.mubr.bf16.gmra.mrb[0].mxu0 %v4310
      %v4846 = vpop.f32.mrb[0].mxu0
      %v4847 = vadd.f32 %v4415, %v4846
      %v4848 = vpop.f32.mrb[0].mxu0
      %v4849 = vadd.f32 %v4419, %v4848
      %v4850 = vpop.f32.mrb[0].mxu0
      %v4851 = vadd.f32 %v4415, %v4850
      %v4852 = vpop.f32.mrb[0].mxu0
      %v4853 = vadd.f32 %v4419, %v4852
      %4854 = vmatprep.mubr.bf16.mxu0 %v4315
      %4855 = vmatmul.mubr.bf16.gmra.mrb[0].mxu0 %v4314
      %v4856 = vpop.f32.mrb[0].mxu0
      %v4857 = vadd.f32 %v4415, %v4856
      %v4858 = vpop.f32.mrb[0].mxu0
      %v4859 = vadd.f32 %v4419, %v4858
      %v4860 = vpop.f32.mrb[0].mxu0
      %v4861 = vadd.f32 %v4415, %v4860
      %v4862 = vpop.f32.mrb[0].mxu0
      %v4863 = vadd.f32 %v4419, %v4862
      %4864 = vmatprep.mubr.bf16.mxu0 %v4319
      %4865 = vmatmul.mubr.bf16.gmra.mrb[0].mxu0 %v4318
      %v4866 = vpop.f32.mrb[0].mxu0
      %v4867 = vadd.f32 %v4415, %v4866
      %v4868 = vpop.f32.mrb[0].mxu0
      %v4869 = vadd.f32 %v4419, %v4868
      %v4870 = vpop.f32.mrb[0].mxu0
      %v4871 = vadd.f32 %v4415, %v4870
      %v4872 = vpop.f32.mrb[0].mxu0
      %v4873 = vadd.f32 %v4419, %v4872
      %4874 = vmatprep.mubr.bf16.mxu0 %v4323
      %4875 = vmatmul.mubr.bf16.gmra.mrb[0].mxu0 %v4322
      %v4876 = vpop.f32.mrb[0].mxu0
      %v4877 = vadd.f32 %v4415, %v4876
      %v4878 = vpop.f32.mrb[0].mxu0
      %v4879 = vadd.f32 %v4419, %v4878
      %v4880 = vpop.f32.mrb[0].mxu0
      %v4881 = vadd.f32 %v4415, %v4880
      %v4882 = vpop.f32.mrb[0].mxu0
      %v4883 = vadd.f32 %v4419, %v4882
      %4884 = vmatprep.mubr.bf16.mxu0 %v4327
      %4885 = vmatmul.mubr.bf16.gmra.mrb[0].mxu0 %v4326
      %v4886 = vpop.f32.mrb[0].mxu0
      %v4887 = vadd.f32 %v4415, %v4886
      %v4888 = vpop.f32.mrb[0].mxu0
      %v4889 = vadd.f32 %v4419, %v4888
      %v4890 = vpop.f32.mrb[0].mxu0
      %v4891 = vadd.f32 %v4415, %v4890
      %v4892 = vpop.f32.mrb[0].mxu0
      %v4893 = vadd.f32 %v4419, %v4892
      %4894 = vmatprep.mubr.bf16.mxu0 %v4331
      %4895 = vmatmul.mubr.bf16.gmra.mrb[0].mxu0 %v4330
      %v4896 = vpop.f32.mrb[0].mxu0
      %v4897 = vadd.f32 %v4415, %v4896
      %v4898 = vpop.f32.mrb[0].mxu0
      %v4899 = vadd.f32 %v4419, %v4898
      %v4900 = vpop.f32.mrb[0].mxu0
      %v4901 = vadd.f32 %v4415, %v4900
      %v4902 = vpop.f32.mrb[0].mxu0
      %v4903 = vadd.f32 %v4419, %v4902
      %4904 = vmatprep.mubr.bf16.mxu0 %v4335
      %4905 = vmatmul.mubr.bf16.gmra.mrb[0].mxu0 %v4334
      %v4906 = vpop.f32.mrb[0].mxu0
      %v4907 = vadd.f32 %v4415, %v4906
      %v4908 = vpop.f32.mrb[0].mxu0
      %v4909 = vadd.f32 %v4419, %v4908
      %v4910 = vpop.f32.mrb[0].mxu0
      %v4911 = vadd.f32 %v4415, %v4910
      %v4912 = vpop.f32.mrb[0].mxu0
      %v4913 = vadd.f32 %v4419, %v4912
      %4914 = vmatprep.mubr.bf16.mxu0 %v4339
      %4915 = vmatmul.mubr.bf16.gmra.mrb[0].mxu0 %v4338
      %v4916 = vpop.f32.mrb[0].mxu0
      %v4917 = vadd.f32 %v4415, %v4916
      %v4918 = vpop.f32.mrb[0].mxu0
      %v4919 = vadd.f32 %v4419, %v4918
      %v4920 = vpop.f32.mrb[0].mxu0
      %v4921 = vadd.f32 %v4415, %v4920
      %v4922 = vpop.f32.mrb[0].mxu0
      %v4923 = vadd.f32 %v4419, %v4922
      %4924 = vmatprep.mubr.bf16.mxu0 %v4343
      %4925 = vmatmul.mubr.bf16.gmra.mrb[0].mxu0 %v4342
      %v4926 = vpop.f32.mrb[0].mxu0
      %v4927 = vadd.f32 %v4415, %v4926
      %v4928 = vpop.f32.mrb[0].mxu0
      %v4929 = vadd.f32 %v4419, %v4928
      %v4930 = vpop.f32.mrb[0].mxu0
      %v4931 = vadd.f32 %v4415, %v4930
      %v4932 = vpop.f32.mrb[0].mxu0
      %v4933 = vadd.f32 %v4419, %v4932
      %4934 = vdwg.mxu0
      %4935 = vmatprep.subr.bf16.mxu0 %v4647
      %4936 = vmatpush1.bf16.msra.mxu0 %v4646
      %4937 = vmatprep.subr.bf16.mxu0 %v4649
      %4938 = vmatpush1.bf16.msra.mxu0 %v4648
      %4939 = vmatprep.subr.bf16.mxu0 %v4651
      %4940 = vmatpush1.bf16.msra.mxu0 %v4650
      %4941 = vmatprep.subr.bf16.mxu0 %v4653
      %4942 = vmatpush1.bf16.msra.mxu0 %v4652
      %4943 = vmatprep.subr.bf16.mxu0 %v4655
      %4944 = vmatpush1.bf16.msra.mxu0 %v4654
      %4945 = vmatprep.subr.bf16.mxu0 %v4657
      %4946 = vmatpush1.bf16.msra.mxu0 %v4656
      %4947 = vmatprep.subr.bf16.mxu0 %v4659
      %4948 = vmatpush1.bf16.msra.mxu0 %v4658
      %4949 = vmatprep.subr.bf16.mxu0 %v4661
      %4950 = vmatpush1.bf16.msra.mxu0 %v4660
      %4951 = vmatprep.subr.bf16.mxu0 %v4663
      %4952 = vmatpush1.bf16.msra.mxu0 %v4662
      %4953 = vmatprep.subr.bf16.mxu0 %v4665
      %4954 = vmatpush1.bf16.msra.mxu0 %v4664
      %4955 = vmatprep.subr.bf16.mxu0 %v4667
      %4956 = vmatpush1.bf16.msra.mxu0 %v4666
      %4957 = vmatprep.subr.bf16.mxu0 %v4669
      %4958 = vmatpush1.bf16.msra.mxu0 %v4668
      %4959 = vmatprep.subr.bf16.mxu0 %v4671
      %4960 = vmatpush1.bf16.msra.mxu0 %v4670
      %4961 = vmatprep.subr.bf16.mxu0 %v4673
      %4962 = vmatpush1.bf16.msra.mxu0 %v4672
      %4963 = vmatprep.subr.bf16.mxu0 %v4675
      %4964 = vmatpush1.bf16.msra.mxu0 %v4674
      %4965 = vmatprep.subr.bf16.mxu0 %v4677
      %4966 = vmatpush1.bf16.msra.mxu0 %v4676
      %4967 = vmatprep.mubr.bf16.mxu0 %v4285
      %4968 = vmatmul.mubr.bf16.gmra.mrb[0].mxu0 %v4284
      %v4969 = vpop.f32.mrb[0].mxu0
      %v4970 = vadd.f32 %v4777, %v4969
      %v4971 = vpop.f32.mrb[0].mxu0
      %v4972 = vadd.f32 %v4779, %v4971
      %v4973 = vpop.f32.mrb[0].mxu0
      %v4974 = vadd.f32 %v4781, %v4973
      %v4975 = vpop.f32.mrb[0].mxu0
      %v4976 = vadd.f32 %v4783, %v4975
      %4977 = vmatprep.mubr.bf16.mxu0 %v4289
      %4978 = vmatmul.mubr.bf16.gmra.mrb[0].mxu0 %v4288
      %v4979 = vpop.f32.mrb[0].mxu0
      %v4980 = vadd.f32 %v4787, %v4979
      %v4981 = vpop.f32.mrb[0].mxu0
      %v4982 = vadd.f32 %v4789, %v4981
      %v4983 = vpop.f32.mrb[0].mxu0
      %v4984 = vadd.f32 %v4791, %v4983
      %v4985 = vpop.f32.mrb[0].mxu0
      %v4986 = vadd.f32 %v4793, %v4985
      %4987 = vmatprep.mubr.bf16.mxu0 %v4293
      %4988 = vmatmul.mubr.bf16.gmra.mrb[0].mxu0 %v4292
      %v4989 = vpop.f32.mrb[0].mxu0
      %v4990 = vadd.f32 %v4797, %v4989
      %v4991 = vpop.f32.mrb[0].mxu0
      %v4992 = vadd.f32 %v4799, %v4991
      %v4993 = vpop.f32.mrb[0].mxu0
      %v4994 = vadd.f32 %v4801, %v4993
      %v4995 = vpop.f32.mrb[0].mxu0
      %v4996 = vadd.f32 %v4803, %v4995
      %4997 = vmatprep.mubr.bf16.mxu0 %v4297
      %4998 = vmatmul.mubr.bf16.gmra.mrb[0].mxu0 %v4296
      %v4999 = vpop.f32.mrb[0].mxu0
      %v5000 = vadd.f32 %v4807, %v4999
      %v5001 = vpop.f32.mrb[0].mxu0
      %v5002 = vadd.f32 %v4809, %v5001
      %v5003 = vpop.f32.mrb[0].mxu0
      %v5004 = vadd.f32 %v4811, %v5003
      %v5005 = vpop.f32.mrb[0].mxu0
      %v5006 = vadd.f32 %v4813, %v5005
      %5007 = vmatprep.mubr.bf16.mxu0 %v4301
      %5008 = vmatmul.mubr.bf16.gmra.mrb[0].mxu0 %v4300
      %v5009 = vpop.f32.mrb[0].mxu0
      %v5010 = vadd.f32 %v4817, %v5009
      %v5011 = vpop.f32.mrb[0].mxu0
      %v5012 = vadd.f32 %v4819, %v5011
      %v5013 = vpop.f32.mrb[0].mxu0
      %v5014 = vadd.f32 %v4821, %v5013
      %v5015 = vpop.f32.mrb[0].mxu0
      %v5016 = vadd.f32 %v4823, %v5015
      %5017 = vmatprep.mubr.bf16.mxu0 %v4305
      %5018 = vmatmul.mubr.bf16.gmra.mrb[0].mxu0 %v4304
      %v5019 = vpop.f32.mrb[0].mxu0
      %v5020 = vadd.f32 %v4827, %v5019
      %v5021 = vpop.f32.mrb[0].mxu0
      %v5022 = vadd.f32 %v4829, %v5021
      %v5023 = vpop.f32.mrb[0].mxu0
      %v5024 = vadd.f32 %v4831, %v5023
      %v5025 = vpop.f32.mrb[0].mxu0
      %v5026 = vadd.f32 %v4833, %v5025
      %5027 = vmatprep.mubr.bf16.mxu0 %v4309
      %5028 = vmatmul.mubr.bf16.gmra.mrb[0].mxu0 %v4308
      %v5029 = vpop.f32.mrb[0].mxu0
      %v5030 = vadd.f32 %v4837, %v5029
      %v5031 = vpop.f32.mrb[0].mxu0
      %v5032 = vadd.f32 %v4839, %v5031
      %v5033 = vpop.f32.mrb[0].mxu0
      %v5034 = vadd.f32 %v4841, %v5033
      %v5035 = vpop.f32.mrb[0].mxu0
      %v5036 = vadd.f32 %v4843, %v5035
      %5037 = vmatprep.mubr.bf16.mxu0 %v4313
      %5038 = vmatmul.mubr.bf16.gmra.mrb[0].mxu0 %v4312
      %v5039 = vpop.f32.mrb[0].mxu0
      %v5040 = vadd.f32 %v4847, %v5039
      %v5041 = vpop.f32.mrb[0].mxu0
      %v5042 = vadd.f32 %v4849, %v5041
      %v5043 = vpop.f32.mrb[0].mxu0
      %v5044 = vadd.f32 %v4851, %v5043
      %v5045 = vpop.f32.mrb[0].mxu0
      %v5046 = vadd.f32 %v4853, %v5045
      %5047 = vmatprep.mubr.bf16.mxu0 %v4317
      %5048 = vmatmul.mubr.bf16.gmra.mrb[0].mxu0 %v4316
      %v5049 = vpop.f32.mrb[0].mxu0
      %v5050 = vadd.f32 %v4857, %v5049
      %v5051 = vpop.f32.mrb[0].mxu0
      %v5052 = vadd.f32 %v4859, %v5051
      %v5053 = vpop.f32.mrb[0].mxu0
      %v5054 = vadd.f32 %v4861, %v5053
      %v5055 = vpop.f32.mrb[0].mxu0
      %v5056 = vadd.f32 %v4863, %v5055
      %5057 = vmatprep.mubr.bf16.mxu0 %v4321
      %5058 = vmatmul.mubr.bf16.gmra.mrb[0].mxu0 %v4320
      %v5059 = vpop.f32.mrb[0].mxu0
      %v5060 = vadd.f32 %v4867, %v5059
      %v5061 = vpop.f32.mrb[0].mxu0
      %v5062 = vadd.f32 %v4869, %v5061
      %v5063 = vpop.f32.mrb[0].mxu0
      %v5064 = vadd.f32 %v4871, %v5063
      %v5065 = vpop.f32.mrb[0].mxu0
      %v5066 = vadd.f32 %v4873, %v5065
      %5067 = vmatprep.mubr.bf16.mxu0 %v4325
      %5068 = vmatmul.mubr.bf16.gmra.mrb[0].mxu0 %v4324
      %v5069 = vpop.f32.mrb[0].mxu0
      %v5070 = vadd.f32 %v4877, %v5069
      %v5071 = vpop.f32.mrb[0].mxu0
      %v5072 = vadd.f32 %v4879, %v5071
      %v5073 = vpop.f32.mrb[0].mxu0
      %v5074 = vadd.f32 %v4881, %v5073
      %v5075 = vpop.f32.mrb[0].mxu0
      %v5076 = vadd.f32 %v4883, %v5075
      %5077 = vmatprep.mubr.bf16.mxu0 %v4329
      %5078 = vmatmul.mubr.bf16.gmra.mrb[0].mxu0 %v4328
      %v5079 = vpop.f32.mrb[0].mxu0
      %v5080 = vadd.f32 %v4887, %v5079
      %v5081 = vpop.f32.mrb[0].mxu0
      %v5082 = vadd.f32 %v4889, %v5081
      %v5083 = vpop.f32.mrb[0].mxu0
      %v5084 = vadd.f32 %v4891, %v5083
      %v5085 = vpop.f32.mrb[0].mxu0
      %v5086 = vadd.f32 %v4893, %v5085
      %5087 = vmatprep.mubr.bf16.mxu0 %v4333
      %5088 = vmatmul.mubr.bf16.gmra.mrb[0].mxu0 %v4332
      %v5089 = vpop.f32.mrb[0].mxu0
      %v5090 = vadd.f32 %v4897, %v5089
      %v5091 = vpop.f32.mrb[0].mxu0
      %v5092 = vadd.f32 %v4899, %v5091
      %v5093 = vpop.f32.mrb[0].mxu0
      %v5094 = vadd.f32 %v4901, %v5093
      %v5095 = vpop.f32.mrb[0].mxu0
      %v5096 = vadd.f32 %v4903, %v5095
      %5097 = vmatprep.mubr.bf16.mxu0 %v4337
      %5098 = vmatmul.mubr.bf16.gmra.mrb[0].mxu0 %v4336
      %v5099 = vpop.f32.mrb[0].mxu0
      %v5100 = vadd.f32 %v4907, %v5099
      %v5101 = vpop.f32.mrb[0].mxu0
      %v5102 = vadd.f32 %v4909, %v5101
      %v5103 = vpop.f32.mrb[0].mxu0
      %v5104 = vadd.f32 %v4911, %v5103
      %v5105 = vpop.f32.mrb[0].mxu0
      %v5106 = vadd.f32 %v4913, %v5105
      %5107 = vmatprep.mubr.bf16.mxu0 %v4341
      %5108 = vmatmul.mubr.bf16.gmra.mrb[0].mxu0 %v4340
      %v5109 = vpop.f32.mrb[0].mxu0
      %v5110 = vadd.f32 %v4917, %v5109
      %v5111 = vpop.f32.mrb[0].mxu0
      %v5112 = vadd.f32 %v4919, %v5111
      %v5113 = vpop.f32.mrb[0].mxu0
      %v5114 = vadd.f32 %v4921, %v5113
      %v5115 = vpop.f32.mrb[0].mxu0
      %v5116 = vadd.f32 %v4923, %v5115
      %5117 = vmatprep.mubr.bf16.mxu0 %v4345
      %5118 = vmatmul.mubr.bf16.gmra.mrb[0].mxu0 %v4344
      %v5119 = vpop.f32.mrb[0].mxu0
      %v5120 = vadd.f32 %v4927, %v5119
      %v5121 = vpop.f32.mrb[0].mxu0
      %v5122 = vadd.f32 %v4929, %v5121
      %v5123 = vpop.f32.mrb[0].mxu0
      %v5124 = vadd.f32 %v4931, %v5123
      %v5125 = vpop.f32.mrb[0].mxu0
      %v5126 = vadd.f32 %v4933, %v5125
      %5127 = vdwg.mxu0
      %v5128 = vmax.f32 %v4970, 0.0
      %v5129 = vmax.f32 %v4972, 0.0
      %v5130 = vmax.f32 %v4974, 0.0
      %v5131 = vmax.f32 %v4976, 0.0
      %v5132 = vmax.f32 %v4980, 0.0
      %v5133 = vmax.f32 %v4982, 0.0
      %v5134 = vmax.f32 %v4984, 0.0
      %v5135 = vmax.f32 %v4986, 0.0
      %v5136 = vmax.f32 %v4990, 0.0
      %v5137 = vmax.f32 %v4992, 0.0
      %v5138 = vmax.f32 %v4994, 0.0
      %v5139 = vmax.f32 %v4996, 0.0
      %v5140 = vmax.f32 %v5000, 0.0
      %v5141 = vmax.f32 %v5002, 0.0
      %v5142 = vmax.f32 %v5004, 0.0
      %v5143 = vmax.f32 %v5006, 0.0
      %v5144 = vmax.f32 %v5010, 0.0
      %v5145 = vmax.f32 %v5012, 0.0
      %v5146 = vmax.f32 %v5014, 0.0
      %v5147 = vmax.f32 %v5016, 0.0
      %v5148 = vmax.f32 %v5020, 0.0
      %v5149 = vmax.f32 %v5022, 0.0
      %v5150 = vmax.f32 %v5024, 0.0
      %v5151 = vmax.f32 %v5026, 0.0
      %v5152 = vmax.f32 %v5030, 0.0
      %v5153 = vmax.f32 %v5032, 0.0
      %v5154 = vmax.f32 %v5034, 0.0
      %v5155 = vmax.f32 %v5036, 0.0
      %v5156 = vmax.f32 %v5040, 0.0
      %v5157 = vmax.f32 %v5042, 0.0
      %v5158 = vmax.f32 %v5044, 0.0
      %v5159 = vmax.f32 %v5046, 0.0
      %v5160 = vmax.f32 %v5050, 0.0
      %v5161 = vmax.f32 %v5052, 0.0
      %v5162 = vmax.f32 %v5054, 0.0
      %v5163 = vmax.f32 %v5056, 0.0
      %v5164 = vmax.f32 %v5060, 0.0
      %v5165 = vmax.f32 %v5062, 0.0
      %v5166 = vmax.f32 %v5064, 0.0
      %v5167 = vmax.f32 %v5066, 0.0
      %v5168 = vmax.f32 %v5070, 0.0
      %v5169 = vmax.f32 %v5072, 0.0
      %v5170 = vmax.f32 %v5074, 0.0
      %v5171 = vmax.f32 %v5076, 0.0
      %v5172 = vmax.f32 %v5080, 0.0
      %v5173 = vmax.f32 %v5082, 0.0
      %v5174 = vmax.f32 %v5084, 0.0
      %v5175 = vmax.f32 %v5086, 0.0
      %v5176 = vmax.f32 %v5090, 0.0
      %v5177 = vmax.f32 %v5092, 0.0
      %v5178 = vmax.f32 %v5094, 0.0
      %v5179 = vmax.f32 %v5096, 0.0
      %v5180 = vmax.f32 %v5100, 0.0
      %v5181 = vmax.f32 %v5102, 0.0
      %v5182 = vmax.f32 %v5104, 0.0
      %v5183 = vmax.f32 %v5106, 0.0
      %v5184 = vmax.f32 %v5110, 0.0
      %v5185 = vmax.f32 %v5112, 0.0
      %v5186 = vmax.f32 %v5114, 0.0
      %v5187 = vmax.f32 %v5116, 0.0
      %v5188 = vmax.f32 %v5120, 0.0
      %v5189 = vmax.f32 %v5122, 0.0
      %v5190 = vmax.f32 %v5124, 0.0
      %v5191 = vmax.f32 %v5126, 0.0
      %v5192 = vpack.c.bf16 %v5130, %v5128
      %v5193 = vpack.c.bf16 %v5131, %v5129
      %v5194 = vpack.c.bf16 %v5134, %v5132
      %v5195 = vpack.c.bf16 %v5135, %v5133
      %v5196 = vpack.c.bf16 %v5138, %v5136
      %v5197 = vpack.c.bf16 %v5139, %v5137
      %v5198 = vpack.c.bf16 %v5142, %v5140
      %v5199 = vpack.c.bf16 %v5143, %v5141
      %v5200 = vpack.c.bf16 %v5146, %v5144
      %v5201 = vpack.c.bf16 %v5147, %v5145
      %v5202 = vpack.c.bf16 %v5150, %v5148
      %v5203 = vpack.c.bf16 %v5151, %v5149
      %v5204 = vpack.c.bf16 %v5154, %v5152
      %v5205 = vpack.c.bf16 %v5155, %v5153
      %v5206 = vpack.c.bf16 %v5158, %v5156
      %v5207 = vpack.c.bf16 %v5159, %v5157
      %v5208 = vpack.c.bf16 %v5162, %v5160
      %v5209 = vpack.c.bf16 %v5163, %v5161
      %v5210 = vpack.c.bf16 %v5166, %v5164
      %v5211 = vpack.c.bf16 %v5167, %v5165
      %v5212 = vpack.c.bf16 %v5170, %v5168
      %v5213 = vpack.c.bf16 %v5171, %v5169
      %v5214 = vpack.c.bf16 %v5174, %v5172
      %v5215 = vpack.c.bf16 %v5175, %v5173
      %v5216 = vpack.c.bf16 %v5178, %v5176
      %v5217 = vpack.c.bf16 %v5179, %v5177
      %v5218 = vpack.c.bf16 %v5182, %v5180
      %v5219 = vpack.c.bf16 %v5183, %v5181
      %v5220 = vpack.c.bf16 %v5186, %v5184
      %v5221 = vpack.c.bf16 %v5187, %v5185
      %v5222 = vpack.c.bf16 %v5190, %v5188
      %v5223 = vpack.c.bf16 %v5191, %v5189
      %v5224 = vld [vmem:[%s6] sm:$0xf]
      %v5225 = vld [vmem:[%s6 + $0x4] sm:$0xf]
      %v5226 = vld [vmem:[%s6 + $0x8] sm:$0xf]
      %v5227 = vld [vmem:[%s6 + $0xc] sm:$0xf]
      %v5228 = vld [vmem:[%s6 + $0x10] sm:$0xf]
      %v5229 = vld [vmem:[%s6 + $0x14] sm:$0xf]
      %v5230 = vld [vmem:[%s6 + $0x18] sm:$0xf]
      %v5231 = vld [vmem:[%s6 + $0x1c] sm:$0xf]
      %v5232 = vld [vmem:[%s6 + $0x20] sm:$0xf]
      %v5233 = vld [vmem:[%s6 + $0x24] sm:$0xf]
      %v5234 = vld [vmem:[%s6 + $0x28] sm:$0xf]
      %v5235 = vld [vmem:[%s6 + $0x2c] sm:$0xf]
      %v5236 = vld [vmem:[%s6 + $0x30] sm:$0xf]
      %v5237 = vld [vmem:[%s6 + $0x34] sm:$0xf]
      %v5238 = vld [vmem:[%s6 + $0x38] sm:$0xf]
      %v5239 = vld [vmem:[%s6 + $0x3c] sm:$0xf]
      %v5240 = vld [vmem:[%s6 + $0x40] sm:$0xf]
      %v5241 = vld [vmem:[%s6 + $0x44] sm:$0xf]
      %v5242 = vld [vmem:[%s6 + $0x48] sm:$0xf]
      %v5243 = vld [vmem:[%s6 + $0x4c] sm:$0xf]
      %v5244 = vld [vmem:[%s6 + $0x50] sm:$0xf]
      %v5245 = vld [vmem:[%s6 + $0x54] sm:$0xf]
      %v5246 = vld [vmem:[%s6 + $0x58] sm:$0xf]
      %v5247 = vld [vmem:[%s6 + $0x5c] sm:$0xf]
      %v5248 = vld [vmem:[%s6 + $0x60] sm:$0xf]
      %v5249 = vld [vmem:[%s6 + $0x64] sm:$0xf]
      %v5250 = vld [vmem:[%s6 + $0x68] sm:$0xf]
      %v5251 = vld [vmem:[%s6 + $0x6c] sm:$0xf]
      %v5252 = vld [vmem:[%s6 + $0x70] sm:$0xf]
      %v5253 = vld [vmem:[%s6 + $0x74] sm:$0xf]
      %v5254 = vld [vmem:[%s6 + $0x78] sm:$0xf]
      %v5255 = vld [vmem:[%s6 + $0x7c] sm:$0xf]
      %v5256 = vld [vmem:[%s7] sm:$0x1]
      %v5258 = vlaneseq
      %v5259 = vshrl.u32 %v5258, 7
      %v5260 = vsub.s32 0, %v5259
      %v5261 = vrot.slane %v5256, %v5260
      %v5295 = vunpack.c.l.b16 %v5224
      %v5296 = vunpack.c.l.b16 %v5225
      %v5297 = vunpack.c.l.b16 %v5226
      %v5298 = vunpack.c.l.b16 %v5227
      %v5299 = vunpack.c.l.b16 %v5228
      %v5300 = vunpack.c.l.b16 %v5229
      %v5301 = vunpack.c.l.b16 %v5230
      %v5302 = vunpack.c.l.b16 %v5231
      %v5303 = vunpack.c.l.b16 %v5232
      %v5304 = vunpack.c.l.b16 %v5233
      %v5305 = vunpack.c.l.b16 %v5234
      %v5306 = vunpack.c.l.b16 %v5235
      %v5307 = vunpack.c.l.b16 %v5236
      %v5308 = vunpack.c.l.b16 %v5237
      %v5309 = vunpack.c.l.b16 %v5238
      %v5310 = vunpack.c.l.b16 %v5239
      %v5311 = vunpack.c.l.b16 %v5240
      %v5312 = vunpack.c.l.b16 %v5241
      %v5313 = vunpack.c.l.b16 %v5242
      %v5314 = vunpack.c.l.b16 %v5243
      %v5315 = vunpack.c.l.b16 %v5244
      %v5316 = vunpack.c.l.b16 %v5245
      %v5317 = vunpack.c.l.b16 %v5246
      %v5318 = vunpack.c.l.b16 %v5247
      %v5319 = vunpack.c.l.b16 %v5248
      %v5320 = vunpack.c.l.b16 %v5249
      %v5321 = vunpack.c.l.b16 %v5250
      %v5322 = vunpack.c.l.b16 %v5251
      %v5323 = vunpack.c.l.b16 %v5252
      %v5324 = vunpack.c.l.b16 %v5253
      %v5325 = vunpack.c.l.b16 %v5254
      %v5326 = vunpack.c.l.b16 %v5255
      %v5327 = vpack.c.b16 %v5296, %v5295
      %v5328 = vpack.c.b16 %v5298, %v5297
      %v5329 = vpack.c.b16 %v5300, %v5299
      %v5330 = vpack.c.b16 %v5302, %v5301
      %v5331 = vpack.c.b16 %v5304, %v5303
      %v5332 = vpack.c.b16 %v5306, %v5305
      %v5333 = vpack.c.b16 %v5308, %v5307
      %v5334 = vpack.c.b16 %v5310, %v5309
      %v5335 = vpack.c.b16 %v5312, %v5311
      %v5336 = vpack.c.b16 %v5314, %v5313
      %v5337 = vpack.c.b16 %v5316, %v5315
      %v5338 = vpack.c.b16 %v5318, %v5317
      %v5339 = vpack.c.b16 %v5320, %v5319
      %v5340 = vpack.c.b16 %v5322, %v5321
      %v5341 = vpack.c.b16 %v5324, %v5323
      %v5342 = vpack.c.b16 %v5326, %v5325
      %5359 = vmatprep.subr.bf16.mxu0 0
      %5360 = vmatpush1.bf16.msra.mxu0 %v5327
      %5361 = vmatprep.subr.bf16.mxu0 0
      %5362 = vmatpush1.bf16.msra.mxu0 %v5328
      %5363 = vmatprep.subr.bf16.mxu0 0
      %5364 = vmatpush1.bf16.msra.mxu0 %v5329
      %5365 = vmatprep.subr.bf16.mxu0 0
      %5366 = vmatpush1.bf16.msra.mxu0 %v5330
      %5367 = vmatprep.subr.bf16.mxu0 0
      %5368 = vmatpush1.bf16.msra.mxu0 %v5331
      %5369 = vmatprep.subr.bf16.mxu0 0
      %5370 = vmatpush1.bf16.msra.mxu0 %v5332
      %5371 = vmatprep.subr.bf16.mxu0 0
      %5372 = vmatpush1.bf16.msra.mxu0 %v5333
      %5373 = vmatprep.subr.bf16.mxu0 0
      %5374 = vmatpush1.bf16.msra.mxu0 %v5334
      %5375 = vmatprep.subr.bf16.mxu0 0
      %5376 = vmatpush1.bf16.msra.mxu0 %v5335
      %5377 = vmatprep.subr.bf16.mxu0 0
      %5378 = vmatpush1.bf16.msra.mxu0 %v5336
      %5379 = vmatprep.subr.bf16.mxu0 0
      %5380 = vmatpush1.bf16.msra.mxu0 %v5337
      %5381 = vmatprep.subr.bf16.mxu0 0
      %5382 = vmatpush1.bf16.msra.mxu0 %v5338
      %5383 = vmatprep.subr.bf16.mxu0 0
      %5384 = vmatpush1.bf16.msra.mxu0 %v5339
      %5385 = vmatprep.subr.bf16.mxu0 0
      %5386 = vmatpush1.bf16.msra.mxu0 %v5340
      %5387 = vmatprep.subr.bf16.mxu0 0
      %5388 = vmatpush1.bf16.msra.mxu0 %v5341
      %5389 = vmatprep.subr.bf16.mxu0 0
      %5390 = vmatpush1.bf16.msra.mxu0 %v5342
      %5391 = vmatprep.mubr.bf16.mxu0 %v5193
      %5392 = vmatmul.mubr.bf16.gmra.mrb[0].mxu0 %v5192
      %v5393 = vpop.f32.mrb[0].mxu0
      %v5394 = vadd.f32 %v5261, %v5393
      %v5395 = vpop.f32.mrb[0].mxu0
      %v5396 = vpop.f32.mrb[0].mxu0
      %v5397 = vadd.f32 %v5261, %v5396
      %v5398 = vpop.f32.mrb[0].mxu0
      %5399 = vmatprep.mubr.bf16.mxu0 %v5195
      %5400 = vmatmul.mubr.bf16.gmra.mrb[0].mxu0 %v5194
      %v5401 = vpop.f32.mrb[0].mxu0
      %v5402 = vadd.f32 %v5261, %v5401
      %v5403 = vpop.f32.mrb[0].mxu0
      %v5404 = vpop.f32.mrb[0].mxu0
      %v5405 = vadd.f32 %v5261, %v5404
      %v5406 = vpop.f32.mrb[0].mxu0
      %5407 = vmatprep.mubr.bf16.mxu0 %v5197
      %5408 = vmatmul.mubr.bf16.gmra.mrb[0].mxu0 %v5196
      %v5409 = vpop.f32.mrb[0].mxu0
      %v5410 = vadd.f32 %v5261, %v5409
      %v5411 = vpop.f32.mrb[0].mxu0
      %v5412 = vpop.f32.mrb[0].mxu0
      %v5413 = vadd.f32 %v5261, %v5412
      %v5414 = vpop.f32.mrb[0].mxu0
      %5415 = vmatprep.mubr.bf16.mxu0 %v5199
      %5416 = vmatmul.mubr.bf16.gmra.mrb[0].mxu0 %v5198
      %v5417 = vpop.f32.mrb[0].mxu0
      %v5418 = vadd.f32 %v5261, %v5417
      %v5419 = vpop.f32.mrb[0].mxu0
      %v5420 = vpop.f32.mrb[0].mxu0
      %v5421 = vadd.f32 %v5261, %v5420
      %v5422 = vpop.f32.mrb[0].mxu0
      %5423 = vmatprep.mubr.bf16.mxu0 %v5201
      %5424 = vmatmul.mubr.bf16.gmra.mrb[0].mxu0 %v5200
      %v5425 = vpop.f32.mrb[0].mxu0
      %v5426 = vadd.f32 %v5261, %v5425
      %v5427 = vpop.f32.mrb[0].mxu0
      %v5428 = vpop.f32.mrb[0].mxu0
      %v5429 = vadd.f32 %v5261, %v5428
      %v5430 = vpop.f32.mrb[0].mxu0
      %5431 = vmatprep.mubr.bf16.mxu0 %v5203
      %5432 = vmatmul.mubr.bf16.gmra.mrb[0].mxu0 %v5202
      %v5433 = vpop.f32.mrb[0].mxu0
      %v5434 = vadd.f32 %v5261, %v5433
      %v5435 = vpop.f32.mrb[0].mxu0
      %v5436 = vpop.f32.mrb[0].mxu0
      %v5437 = vadd.f32 %v5261, %v5436
      %v5438 = vpop.f32.mrb[0].mxu0
      %5439 = vmatprep.mubr.bf16.mxu0 %v5205
      %5440 = vmatmul.mubr.bf16.gmra.mrb[0].mxu0 %v5204
      %v5441 = vpop.f32.mrb[0].mxu0
      %v5442 = vadd.f32 %v5261, %v5441
      %v5443 = vpop.f32.mrb[0].mxu0
      %v5444 = vpop.f32.mrb[0].mxu0
      %v5445 = vadd.f32 %v5261, %v5444
      %v5446 = vpop.f32.mrb[0].mxu0
      %5447 = vmatprep.mubr.bf16.mxu0 %v5207
      %5448 = vmatmul.mubr.bf16.gmra.mrb[0].mxu0 %v5206
      %v5449 = vpop.f32.mrb[0].mxu0
      %v5450 = vadd.f32 %v5261, %v5449
      %v5451 = vpop.f32.mrb[0].mxu0
      %v5452 = vpop.f32.mrb[0].mxu0
      %v5453 = vadd.f32 %v5261, %v5452
      %v5454 = vpop.f32.mrb[0].mxu0
      %5455 = vmatprep.mubr.bf16.mxu0 %v5209
      %5456 = vmatmul.mubr.bf16.gmra.mrb[0].mxu0 %v5208
      %v5457 = vpop.f32.mrb[0].mxu0
      %v5458 = vadd.f32 %v5261, %v5457
      %v5459 = vpop.f32.mrb[0].mxu0
      %v5460 = vpop.f32.mrb[0].mxu0
      %v5461 = vadd.f32 %v5261, %v5460
      %v5462 = vpop.f32.mrb[0].mxu0
      %5463 = vmatprep.mubr.bf16.mxu0 %v5211
      %5464 = vmatmul.mubr.bf16.gmra.mrb[0].mxu0 %v5210
      %v5465 = vpop.f32.mrb[0].mxu0
      %v5466 = vadd.f32 %v5261, %v5465
      %v5467 = vpop.f32.mrb[0].mxu0
      %v5468 = vpop.f32.mrb[0].mxu0
      %v5469 = vadd.f32 %v5261, %v5468
      %v5470 = vpop.f32.mrb[0].mxu0
      %5471 = vmatprep.mubr.bf16.mxu0 %v5213
      %5472 = vmatmul.mubr.bf16.gmra.mrb[0].mxu0 %v5212
      %v5473 = vpop.f32.mrb[0].mxu0
      %v5474 = vadd.f32 %v5261, %v5473
      %v5475 = vpop.f32.mrb[0].mxu0
      %v5476 = vpop.f32.mrb[0].mxu0
      %v5477 = vadd.f32 %v5261, %v5476
      %v5478 = vpop.f32.mrb[0].mxu0
      %5479 = vmatprep.mubr.bf16.mxu0 %v5215
      %5480 = vmatmul.mubr.bf16.gmra.mrb[0].mxu0 %v5214
      %v5481 = vpop.f32.mrb[0].mxu0
      %v5482 = vadd.f32 %v5261, %v5481
      %v5483 = vpop.f32.mrb[0].mxu0
      %v5484 = vpop.f32.mrb[0].mxu0
      %v5485 = vadd.f32 %v5261, %v5484
      %v5486 = vpop.f32.mrb[0].mxu0
      %5487 = vmatprep.mubr.bf16.mxu0 %v5217
      %5488 = vmatmul.mubr.bf16.gmra.mrb[0].mxu0 %v5216
      %v5489 = vpop.f32.mrb[0].mxu0
      %v5490 = vadd.f32 %v5261, %v5489
      %v5491 = vpop.f32.mrb[0].mxu0
      %v5492 = vpop.f32.mrb[0].mxu0
      %v5493 = vadd.f32 %v5261, %v5492
      %v5494 = vpop.f32.mrb[0].mxu0
      %5495 = vmatprep.mubr.bf16.mxu0 %v5219
      %5496 = vmatmul.mubr.bf16.gmra.mrb[0].mxu0 %v5218
      %v5497 = vpop.f32.mrb[0].mxu0
      %v5498 = vadd.f32 %v5261, %v5497
      %v5499 = vpop.f32.mrb[0].mxu0
      %v5500 = vpop.f32.mrb[0].mxu0
      %v5501 = vadd.f32 %v5261, %v5500
      %v5502 = vpop.f32.mrb[0].mxu0
      %5503 = vmatprep.mubr.bf16.mxu0 %v5221
      %5504 = vmatmul.mubr.bf16.gmra.mrb[0].mxu0 %v5220
      %v5505 = vpop.f32.mrb[0].mxu0
      %v5506 = vadd.f32 %v5261, %v5505
      %v5507 = vpop.f32.mrb[0].mxu0
      %v5508 = vpop.f32.mrb[0].mxu0
      %v5509 = vadd.f32 %v5261, %v5508
      %v5510 = vpop.f32.mrb[0].mxu0
      %5511 = vmatprep.mubr.bf16.mxu0 %v5223
      %5512 = vmatmul.mubr.bf16.gmra.mrb[0].mxu0 %v5222
      %v5513 = vpop.f32.mrb[0].mxu0
      %v5514 = vadd.f32 %v5261, %v5513
      %v5515 = vpop.f32.mrb[0].mxu0
      %v5516 = vpop.f32.mrb[0].mxu0
      %v5517 = vadd.f32 %v5261, %v5516
      %v5518 = vpop.f32.mrb[0].mxu0
      %5519 = vdwg.mxu0
      %5520 = vrot.lane.b32.xlu0 %v5394, 64
      %v5521 = vpop.permute.xlu0 %5520
      %5522 = vrot.lane.b32.xlu0 %v5397, 64
      %v5523 = vpop.permute.xlu0 %5522
      %5524 = vrot.lane.b32.xlu0 %v5402, 64
      %v5525 = vpop.permute.xlu0 %5524
      %5526 = vrot.lane.b32.xlu0 %v5405, 64
      %v5527 = vpop.permute.xlu0 %5526
      %5528 = vrot.lane.b32.xlu0 %v5410, 64
      %v5529 = vpop.permute.xlu0 %5528
      %5530 = vrot.lane.b32.xlu0 %v5413, 64
      %v5531 = vpop.permute.xlu0 %5530
      %5532 = vrot.lane.b32.xlu0 %v5418, 64
      %v5533 = vpop.permute.xlu0 %5532
      %5534 = vrot.lane.b32.xlu0 %v5421, 64
      %v5535 = vpop.permute.xlu0 %5534
      %5536 = vrot.lane.b32.xlu0 %v5426, 64
      %v5537 = vpop.permute.xlu0 %5536
      %5538 = vrot.lane.b32.xlu0 %v5429, 64
      %v5539 = vpop.permute.xlu0 %5538
      %5540 = vrot.lane.b32.xlu0 %v5434, 64
      %v5541 = vpop.permute.xlu0 %5540
      %5542 = vrot.lane.b32.xlu0 %v5437, 64
      %v5543 = vpop.permute.xlu0 %5542
      %5544 = vrot.lane.b32.xlu0 %v5442, 64
      %v5545 = vpop.permute.xlu0 %5544
      %5546 = vrot.lane.b32.xlu0 %v5445, 64
      %v5547 = vpop.permute.xlu0 %5546
      %5548 = vrot.lane.b32.xlu0 %v5450, 64
      %v5549 = vpop.permute.xlu0 %5548
      %5550 = vrot.lane.b32.xlu0 %v5453, 64
      %v5551 = vpop.permute.xlu0 %5550
      %5552 = vrot.lane.b32.xlu0 %v5458, 64
      %v5553 = vpop.permute.xlu0 %5552
      %5554 = vrot.lane.b32.xlu0 %v5461, 64
      %v5555 = vpop.permute.xlu0 %5554
      %5556 = vrot.lane.b32.xlu0 %v5466, 64
      %v5557 = vpop.permute.xlu0 %5556
      %5558 = vrot.lane.b32.xlu0 %v5469, 64
      %v5559 = vpop.permute.xlu0 %5558
      %5560 = vrot.lane.b32.xlu0 %v5474, 64
      %v5561 = vpop.permute.xlu0 %5560
      %5562 = vrot.lane.b32.xlu0 %v5477, 64
      %v5563 = vpop.permute.xlu0 %5562
      %5564 = vrot.lane.b32.xlu0 %v5482, 64
      %v5565 = vpop.permute.xlu0 %5564
      %5566 = vrot.lane.b32.xlu0 %v5485, 64
      %v5567 = vpop.permute.xlu0 %5566
      %5568 = vrot.lane.b32.xlu0 %v5490, 64
      %v5569 = vpop.permute.xlu0 %5568
      %5570 = vrot.lane.b32.xlu0 %v5493, 64
      %v5571 = vpop.permute.xlu0 %5570
      %5572 = vrot.lane.b32.xlu0 %v5498, 64
      %v5573 = vpop.permute.xlu0 %5572
      %5574 = vrot.lane.b32.xlu0 %v5501, 64
      %v5575 = vpop.permute.xlu0 %5574
      %5576 = vrot.lane.b32.xlu0 %v5506, 64
      %v5577 = vpop.permute.xlu0 %5576
      %5578 = vrot.lane.b32.xlu0 %v5509, 64
      %v5579 = vpop.permute.xlu0 %5578
      %5580 = vrot.lane.b32.xlu0 %v5514, 64
      %v5581 = vpop.permute.xlu0 %5580
      %5582 = vrot.lane.b32.xlu0 %v5517, 64
      %v5583 = vpop.permute.xlu0 %5582
      %v5584 = vlaneseq
      %v5585 = vand.u32 %v5584, 127
      %vm5586 = vcmp.lt.s32.totalorder %v5585, 64
      %v5587 = vmul.f32 %v5521, 0.5
      %v5588 = vmul.f32 %v5523, 0.5
      %v5589 = vmul.f32 %v5525, 0.5
      %v5590 = vmul.f32 %v5527, 0.5
      %v5591 = vmul.f32 %v5529, 0.5
      %v5592 = vmul.f32 %v5531, 0.5
      %v5593 = vmul.f32 %v5533, 0.5
      %v5594 = vmul.f32 %v5535, 0.5
      %v5595 = vmul.f32 %v5537, 0.5
      %v5596 = vmul.f32 %v5539, 0.5
      %v5597 = vmul.f32 %v5541, 0.5
      %v5598 = vmul.f32 %v5543, 0.5
      %v5599 = vmul.f32 %v5545, 0.5
      %v5600 = vmul.f32 %v5547, 0.5
      %v5601 = vmul.f32 %v5549, 0.5
      %v5602 = vmul.f32 %v5551, 0.5
      %v5603 = vmul.f32 %v5553, 0.5
      %v5604 = vmul.f32 %v5555, 0.5
      %v5605 = vmul.f32 %v5557, 0.5
      %v5606 = vmul.f32 %v5559, 0.5
      %v5607 = vmul.f32 %v5561, 0.5
      %v5608 = vmul.f32 %v5563, 0.5
      %v5609 = vmul.f32 %v5565, 0.5
      %v5610 = vmul.f32 %v5567, 0.5
      %v5611 = vmul.f32 %v5569, 0.5
      %v5612 = vmul.f32 %v5571, 0.5
      %v5613 = vmul.f32 %v5573, 0.5
      %v5614 = vmul.f32 %v5575, 0.5
      %v5615 = vmul.f32 %v5577, 0.5
      %v5616 = vmul.f32 %v5579, 0.5
      %v5617 = vmul.f32 %v5581, 0.5
      %v5618 = vmul.f32 %v5583, 0.5
      %v5619 = vsel %vm5586, %v5587, 0.0
      %v5620 = vsel %vm5586, %v5588, 0.0
      %v5621 = vsel %vm5586, %v5589, 0.0
      %v5622 = vsel %vm5586, %v5590, 0.0
      %v5623 = vsel %vm5586, %v5591, 0.0
      %v5624 = vsel %vm5586, %v5592, 0.0
      %v5625 = vsel %vm5586, %v5593, 0.0
      %v5626 = vsel %vm5586, %v5594, 0.0
      %v5627 = vsel %vm5586, %v5595, 0.0
      %v5628 = vsel %vm5586, %v5596, 0.0
      %v5629 = vsel %vm5586, %v5597, 0.0
      %v5630 = vsel %vm5586, %v5598, 0.0
      %v5631 = vsel %vm5586, %v5599, 0.0
      %v5632 = vsel %vm5586, %v5600, 0.0
      %v5633 = vsel %vm5586, %v5601, 0.0
      %v5634 = vsel %vm5586, %v5602, 0.0
      %v5635 = vsel %vm5586, %v5603, 0.0
      %v5636 = vsel %vm5586, %v5604, 0.0
      %v5637 = vsel %vm5586, %v5605, 0.0
      %v5638 = vsel %vm5586, %v5606, 0.0
      %v5639 = vsel %vm5586, %v5607, 0.0
      %v5640 = vsel %vm5586, %v5608, 0.0
      %v5641 = vsel %vm5586, %v5609, 0.0
      %v5642 = vsel %vm5586, %v5610, 0.0
      %v5643 = vsel %vm5586, %v5611, 0.0
      %v5644 = vsel %vm5586, %v5612, 0.0
      %v5645 = vsel %vm5586, %v5613, 0.0
      %v5646 = vsel %vm5586, %v5614, 0.0
      %v5647 = vsel %vm5586, %v5615, 0.0
      %v5648 = vsel %vm5586, %v5616, 0.0
      %v5649 = vsel %vm5586, %v5617, 0.0
      %v5650 = vsel %vm5586, %v5618, 0.0
      %v5651 = vld [vmem:[%s524] sm:$0xff]
      %v5652 = vld [vmem:[%s524 + $0x8] sm:$0xff]
      %v5653 = vld [vmem:[%s524 + $0x10] sm:$0xff]
      %v5654 = vld [vmem:[%s524 + $0x18] sm:$0xff]
      %v5655 = vld [vmem:[%s524 + $0x20] sm:$0xff]
      %v5656 = vld [vmem:[%s524 + $0x28] sm:$0xff]
      %v5657 = vld [vmem:[%s524 + $0x30] sm:$0xff]
      %v5658 = vld [vmem:[%s524 + $0x38] sm:$0xff]
      %v5659 = vld [vmem:[%s524 + $0x40] sm:$0xff]
      %v5660 = vld [vmem:[%s524 + $0x48] sm:$0xff]
      %v5661 = vld [vmem:[%s524 + $0x50] sm:$0xff]
      %v5662 = vld [vmem:[%s524 + $0x58] sm:$0xff]
      %v5663 = vld [vmem:[%s524 + $0x60] sm:$0xff]
      %v5664 = vld [vmem:[%s524 + $0x68] sm:$0xff]
      %v5665 = vld [vmem:[%s524 + $0x70] sm:$0xff]
      %v5666 = vld [vmem:[%s524 + $0x78] sm:$0xff]
      %v5667 = vld [vmem:[%s524 + $0x80] sm:$0xff]
      %v5668 = vld [vmem:[%s524 + $0x88] sm:$0xff]
      %v5669 = vld [vmem:[%s524 + $0x90] sm:$0xff]
      %v5670 = vld [vmem:[%s524 + $0x98] sm:$0xff]
      %v5671 = vld [vmem:[%s524 + $0xa0] sm:$0xff]
      %v5672 = vld [vmem:[%s524 + $0xa8] sm:$0xff]
      %v5673 = vld [vmem:[%s524 + $0xb0] sm:$0xff]
      %v5674 = vld [vmem:[%s524 + $0xb8] sm:$0xff]
      %v5675 = vld [vmem:[%s524 + $0xc0] sm:$0xff]
      %v5676 = vld [vmem:[%s524 + $0xc8] sm:$0xff]
      %v5677 = vld [vmem:[%s524 + $0xd0] sm:$0xff]
      %v5678 = vld [vmem:[%s524 + $0xd8] sm:$0xff]
      %v5679 = vld [vmem:[%s524 + $0xe0] sm:$0xff]
      %v5680 = vld [vmem:[%s524 + $0xe8] sm:$0xff]
      %v5681 = vld [vmem:[%s524 + $0xf0] sm:$0xff]
      %v5682 = vld [vmem:[%s524 + $0xf8] sm:$0xff]
      %v5683 = vmul.f32 %v5619, 1.442695
      %v5684 = vpow.pop %v5683
      %v5685 = vmul.f32 %v5620, 1.442695
      %v5686 = vpow.pop %v5685
      %v5687 = vmul.f32 %v5621, 1.442695
      %v5688 = vpow.pop %v5687
      %v5689 = vmul.f32 %v5622, 1.442695
      %v5690 = vpow.pop %v5689
      %v5691 = vmul.f32 %v5623, 1.442695
      %v5692 = vpow.pop %v5691
      %v5693 = vmul.f32 %v5624, 1.442695
      %v5694 = vpow.pop %v5693
      %v5695 = vmul.f32 %v5625, 1.442695
      %v5696 = vpow.pop %v5695
      %v5697 = vmul.f32 %v5626, 1.442695
      %v5698 = vpow.pop %v5697
      %v5699 = vmul.f32 %v5627, 1.442695
      %v5700 = vpow.pop %v5699
      %v5701 = vmul.f32 %v5628, 1.442695
      %v5702 = vpow.pop %v5701
      %v5703 = vmul.f32 %v5629, 1.442695
      %v5704 = vpow.pop %v5703
      %v5705 = vmul.f32 %v5630, 1.442695
      %v5706 = vpow.pop %v5705
      %v5707 = vmul.f32 %v5631, 1.442695
      %v5708 = vpow.pop %v5707
      %v5709 = vmul.f32 %v5632, 1.442695
      %v5710 = vpow.pop %v5709
      %v5711 = vmul.f32 %v5633, 1.442695
      %v5712 = vpow.pop %v5711
      %v5713 = vmul.f32 %v5634, 1.442695
      %v5714 = vpow.pop %v5713
      %v5715 = vmul.f32 %v5635, 1.442695
      %v5716 = vpow.pop %v5715
      %v5717 = vmul.f32 %v5636, 1.442695
      %v5718 = vpow.pop %v5717
      %v5719 = vmul.f32 %v5637, 1.442695
      %v5720 = vpow.pop %v5719
      %v5721 = vmul.f32 %v5638, 1.442695
      %v5722 = vpow.pop %v5721
      %v5723 = vmul.f32 %v5639, 1.442695
      %v5724 = vpow.pop %v5723
      %v5725 = vmul.f32 %v5640, 1.442695
      %v5726 = vpow.pop %v5725
      %v5727 = vmul.f32 %v5641, 1.442695
      %v5728 = vpow.pop %v5727
      %v5729 = vmul.f32 %v5642, 1.442695
      %v5730 = vpow.pop %v5729
      %v5731 = vmul.f32 %v5643, 1.442695
      %v5732 = vpow.pop %v5731
      %v5733 = vmul.f32 %v5644, 1.442695
      %v5734 = vpow.pop %v5733
      %v5735 = vmul.f32 %v5645, 1.442695
      %v5736 = vpow.pop %v5735
      %v5737 = vmul.f32 %v5646, 1.442695
      %v5738 = vpow.pop %v5737
      %v5739 = vmul.f32 %v5647, 1.442695
      %v5740 = vpow.pop %v5739
      %v5741 = vmul.f32 %v5648, 1.442695
      %v5742 = vpow.pop %v5741
      %v5743 = vmul.f32 %v5649, 1.442695
      %v5744 = vpow.pop %v5743
      %v5745 = vmul.f32 %v5650, 1.442695
      %v5746 = vpow.pop %v5745
      %v5747 = vmul.f32 %v5651, %v5684
      %v5748 = vmul.f32 %v5652, %v5686
      %v5749 = vmul.f32 %v5653, %v5688
      %v5750 = vmul.f32 %v5654, %v5690
      %v5751 = vmul.f32 %v5655, %v5692
      %v5752 = vmul.f32 %v5656, %v5694
      %v5753 = vmul.f32 %v5657, %v5696
      %v5754 = vmul.f32 %v5658, %v5698
      %v5755 = vmul.f32 %v5659, %v5700
      %v5756 = vmul.f32 %v5660, %v5702
      %v5757 = vmul.f32 %v5661, %v5704
      %v5758 = vmul.f32 %v5662, %v5706
      %v5759 = vmul.f32 %v5663, %v5708
      %v5760 = vmul.f32 %v5664, %v5710
      %v5761 = vmul.f32 %v5665, %v5712
      %v5762 = vmul.f32 %v5666, %v5714
      %v5763 = vmul.f32 %v5667, %v5716
      %v5764 = vmul.f32 %v5668, %v5718
      %v5765 = vmul.f32 %v5669, %v5720
      %v5766 = vmul.f32 %v5670, %v5722
      %v5767 = vmul.f32 %v5671, %v5724
      %v5768 = vmul.f32 %v5672, %v5726
      %v5769 = vmul.f32 %v5673, %v5728
      %v5770 = vmul.f32 %v5674, %v5730
      %v5771 = vmul.f32 %v5675, %v5732
      %v5772 = vmul.f32 %v5676, %v5734
      %v5773 = vmul.f32 %v5677, %v5736
      %v5774 = vmul.f32 %v5678, %v5738
      %v5775 = vmul.f32 %v5679, %v5740
      %v5776 = vmul.f32 %v5680, %v5742
      %v5777 = vmul.f32 %v5681, %v5744
      %v5778 = vmul.f32 %v5682, %v5746
      %v5779 = vadd.f32 %v5394, %v5747
      %v5780 = vadd.f32 %v5397, %v5748
      %v5781 = vadd.f32 %v5402, %v5749
      %v5782 = vadd.f32 %v5405, %v5750
      %v5783 = vadd.f32 %v5410, %v5751
      %v5784 = vadd.f32 %v5413, %v5752
      %v5785 = vadd.f32 %v5418, %v5753
      %v5786 = vadd.f32 %v5421, %v5754
      %v5787 = vadd.f32 %v5426, %v5755
      %v5788 = vadd.f32 %v5429, %v5756
      %v5789 = vadd.f32 %v5434, %v5757
      %v5790 = vadd.f32 %v5437, %v5758
      %v5791 = vadd.f32 %v5442, %v5759
      %v5792 = vadd.f32 %v5445, %v5760
      %v5793 = vadd.f32 %v5450, %v5761
      %v5794 = vadd.f32 %v5453, %v5762
      %v5795 = vadd.f32 %v5458, %v5763
      %v5796 = vadd.f32 %v5461, %v5764
      %v5797 = vadd.f32 %v5466, %v5765
      %v5798 = vadd.f32 %v5469, %v5766
      %v5799 = vadd.f32 %v5474, %v5767
      %v5800 = vadd.f32 %v5477, %v5768
      %v5801 = vadd.f32 %v5482, %v5769
      %v5802 = vadd.f32 %v5485, %v5770
      %v5803 = vadd.f32 %v5490, %v5771
      %v5804 = vadd.f32 %v5493, %v5772
      %v5805 = vadd.f32 %v5498, %v5773
      %v5806 = vadd.f32 %v5501, %v5774
      %v5807 = vadd.f32 %v5506, %v5775
      %v5808 = vadd.f32 %v5509, %v5776
      %v5809 = vadd.f32 %v5514, %v5777
      %v5810 = vadd.f32 %v5517, %v5778
      %v5811 = vpack.c.bf16 %v5780, %v5779
      %v5812 = vpack.c.bf16 %v5782, %v5781
      %v5813 = vpack.c.bf16 %v5784, %v5783
      %v5814 = vpack.c.bf16 %v5786, %v5785
      %v5815 = vpack.c.bf16 %v5788, %v5787
      %v5816 = vpack.c.bf16 %v5790, %v5789
      %v5817 = vpack.c.bf16 %v5792, %v5791
      %v5818 = vpack.c.bf16 %v5794, %v5793
      %v5819 = vpack.c.bf16 %v5796, %v5795
      %v5820 = vpack.c.bf16 %v5798, %v5797
      %v5821 = vpack.c.bf16 %v5800, %v5799
      %v5822 = vpack.c.bf16 %v5802, %v5801
      %v5823 = vpack.c.bf16 %v5804, %v5803
      %v5824 = vpack.c.bf16 %v5806, %v5805
      %v5825 = vpack.c.bf16 %v5808, %v5807
      %v5826 = vpack.c.bf16 %v5810, %v5809
      %v5827 = vld [vmem:[%s8] sm:$0xff]
      %v5828 = vld [vmem:[%s8 + $0x8] sm:$0xff]
      %v5829 = vld [vmem:[%s8 + $0x10] sm:$0xff]
      %v5830 = vld [vmem:[%s8 + $0x18] sm:$0xff]
      %v5831 = vld [vmem:[%s8 + $0x20] sm:$0xff]
      %v5832 = vld [vmem:[%s8 + $0x28] sm:$0xff]
      %v5833 = vld [vmem:[%s8 + $0x30] sm:$0xff]
      %v5834 = vld [vmem:[%s8 + $0x38] sm:$0xff]
      %v5835 = vld [vmem:[%s8 + $0x40] sm:$0xff]
      %v5836 = vld [vmem:[%s8 + $0x48] sm:$0xff]
      %v5837 = vld [vmem:[%s8 + $0x50] sm:$0xff]
      %v5838 = vld [vmem:[%s8 + $0x58] sm:$0xff]
      %v5839 = vld [vmem:[%s8 + $0x60] sm:$0xff]
      %v5840 = vld [vmem:[%s8 + $0x68] sm:$0xff]
      %v5841 = vld [vmem:[%s8 + $0x70] sm:$0xff]
      %v5842 = vld [vmem:[%s8 + $0x78] sm:$0xff]
      %v5843 = vld [vmem:[%s9] sm:$0x3]
      %v5845 = vlaneseq
      %v5846 = vshrl.u32 %v5845, 7
      %v5847 = vsub.s32 0, %v5846
      %v5848 = vrot.slane %v5843, %v5847
      %v5849 = vlaneseq
      %v5850 = vshrl.u32 %v5849, 7
      %v5851 = vsub.s32 1, %v5850
      %v5852 = vrot.slane %v5843, %v5851
      %v5871 = vunpack.c.l.b16 %v5827
      %v5872 = vunpack.c.h.b16 %v5827
      %v5873 = vunpack.c.l.b16 %v5828
      %v5874 = vunpack.c.h.b16 %v5828
      %v5875 = vunpack.c.l.b16 %v5829
      %v5876 = vunpack.c.h.b16 %v5829
      %v5877 = vunpack.c.l.b16 %v5830
      %v5878 = vunpack.c.h.b16 %v5830
      %v5879 = vunpack.c.l.b16 %v5831
      %v5880 = vunpack.c.h.b16 %v5831
      %v5881 = vunpack.c.l.b16 %v5832
      %v5882 = vunpack.c.h.b16 %v5832
      %v5883 = vunpack.c.l.b16 %v5833
      %v5884 = vunpack.c.h.b16 %v5833
      %v5885 = vunpack.c.l.b16 %v5834
      %v5886 = vunpack.c.h.b16 %v5834
      %v5887 = vunpack.c.l.b16 %v5835
      %v5888 = vunpack.c.h.b16 %v5835
      %v5889 = vunpack.c.l.b16 %v5836
      %v5890 = vunpack.c.h.b16 %v5836
      %v5891 = vunpack.c.l.b16 %v5837
      %v5892 = vunpack.c.h.b16 %v5837
      %v5893 = vunpack.c.l.b16 %v5838
      %v5894 = vunpack.c.h.b16 %v5838
      %v5895 = vunpack.c.l.b16 %v5839
      %v5896 = vunpack.c.h.b16 %v5839
      %v5897 = vunpack.c.l.b16 %v5840
      %v5898 = vunpack.c.h.b16 %v5840
      %v5899 = vunpack.c.l.b16 %v5841
      %v5900 = vunpack.c.h.b16 %v5841
      %v5901 = vunpack.c.l.b16 %v5842
      %v5902 = vunpack.c.h.b16 %v5842
      %v5903 = vpack.c.b16 %v5873, %v5871
      %v5904 = vpack.c.b16 %v5874, %v5872
      %v5905 = vpack.c.b16 %v5877, %v5875
      %v5906 = vpack.c.b16 %v5878, %v5876
      %v5907 = vpack.c.b16 %v5881, %v5879
      %v5908 = vpack.c.b16 %v5882, %v5880
      %v5909 = vpack.c.b16 %v5885, %v5883
      %v5910 = vpack.c.b16 %v5886, %v5884
      %v5911 = vpack.c.b16 %v5889, %v5887
      %v5912 = vpack.c.b16 %v5890, %v5888
      %v5913 = vpack.c.b16 %v5893, %v5891
      %v5914 = vpack.c.b16 %v5894, %v5892
      %v5915 = vpack.c.b16 %v5897, %v5895
      %v5916 = vpack.c.b16 %v5898, %v5896
      %v5917 = vpack.c.b16 %v5901, %v5899
      %v5918 = vpack.c.b16 %v5902, %v5900
      %5935 = vmatprep.subr.bf16.mxu0 %v5904
      %5936 = vmatpush1.bf16.msra.mxu0 %v5903
      %5937 = vmatprep.subr.bf16.mxu0 %v5906
      %5938 = vmatpush1.bf16.msra.mxu0 %v5905
      %5939 = vmatprep.subr.bf16.mxu0 %v5908
      %5940 = vmatpush1.bf16.msra.mxu0 %v5907
      %5941 = vmatprep.subr.bf16.mxu0 %v5910
      %5942 = vmatpush1.bf16.msra.mxu0 %v5909
      %5943 = vmatprep.subr.bf16.mxu0 %v5912
      %5944 = vmatpush1.bf16.msra.mxu0 %v5911
      %5945 = vmatprep.subr.bf16.mxu0 %v5914
      %5946 = vmatpush1.bf16.msra.mxu0 %v5913
      %5947 = vmatprep.subr.bf16.mxu0 %v5916
      %5948 = vmatpush1.bf16.msra.mxu0 %v5915
      %5949 = vmatprep.subr.bf16.mxu0 %v5918
      %5950 = vmatpush1.bf16.msra.mxu0 %v5917
      %5951 = vmatprep.subr.bf16.mxu0 0
      %5952 = vmatpush1.bf16.msra.mxu0 0
      %5953 = vmatprep.subr.bf16.mxu0 0
      %5954 = vmatpush1.bf16.msra.mxu0 0
      %5955 = vmatprep.subr.bf16.mxu0 0
      %5956 = vmatpush1.bf16.msra.mxu0 0
      %5957 = vmatprep.subr.bf16.mxu0 0
      %5958 = vmatpush1.bf16.msra.mxu0 0
      %5959 = vmatprep.subr.bf16.mxu0 0
      %5960 = vmatpush1.bf16.msra.mxu0 0
      %5961 = vmatprep.subr.bf16.mxu0 0
      %5962 = vmatpush1.bf16.msra.mxu0 0
      %5963 = vmatprep.subr.bf16.mxu0 0
      %5964 = vmatpush1.bf16.msra.mxu0 0
      %5965 = vmatprep.subr.bf16.mxu0 0
      %5966 = vmatpush1.bf16.msra.mxu0 0
      %5967 = vmatprep.mubr.bf16.mxu0 0
      %5968 = vmatmul.mubr.bf16.gmra.mrb[0].mxu0 %v5811
      %v5969 = vpop.f32.mrb[0].mxu0
      %v5970 = vadd.f32 %v5848, %v5969
      %v5971 = vpop.f32.mrb[0].mxu0
      %v5972 = vadd.f32 %v5852, %v5971
      %v5973 = vpop.f32.mrb[0].mxu0
      %v5974 = vadd.f32 %v5848, %v5973
      %v5975 = vpop.f32.mrb[0].mxu0
      %v5976 = vadd.f32 %v5852, %v5975
      %5977 = vmatprep.mubr.bf16.mxu0 0
      %5978 = vmatmul.mubr.bf16.gmra.mrb[0].mxu0 %v5812
      %v5979 = vpop.f32.mrb[0].mxu0
      %v5980 = vadd.f32 %v5848, %v5979
      %v5981 = vpop.f32.mrb[0].mxu0
      %v5982 = vadd.f32 %v5852, %v5981
      %v5983 = vpop.f32.mrb[0].mxu0
      %v5984 = vadd.f32 %v5848, %v5983
      %v5985 = vpop.f32.mrb[0].mxu0
      %v5986 = vadd.f32 %v5852, %v5985
      %5987 = vmatprep.mubr.bf16.mxu0 0
      %5988 = vmatmul.mubr.bf16.gmra.mrb[0].mxu0 %v5813
      %v5989 = vpop.f32.mrb[0].mxu0
      %v5990 = vadd.f32 %v5848, %v5989
      %v5991 = vpop.f32.mrb[0].mxu0
      %v5992 = vadd.f32 %v5852, %v5991
      %v5993 = vpop.f32.mrb[0].mxu0
      %v5994 = vadd.f32 %v5848, %v5993
      %v5995 = vpop.f32.mrb[0].mxu0
      %v5996 = vadd.f32 %v5852, %v5995
      %5997 = vmatprep.mubr.bf16.mxu0 0
      %5998 = vmatmul.mubr.bf16.gmra.mrb[0].mxu0 %v5814
      %v5999 = vpop.f32.mrb[0].mxu0
      %v6000 = vadd.f32 %v5848, %v5999
      %v6001 = vpop.f32.mrb[0].mxu0
      %v6002 = vadd.f32 %v5852, %v6001
      %v6003 = vpop.f32.mrb[0].mxu0
      %v6004 = vadd.f32 %v5848, %v6003
      %v6005 = vpop.f32.mrb[0].mxu0
      %v6006 = vadd.f32 %v5852, %v6005
      %6007 = vmatprep.mubr.bf16.mxu0 0
      %6008 = vmatmul.mubr.bf16.gmra.mrb[0].mxu0 %v5815
      %v6009 = vpop.f32.mrb[0].mxu0
      %v6010 = vadd.f32 %v5848, %v6009
      %v6011 = vpop.f32.mrb[0].mxu0
      %v6012 = vadd.f32 %v5852, %v6011
      %v6013 = vpop.f32.mrb[0].mxu0
      %v6014 = vadd.f32 %v5848, %v6013
      %v6015 = vpop.f32.mrb[0].mxu0
      %v6016 = vadd.f32 %v5852, %v6015
      %6017 = vmatprep.mubr.bf16.mxu0 0
      %6018 = vmatmul.mubr.bf16.gmra.mrb[0].mxu0 %v5816
      %v6019 = vpop.f32.mrb[0].mxu0
      %v6020 = vadd.f32 %v5848, %v6019
      %v6021 = vpop.f32.mrb[0].mxu0
      %v6022 = vadd.f32 %v5852, %v6021
      %v6023 = vpop.f32.mrb[0].mxu0
      %v6024 = vadd.f32 %v5848, %v6023
      %v6025 = vpop.f32.mrb[0].mxu0
      %v6026 = vadd.f32 %v5852, %v6025
      %6027 = vmatprep.mubr.bf16.mxu0 0
      %6028 = vmatmul.mubr.bf16.gmra.mrb[0].mxu0 %v5817
      %v6029 = vpop.f32.mrb[0].mxu0
      %v6030 = vadd.f32 %v5848, %v6029
      %v6031 = vpop.f32.mrb[0].mxu0
      %v6032 = vadd.f32 %v5852, %v6031
      %v6033 = vpop.f32.mrb[0].mxu0
      %v6034 = vadd.f32 %v5848, %v6033
      %v6035 = vpop.f32.mrb[0].mxu0
      %v6036 = vadd.f32 %v5852, %v6035
      %6037 = vmatprep.mubr.bf16.mxu0 0
      %6038 = vmatmul.mubr.bf16.gmra.mrb[0].mxu0 %v5818
      %v6039 = vpop.f32.mrb[0].mxu0
      %v6040 = vadd.f32 %v5848, %v6039
      %v6041 = vpop.f32.mrb[0].mxu0
      %v6042 = vadd.f32 %v5852, %v6041
      %v6043 = vpop.f32.mrb[0].mxu0
      %v6044 = vadd.f32 %v5848, %v6043
      %v6045 = vpop.f32.mrb[0].mxu0
      %v6046 = vadd.f32 %v5852, %v6045
      %6047 = vmatprep.mubr.bf16.mxu0 0
      %6048 = vmatmul.mubr.bf16.gmra.mrb[0].mxu0 %v5819
      %v6049 = vpop.f32.mrb[0].mxu0
      %v6050 = vadd.f32 %v5848, %v6049
      %v6051 = vpop.f32.mrb[0].mxu0
      %v6052 = vadd.f32 %v5852, %v6051
      %v6053 = vpop.f32.mrb[0].mxu0
      %v6054 = vadd.f32 %v5848, %v6053
      %v6055 = vpop.f32.mrb[0].mxu0
      %v6056 = vadd.f32 %v5852, %v6055
      %6057 = vmatprep.mubr.bf16.mxu0 0
      %6058 = vmatmul.mubr.bf16.gmra.mrb[0].mxu0 %v5820
      %v6059 = vpop.f32.mrb[0].mxu0
      %v6060 = vadd.f32 %v5848, %v6059
      %v6061 = vpop.f32.mrb[0].mxu0
      %v6062 = vadd.f32 %v5852, %v6061
      %v6063 = vpop.f32.mrb[0].mxu0
      %v6064 = vadd.f32 %v5848, %v6063
      %v6065 = vpop.f32.mrb[0].mxu0
      %v6066 = vadd.f32 %v5852, %v6065
      %6067 = vmatprep.mubr.bf16.mxu0 0
      %6068 = vmatmul.mubr.bf16.gmra.mrb[0].mxu0 %v5821
      %v6069 = vpop.f32.mrb[0].mxu0
      %v6070 = vadd.f32 %v5848, %v6069
      %v6071 = vpop.f32.mrb[0].mxu0
      %v6072 = vadd.f32 %v5852, %v6071
      %v6073 = vpop.f32.mrb[0].mxu0
      %v6074 = vadd.f32 %v5848, %v6073
      %v6075 = vpop.f32.mrb[0].mxu0
      %v6076 = vadd.f32 %v5852, %v6075
      %6077 = vmatprep.mubr.bf16.mxu0 0
      %6078 = vmatmul.mubr.bf16.gmra.mrb[0].mxu0 %v5822
      %v6079 = vpop.f32.mrb[0].mxu0
      %v6080 = vadd.f32 %v5848, %v6079
      %v6081 = vpop.f32.mrb[0].mxu0
      %v6082 = vadd.f32 %v5852, %v6081
      %v6083 = vpop.f32.mrb[0].mxu0
      %v6084 = vadd.f32 %v5848, %v6083
      %v6085 = vpop.f32.mrb[0].mxu0
      %v6086 = vadd.f32 %v5852, %v6085
      %6087 = vmatprep.mubr.bf16.mxu0 0
      %6088 = vmatmul.mubr.bf16.gmra.mrb[0].mxu0 %v5823
      %v6089 = vpop.f32.mrb[0].mxu0
      %v6090 = vadd.f32 %v5848, %v6089
      %v6091 = vpop.f32.mrb[0].mxu0
      %v6092 = vadd.f32 %v5852, %v6091
      %v6093 = vpop.f32.mrb[0].mxu0
      %v6094 = vadd.f32 %v5848, %v6093
      %v6095 = vpop.f32.mrb[0].mxu0
      %v6096 = vadd.f32 %v5852, %v6095
      %6097 = vmatprep.mubr.bf16.mxu0 0
      %6098 = vmatmul.mubr.bf16.gmra.mrb[0].mxu0 %v5824
      %v6099 = vpop.f32.mrb[0].mxu0
      %v6100 = vadd.f32 %v5848, %v6099
      %v6101 = vpop.f32.mrb[0].mxu0
      %v6102 = vadd.f32 %v5852, %v6101
      %v6103 = vpop.f32.mrb[0].mxu0
      %v6104 = vadd.f32 %v5848, %v6103
      %v6105 = vpop.f32.mrb[0].mxu0
      %v6106 = vadd.f32 %v5852, %v6105
      %6107 = vmatprep.mubr.bf16.mxu0 0
      %6108 = vmatmul.mubr.bf16.gmra.mrb[0].mxu0 %v5825
      %v6109 = vpop.f32.mrb[0].mxu0
      %v6110 = vadd.f32 %v5848, %v6109
      %v6111 = vpop.f32.mrb[0].mxu0
      %v6112 = vadd.f32 %v5852, %v6111
      %v6113 = vpop.f32.mrb[0].mxu0
      %v6114 = vadd.f32 %v5848, %v6113
      %v6115 = vpop.f32.mrb[0].mxu0
      %v6116 = vadd.f32 %v5852, %v6115
      %6117 = vmatprep.mubr.bf16.mxu0 0
      %6118 = vmatmul.mubr.bf16.gmra.mrb[0].mxu0 %v5826
      %v6119 = vpop.f32.mrb[0].mxu0
      %v6120 = vadd.f32 %v5848, %v6119
      %v6121 = vpop.f32.mrb[0].mxu0
      %v6122 = vadd.f32 %v5852, %v6121
      %v6123 = vpop.f32.mrb[0].mxu0
      %v6124 = vadd.f32 %v5848, %v6123
      %v6125 = vpop.f32.mrb[0].mxu0
      %v6126 = vadd.f32 %v5852, %v6125
      %6127 = vdwg.mxu0
      %v6128 = vmax.f32 %v5970, 0.0
      %v6129 = vmax.f32 %v5972, 0.0
      %v6130 = vmax.f32 %v5974, 0.0
      %v6131 = vmax.f32 %v5976, 0.0
      %v6132 = vmax.f32 %v5980, 0.0
      %v6133 = vmax.f32 %v5982, 0.0
      %v6134 = vmax.f32 %v5984, 0.0
      %v6135 = vmax.f32 %v5986, 0.0
      %v6136 = vmax.f32 %v5990, 0.0
      %v6137 = vmax.f32 %v5992, 0.0
      %v6138 = vmax.f32 %v5994, 0.0
      %v6139 = vmax.f32 %v5996, 0.0
      %v6140 = vmax.f32 %v6000, 0.0
      %v6141 = vmax.f32 %v6002, 0.0
      %v6142 = vmax.f32 %v6004, 0.0
      %v6143 = vmax.f32 %v6006, 0.0
      %v6144 = vmax.f32 %v6010, 0.0
      %v6145 = vmax.f32 %v6012, 0.0
      %v6146 = vmax.f32 %v6014, 0.0
      %v6147 = vmax.f32 %v6016, 0.0
      %v6148 = vmax.f32 %v6020, 0.0
      %v6149 = vmax.f32 %v6022, 0.0
      %v6150 = vmax.f32 %v6024, 0.0
      %v6151 = vmax.f32 %v6026, 0.0
      %v6152 = vmax.f32 %v6030, 0.0
      %v6153 = vmax.f32 %v6032, 0.0
      %v6154 = vmax.f32 %v6034, 0.0
      %v6155 = vmax.f32 %v6036, 0.0
      %v6156 = vmax.f32 %v6040, 0.0
      %v6157 = vmax.f32 %v6042, 0.0
      %v6158 = vmax.f32 %v6044, 0.0
      %v6159 = vmax.f32 %v6046, 0.0
      %v6160 = vmax.f32 %v6050, 0.0
      %v6161 = vmax.f32 %v6052, 0.0
      %v6162 = vmax.f32 %v6054, 0.0
      %v6163 = vmax.f32 %v6056, 0.0
      %v6164 = vmax.f32 %v6060, 0.0
      %v6165 = vmax.f32 %v6062, 0.0
      %v6166 = vmax.f32 %v6064, 0.0
      %v6167 = vmax.f32 %v6066, 0.0
      %v6168 = vmax.f32 %v6070, 0.0
      %v6169 = vmax.f32 %v6072, 0.0
      %v6170 = vmax.f32 %v6074, 0.0
      %v6171 = vmax.f32 %v6076, 0.0
      %v6172 = vmax.f32 %v6080, 0.0
      %v6173 = vmax.f32 %v6082, 0.0
      %v6174 = vmax.f32 %v6084, 0.0
      %v6175 = vmax.f32 %v6086, 0.0
      %v6176 = vmax.f32 %v6090, 0.0
      %v6177 = vmax.f32 %v6092, 0.0
      %v6178 = vmax.f32 %v6094, 0.0
      %v6179 = vmax.f32 %v6096, 0.0
      %v6180 = vmax.f32 %v6100, 0.0
      %v6181 = vmax.f32 %v6102, 0.0
      %v6182 = vmax.f32 %v6104, 0.0
      %v6183 = vmax.f32 %v6106, 0.0
      %v6184 = vmax.f32 %v6110, 0.0
      %v6185 = vmax.f32 %v6112, 0.0
      %v6186 = vmax.f32 %v6114, 0.0
      %v6187 = vmax.f32 %v6116, 0.0
      %v6188 = vmax.f32 %v6120, 0.0
      %v6189 = vmax.f32 %v6122, 0.0
      %v6190 = vmax.f32 %v6124, 0.0
      %v6191 = vmax.f32 %v6126, 0.0
      %v6192 = vpack.c.bf16 %v6130, %v6128
      %v6193 = vpack.c.bf16 %v6131, %v6129
      %v6194 = vpack.c.bf16 %v6134, %v6132
      %v6195 = vpack.c.bf16 %v6135, %v6133
      %v6196 = vpack.c.bf16 %v6138, %v6136
      %v6197 = vpack.c.bf16 %v6139, %v6137
      %v6198 = vpack.c.bf16 %v6142, %v6140
      %v6199 = vpack.c.bf16 %v6143, %v6141
      %v6200 = vpack.c.bf16 %v6146, %v6144
      %v6201 = vpack.c.bf16 %v6147, %v6145
      %v6202 = vpack.c.bf16 %v6150, %v6148
      %v6203 = vpack.c.bf16 %v6151, %v6149
      %v6204 = vpack.c.bf16 %v6154, %v6152
      %v6205 = vpack.c.bf16 %v6155, %v6153
      %v6206 = vpack.c.bf16 %v6158, %v6156
      %v6207 = vpack.c.bf16 %v6159, %v6157
      %v6208 = vpack.c.bf16 %v6162, %v6160
      %v6209 = vpack.c.bf16 %v6163, %v6161
      %v6210 = vpack.c.bf16 %v6166, %v6164
      %v6211 = vpack.c.bf16 %v6167, %v6165
      %v6212 = vpack.c.bf16 %v6170, %v6168
      %v6213 = vpack.c.bf16 %v6171, %v6169
      %v6214 = vpack.c.bf16 %v6174, %v6172
      %v6215 = vpack.c.bf16 %v6175, %v6173
      %v6216 = vpack.c.bf16 %v6178, %v6176
      %v6217 = vpack.c.bf16 %v6179, %v6177
      %v6218 = vpack.c.bf16 %v6182, %v6180
      %v6219 = vpack.c.bf16 %v6183, %v6181
      %v6220 = vpack.c.bf16 %v6186, %v6184
      %v6221 = vpack.c.bf16 %v6187, %v6185
      %v6222 = vpack.c.bf16 %v6190, %v6188
      %v6223 = vpack.c.bf16 %v6191, %v6189
      %v6224 = vld [vmem:[%s10] sm:$0xff]
      %v6225 = vld [vmem:[%s10 + $0x8] sm:$0xff]
      %v6226 = vld [vmem:[%s10 + $0x10] sm:$0xff]
      %v6227 = vld [vmem:[%s10 + $0x18] sm:$0xff]
      %v6228 = vld [vmem:[%s10 + $0x20] sm:$0xff]
      %v6229 = vld [vmem:[%s10 + $0x28] sm:$0xff]
      %v6230 = vld [vmem:[%s10 + $0x30] sm:$0xff]
      %v6231 = vld [vmem:[%s10 + $0x38] sm:$0xff]
      %v6232 = vld [vmem:[%s10 + $0x40] sm:$0xff]
      %v6233 = vld [vmem:[%s10 + $0x48] sm:$0xff]
      %v6234 = vld [vmem:[%s10 + $0x50] sm:$0xff]
      %v6235 = vld [vmem:[%s10 + $0x58] sm:$0xff]
      %v6236 = vld [vmem:[%s10 + $0x60] sm:$0xff]
      %v6237 = vld [vmem:[%s10 + $0x68] sm:$0xff]
      %v6238 = vld [vmem:[%s10 + $0x70] sm:$0xff]
      %v6239 = vld [vmem:[%s10 + $0x78] sm:$0xff]
      %v6240 = vld [vmem:[%s10 + $0x80] sm:$0xff]
      %v6241 = vld [vmem:[%s10 + $0x88] sm:$0xff]
      %v6242 = vld [vmem:[%s10 + $0x90] sm:$0xff]
      %v6243 = vld [vmem:[%s10 + $0x98] sm:$0xff]
      %v6244 = vld [vmem:[%s10 + $0xa0] sm:$0xff]
      %v6245 = vld [vmem:[%s10 + $0xa8] sm:$0xff]
      %v6246 = vld [vmem:[%s10 + $0xb0] sm:$0xff]
      %v6247 = vld [vmem:[%s10 + $0xb8] sm:$0xff]
      %v6248 = vld [vmem:[%s10 + $0xc0] sm:$0xff]
      %v6249 = vld [vmem:[%s10 + $0xc8] sm:$0xff]
      %v6250 = vld [vmem:[%s10 + $0xd0] sm:$0xff]
      %v6251 = vld [vmem:[%s10 + $0xd8] sm:$0xff]
      %v6252 = vld [vmem:[%s10 + $0xe0] sm:$0xff]
      %v6253 = vld [vmem:[%s10 + $0xe8] sm:$0xff]
      %v6254 = vld [vmem:[%s10 + $0xf0] sm:$0xff]
      %v6255 = vld [vmem:[%s10 + $0xf8] sm:$0xff]
      %v6256 = vld [vmem:[%s10 + $0x100] sm:$0xff]
      %v6257 = vld [vmem:[%s10 + $0x108] sm:$0xff]
      %v6258 = vld [vmem:[%s10 + $0x110] sm:$0xff]
      %v6259 = vld [vmem:[%s10 + $0x118] sm:$0xff]
      %v6260 = vld [vmem:[%s10 + $0x120] sm:$0xff]
      %v6261 = vld [vmem:[%s10 + $0x128] sm:$0xff]
      %v6262 = vld [vmem:[%s10 + $0x130] sm:$0xff]
      %v6263 = vld [vmem:[%s10 + $0x138] sm:$0xff]
      %v6264 = vld [vmem:[%s10 + $0x140] sm:$0xff]
      %v6265 = vld [vmem:[%s10 + $0x148] sm:$0xff]
      %v6266 = vld [vmem:[%s10 + $0x150] sm:$0xff]
      %v6267 = vld [vmem:[%s10 + $0x158] sm:$0xff]
      %v6268 = vld [vmem:[%s10 + $0x160] sm:$0xff]
      %v6269 = vld [vmem:[%s10 + $0x168] sm:$0xff]
      %v6270 = vld [vmem:[%s10 + $0x170] sm:$0xff]
      %v6271 = vld [vmem:[%s10 + $0x178] sm:$0xff]
      %v6272 = vld [vmem:[%s10 + $0x180] sm:$0xff]
      %v6273 = vld [vmem:[%s10 + $0x188] sm:$0xff]
      %v6274 = vld [vmem:[%s10 + $0x190] sm:$0xff]
      %v6275 = vld [vmem:[%s10 + $0x198] sm:$0xff]
      %v6276 = vld [vmem:[%s10 + $0x1a0] sm:$0xff]
      %v6277 = vld [vmem:[%s10 + $0x1a8] sm:$0xff]
      %v6278 = vld [vmem:[%s10 + $0x1b0] sm:$0xff]
      %v6279 = vld [vmem:[%s10 + $0x1b8] sm:$0xff]
      %v6280 = vld [vmem:[%s10 + $0x1c0] sm:$0xff]
      %v6281 = vld [vmem:[%s10 + $0x1c8] sm:$0xff]
      %v6282 = vld [vmem:[%s10 + $0x1d0] sm:$0xff]
      %v6283 = vld [vmem:[%s10 + $0x1d8] sm:$0xff]
      %v6284 = vld [vmem:[%s10 + $0x1e0] sm:$0xff]
      %v6285 = vld [vmem:[%s10 + $0x1e8] sm:$0xff]
      %v6286 = vld [vmem:[%s10 + $0x1f0] sm:$0xff]
      %v6287 = vld [vmem:[%s10 + $0x1f8] sm:$0xff]
      %v6288 = vld [vmem:[%s11] sm:$0xf]
      %v6290 = vlaneseq
      %v6291 = vshrl.u32 %v6290, 7
      %v6292 = vsub.s32 0, %v6291
      %v6293 = vrot.slane %v6288, %v6292
      %v6294 = vlaneseq
      %v6295 = vshrl.u32 %v6294, 7
      %v6296 = vsub.s32 1, %v6295
      %v6297 = vrot.slane %v6288, %v6296
      %v6298 = vlaneseq
      %v6299 = vshrl.u32 %v6298, 7
      %v6300 = vsub.s32 2, %v6299
      %v6301 = vrot.slane %v6288, %v6300
      %v6302 = vlaneseq
      %v6303 = vshrl.u32 %v6302, 7
      %v6304 = vsub.s32 3, %v6303
      %v6305 = vrot.slane %v6288, %v6304
      %v6374 = vunpack.c.l.b16 %v6224
      %v6375 = vunpack.c.h.b16 %v6224
      %v6376 = vunpack.c.l.b16 %v6225
      %v6377 = vunpack.c.h.b16 %v6225
      %v6378 = vunpack.c.l.b16 %v6226
      %v6379 = vunpack.c.h.b16 %v6226
      %v6380 = vunpack.c.l.b16 %v6227
      %v6381 = vunpack.c.h.b16 %v6227
      %v6382 = vunpack.c.l.b16 %v6228
      %v6383 = vunpack.c.h.b16 %v6228
      %v6384 = vunpack.c.l.b16 %v6229
      %v6385 = vunpack.c.h.b16 %v6229
      %v6386 = vunpack.c.l.b16 %v6230
      %v6387 = vunpack.c.h.b16 %v6230
      %v6388 = vunpack.c.l.b16 %v6231
      %v6389 = vunpack.c.h.b16 %v6231
      %v6390 = vunpack.c.l.b16 %v6232
      %v6391 = vunpack.c.h.b16 %v6232
      %v6392 = vunpack.c.l.b16 %v6233
      %v6393 = vunpack.c.h.b16 %v6233
      %v6394 = vunpack.c.l.b16 %v6234
      %v6395 = vunpack.c.h.b16 %v6234
      %v6396 = vunpack.c.l.b16 %v6235
      %v6397 = vunpack.c.h.b16 %v6235
      %v6398 = vunpack.c.l.b16 %v6236
      %v6399 = vunpack.c.h.b16 %v6236
      %v6400 = vunpack.c.l.b16 %v6237
      %v6401 = vunpack.c.h.b16 %v6237
      %v6402 = vunpack.c.l.b16 %v6238
      %v6403 = vunpack.c.h.b16 %v6238
      %v6404 = vunpack.c.l.b16 %v6239
      %v6405 = vunpack.c.h.b16 %v6239
      %v6406 = vunpack.c.l.b16 %v6240
      %v6407 = vunpack.c.h.b16 %v6240
      %v6408 = vunpack.c.l.b16 %v6241
      %v6409 = vunpack.c.h.b16 %v6241
      %v6410 = vunpack.c.l.b16 %v6242
      %v6411 = vunpack.c.h.b16 %v6242
      %v6412 = vunpack.c.l.b16 %v6243
      %v6413 = vunpack.c.h.b16 %v6243
      %v6414 = vunpack.c.l.b16 %v6244
      %v6415 = vunpack.c.h.b16 %v6244
      %v6416 = vunpack.c.l.b16 %v6245
      %v6417 = vunpack.c.h.b16 %v6245
      %v6418 = vunpack.c.l.b16 %v6246
      %v6419 = vunpack.c.h.b16 %v6246
      %v6420 = vunpack.c.l.b16 %v6247
      %v6421 = vunpack.c.h.b16 %v6247
      %v6422 = vunpack.c.l.b16 %v6248
      %v6423 = vunpack.c.h.b16 %v6248
      %v6424 = vunpack.c.l.b16 %v6249
      %v6425 = vunpack.c.h.b16 %v6249
      %v6426 = vunpack.c.l.b16 %v6250
      %v6427 = vunpack.c.h.b16 %v6250
      %v6428 = vunpack.c.l.b16 %v6251
      %v6429 = vunpack.c.h.b16 %v6251
      %v6430 = vunpack.c.l.b16 %v6252
      %v6431 = vunpack.c.h.b16 %v6252
      %v6432 = vunpack.c.l.b16 %v6253
      %v6433 = vunpack.c.h.b16 %v6253
      %v6434 = vunpack.c.l.b16 %v6254
      %v6435 = vunpack.c.h.b16 %v6254
      %v6436 = vunpack.c.l.b16 %v6255
      %v6437 = vunpack.c.h.b16 %v6255
      %v6438 = vunpack.c.l.b16 %v6256
      %v6439 = vunpack.c.h.b16 %v6256
      %v6440 = vunpack.c.l.b16 %v6257
      %v6441 = vunpack.c.h.b16 %v6257
      %v6442 = vunpack.c.l.b16 %v6258
      %v6443 = vunpack.c.h.b16 %v6258
      %v6444 = vunpack.c.l.b16 %v6259
      %v6445 = vunpack.c.h.b16 %v6259
      %v6446 = vunpack.c.l.b16 %v6260
      %v6447 = vunpack.c.h.b16 %v6260
      %v6448 = vunpack.c.l.b16 %v6261
      %v6449 = vunpack.c.h.b16 %v6261
      %v6450 = vunpack.c.l.b16 %v6262
      %v6451 = vunpack.c.h.b16 %v6262
      %v6452 = vunpack.c.l.b16 %v6263
      %v6453 = vunpack.c.h.b16 %v6263
      %v6454 = vunpack.c.l.b16 %v6264
      %v6455 = vunpack.c.h.b16 %v6264
      %v6456 = vunpack.c.l.b16 %v6265
      %v6457 = vunpack.c.h.b16 %v6265
      %v6458 = vunpack.c.l.b16 %v6266
      %v6459 = vunpack.c.h.b16 %v6266
      %v6460 = vunpack.c.l.b16 %v6267
      %v6461 = vunpack.c.h.b16 %v6267
      %v6462 = vunpack.c.l.b16 %v6268
      %v6463 = vunpack.c.h.b16 %v6268
      %v6464 = vunpack.c.l.b16 %v6269
      %v6465 = vunpack.c.h.b16 %v6269
      %v6466 = vunpack.c.l.b16 %v6270
      %v6467 = vunpack.c.h.b16 %v6270
      %v6468 = vunpack.c.l.b16 %v6271
      %v6469 = vunpack.c.h.b16 %v6271
      %v6470 = vunpack.c.l.b16 %v6272
      %v6471 = vunpack.c.h.b16 %v6272
      %v6472 = vunpack.c.l.b16 %v6273
      %v6473 = vunpack.c.h.b16 %v6273
      %v6474 = vunpack.c.l.b16 %v6274
      %v6475 = vunpack.c.h.b16 %v6274
      %v6476 = vunpack.c.l.b16 %v6275
      %v6477 = vunpack.c.h.b16 %v6275
      %v6478 = vunpack.c.l.b16 %v6276
      %v6479 = vunpack.c.h.b16 %v6276
      %v6480 = vunpack.c.l.b16 %v6277
      %v6481 = vunpack.c.h.b16 %v6277
      %v6482 = vunpack.c.l.b16 %v6278
      %v6483 = vunpack.c.h.b16 %v6278
      %v6484 = vunpack.c.l.b16 %v6279
      %v6485 = vunpack.c.h.b16 %v6279
      %v6486 = vunpack.c.l.b16 %v6280
      %v6487 = vunpack.c.h.b16 %v6280
      %v6488 = vunpack.c.l.b16 %v6281
      %v6489 = vunpack.c.h.b16 %v6281
      %v6490 = vunpack.c.l.b16 %v6282
      %v6491 = vunpack.c.h.b16 %v6282
      %v6492 = vunpack.c.l.b16 %v6283
      %v6493 = vunpack.c.h.b16 %v6283
      %v6494 = vunpack.c.l.b16 %v6284
      %v6495 = vunpack.c.h.b16 %v6284
      %v6496 = vunpack.c.l.b16 %v6285
      %v6497 = vunpack.c.h.b16 %v6285
      %v6498 = vunpack.c.l.b16 %v6286
      %v6499 = vunpack.c.h.b16 %v6286
      %v6500 = vunpack.c.l.b16 %v6287
      %v6501 = vunpack.c.h.b16 %v6287
      %v6502 = vpack.c.b16 %v6378, %v6374
      %v6503 = vpack.c.b16 %v6379, %v6375
      %v6504 = vpack.c.b16 %v6380, %v6376
      %v6505 = vpack.c.b16 %v6381, %v6377
      %v6506 = vpack.c.b16 %v6386, %v6382
      %v6507 = vpack.c.b16 %v6387, %v6383
      %v6508 = vpack.c.b16 %v6388, %v6384
      %v6509 = vpack.c.b16 %v6389, %v6385
      %v6510 = vpack.c.b16 %v6394, %v6390
      %v6511 = vpack.c.b16 %v6395, %v6391
      %v6512 = vpack.c.b16 %v6396, %v6392
      %v6513 = vpack.c.b16 %v6397, %v6393
      %v6514 = vpack.c.b16 %v6402, %v6398
      %v6515 = vpack.c.b16 %v6403, %v6399
      %v6516 = vpack.c.b16 %v6404, %v6400
      %v6517 = vpack.c.b16 %v6405, %v6401
      %v6518 = vpack.c.b16 %v6410, %v6406
      %v6519 = vpack.c.b16 %v6411, %v6407
      %v6520 = vpack.c.b16 %v6412, %v6408
      %v6521 = vpack.c.b16 %v6413, %v6409
      %v6522 = vpack.c.b16 %v6418, %v6414
      %v6523 = vpack.c.b16 %v6419, %v6415
      %v6524 = vpack.c.b16 %v6420, %v6416
      %v6525 = vpack.c.b16 %v6421, %v6417
      %v6526 = vpack.c.b16 %v6426, %v6422
      %v6527 = vpack.c.b16 %v6427, %v6423
      %v6528 = vpack.c.b16 %v6428, %v6424
      %v6529 = vpack.c.b16 %v6429, %v6425
      %v6530 = vpack.c.b16 %v6434, %v6430
      %v6531 = vpack.c.b16 %v6435, %v6431
      %v6532 = vpack.c.b16 %v6436, %v6432
      %v6533 = vpack.c.b16 %v6437, %v6433
      %v6534 = vpack.c.b16 %v6442, %v6438
      %v6535 = vpack.c.b16 %v6443, %v6439
      %v6536 = vpack.c.b16 %v6444, %v6440
      %v6537 = vpack.c.b16 %v6445, %v6441
      %v6538 = vpack.c.b16 %v6450, %v6446
      %v6539 = vpack.c.b16 %v6451, %v6447
      %v6540 = vpack.c.b16 %v6452, %v6448
      %v6541 = vpack.c.b16 %v6453, %v6449
      %v6542 = vpack.c.b16 %v6458, %v6454
      %v6543 = vpack.c.b16 %v6459, %v6455
      %v6544 = vpack.c.b16 %v6460, %v6456
      %v6545 = vpack.c.b16 %v6461, %v6457
      %v6546 = vpack.c.b16 %v6466, %v6462
      %v6547 = vpack.c.b16 %v6467, %v6463
      %v6548 = vpack.c.b16 %v6468, %v6464
      %v6549 = vpack.c.b16 %v6469, %v6465
      %v6550 = vpack.c.b16 %v6474, %v6470
      %v6551 = vpack.c.b16 %v6475, %v6471
      %v6552 = vpack.c.b16 %v6476, %v6472
      %v6553 = vpack.c.b16 %v6477, %v6473
      %v6554 = vpack.c.b16 %v6482, %v6478
      %v6555 = vpack.c.b16 %v6483, %v6479
      %v6556 = vpack.c.b16 %v6484, %v6480
      %v6557 = vpack.c.b16 %v6485, %v6481
      %v6558 = vpack.c.b16 %v6490, %v6486
      %v6559 = vpack.c.b16 %v6491, %v6487
      %v6560 = vpack.c.b16 %v6492, %v6488
      %v6561 = vpack.c.b16 %v6493, %v6489
      %v6562 = vpack.c.b16 %v6498, %v6494
      %v6563 = vpack.c.b16 %v6499, %v6495
      %v6564 = vpack.c.b16 %v6500, %v6496
      %v6565 = vpack.c.b16 %v6501, %v6497
      %6630 = vmatprep.subr.bf16.mxu0 %v6503
      %6631 = vmatpush1.bf16.msra.mxu0 %v6502
      %6632 = vmatprep.subr.bf16.mxu0 %v6507
      %6633 = vmatpush1.bf16.msra.mxu0 %v6506
      %6634 = vmatprep.subr.bf16.mxu0 %v6511
      %6635 = vmatpush1.bf16.msra.mxu0 %v6510
      %6636 = vmatprep.subr.bf16.mxu0 %v6515
      %6637 = vmatpush1.bf16.msra.mxu0 %v6514
      %6638 = vmatprep.subr.bf16.mxu0 %v6519
      %6639 = vmatpush1.bf16.msra.mxu0 %v6518
      %6640 = vmatprep.subr.bf16.mxu0 %v6523
      %6641 = vmatpush1.bf16.msra.mxu0 %v6522
      %6642 = vmatprep.subr.bf16.mxu0 %v6527
      %6643 = vmatpush1.bf16.msra.mxu0 %v6526
      %6644 = vmatprep.subr.bf16.mxu0 %v6531
      %6645 = vmatpush1.bf16.msra.mxu0 %v6530
      %6646 = vmatprep.subr.bf16.mxu0 %v6535
      %6647 = vmatpush1.bf16.msra.mxu0 %v6534
      %6648 = vmatprep.subr.bf16.mxu0 %v6539
      %6649 = vmatpush1.bf16.msra.mxu0 %v6538
      %6650 = vmatprep.subr.bf16.mxu0 %v6543
      %6651 = vmatpush1.bf16.msra.mxu0 %v6542
      %6652 = vmatprep.subr.bf16.mxu0 %v6547
      %6653 = vmatpush1.bf16.msra.mxu0 %v6546
      %6654 = vmatprep.subr.bf16.mxu0 %v6551
      %6655 = vmatpush1.bf16.msra.mxu0 %v6550
      %6656 = vmatprep.subr.bf16.mxu0 %v6555
      %6657 = vmatpush1.bf16.msra.mxu0 %v6554
      %6658 = vmatprep.subr.bf16.mxu0 %v6559
      %6659 = vmatpush1.bf16.msra.mxu0 %v6558
      %6660 = vmatprep.subr.bf16.mxu0 %v6563
      %6661 = vmatpush1.bf16.msra.mxu0 %v6562
      %6662 = vmatprep.mubr.bf16.mxu0 %v6193
      %6663 = vmatmul.mubr.bf16.gmra.mrb[0].mxu0 %v6192
      %v6664 = vpop.f32.mrb[0].mxu0
      %v6665 = vadd.f32 %v6293, %v6664
      %v6666 = vpop.f32.mrb[0].mxu0
      %v6667 = vadd.f32 %v6297, %v6666
      %v6668 = vpop.f32.mrb[0].mxu0
      %v6669 = vadd.f32 %v6293, %v6668
      %v6670 = vpop.f32.mrb[0].mxu0
      %v6671 = vadd.f32 %v6297, %v6670
      %6672 = vmatprep.mubr.bf16.mxu0 %v6195
      %6673 = vmatmul.mubr.bf16.gmra.mrb[0].mxu0 %v6194
      %v6674 = vpop.f32.mrb[0].mxu0
      %v6675 = vadd.f32 %v6293, %v6674
      %v6676 = vpop.f32.mrb[0].mxu0
      %v6677 = vadd.f32 %v6297, %v6676
      %v6678 = vpop.f32.mrb[0].mxu0
      %v6679 = vadd.f32 %v6293, %v6678
      %v6680 = vpop.f32.mrb[0].mxu0
      %v6681 = vadd.f32 %v6297, %v6680
      %6682 = vmatprep.mubr.bf16.mxu0 %v6197
      %6683 = vmatmul.mubr.bf16.gmra.mrb[0].mxu0 %v6196
      %v6684 = vpop.f32.mrb[0].mxu0
      %v6685 = vadd.f32 %v6293, %v6684
      %v6686 = vpop.f32.mrb[0].mxu0
      %v6687 = vadd.f32 %v6297, %v6686
      %v6688 = vpop.f32.mrb[0].mxu0
      %v6689 = vadd.f32 %v6293, %v6688
      %v6690 = vpop.f32.mrb[0].mxu0
      %v6691 = vadd.f32 %v6297, %v6690
      %6692 = vmatprep.mubr.bf16.mxu0 %v6199
      %6693 = vmatmul.mubr.bf16.gmra.mrb[0].mxu0 %v6198
      %v6694 = vpop.f32.mrb[0].mxu0
      %v6695 = vadd.f32 %v6293, %v6694
      %v6696 = vpop.f32.mrb[0].mxu0
      %v6697 = vadd.f32 %v6297, %v6696
      %v6698 = vpop.f32.mrb[0].mxu0
      %v6699 = vadd.f32 %v6293, %v6698
      %v6700 = vpop.f32.mrb[0].mxu0
      %v6701 = vadd.f32 %v6297, %v6700
      %6702 = vmatprep.mubr.bf16.mxu0 %v6201
      %6703 = vmatmul.mubr.bf16.gmra.mrb[0].mxu0 %v6200
      %v6704 = vpop.f32.mrb[0].mxu0
      %v6705 = vadd.f32 %v6293, %v6704
      %v6706 = vpop.f32.mrb[0].mxu0
      %v6707 = vadd.f32 %v6297, %v6706
      %v6708 = vpop.f32.mrb[0].mxu0
      %v6709 = vadd.f32 %v6293, %v6708
      %v6710 = vpop.f32.mrb[0].mxu0
      %v6711 = vadd.f32 %v6297, %v6710
      %6712 = vmatprep.mubr.bf16.mxu0 %v6203
      %6713 = vmatmul.mubr.bf16.gmra.mrb[0].mxu0 %v6202
      %v6714 = vpop.f32.mrb[0].mxu0
      %v6715 = vadd.f32 %v6293, %v6714
      %v6716 = vpop.f32.mrb[0].mxu0
      %v6717 = vadd.f32 %v6297, %v6716
      %v6718 = vpop.f32.mrb[0].mxu0
      %v6719 = vadd.f32 %v6293, %v6718
      %v6720 = vpop.f32.mrb[0].mxu0
      %v6721 = vadd.f32 %v6297, %v6720
      %6722 = vmatprep.mubr.bf16.mxu0 %v6205
      %6723 = vmatmul.mubr.bf16.gmra.mrb[0].mxu0 %v6204
      %v6724 = vpop.f32.mrb[0].mxu0
      %v6725 = vadd.f32 %v6293, %v6724
      %v6726 = vpop.f32.mrb[0].mxu0
      %v6727 = vadd.f32 %v6297, %v6726
      %v6728 = vpop.f32.mrb[0].mxu0
      %v6729 = vadd.f32 %v6293, %v6728
      %v6730 = vpop.f32.mrb[0].mxu0
      %v6731 = vadd.f32 %v6297, %v6730
      %6732 = vmatprep.mubr.bf16.mxu0 %v6207
      %6733 = vmatmul.mubr.bf16.gmra.mrb[0].mxu0 %v6206
      %v6734 = vpop.f32.mrb[0].mxu0
      %v6735 = vadd.f32 %v6293, %v6734
      %v6736 = vpop.f32.mrb[0].mxu0
      %v6737 = vadd.f32 %v6297, %v6736
      %v6738 = vpop.f32.mrb[0].mxu0
      %v6739 = vadd.f32 %v6293, %v6738
      %v6740 = vpop.f32.mrb[0].mxu0
      %v6741 = vadd.f32 %v6297, %v6740
      %6742 = vmatprep.mubr.bf16.mxu0 %v6209
      %6743 = vmatmul.mubr.bf16.gmra.mrb[0].mxu0 %v6208
      %v6744 = vpop.f32.mrb[0].mxu0
      %v6745 = vadd.f32 %v6293, %v6744
      %v6746 = vpop.f32.mrb[0].mxu0
      %v6747 = vadd.f32 %v6297, %v6746
      %v6748 = vpop.f32.mrb[0].mxu0
      %v6749 = vadd.f32 %v6293, %v6748
      %v6750 = vpop.f32.mrb[0].mxu0
      %v6751 = vadd.f32 %v6297, %v6750
      %6752 = vmatprep.mubr.bf16.mxu0 %v6211
      %6753 = vmatmul.mubr.bf16.gmra.mrb[0].mxu0 %v6210
      %v6754 = vpop.f32.mrb[0].mxu0
      %v6755 = vadd.f32 %v6293, %v6754
      %v6756 = vpop.f32.mrb[0].mxu0
      %v6757 = vadd.f32 %v6297, %v6756
      %v6758 = vpop.f32.mrb[0].mxu0
      %v6759 = vadd.f32 %v6293, %v6758
      %v6760 = vpop.f32.mrb[0].mxu0
      %v6761 = vadd.f32 %v6297, %v6760
      %6762 = vmatprep.mubr.bf16.mxu0 %v6213
      %6763 = vmatmul.mubr.bf16.gmra.mrb[0].mxu0 %v6212
      %v6764 = vpop.f32.mrb[0].mxu0
      %v6765 = vadd.f32 %v6293, %v6764
      %v6766 = vpop.f32.mrb[0].mxu0
      %v6767 = vadd.f32 %v6297, %v6766
      %v6768 = vpop.f32.mrb[0].mxu0
      %v6769 = vadd.f32 %v6293, %v6768
      %v6770 = vpop.f32.mrb[0].mxu0
      %v6771 = vadd.f32 %v6297, %v6770
      %6772 = vmatprep.mubr.bf16.mxu0 %v6215
      %6773 = vmatmul.mubr.bf16.gmra.mrb[0].mxu0 %v6214
      %v6774 = vpop.f32.mrb[0].mxu0
      %v6775 = vadd.f32 %v6293, %v6774
      %v6776 = vpop.f32.mrb[0].mxu0
      %v6777 = vadd.f32 %v6297, %v6776
      %v6778 = vpop.f32.mrb[0].mxu0
      %v6779 = vadd.f32 %v6293, %v6778
      %v6780 = vpop.f32.mrb[0].mxu0
      %v6781 = vadd.f32 %v6297, %v6780
      %6782 = vmatprep.mubr.bf16.mxu0 %v6217
      %6783 = vmatmul.mubr.bf16.gmra.mrb[0].mxu0 %v6216
      %v6784 = vpop.f32.mrb[0].mxu0
      %v6785 = vadd.f32 %v6293, %v6784
      %v6786 = vpop.f32.mrb[0].mxu0
      %v6787 = vadd.f32 %v6297, %v6786
      %v6788 = vpop.f32.mrb[0].mxu0
      %v6789 = vadd.f32 %v6293, %v6788
      %v6790 = vpop.f32.mrb[0].mxu0
      %v6791 = vadd.f32 %v6297, %v6790
      %6792 = vmatprep.mubr.bf16.mxu0 %v6219
      %6793 = vmatmul.mubr.bf16.gmra.mrb[0].mxu0 %v6218
      %v6794 = vpop.f32.mrb[0].mxu0
      %v6795 = vadd.f32 %v6293, %v6794
      %v6796 = vpop.f32.mrb[0].mxu0
      %v6797 = vadd.f32 %v6297, %v6796
      %v6798 = vpop.f32.mrb[0].mxu0
      %v6799 = vadd.f32 %v6293, %v6798
      %v6800 = vpop.f32.mrb[0].mxu0
      %v6801 = vadd.f32 %v6297, %v6800
      %6802 = vmatprep.mubr.bf16.mxu0 %v6221
      %6803 = vmatmul.mubr.bf16.gmra.mrb[0].mxu0 %v6220
      %v6804 = vpop.f32.mrb[0].mxu0
      %v6805 = vadd.f32 %v6293, %v6804
      %v6806 = vpop.f32.mrb[0].mxu0
      %v6807 = vadd.f32 %v6297, %v6806
      %v6808 = vpop.f32.mrb[0].mxu0
      %v6809 = vadd.f32 %v6293, %v6808
      %v6810 = vpop.f32.mrb[0].mxu0
      %v6811 = vadd.f32 %v6297, %v6810
      %6812 = vmatprep.mubr.bf16.mxu0 %v6223
      %6813 = vmatmul.mubr.bf16.gmra.mrb[0].mxu0 %v6222
      %v6814 = vpop.f32.mrb[0].mxu0
      %v6815 = vadd.f32 %v6293, %v6814
      %v6816 = vpop.f32.mrb[0].mxu0
      %v6817 = vadd.f32 %v6297, %v6816
      %v6818 = vpop.f32.mrb[0].mxu0
      %v6819 = vadd.f32 %v6293, %v6818
      %v6820 = vpop.f32.mrb[0].mxu0
      %v6821 = vadd.f32 %v6297, %v6820
      %6822 = vdwg.mxu0
      %6823 = vmatprep.subr.bf16.mxu0 %v6505
      %6824 = vmatpush1.bf16.msra.mxu0 %v6504
      %6825 = vmatprep.subr.bf16.mxu0 %v6509
      %6826 = vmatpush1.bf16.msra.mxu0 %v6508
      %6827 = vmatprep.subr.bf16.mxu0 %v6513
      %6828 = vmatpush1.bf16.msra.mxu0 %v6512
      %6829 = vmatprep.subr.bf16.mxu0 %v6517
      %6830 = vmatpush1.bf16.msra.mxu0 %v6516
      %6831 = vmatprep.subr.bf16.mxu0 %v6521
      %6832 = vmatpush1.bf16.msra.mxu0 %v6520
      %6833 = vmatprep.subr.bf16.mxu0 %v6525
      %6834 = vmatpush1.bf16.msra.mxu0 %v6524
      %6835 = vmatprep.subr.bf16.mxu0 %v6529
      %6836 = vmatpush1.bf16.msra.mxu0 %v6528
      %6837 = vmatprep.subr.bf16.mxu0 %v6533
      %6838 = vmatpush1.bf16.msra.mxu0 %v6532
      %6839 = vmatprep.subr.bf16.mxu0 %v6537
      %6840 = vmatpush1.bf16.msra.mxu0 %v6536
      %6841 = vmatprep.subr.bf16.mxu0 %v6541
      %6842 = vmatpush1.bf16.msra.mxu0 %v6540
      %6843 = vmatprep.subr.bf16.mxu0 %v6545
      %6844 = vmatpush1.bf16.msra.mxu0 %v6544
      %6845 = vmatprep.subr.bf16.mxu0 %v6549
      %6846 = vmatpush1.bf16.msra.mxu0 %v6548
      %6847 = vmatprep.subr.bf16.mxu0 %v6553
      %6848 = vmatpush1.bf16.msra.mxu0 %v6552
      %6849 = vmatprep.subr.bf16.mxu0 %v6557
      %6850 = vmatpush1.bf16.msra.mxu0 %v6556
      %6851 = vmatprep.subr.bf16.mxu0 %v6561
      %6852 = vmatpush1.bf16.msra.mxu0 %v6560
      %6853 = vmatprep.subr.bf16.mxu0 %v6565
      %6854 = vmatpush1.bf16.msra.mxu0 %v6564
      %6855 = vmatprep.mubr.bf16.mxu0 %v6193
      %6856 = vmatmul.mubr.bf16.gmra.mrb[0].mxu0 %v6192
      %v6857 = vpop.f32.mrb[0].mxu0
      %v6858 = vadd.f32 %v6301, %v6857
      %v6859 = vpop.f32.mrb[0].mxu0
      %v6860 = vadd.f32 %v6305, %v6859
      %v6861 = vpop.f32.mrb[0].mxu0
      %v6862 = vadd.f32 %v6301, %v6861
      %v6863 = vpop.f32.mrb[0].mxu0
      %v6864 = vadd.f32 %v6305, %v6863
      %6865 = vmatprep.mubr.bf16.mxu0 %v6195
      %6866 = vmatmul.mubr.bf16.gmra.mrb[0].mxu0 %v6194
      %v6867 = vpop.f32.mrb[0].mxu0
      %v6868 = vadd.f32 %v6301, %v6867
      %v6869 = vpop.f32.mrb[0].mxu0
      %v6870 = vadd.f32 %v6305, %v6869
      %v6871 = vpop.f32.mrb[0].mxu0
      %v6872 = vadd.f32 %v6301, %v6871
      %v6873 = vpop.f32.mrb[0].mxu0
      %v6874 = vadd.f32 %v6305, %v6873
      %6875 = vmatprep.mubr.bf16.mxu0 %v6197
      %6876 = vmatmul.mubr.bf16.gmra.mrb[0].mxu0 %v6196
      %v6877 = vpop.f32.mrb[0].mxu0
      %v6878 = vadd.f32 %v6301, %v6877
      %v6879 = vpop.f32.mrb[0].mxu0
      %v6880 = vadd.f32 %v6305, %v6879
      %v6881 = vpop.f32.mrb[0].mxu0
      %v6882 = vadd.f32 %v6301, %v6881
      %v6883 = vpop.f32.mrb[0].mxu0
      %v6884 = vadd.f32 %v6305, %v6883
      %6885 = vmatprep.mubr.bf16.mxu0 %v6199
      %6886 = vmatmul.mubr.bf16.gmra.mrb[0].mxu0 %v6198
      %v6887 = vpop.f32.mrb[0].mxu0
      %v6888 = vadd.f32 %v6301, %v6887
      %v6889 = vpop.f32.mrb[0].mxu0
      %v6890 = vadd.f32 %v6305, %v6889
      %v6891 = vpop.f32.mrb[0].mxu0
      %v6892 = vadd.f32 %v6301, %v6891
      %v6893 = vpop.f32.mrb[0].mxu0
      %v6894 = vadd.f32 %v6305, %v6893
      %6895 = vmatprep.mubr.bf16.mxu0 %v6201
      %6896 = vmatmul.mubr.bf16.gmra.mrb[0].mxu0 %v6200
      %v6897 = vpop.f32.mrb[0].mxu0
      %v6898 = vadd.f32 %v6301, %v6897
      %v6899 = vpop.f32.mrb[0].mxu0
      %v6900 = vadd.f32 %v6305, %v6899
      %v6901 = vpop.f32.mrb[0].mxu0
      %v6902 = vadd.f32 %v6301, %v6901
      %v6903 = vpop.f32.mrb[0].mxu0
      %v6904 = vadd.f32 %v6305, %v6903
      %6905 = vmatprep.mubr.bf16.mxu0 %v6203
      %6906 = vmatmul.mubr.bf16.gmra.mrb[0].mxu0 %v6202
      %v6907 = vpop.f32.mrb[0].mxu0
      %v6908 = vadd.f32 %v6301, %v6907
      %v6909 = vpop.f32.mrb[0].mxu0
      %v6910 = vadd.f32 %v6305, %v6909
      %v6911 = vpop.f32.mrb[0].mxu0
      %v6912 = vadd.f32 %v6301, %v6911
      %v6913 = vpop.f32.mrb[0].mxu0
      %v6914 = vadd.f32 %v6305, %v6913
      %6915 = vmatprep.mubr.bf16.mxu0 %v6205
      %6916 = vmatmul.mubr.bf16.gmra.mrb[0].mxu0 %v6204
      %v6917 = vpop.f32.mrb[0].mxu0
      %v6918 = vadd.f32 %v6301, %v6917
      %v6919 = vpop.f32.mrb[0].mxu0
      %v6920 = vadd.f32 %v6305, %v6919
      %v6921 = vpop.f32.mrb[0].mxu0
      %v6922 = vadd.f32 %v6301, %v6921
      %v6923 = vpop.f32.mrb[0].mxu0
      %v6924 = vadd.f32 %v6305, %v6923
      %6925 = vmatprep.mubr.bf16.mxu0 %v6207
      %6926 = vmatmul.mubr.bf16.gmra.mrb[0].mxu0 %v6206
      %v6927 = vpop.f32.mrb[0].mxu0
      %v6928 = vadd.f32 %v6301, %v6927
      %v6929 = vpop.f32.mrb[0].mxu0
      %v6930 = vadd.f32 %v6305, %v6929
      %v6931 = vpop.f32.mrb[0].mxu0
      %v6932 = vadd.f32 %v6301, %v6931
      %v6933 = vpop.f32.mrb[0].mxu0
      %v6934 = vadd.f32 %v6305, %v6933
      %6935 = vmatprep.mubr.bf16.mxu0 %v6209
      %6936 = vmatmul.mubr.bf16.gmra.mrb[0].mxu0 %v6208
      %v6937 = vpop.f32.mrb[0].mxu0
      %v6938 = vadd.f32 %v6301, %v6937
      %v6939 = vpop.f32.mrb[0].mxu0
      %v6940 = vadd.f32 %v6305, %v6939
      %v6941 = vpop.f32.mrb[0].mxu0
      %v6942 = vadd.f32 %v6301, %v6941
      %v6943 = vpop.f32.mrb[0].mxu0
      %v6944 = vadd.f32 %v6305, %v6943
      %6945 = vmatprep.mubr.bf16.mxu0 %v6211
      %6946 = vmatmul.mubr.bf16.gmra.mrb[0].mxu0 %v6210
      %v6947 = vpop.f32.mrb[0].mxu0
      %v6948 = vadd.f32 %v6301, %v6947
      %v6949 = vpop.f32.mrb[0].mxu0
      %v6950 = vadd.f32 %v6305, %v6949
      %v6951 = vpop.f32.mrb[0].mxu0
      %v6952 = vadd.f32 %v6301, %v6951
      %v6953 = vpop.f32.mrb[0].mxu0
      %v6954 = vadd.f32 %v6305, %v6953
      %6955 = vmatprep.mubr.bf16.mxu0 %v6213
      %6956 = vmatmul.mubr.bf16.gmra.mrb[0].mxu0 %v6212
      %v6957 = vpop.f32.mrb[0].mxu0
      %v6958 = vadd.f32 %v6301, %v6957
      %v6959 = vpop.f32.mrb[0].mxu0
      %v6960 = vadd.f32 %v6305, %v6959
      %v6961 = vpop.f32.mrb[0].mxu0
      %v6962 = vadd.f32 %v6301, %v6961
      %v6963 = vpop.f32.mrb[0].mxu0
      %v6964 = vadd.f32 %v6305, %v6963
      %6965 = vmatprep.mubr.bf16.mxu0 %v6215
      %6966 = vmatmul.mubr.bf16.gmra.mrb[0].mxu0 %v6214
      %v6967 = vpop.f32.mrb[0].mxu0
      %v6968 = vadd.f32 %v6301, %v6967
      %v6969 = vpop.f32.mrb[0].mxu0
      %v6970 = vadd.f32 %v6305, %v6969
      %v6971 = vpop.f32.mrb[0].mxu0
      %v6972 = vadd.f32 %v6301, %v6971
      %v6973 = vpop.f32.mrb[0].mxu0
      %v6974 = vadd.f32 %v6305, %v6973
      %6975 = vmatprep.mubr.bf16.mxu0 %v6217
      %6976 = vmatmul.mubr.bf16.gmra.mrb[0].mxu0 %v6216
      %v6977 = vpop.f32.mrb[0].mxu0
      %v6978 = vadd.f32 %v6301, %v6977
      %v6979 = vpop.f32.mrb[0].mxu0
      %v6980 = vadd.f32 %v6305, %v6979
      %v6981 = vpop.f32.mrb[0].mxu0
      %v6982 = vadd.f32 %v6301, %v6981
      %v6983 = vpop.f32.mrb[0].mxu0
      %v6984 = vadd.f32 %v6305, %v6983
      %6985 = vmatprep.mubr.bf16.mxu0 %v6219
      %6986 = vmatmul.mubr.bf16.gmra.mrb[0].mxu0 %v6218
      %v6987 = vpop.f32.mrb[0].mxu0
      %v6988 = vadd.f32 %v6301, %v6987
      %v6989 = vpop.f32.mrb[0].mxu0
      %v6990 = vadd.f32 %v6305, %v6989
      %v6991 = vpop.f32.mrb[0].mxu0
      %v6992 = vadd.f32 %v6301, %v6991
      %v6993 = vpop.f32.mrb[0].mxu0
      %v6994 = vadd.f32 %v6305, %v6993
      %6995 = vmatprep.mubr.bf16.mxu0 %v6221
      %6996 = vmatmul.mubr.bf16.gmra.mrb[0].mxu0 %v6220
      %v6997 = vpop.f32.mrb[0].mxu0
      %v6998 = vadd.f32 %v6301, %v6997
      %v6999 = vpop.f32.mrb[0].mxu0
      %v7000 = vadd.f32 %v6305, %v6999
      %v7001 = vpop.f32.mrb[0].mxu0
      %v7002 = vadd.f32 %v6301, %v7001
      %v7003 = vpop.f32.mrb[0].mxu0
      %v7004 = vadd.f32 %v6305, %v7003
      %7005 = vmatprep.mubr.bf16.mxu0 %v6223
      %7006 = vmatmul.mubr.bf16.gmra.mrb[0].mxu0 %v6222
      %v7007 = vpop.f32.mrb[0].mxu0
      %v7008 = vadd.f32 %v6301, %v7007
      %v7009 = vpop.f32.mrb[0].mxu0
      %v7010 = vadd.f32 %v6305, %v7009
      %v7011 = vpop.f32.mrb[0].mxu0
      %v7012 = vadd.f32 %v6301, %v7011
      %v7013 = vpop.f32.mrb[0].mxu0
      %v7014 = vadd.f32 %v6305, %v7013
      %7015 = vdwg.mxu0
      %v7016 = vmax.f32 %v6665, 0.0
      %v7017 = vmax.f32 %v6667, 0.0
      %v7018 = vmax.f32 %v6858, 0.0
      %v7019 = vmax.f32 %v6860, 0.0
      %v7020 = vmax.f32 %v6669, 0.0
      %v7021 = vmax.f32 %v6671, 0.0
      %v7022 = vmax.f32 %v6862, 0.0
      %v7023 = vmax.f32 %v6864, 0.0
      %v7024 = vmax.f32 %v6675, 0.0
      %v7025 = vmax.f32 %v6677, 0.0
      %v7026 = vmax.f32 %v6868, 0.0
      %v7027 = vmax.f32 %v6870, 0.0
      %v7028 = vmax.f32 %v6679, 0.0
      %v7029 = vmax.f32 %v6681, 0.0
      %v7030 = vmax.f32 %v6872, 0.0
      %v7031 = vmax.f32 %v6874, 0.0
      %v7032 = vmax.f32 %v6685, 0.0
      %v7033 = vmax.f32 %v6687, 0.0
      %v7034 = vmax.f32 %v6878, 0.0
      %v7035 = vmax.f32 %v6880, 0.0
      %v7036 = vmax.f32 %v6689, 0.0
      %v7037 = vmax.f32 %v6691, 0.0
      %v7038 = vmax.f32 %v6882, 0.0
      %v7039 = vmax.f32 %v6884, 0.0
      %v7040 = vmax.f32 %v6695, 0.0
      %v7041 = vmax.f32 %v6697, 0.0
      %v7042 = vmax.f32 %v6888, 0.0
      %v7043 = vmax.f32 %v6890, 0.0
      %v7044 = vmax.f32 %v6699, 0.0
      %v7045 = vmax.f32 %v6701, 0.0
      %v7046 = vmax.f32 %v6892, 0.0
      %v7047 = vmax.f32 %v6894, 0.0
      %v7048 = vmax.f32 %v6705, 0.0
      %v7049 = vmax.f32 %v6707, 0.0
      %v7050 = vmax.f32 %v6898, 0.0
      %v7051 = vmax.f32 %v6900, 0.0
      %v7052 = vmax.f32 %v6709, 0.0
      %v7053 = vmax.f32 %v6711, 0.0
      %v7054 = vmax.f32 %v6902, 0.0
      %v7055 = vmax.f32 %v6904, 0.0
      %v7056 = vmax.f32 %v6715, 0.0
      %v7057 = vmax.f32 %v6717, 0.0
      %v7058 = vmax.f32 %v6908, 0.0
      %v7059 = vmax.f32 %v6910, 0.0
      %v7060 = vmax.f32 %v6719, 0.0
      %v7061 = vmax.f32 %v6721, 0.0
      %v7062 = vmax.f32 %v6912, 0.0
      %v7063 = vmax.f32 %v6914, 0.0
      %v7064 = vmax.f32 %v6725, 0.0
      %v7065 = vmax.f32 %v6727, 0.0
      %v7066 = vmax.f32 %v6918, 0.0
      %v7067 = vmax.f32 %v6920, 0.0
      %v7068 = vmax.f32 %v6729, 0.0
      %v7069 = vmax.f32 %v6731, 0.0
      %v7070 = vmax.f32 %v6922, 0.0
      %v7071 = vmax.f32 %v6924, 0.0
      %v7072 = vmax.f32 %v6735, 0.0
      %v7073 = vmax.f32 %v6737, 0.0
      %v7074 = vmax.f32 %v6928, 0.0
      %v7075 = vmax.f32 %v6930, 0.0
      %v7076 = vmax.f32 %v6739, 0.0
      %v7077 = vmax.f32 %v6741, 0.0
      %v7078 = vmax.f32 %v6932, 0.0
      %v7079 = vmax.f32 %v6934, 0.0
      %v7080 = vmax.f32 %v6745, 0.0
      %v7081 = vmax.f32 %v6747, 0.0
      %v7082 = vmax.f32 %v6938, 0.0
      %v7083 = vmax.f32 %v6940, 0.0
      %v7084 = vmax.f32 %v6749, 0.0
      %v7085 = vmax.f32 %v6751, 0.0
      %v7086 = vmax.f32 %v6942, 0.0
      %v7087 = vmax.f32 %v6944, 0.0
      %v7088 = vmax.f32 %v6755, 0.0
      %v7089 = vmax.f32 %v6757, 0.0
      %v7090 = vmax.f32 %v6948, 0.0
      %v7091 = vmax.f32 %v6950, 0.0
      %v7092 = vmax.f32 %v6759, 0.0
      %v7093 = vmax.f32 %v6761, 0.0
      %v7094 = vmax.f32 %v6952, 0.0
      %v7095 = vmax.f32 %v6954, 0.0
      %v7096 = vmax.f32 %v6765, 0.0
      %v7097 = vmax.f32 %v6767, 0.0
      %v7098 = vmax.f32 %v6958, 0.0
      %v7099 = vmax.f32 %v6960, 0.0
      %v7100 = vmax.f32 %v6769, 0.0
      %v7101 = vmax.f32 %v6771, 0.0
      %v7102 = vmax.f32 %v6962, 0.0
      %v7103 = vmax.f32 %v6964, 0.0
      %v7104 = vmax.f32 %v6775, 0.0
      %v7105 = vmax.f32 %v6777, 0.0
      %v7106 = vmax.f32 %v6968, 0.0
      %v7107 = vmax.f32 %v6970, 0.0
      %v7108 = vmax.f32 %v6779, 0.0
      %v7109 = vmax.f32 %v6781, 0.0
      %v7110 = vmax.f32 %v6972, 0.0
      %v7111 = vmax.f32 %v6974, 0.0
      %v7112 = vmax.f32 %v6785, 0.0
      %v7113 = vmax.f32 %v6787, 0.0
      %v7114 = vmax.f32 %v6978, 0.0
      %v7115 = vmax.f32 %v6980, 0.0
      %v7116 = vmax.f32 %v6789, 0.0
      %v7117 = vmax.f32 %v6791, 0.0
      %v7118 = vmax.f32 %v6982, 0.0
      %v7119 = vmax.f32 %v6984, 0.0
      %v7120 = vmax.f32 %v6795, 0.0
      %v7121 = vmax.f32 %v6797, 0.0
      %v7122 = vmax.f32 %v6988, 0.0
      %v7123 = vmax.f32 %v6990, 0.0
      %v7124 = vmax.f32 %v6799, 0.0
      %v7125 = vmax.f32 %v6801, 0.0
      %v7126 = vmax.f32 %v6992, 0.0
      %v7127 = vmax.f32 %v6994, 0.0
      %v7128 = vmax.f32 %v6805, 0.0
      %v7129 = vmax.f32 %v6807, 0.0
      %v7130 = vmax.f32 %v6998, 0.0
      %v7131 = vmax.f32 %v7000, 0.0
      %v7132 = vmax.f32 %v6809, 0.0
      %v7133 = vmax.f32 %v6811, 0.0
      %v7134 = vmax.f32 %v7002, 0.0
      %v7135 = vmax.f32 %v7004, 0.0
      %v7136 = vmax.f32 %v6815, 0.0
      %v7137 = vmax.f32 %v6817, 0.0
      %v7138 = vmax.f32 %v7008, 0.0
      %v7139 = vmax.f32 %v7010, 0.0
      %v7140 = vmax.f32 %v6819, 0.0
      %v7141 = vmax.f32 %v6821, 0.0
      %v7142 = vmax.f32 %v7012, 0.0
      %v7143 = vmax.f32 %v7014, 0.0
      %v7144 = vpack.c.bf16 %v7020, %v7016
      %v7145 = vpack.c.bf16 %v7021, %v7017
      %v7146 = vpack.c.bf16 %v7022, %v7018
      %v7147 = vpack.c.bf16 %v7023, %v7019
      %v7148 = vpack.c.bf16 %v7028, %v7024
      %v7149 = vpack.c.bf16 %v7029, %v7025
      %v7150 = vpack.c.bf16 %v7030, %v7026
      %v7151 = vpack.c.bf16 %v7031, %v7027
      %v7152 = vpack.c.bf16 %v7036, %v7032
      %v7153 = vpack.c.bf16 %v7037, %v7033
      %v7154 = vpack.c.bf16 %v7038, %v7034
      %v7155 = vpack.c.bf16 %v7039, %v7035
      %v7156 = vpack.c.bf16 %v7044, %v7040
      %v7157 = vpack.c.bf16 %v7045, %v7041
      %v7158 = vpack.c.bf16 %v7046, %v7042
      %v7159 = vpack.c.bf16 %v7047, %v7043
      %v7160 = vpack.c.bf16 %v7052, %v7048
      %v7161 = vpack.c.bf16 %v7053, %v7049
      %v7162 = vpack.c.bf16 %v7054, %v7050
      %v7163 = vpack.c.bf16 %v7055, %v7051
      %v7164 = vpack.c.bf16 %v7060, %v7056
      %v7165 = vpack.c.bf16 %v7061, %v7057
      %v7166 = vpack.c.bf16 %v7062, %v7058
      %v7167 = vpack.c.bf16 %v7063, %v7059
      %v7168 = vpack.c.bf16 %v7068, %v7064
      %v7169 = vpack.c.bf16 %v7069, %v7065
      %v7170 = vpack.c.bf16 %v7070, %v7066
      %v7171 = vpack.c.bf16 %v7071, %v7067
      %v7172 = vpack.c.bf16 %v7076, %v7072
      %v7173 = vpack.c.bf16 %v7077, %v7073
      %v7174 = vpack.c.bf16 %v7078, %v7074
      %v7175 = vpack.c.bf16 %v7079, %v7075
      %v7176 = vpack.c.bf16 %v7084, %v7080
      %v7177 = vpack.c.bf16 %v7085, %v7081
      %v7178 = vpack.c.bf16 %v7086, %v7082
      %v7179 = vpack.c.bf16 %v7087, %v7083
      %v7180 = vpack.c.bf16 %v7092, %v7088
      %v7181 = vpack.c.bf16 %v7093, %v7089
      %v7182 = vpack.c.bf16 %v7094, %v7090
      %v7183 = vpack.c.bf16 %v7095, %v7091
      %v7184 = vpack.c.bf16 %v7100, %v7096
      %v7185 = vpack.c.bf16 %v7101, %v7097
      %v7186 = vpack.c.bf16 %v7102, %v7098
      %v7187 = vpack.c.bf16 %v7103, %v7099
      %v7188 = vpack.c.bf16 %v7108, %v7104
      %v7189 = vpack.c.bf16 %v7109, %v7105
      %v7190 = vpack.c.bf16 %v7110, %v7106
      %v7191 = vpack.c.bf16 %v7111, %v7107
      %v7192 = vpack.c.bf16 %v7116, %v7112
      %v7193 = vpack.c.bf16 %v7117, %v7113
      %v7194 = vpack.c.bf16 %v7118, %v7114
      %v7195 = vpack.c.bf16 %v7119, %v7115
      %v7196 = vpack.c.bf16 %v7124, %v7120
      %v7197 = vpack.c.bf16 %v7125, %v7121
      %v7198 = vpack.c.bf16 %v7126, %v7122
      %v7199 = vpack.c.bf16 %v7127, %v7123
      %v7200 = vpack.c.bf16 %v7132, %v7128
      %v7201 = vpack.c.bf16 %v7133, %v7129
      %v7202 = vpack.c.bf16 %v7134, %v7130
      %v7203 = vpack.c.bf16 %v7135, %v7131
      %v7204 = vpack.c.bf16 %v7140, %v7136
      %v7205 = vpack.c.bf16 %v7141, %v7137
      %v7206 = vpack.c.bf16 %v7142, %v7138
      %v7207 = vpack.c.bf16 %v7143, %v7139
      %v7208 = vld [vmem:[%s12] sm:$0xff]
      %v7209 = vld [vmem:[%s12 + $0x8] sm:$0xff]
      %v7210 = vld [vmem:[%s12 + $0x10] sm:$0xff]
      %v7211 = vld [vmem:[%s12 + $0x18] sm:$0xf]
      %v7212 = vld [vmem:[%s12 + $0x1c] sm:$0xff]
      %v7213 = vld [vmem:[%s12 + $0x24] sm:$0xff]
      %v7214 = vld [vmem:[%s12 + $0x2c] sm:$0xff]
      %v7215 = vld [vmem:[%s12 + $0x34] sm:$0xf]
      %v7216 = vld [vmem:[%s12 + $0x38] sm:$0xff]
      %v7217 = vld [vmem:[%s12 + $0x40] sm:$0xff]
      %v7218 = vld [vmem:[%s12 + $0x48] sm:$0xff]
      %v7219 = vld [vmem:[%s12 + $0x50] sm:$0xf]
      %v7220 = vld [vmem:[%s12 + $0x54] sm:$0xff]
      %v7221 = vld [vmem:[%s12 + $0x5c] sm:$0xff]
      %v7222 = vld [vmem:[%s12 + $0x64] sm:$0xff]
      %v7223 = vld [vmem:[%s12 + $0x6c] sm:$0xf]
      %v7224 = vld [vmem:[%s12 + $0x70] sm:$0xff]
      %v7225 = vld [vmem:[%s12 + $0x78] sm:$0xff]
      %v7226 = vld [vmem:[%s12 + $0x80] sm:$0xff]
      %v7227 = vld [vmem:[%s12 + $0x88] sm:$0xf]
      %v7228 = vld [vmem:[%s12 + $0x8c] sm:$0xff]
      %v7229 = vld [vmem:[%s12 + $0x94] sm:$0xff]
      %v7230 = vld [vmem:[%s12 + $0x9c] sm:$0xff]
      %v7231 = vld [vmem:[%s12 + $0xa4] sm:$0xf]
      %v7232 = vld [vmem:[%s12 + $0xa8] sm:$0xff]
      %v7233 = vld [vmem:[%s12 + $0xb0] sm:$0xff]
      %v7234 = vld [vmem:[%s12 + $0xb8] sm:$0xff]
      %v7235 = vld [vmem:[%s12 + $0xc0] sm:$0xf]
      %v7236 = vld [vmem:[%s12 + $0xc4] sm:$0xff]
      %v7237 = vld [vmem:[%s12 + $0xcc] sm:$0xff]
      %v7238 = vld [vmem:[%s12 + $0xd4] sm:$0xff]
      %v7239 = vld [vmem:[%s12 + $0xdc] sm:$0xf]
      %v7240 = vld [vmem:[%s12 + $0xe0] sm:$0xff]
      %v7241 = vld [vmem:[%s12 + $0xe8] sm:$0xff]
      %v7242 = vld [vmem:[%s12 + $0xf0] sm:$0xff]
      %v7243 = vld [vmem:[%s12 + $0xf8] sm:$0xf]
      %v7244 = vld [vmem:[%s12 + $0xfc] sm:$0xff]
      %v7245 = vld [vmem:[%s12 + $0x104] sm:$0xff]
      %v7246 = vld [vmem:[%s12 + $0x10c] sm:$0xff]
      %v7247 = vld [vmem:[%s12 + $0x114] sm:$0xf]
      %v7248 = vld [vmem:[%s12 + $0x118] sm:$0xff]
      %v7249 = vld [vmem:[%s12 + $0x120] sm:$0xff]
      %v7250 = vld [vmem:[%s12 + $0x128] sm:$0xff]
      %v7251 = vld [vmem:[%s12 + $0x130] sm:$0xf]
      %v7252 = vld [vmem:[%s12 + $0x134] sm:$0xff]
      %v7253 = vld [vmem:[%s12 + $0x13c] sm:$0xff]
      %v7254 = vld [vmem:[%s12 + $0x144] sm:$0xff]
      %v7255 = vld [vmem:[%s12 + $0x14c] sm:$0xf]
      %v7256 = vld [vmem:[%s12 + $0x150] sm:$0xff]
      %v7257 = vld [vmem:[%s12 + $0x158] sm:$0xff]
      %v7258 = vld [vmem:[%s12 + $0x160] sm:$0xff]
      %v7259 = vld [vmem:[%s12 + $0x168] sm:$0xf]
      %v7260 = vld [vmem:[%s12 + $0x16c] sm:$0xff]
      %v7261 = vld [vmem:[%s12 + $0x174] sm:$0xff]
      %v7262 = vld [vmem:[%s12 + $0x17c] sm:$0xff]
      %v7263 = vld [vmem:[%s12 + $0x184] sm:$0xf]
      %v7264 = vld [vmem:[%s12 + $0x188] sm:$0xff]
      %v7265 = vld [vmem:[%s12 + $0x190] sm:$0xff]
      %v7266 = vld [vmem:[%s12 + $0x198] sm:$0xff]
      %v7267 = vld [vmem:[%s12 + $0x1a0] sm:$0xf]
      %v7268 = vld [vmem:[%s12 + $0x1a4] sm:$0xff]
      %v7269 = vld [vmem:[%s12 + $0x1ac] sm:$0xff]
      %v7270 = vld [vmem:[%s12 + $0x1b4] sm:$0xff]
      %v7271 = vld [vmem:[%s12 + $0x1bc] sm:$0xf]
      %v7272 = vld [vmem:[%s12 + $0x1c0] sm:$0xff]
      %v7273 = vld [vmem:[%s12 + $0x1c8] sm:$0xff]
      %v7274 = vld [vmem:[%s12 + $0x1d0] sm:$0xff]
      %v7275 = vld [vmem:[%s12 + $0x1d8] sm:$0xf]
      %v7276 = vld [vmem:[%s12 + $0x1dc] sm:$0xff]
      %v7277 = vld [vmem:[%s12 + $0x1e4] sm:$0xff]
      %v7278 = vld [vmem:[%s12 + $0x1ec] sm:$0xff]
      %v7279 = vld [vmem:[%s12 + $0x1f4] sm:$0xf]
      %v7280 = vld [vmem:[%s12 + $0x1f8] sm:$0xff]
      %v7281 = vld [vmem:[%s12 + $0x200] sm:$0xff]
      %v7282 = vld [vmem:[%s12 + $0x208] sm:$0xff]
      %v7283 = vld [vmem:[%s12 + $0x210] sm:$0xf]
      %v7284 = vld [vmem:[%s12 + $0x214] sm:$0xff]
      %v7285 = vld [vmem:[%s12 + $0x21c] sm:$0xff]
      %v7286 = vld [vmem:[%s12 + $0x224] sm:$0xff]
      %v7287 = vld [vmem:[%s12 + $0x22c] sm:$0xf]
      %v7288 = vld [vmem:[%s12 + $0x230] sm:$0xff]
      %v7289 = vld [vmem:[%s12 + $0x238] sm:$0xff]
      %v7290 = vld [vmem:[%s12 + $0x240] sm:$0xff]
      %v7291 = vld [vmem:[%s12 + $0x248] sm:$0xf]
      %v7292 = vld [vmem:[%s12 + $0x24c] sm:$0xff]
      %v7293 = vld [vmem:[%s12 + $0x254] sm:$0xff]
      %v7294 = vld [vmem:[%s12 + $0x25c] sm:$0xff]
      %v7295 = vld [vmem:[%s12 + $0x264] sm:$0xf]
      %v7296 = vld [vmem:[%s12 + $0x268] sm:$0xff]
      %v7297 = vld [vmem:[%s12 + $0x270] sm:$0xff]
      %v7298 = vld [vmem:[%s12 + $0x278] sm:$0xff]
      %v7299 = vld [vmem:[%s12 + $0x280] sm:$0xf]
      %v7300 = vld [vmem:[%s12 + $0x284] sm:$0xff]
      %v7301 = vld [vmem:[%s12 + $0x28c] sm:$0xff]
      %v7302 = vld [vmem:[%s12 + $0x294] sm:$0xff]
      %v7303 = vld [vmem:[%s12 + $0x29c] sm:$0xf]
      %v7304 = vld [vmem:[%s12 + $0x2a0] sm:$0xff]
      %v7305 = vld [vmem:[%s12 + $0x2a8] sm:$0xff]
      %v7306 = vld [vmem:[%s12 + $0x2b0] sm:$0xff]
      %v7307 = vld [vmem:[%s12 + $0x2b8] sm:$0xf]
      %v7308 = vld [vmem:[%s12 + $0x2bc] sm:$0xff]
      %v7309 = vld [vmem:[%s12 + $0x2c4] sm:$0xff]
      %v7310 = vld [vmem:[%s12 + $0x2cc] sm:$0xff]
      %v7311 = vld [vmem:[%s12 + $0x2d4] sm:$0xf]
      %v7312 = vld [vmem:[%s12 + $0x2d8] sm:$0xff]
      %v7313 = vld [vmem:[%s12 + $0x2e0] sm:$0xff]
      %v7314 = vld [vmem:[%s12 + $0x2e8] sm:$0xff]
      %v7315 = vld [vmem:[%s12 + $0x2f0] sm:$0xf]
      %v7316 = vld [vmem:[%s12 + $0x2f4] sm:$0xff]
      %v7317 = vld [vmem:[%s12 + $0x2fc] sm:$0xff]
      %v7318 = vld [vmem:[%s12 + $0x304] sm:$0xff]
      %v7319 = vld [vmem:[%s12 + $0x30c] sm:$0xf]
      %v7320 = vld [vmem:[%s12 + $0x310] sm:$0xff]
      %v7321 = vld [vmem:[%s12 + $0x318] sm:$0xff]
      %v7322 = vld [vmem:[%s12 + $0x320] sm:$0xff]
      %v7323 = vld [vmem:[%s12 + $0x328] sm:$0xf]
      %v7324 = vld [vmem:[%s12 + $0x32c] sm:$0xff]
      %v7325 = vld [vmem:[%s12 + $0x334] sm:$0xff]
      %v7326 = vld [vmem:[%s12 + $0x33c] sm:$0xff]
      %v7327 = vld [vmem:[%s12 + $0x344] sm:$0xf]
      %v7328 = vld [vmem:[%s12 + $0x348] sm:$0xff]
      %v7329 = vld [vmem:[%s12 + $0x350] sm:$0xff]
      %v7330 = vld [vmem:[%s12 + $0x358] sm:$0xff]
      %v7331 = vld [vmem:[%s12 + $0x360] sm:$0xf]
      %v7332 = vld [vmem:[%s12 + $0x364] sm:$0xff]
      %v7333 = vld [vmem:[%s12 + $0x36c] sm:$0xff]
      %v7334 = vld [vmem:[%s12 + $0x374] sm:$0xff]
      %v7335 = vld [vmem:[%s12 + $0x37c] sm:$0xf]
      %v7336 = vld [vmem:[%s12 + $0x380] sm:$0xff]
      %v7337 = vld [vmem:[%s12 + $0x388] sm:$0xff]
      %v7338 = vld [vmem:[%s12 + $0x390] sm:$0xff]
      %v7339 = vld [vmem:[%s12 + $0x398] sm:$0xf]
      %v7340 = vld [vmem:[%s12 + $0x39c] sm:$0xff]
      %v7341 = vld [vmem:[%s12 + $0x3a4] sm:$0xff]
      %v7342 = vld [vmem:[%s12 + $0x3ac] sm:$0xff]
      %v7343 = vld [vmem:[%s12 + $0x3b4] sm:$0xf]
      %v7344 = vld [vmem:[%s12 + $0x3b8] sm:$0xff]
      %v7345 = vld [vmem:[%s12 + $0x3c0] sm:$0xff]
      %v7346 = vld [vmem:[%s12 + $0x3c8] sm:$0xff]
      %v7347 = vld [vmem:[%s12 + $0x3d0] sm:$0xf]
      %v7348 = vld [vmem:[%s12 + $0x3d4] sm:$0xff]
      %v7349 = vld [vmem:[%s12 + $0x3dc] sm:$0xff]
      %v7350 = vld [vmem:[%s12 + $0x3e4] sm:$0xff]
      %v7351 = vld [vmem:[%s12 + $0x3ec] sm:$0xf]
      %v7352 = vld [vmem:[%s12 + $0x3f0] sm:$0xff]
      %v7353 = vld [vmem:[%s12 + $0x3f8] sm:$0xff]
      %v7354 = vld [vmem:[%s12 + $0x400] sm:$0xff]
      %v7355 = vld [vmem:[%s12 + $0x408] sm:$0xf]
      %v7356 = vld [vmem:[%s12 + $0x40c] sm:$0xff]
      %v7357 = vld [vmem:[%s12 + $0x414] sm:$0xff]
      %v7358 = vld [vmem:[%s12 + $0x41c] sm:$0xff]
      %v7359 = vld [vmem:[%s12 + $0x424] sm:$0xf]
      %v7360 = vld [vmem:[%s12 + $0x428] sm:$0xff]
      %v7361 = vld [vmem:[%s12 + $0x430] sm:$0xff]
      %v7362 = vld [vmem:[%s12 + $0x438] sm:$0xff]
      %v7363 = vld [vmem:[%s12 + $0x440] sm:$0xf]
      %v7364 = vld [vmem:[%s12 + $0x444] sm:$0xff]
      %v7365 = vld [vmem:[%s12 + $0x44c] sm:$0xff]
      %v7366 = vld [vmem:[%s12 + $0x454] sm:$0xff]
      %v7367 = vld [vmem:[%s12 + $0x45c] sm:$0xf]
      %v7368 = vld [vmem:[%s12 + $0x460] sm:$0xff]
      %v7369 = vld [vmem:[%s12 + $0x468] sm:$0xff]
      %v7370 = vld [vmem:[%s12 + $0x470] sm:$0xff]
      %v7371 = vld [vmem:[%s12 + $0x478] sm:$0xf]
      %v7372 = vld [vmem:[%s12 + $0x47c] sm:$0xff]
      %v7373 = vld [vmem:[%s12 + $0x484] sm:$0xff]
      %v7374 = vld [vmem:[%s12 + $0x48c] sm:$0xff]
      %v7375 = vld [vmem:[%s12 + $0x494] sm:$0xf]
      %v7376 = vld [vmem:[%s12 + $0x498] sm:$0xff]
      %v7377 = vld [vmem:[%s12 + $0x4a0] sm:$0xff]
      %v7378 = vld [vmem:[%s12 + $0x4a8] sm:$0xff]
      %v7379 = vld [vmem:[%s12 + $0x4b0] sm:$0xf]
      %v7380 = vld [vmem:[%s12 + $0x4b4] sm:$0xff]
      %v7381 = vld [vmem:[%s12 + $0x4bc] sm:$0xff]
      %v7382 = vld [vmem:[%s12 + $0x4c4] sm:$0xff]
      %v7383 = vld [vmem:[%s12 + $0x4cc] sm:$0xf]
      %v7384 = vld [vmem:[%s12 + $0x4d0] sm:$0xff]
      %v7385 = vld [vmem:[%s12 + $0x4d8] sm:$0xff]
      %v7386 = vld [vmem:[%s12 + $0x4e0] sm:$0xff]
      %v7387 = vld [vmem:[%s12 + $0x4e8] sm:$0xf]
      %v7388 = vld [vmem:[%s12 + $0x4ec] sm:$0xff]
      %v7389 = vld [vmem:[%s12 + $0x4f4] sm:$0xff]
      %v7390 = vld [vmem:[%s12 + $0x4fc] sm:$0xff]
      %v7391 = vld [vmem:[%s12 + $0x504] sm:$0xf]
      %v7392 = vld [vmem:[%s12 + $0x508] sm:$0xff]
      %v7393 = vld [vmem:[%s12 + $0x510] sm:$0xff]
      %v7394 = vld [vmem:[%s12 + $0x518] sm:$0xff]
      %v7395 = vld [vmem:[%s12 + $0x520] sm:$0xf]
      %v7396 = vld [vmem:[%s12 + $0x524] sm:$0xff]
      %v7397 = vld [vmem:[%s12 + $0x52c] sm:$0xff]
      %v7398 = vld [vmem:[%s12 + $0x534] sm:$0xff]
      %v7399 = vld [vmem:[%s12 + $0x53c] sm:$0xf]
      %v7400 = vld [vmem:[%s12 + $0x540] sm:$0xff]
      %v7401 = vld [vmem:[%s12 + $0x548] sm:$0xff]
      %v7402 = vld [vmem:[%s12 + $0x550] sm:$0xff]
      %v7403 = vld [vmem:[%s12 + $0x558] sm:$0xf]
      %v7404 = vld [vmem:[%s12 + $0x55c] sm:$0xff]
      %v7405 = vld [vmem:[%s12 + $0x564] sm:$0xff]
      %v7406 = vld [vmem:[%s12 + $0x56c] sm:$0xff]
      %v7407 = vld [vmem:[%s12 + $0x574] sm:$0xf]
      %v7408 = vld [vmem:[%s12 + $0x578] sm:$0xff]
      %v7409 = vld [vmem:[%s12 + $0x580] sm:$0xff]
      %v7410 = vld [vmem:[%s12 + $0x588] sm:$0xff]
      %v7411 = vld [vmem:[%s12 + $0x590] sm:$0xf]
      %v7412 = vld [vmem:[%s12 + $0x594] sm:$0xff]
      %v7413 = vld [vmem:[%s12 + $0x59c] sm:$0xff]
      %v7414 = vld [vmem:[%s12 + $0x5a4] sm:$0xff]
      %v7415 = vld [vmem:[%s12 + $0x5ac] sm:$0xf]
      %v7416 = vld [vmem:[%s12 + $0x5b0] sm:$0xff]
      %v7417 = vld [vmem:[%s12 + $0x5b8] sm:$0xff]
      %v7418 = vld [vmem:[%s12 + $0x5c0] sm:$0xff]
      %v7419 = vld [vmem:[%s12 + $0x5c8] sm:$0xf]
      %v7420 = vld [vmem:[%s12 + $0x5cc] sm:$0xff]
      %v7421 = vld [vmem:[%s12 + $0x5d4] sm:$0xff]
      %v7422 = vld [vmem:[%s12 + $0x5dc] sm:$0xff]
      %v7423 = vld [vmem:[%s12 + $0x5e4] sm:$0xf]
      %v7424 = vld [vmem:[%s12 + $0x5e8] sm:$0xff]
      %v7425 = vld [vmem:[%s12 + $0x5f0] sm:$0xff]
      %v7426 = vld [vmem:[%s12 + $0x5f8] sm:$0xff]
      %v7427 = vld [vmem:[%s12 + $0x600] sm:$0xf]
      %v7428 = vld [vmem:[%s12 + $0x604] sm:$0xff]
      %v7429 = vld [vmem:[%s12 + $0x60c] sm:$0xff]
      %v7430 = vld [vmem:[%s12 + $0x614] sm:$0xff]
      %v7431 = vld [vmem:[%s12 + $0x61c] sm:$0xf]
      %v7432 = vld [vmem:[%s12 + $0x620] sm:$0xff]
      %v7433 = vld [vmem:[%s12 + $0x628] sm:$0xff]
      %v7434 = vld [vmem:[%s12 + $0x630] sm:$0xff]
      %v7435 = vld [vmem:[%s12 + $0x638] sm:$0xf]
      %v7436 = vld [vmem:[%s12 + $0x63c] sm:$0xff]
      %v7437 = vld [vmem:[%s12 + $0x644] sm:$0xff]
      %v7438 = vld [vmem:[%s12 + $0x64c] sm:$0xff]
      %v7439 = vld [vmem:[%s12 + $0x654] sm:$0xf]
      %v7440 = vld [vmem:[%s12 + $0x658] sm:$0xff]
      %v7441 = vld [vmem:[%s12 + $0x660] sm:$0xff]
      %v7442 = vld [vmem:[%s12 + $0x668] sm:$0xff]
      %v7443 = vld [vmem:[%s12 + $0x670] sm:$0xf]
      %v7444 = vld [vmem:[%s12 + $0x674] sm:$0xff]
      %v7445 = vld [vmem:[%s12 + $0x67c] sm:$0xff]
      %v7446 = vld [vmem:[%s12 + $0x684] sm:$0xff]
      %v7447 = vld [vmem:[%s12 + $0x68c] sm:$0xf]
      %v7448 = vld [vmem:[%s12 + $0x690] sm:$0xff]
      %v7449 = vld [vmem:[%s12 + $0x698] sm:$0xff]
      %v7450 = vld [vmem:[%s12 + $0x6a0] sm:$0xff]
      %v7451 = vld [vmem:[%s12 + $0x6a8] sm:$0xf]
      %v7452 = vld [vmem:[%s12 + $0x6ac] sm:$0xff]
      %v7453 = vld [vmem:[%s12 + $0x6b4] sm:$0xff]
      %v7454 = vld [vmem:[%s12 + $0x6bc] sm:$0xff]
      %v7455 = vld [vmem:[%s12 + $0x6c4] sm:$0xf]
      %v7456 = vld [vmem:[%s12 + $0x6c8] sm:$0xff]
      %v7457 = vld [vmem:[%s12 + $0x6d0] sm:$0xff]
      %v7458 = vld [vmem:[%s12 + $0x6d8] sm:$0xff]
      %v7459 = vld [vmem:[%s12 + $0x6e0] sm:$0xf]
      %v7460 = vld [vmem:[%s12 + $0x6e4] sm:$0xff]
      %v7461 = vld [vmem:[%s12 + $0x6ec] sm:$0xff]
      %v7462 = vld [vmem:[%s12 + $0x6f4] sm:$0xff]
      %v7463 = vld [vmem:[%s12 + $0x6fc] sm:$0xf]
      %v7464 = vld [vmem:[%s13] sm:$0xff]
      %v7466 = vlaneseq
      %v7467 = vshrl.u32 %v7466, 7
      %v7468 = vsub.s32 0, %v7467
      %v7469 = vrot.slane %v7464, %v7468
      %v7470 = vlaneseq
      %v7471 = vshrl.u32 %v7470, 7
      %v7472 = vsub.s32 1, %v7471
      %v7473 = vrot.slane %v7464, %v7472
      %v7474 = vlaneseq
      %v7475 = vshrl.u32 %v7474, 7
      %v7476 = vsub.s32 2, %v7475
      %v7477 = vrot.slane %v7464, %v7476
      %v7478 = vlaneseq
      %v7479 = vshrl.u32 %v7478, 7
      %v7480 = vsub.s32 3, %v7479
      %v7481 = vrot.slane %v7464, %v7480
      %v7482 = vlaneseq
      %v7483 = vshrl.u32 %v7482, 7
      %v7484 = vsub.s32 4, %v7483
      %v7485 = vrot.slane %v7464, %v7484
      %v7486 = vlaneseq
      %v7487 = vshrl.u32 %v7486, 7
      %v7488 = vsub.s32 5, %v7487
      %v7489 = vrot.slane %v7464, %v7488
      %v7490 = vlaneseq
      %v7491 = vshrl.u32 %v7490, 7
      %v7492 = vsub.s32 6, %v7491
      %v7493 = vrot.slane %v7464, %v7492
      %v7757 = vunpack.c.l.b16 %v7208
      %v7758 = vunpack.c.h.b16 %v7208
      %v7759 = vunpack.c.l.b16 %v7209
      %v7760 = vunpack.c.h.b16 %v7209
      %v7761 = vunpack.c.l.b16 %v7210
      %v7762 = vunpack.c.h.b16 %v7210
      %v7763 = vunpack.c.l.b16 %v7211
      %v7764 = vunpack.c.l.b16 %v7212
      %v7765 = vunpack.c.h.b16 %v7212
      %v7766 = vunpack.c.l.b16 %v7213
      %v7767 = vunpack.c.h.b16 %v7213
      %v7768 = vunpack.c.l.b16 %v7214
      %v7769 = vunpack.c.h.b16 %v7214
      %v7770 = vunpack.c.l.b16 %v7215
      %v7771 = vunpack.c.l.b16 %v7216
      %v7772 = vunpack.c.h.b16 %v7216
      %v7773 = vunpack.c.l.b16 %v7217
      %v7774 = vunpack.c.h.b16 %v7217
      %v7775 = vunpack.c.l.b16 %v7218
      %v7776 = vunpack.c.h.b16 %v7218
      %v7777 = vunpack.c.l.b16 %v7219
      %v7778 = vunpack.c.l.b16 %v7220
      %v7779 = vunpack.c.h.b16 %v7220
      %v7780 = vunpack.c.l.b16 %v7221
      %v7781 = vunpack.c.h.b16 %v7221
      %v7782 = vunpack.c.l.b16 %v7222
      %v7783 = vunpack.c.h.b16 %v7222
      %v7784 = vunpack.c.l.b16 %v7223
      %v7785 = vunpack.c.l.b16 %v7224
      %v7786 = vunpack.c.h.b16 %v7224
      %v7787 = vunpack.c.l.b16 %v7225
      %v7788 = vunpack.c.h.b16 %v7225
      %v7789 = vunpack.c.l.b16 %v7226
      %v7790 = vunpack.c.h.b16 %v7226
      %v7791 = vunpack.c.l.b16 %v7227
      %v7792 = vunpack.c.l.b16 %v7228
      %v7793 = vunpack.c.h.b16 %v7228
      %v7794 = vunpack.c.l.b16 %v7229
      %v7795 = vunpack.c.h.b16 %v7229
      %v7796 = vunpack.c.l.b16 %v7230
      %v7797 = vunpack.c.h.b16 %v7230
      %v7798 = vunpack.c.l.b16 %v7231
      %v7799 = vunpack.c.l.b16 %v7232
      %v7800 = vunpack.c.h.b16 %v7232
      %v7801 = vunpack.c.l.b16 %v7233
      %v7802 = vunpack.c.h.b16 %v7233
      %v7803 = vunpack.c.l.b16 %v7234
      %v7804 = vunpack.c.h.b16 %v7234
      %v7805 = vunpack.c.l.b16 %v7235
      %v7806 = vunpack.c.l.b16 %v7236
      %v7807 = vunpack.c.h.b16 %v7236
      %v7808 = vunpack.c.l.b16 %v7237
      %v7809 = vunpack.c.h.b16 %v7237
      %v7810 = vunpack.c.l.b16 %v7238
      %v7811 = vunpack.c.h.b16 %v7238
      %v7812 = vunpack.c.l.b16 %v7239
      %v7813 = vunpack.c.l.b16 %v7240
      %v7814 = vunpack.c.h.b16 %v7240
      %v7815 = vunpack.c.l.b16 %v7241
      %v7816 = vunpack.c.h.b16 %v7241
      %v7817 = vunpack.c.l.b16 %v7242
      %v7818 = vunpack.c.h.b16 %v7242
      %v7819 = vunpack.c.l.b16 %v7243
      %v7820 = vunpack.c.l.b16 %v7244
      %v7821 = vunpack.c.h.b16 %v7244
      %v7822 = vunpack.c.l.b16 %v7245
      %v7823 = vunpack.c.h.b16 %v7245
      %v7824 = vunpack.c.l.b16 %v7246
      %v7825 = vunpack.c.h.b16 %v7246
      %v7826 = vunpack.c.l.b16 %v7247
      %v7827 = vunpack.c.l.b16 %v7248
      %v7828 = vunpack.c.h.b16 %v7248
      %v7829 = vunpack.c.l.b16 %v7249
      %v7830 = vunpack.c.h.b16 %v7249
      %v7831 = vunpack.c.l.b16 %v7250
      %v7832 = vunpack.c.h.b16 %v7250
      %v7833 = vunpack.c.l.b16 %v7251
      %v7834 = vunpack.c.l.b16 %v7252
      %v7835 = vunpack.c.h.b16 %v7252
      %v7836 = vunpack.c.l.b16 %v7253
      %v7837 = vunpack.c.h.b16 %v7253
      %v7838 = vunpack.c.l.b16 %v7254
      %v7839 = vunpack.c.h.b16 %v7254
      %v7840 = vunpack.c.l.b16 %v7255
      %v7841 = vunpack.c.l.b16 %v7256
      %v7842 = vunpack.c.h.b16 %v7256
      %v7843 = vunpack.c.l.b16 %v7257
      %v7844 = vunpack.c.h.b16 %v7257
      %v7845 = vunpack.c.l.b16 %v7258
      %v7846 = vunpack.c.h.b16 %v7258
      %v7847 = vunpack.c.l.b16 %v7259
      %v7848 = vunpack.c.l.b16 %v7260
      %v7849 = vunpack.c.h.b16 %v7260
      %v7850 = vunpack.c.l.b16 %v7261
      %v7851 = vunpack.c.h.b16 %v7261
      %v7852 = vunpack.c.l.b16 %v7262
      %v7853 = vunpack.c.h.b16 %v7262
      %v7854 = vunpack.c.l.b16 %v7263
      %v7855 = vunpack.c.l.b16 %v7264
      %v7856 = vunpack.c.h.b16 %v7264
      %v7857 = vunpack.c.l.b16 %v7265
      %v7858 = vunpack.c.h.b16 %v7265
      %v7859 = vunpack.c.l.b16 %v7266
      %v7860 = vunpack.c.h.b16 %v7266
      %v7861 = vunpack.c.l.b16 %v7267
      %v7862 = vunpack.c.l.b16 %v7268
      %v7863 = vunpack.c.h.b16 %v7268
      %v7864 = vunpack.c.l.b16 %v7269
      %v7865 = vunpack.c.h.b16 %v7269
      %v7866 = vunpack.c.l.b16 %v7270
      %v7867 = vunpack.c.h.b16 %v7270
      %v7868 = vunpack.c.l.b16 %v7271
      %v7869 = vunpack.c.l.b16 %v7272
      %v7870 = vunpack.c.h.b16 %v7272
      %v7871 = vunpack.c.l.b16 %v7273
      %v7872 = vunpack.c.h.b16 %v7273
      %v7873 = vunpack.c.l.b16 %v7274
      %v7874 = vunpack.c.h.b16 %v7274
      %v7875 = vunpack.c.l.b16 %v7275
      %v7876 = vunpack.c.l.b16 %v7276
      %v7877 = vunpack.c.h.b16 %v7276
      %v7878 = vunpack.c.l.b16 %v7277
      %v7879 = vunpack.c.h.b16 %v7277
      %v7880 = vunpack.c.l.b16 %v7278
      %v7881 = vunpack.c.h.b16 %v7278
      %v7882 = vunpack.c.l.b16 %v7279
      %v7883 = vunpack.c.l.b16 %v7280
      %v7884 = vunpack.c.h.b16 %v7280
      %v7885 = vunpack.c.l.b16 %v7281
      %v7886 = vunpack.c.h.b16 %v7281
      %v7887 = vunpack.c.l.b16 %v7282
      %v7888 = vunpack.c.h.b16 %v7282
      %v7889 = vunpack.c.l.b16 %v7283
      %v7890 = vunpack.c.l.b16 %v7284
      %v7891 = vunpack.c.h.b16 %v7284
      %v7892 = vunpack.c.l.b16 %v7285
      %v7893 = vunpack.c.h.b16 %v7285
      %v7894 = vunpack.c.l.b16 %v7286
      %v7895 = vunpack.c.h.b16 %v7286
      %v7896 = vunpack.c.l.b16 %v7287
      %v7897 = vunpack.c.l.b16 %v7288
      %v7898 = vunpack.c.h.b16 %v7288
      %v7899 = vunpack.c.l.b16 %v7289
      %v7900 = vunpack.c.h.b16 %v7289
      %v7901 = vunpack.c.l.b16 %v7290
      %v7902 = vunpack.c.h.b16 %v7290
      %v7903 = vunpack.c.l.b16 %v7291
      %v7904 = vunpack.c.l.b16 %v7292
      %v7905 = vunpack.c.h.b16 %v7292
      %v7906 = vunpack.c.l.b16 %v7293
      %v7907 = vunpack.c.h.b16 %v7293
      %v7908 = vunpack.c.l.b16 %v7294
      %v7909 = vunpack.c.h.b16 %v7294
      %v7910 = vunpack.c.l.b16 %v7295
      %v7911 = vunpack.c.l.b16 %v7296
      %v7912 = vunpack.c.h.b16 %v7296
      %v7913 = vunpack.c.l.b16 %v7297
      %v7914 = vunpack.c.h.b16 %v7297
      %v7915 = vunpack.c.l.b16 %v7298
      %v7916 = vunpack.c.h.b16 %v7298
      %v7917 = vunpack.c.l.b16 %v7299
      %v7918 = vunpack.c.l.b16 %v7300
      %v7919 = vunpack.c.h.b16 %v7300
      %v7920 = vunpack.c.l.b16 %v7301
      %v7921 = vunpack.c.h.b16 %v7301
      %v7922 = vunpack.c.l.b16 %v7302
      %v7923 = vunpack.c.h.b16 %v7302
      %v7924 = vunpack.c.l.b16 %v7303
      %v7925 = vunpack.c.l.b16 %v7304
      %v7926 = vunpack.c.h.b16 %v7304
      %v7927 = vunpack.c.l.b16 %v7305
      %v7928 = vunpack.c.h.b16 %v7305
      %v7929 = vunpack.c.l.b16 %v7306
      %v7930 = vunpack.c.h.b16 %v7306
      %v7931 = vunpack.c.l.b16 %v7307
      %v7932 = vunpack.c.l.b16 %v7308
      %v7933 = vunpack.c.h.b16 %v7308
      %v7934 = vunpack.c.l.b16 %v7309
      %v7935 = vunpack.c.h.b16 %v7309
      %v7936 = vunpack.c.l.b16 %v7310
      %v7937 = vunpack.c.h.b16 %v7310
      %v7938 = vunpack.c.l.b16 %v7311
      %v7939 = vunpack.c.l.b16 %v7312
      %v7940 = vunpack.c.h.b16 %v7312
      %v7941 = vunpack.c.l.b16 %v7313
      %v7942 = vunpack.c.h.b16 %v7313
      %v7943 = vunpack.c.l.b16 %v7314
      %v7944 = vunpack.c.h.b16 %v7314
      %v7945 = vunpack.c.l.b16 %v7315
      %v7946 = vunpack.c.l.b16 %v7316
      %v7947 = vunpack.c.h.b16 %v7316
      %v7948 = vunpack.c.l.b16 %v7317
      %v7949 = vunpack.c.h.b16 %v7317
      %v7950 = vunpack.c.l.b16 %v7318
      %v7951 = vunpack.c.h.b16 %v7318
      %v7952 = vunpack.c.l.b16 %v7319
      %v7953 = vunpack.c.l.b16 %v7320
      %v7954 = vunpack.c.h.b16 %v7320
      %v7955 = vunpack.c.l.b16 %v7321
      %v7956 = vunpack.c.h.b16 %v7321
      %v7957 = vunpack.c.l.b16 %v7322
      %v7958 = vunpack.c.h.b16 %v7322
      %v7959 = vunpack.c.l.b16 %v7323
      %v7960 = vunpack.c.l.b16 %v7324
      %v7961 = vunpack.c.h.b16 %v7324
      %v7962 = vunpack.c.l.b16 %v7325
      %v7963 = vunpack.c.h.b16 %v7325
      %v7964 = vunpack.c.l.b16 %v7326
      %v7965 = vunpack.c.h.b16 %v7326
      %v7966 = vunpack.c.l.b16 %v7327
      %v7967 = vunpack.c.l.b16 %v7328
      %v7968 = vunpack.c.h.b16 %v7328
      %v7969 = vunpack.c.l.b16 %v7329
      %v7970 = vunpack.c.h.b16 %v7329
      %v7971 = vunpack.c.l.b16 %v7330
      %v7972 = vunpack.c.h.b16 %v7330
      %v7973 = vunpack.c.l.b16 %v7331
      %v7974 = vunpack.c.l.b16 %v7332
      %v7975 = vunpack.c.h.b16 %v7332
      %v7976 = vunpack.c.l.b16 %v7333
      %v7977 = vunpack.c.h.b16 %v7333
      %v7978 = vunpack.c.l.b16 %v7334
      %v7979 = vunpack.c.h.b16 %v7334
      %v7980 = vunpack.c.l.b16 %v7335
      %v7981 = vunpack.c.l.b16 %v7336
      %v7982 = vunpack.c.h.b16 %v7336
      %v7983 = vunpack.c.l.b16 %v7337
      %v7984 = vunpack.c.h.b16 %v7337
      %v7985 = vunpack.c.l.b16 %v7338
      %v7986 = vunpack.c.h.b16 %v7338
      %v7987 = vunpack.c.l.b16 %v7339
      %v7988 = vunpack.c.l.b16 %v7340
      %v7989 = vunpack.c.h.b16 %v7340
      %v7990 = vunpack.c.l.b16 %v7341
      %v7991 = vunpack.c.h.b16 %v7341
      %v7992 = vunpack.c.l.b16 %v7342
      %v7993 = vunpack.c.h.b16 %v7342
      %v7994 = vunpack.c.l.b16 %v7343
      %v7995 = vunpack.c.l.b16 %v7344
      %v7996 = vunpack.c.h.b16 %v7344
      %v7997 = vunpack.c.l.b16 %v7345
      %v7998 = vunpack.c.h.b16 %v7345
      %v7999 = vunpack.c.l.b16 %v7346
      %v8000 = vunpack.c.h.b16 %v7346
      %v8001 = vunpack.c.l.b16 %v7347
      %v8002 = vunpack.c.l.b16 %v7348
      %v8003 = vunpack.c.h.b16 %v7348
      %v8004 = vunpack.c.l.b16 %v7349
      %v8005 = vunpack.c.h.b16 %v7349
      %v8006 = vunpack.c.l.b16 %v7350
      %v8007 = vunpack.c.h.b16 %v7350
      %v8008 = vunpack.c.l.b16 %v7351
      %v8009 = vunpack.c.l.b16 %v7352
      %v8010 = vunpack.c.h.b16 %v7352
      %v8011 = vunpack.c.l.b16 %v7353
      %v8012 = vunpack.c.h.b16 %v7353
      %v8013 = vunpack.c.l.b16 %v7354
      %v8014 = vunpack.c.h.b16 %v7354
      %v8015 = vunpack.c.l.b16 %v7355
      %v8016 = vunpack.c.l.b16 %v7356
      %v8017 = vunpack.c.h.b16 %v7356
      %v8018 = vunpack.c.l.b16 %v7357
      %v8019 = vunpack.c.h.b16 %v7357
      %v8020 = vunpack.c.l.b16 %v7358
      %v8021 = vunpack.c.h.b16 %v7358
      %v8022 = vunpack.c.l.b16 %v7359
      %v8023 = vunpack.c.l.b16 %v7360
      %v8024 = vunpack.c.h.b16 %v7360
      %v8025 = vunpack.c.l.b16 %v7361
      %v8026 = vunpack.c.h.b16 %v7361
      %v8027 = vunpack.c.l.b16 %v7362
      %v8028 = vunpack.c.h.b16 %v7362
      %v8029 = vunpack.c.l.b16 %v7363
      %v8030 = vunpack.c.l.b16 %v7364
      %v8031 = vunpack.c.h.b16 %v7364
      %v8032 = vunpack.c.l.b16 %v7365
      %v8033 = vunpack.c.h.b16 %v7365
      %v8034 = vunpack.c.l.b16 %v7366
      %v8035 = vunpack.c.h.b16 %v7366
      %v8036 = vunpack.c.l.b16 %v7367
      %v8037 = vunpack.c.l.b16 %v7368
      %v8038 = vunpack.c.h.b16 %v7368
      %v8039 = vunpack.c.l.b16 %v7369
      %v8040 = vunpack.c.h.b16 %v7369
      %v8041 = vunpack.c.l.b16 %v7370
      %v8042 = vunpack.c.h.b16 %v7370
      %v8043 = vunpack.c.l.b16 %v7371
      %v8044 = vunpack.c.l.b16 %v7372
      %v8045 = vunpack.c.h.b16 %v7372
      %v8046 = vunpack.c.l.b16 %v7373
      %v8047 = vunpack.c.h.b16 %v7373
      %v8048 = vunpack.c.l.b16 %v7374
      %v8049 = vunpack.c.h.b16 %v7374
      %v8050 = vunpack.c.l.b16 %v7375
      %v8051 = vunpack.c.l.b16 %v7376
      %v8052 = vunpack.c.h.b16 %v7376
      %v8053 = vunpack.c.l.b16 %v7377
      %v8054 = vunpack.c.h.b16 %v7377
      %v8055 = vunpack.c.l.b16 %v7378
      %v8056 = vunpack.c.h.b16 %v7378
      %v8057 = vunpack.c.l.b16 %v7379
      %v8058 = vunpack.c.l.b16 %v7380
      %v8059 = vunpack.c.h.b16 %v7380
      %v8060 = vunpack.c.l.b16 %v7381
      %v8061 = vunpack.c.h.b16 %v7381
      %v8062 = vunpack.c.l.b16 %v7382
      %v8063 = vunpack.c.h.b16 %v7382
      %v8064 = vunpack.c.l.b16 %v7383
      %v8065 = vunpack.c.l.b16 %v7384
      %v8066 = vunpack.c.h.b16 %v7384
      %v8067 = vunpack.c.l.b16 %v7385
      %v8068 = vunpack.c.h.b16 %v7385
      %v8069 = vunpack.c.l.b16 %v7386
      %v8070 = vunpack.c.h.b16 %v7386
      %v8071 = vunpack.c.l.b16 %v7387
      %v8072 = vunpack.c.l.b16 %v7388
      %v8073 = vunpack.c.h.b16 %v7388
      %v8074 = vunpack.c.l.b16 %v7389
      %v8075 = vunpack.c.h.b16 %v7389
      %v8076 = vunpack.c.l.b16 %v7390
      %v8077 = vunpack.c.h.b16 %v7390
      %v8078 = vunpack.c.l.b16 %v7391
      %v8079 = vunpack.c.l.b16 %v7392
      %v8080 = vunpack.c.h.b16 %v7392
      %v8081 = vunpack.c.l.b16 %v7393
      %v8082 = vunpack.c.h.b16 %v7393
      %v8083 = vunpack.c.l.b16 %v7394
      %v8084 = vunpack.c.h.b16 %v7394
      %v8085 = vunpack.c.l.b16 %v7395
      %v8086 = vunpack.c.l.b16 %v7396
      %v8087 = vunpack.c.h.b16 %v7396
      %v8088 = vunpack.c.l.b16 %v7397
      %v8089 = vunpack.c.h.b16 %v7397
      %v8090 = vunpack.c.l.b16 %v7398
      %v8091 = vunpack.c.h.b16 %v7398
      %v8092 = vunpack.c.l.b16 %v7399
      %v8093 = vunpack.c.l.b16 %v7400
      %v8094 = vunpack.c.h.b16 %v7400
      %v8095 = vunpack.c.l.b16 %v7401
      %v8096 = vunpack.c.h.b16 %v7401
      %v8097 = vunpack.c.l.b16 %v7402
      %v8098 = vunpack.c.h.b16 %v7402
      %v8099 = vunpack.c.l.b16 %v7403
      %v8100 = vunpack.c.l.b16 %v7404
      %v8101 = vunpack.c.h.b16 %v7404
      %v8102 = vunpack.c.l.b16 %v7405
      %v8103 = vunpack.c.h.b16 %v7405
      %v8104 = vunpack.c.l.b16 %v7406
      %v8105 = vunpack.c.h.b16 %v7406
      %v8106 = vunpack.c.l.b16 %v7407
      %v8107 = vunpack.c.l.b16 %v7408
      %v8108 = vunpack.c.h.b16 %v7408
      %v8109 = vunpack.c.l.b16 %v7409
      %v8110 = vunpack.c.h.b16 %v7409
      %v8111 = vunpack.c.l.b16 %v7410
      %v8112 = vunpack.c.h.b16 %v7410
      %v8113 = vunpack.c.l.b16 %v7411
      %v8114 = vunpack.c.l.b16 %v7412
      %v8115 = vunpack.c.h.b16 %v7412
      %v8116 = vunpack.c.l.b16 %v7413
      %v8117 = vunpack.c.h.b16 %v7413
      %v8118 = vunpack.c.l.b16 %v7414
      %v8119 = vunpack.c.h.b16 %v7414
      %v8120 = vunpack.c.l.b16 %v7415
      %v8121 = vunpack.c.l.b16 %v7416
      %v8122 = vunpack.c.h.b16 %v7416
      %v8123 = vunpack.c.l.b16 %v7417
      %v8124 = vunpack.c.h.b16 %v7417
      %v8125 = vunpack.c.l.b16 %v7418
      %v8126 = vunpack.c.h.b16 %v7418
      %v8127 = vunpack.c.l.b16 %v7419
      %v8128 = vunpack.c.l.b16 %v7420
      %v8129 = vunpack.c.h.b16 %v7420
      %v8130 = vunpack.c.l.b16 %v7421
      %v8131 = vunpack.c.h.b16 %v7421
      %v8132 = vunpack.c.l.b16 %v7422
      %v8133 = vunpack.c.h.b16 %v7422
      %v8134 = vunpack.c.l.b16 %v7423
      %v8135 = vunpack.c.l.b16 %v7424
      %v8136 = vunpack.c.h.b16 %v7424
      %v8137 = vunpack.c.l.b16 %v7425
      %v8138 = vunpack.c.h.b16 %v7425
      %v8139 = vunpack.c.l.b16 %v7426
      %v8140 = vunpack.c.h.b16 %v7426
      %v8141 = vunpack.c.l.b16 %v7427
      %v8142 = vunpack.c.l.b16 %v7428
      %v8143 = vunpack.c.h.b16 %v7428
      %v8144 = vunpack.c.l.b16 %v7429
      %v8145 = vunpack.c.h.b16 %v7429
      %v8146 = vunpack.c.l.b16 %v7430
      %v8147 = vunpack.c.h.b16 %v7430
      %v8148 = vunpack.c.l.b16 %v7431
      %v8149 = vunpack.c.l.b16 %v7432
      %v8150 = vunpack.c.h.b16 %v7432
      %v8151 = vunpack.c.l.b16 %v7433
      %v8152 = vunpack.c.h.b16 %v7433
      %v8153 = vunpack.c.l.b16 %v7434
      %v8154 = vunpack.c.h.b16 %v7434
      %v8155 = vunpack.c.l.b16 %v7435
      %v8156 = vunpack.c.l.b16 %v7436
      %v8157 = vunpack.c.h.b16 %v7436
      %v8158 = vunpack.c.l.b16 %v7437
      %v8159 = vunpack.c.h.b16 %v7437
      %v8160 = vunpack.c.l.b16 %v7438
      %v8161 = vunpack.c.h.b16 %v7438
      %v8162 = vunpack.c.l.b16 %v7439
      %v8163 = vunpack.c.l.b16 %v7440
      %v8164 = vunpack.c.h.b16 %v7440
      %v8165 = vunpack.c.l.b16 %v7441
      %v8166 = vunpack.c.h.b16 %v7441
      %v8167 = vunpack.c.l.b16 %v7442
      %v8168 = vunpack.c.h.b16 %v7442
      %v8169 = vunpack.c.l.b16 %v7443
      %v8170 = vunpack.c.l.b16 %v7444
      %v8171 = vunpack.c.h.b16 %v7444
      %v8172 = vunpack.c.l.b16 %v7445
      %v8173 = vunpack.c.h.b16 %v7445
      %v8174 = vunpack.c.l.b16 %v7446
      %v8175 = vunpack.c.h.b16 %v7446
      %v8176 = vunpack.c.l.b16 %v7447
      %v8177 = vunpack.c.l.b16 %v7448
      %v8178 = vunpack.c.h.b16 %v7448
      %v8179 = vunpack.c.l.b16 %v7449
      %v8180 = vunpack.c.h.b16 %v7449
      %v8181 = vunpack.c.l.b16 %v7450
      %v8182 = vunpack.c.h.b16 %v7450
      %v8183 = vunpack.c.l.b16 %v7451
      %v8184 = vunpack.c.l.b16 %v7452
      %v8185 = vunpack.c.h.b16 %v7452
      %v8186 = vunpack.c.l.b16 %v7453
      %v8187 = vunpack.c.h.b16 %v7453
      %v8188 = vunpack.c.l.b16 %v7454
      %v8189 = vunpack.c.h.b16 %v7454
      %v8190 = vunpack.c.l.b16 %v7455
      %v8191 = vunpack.c.l.b16 %v7456
      %v8192 = vunpack.c.h.b16 %v7456
      %v8193 = vunpack.c.l.b16 %v7457
      %v8194 = vunpack.c.h.b16 %v7457
      %v8195 = vunpack.c.l.b16 %v7458
      %v8196 = vunpack.c.h.b16 %v7458
      %v8197 = vunpack.c.l.b16 %v7459
      %v8198 = vunpack.c.l.b16 %v7460
      %v8199 = vunpack.c.h.b16 %v7460
      %v8200 = vunpack.c.l.b16 %v7461
      %v8201 = vunpack.c.h.b16 %v7461
      %v8202 = vunpack.c.l.b16 %v7462
      %v8203 = vunpack.c.h.b16 %v7462
      %v8204 = vunpack.c.l.b16 %v7463
      %v8205 = vpack.c.b16 %v7764, %v7757
      %v8206 = vpack.c.b16 %v7765, %v7758
      %v8207 = vpack.c.b16 %v7766, %v7759
      %v8208 = vpack.c.b16 %v7767, %v7760
      %v8209 = vpack.c.b16 %v7768, %v7761
      %v8210 = vpack.c.b16 %v7769, %v7762
      %v8211 = vpack.c.b16 %v7770, %v7763
      %v8212 = vpack.c.b16 %v7778, %v7771
      %v8213 = vpack.c.b16 %v7779, %v7772
      %v8214 = vpack.c.b16 %v7780, %v7773
      %v8215 = vpack.c.b16 %v7781, %v7774
      %v8216 = vpack.c.b16 %v7782, %v7775
      %v8217 = vpack.c.b16 %v7783, %v7776
      %v8218 = vpack.c.b16 %v7784, %v7777
      %v8219 = vpack.c.b16 %v7792, %v7785
      %v8220 = vpack.c.b16 %v7793, %v7786
      %v8221 = vpack.c.b16 %v7794, %v7787
      %v8222 = vpack.c.b16 %v7795, %v7788
      %v8223 = vpack.c.b16 %v7796, %v7789
      %v8224 = vpack.c.b16 %v7797, %v7790
      %v8225 = vpack.c.b16 %v7798, %v7791
      %v8226 = vpack.c.b16 %v7806, %v7799
      %v8227 = vpack.c.b16 %v7807, %v7800
      %v8228 = vpack.c.b16 %v7808, %v7801
      %v8229 = vpack.c.b16 %v7809, %v7802
      %v8230 = vpack.c.b16 %v7810, %v7803
      %v8231 = vpack.c.b16 %v7811, %v7804
      %v8232 = vpack.c.b16 %v7812, %v7805
      %v8233 = vpack.c.b16 %v7820, %v7813
      %v8234 = vpack.c.b16 %v7821, %v7814
      %v8235 = vpack.c.b16 %v7822, %v7815
      %v8236 = vpack.c.b16 %v7823, %v7816
      %v8237 = vpack.c.b16 %v7824, %v7817
      %v8238 = vpack.c.b16 %v7825, %v7818
      %v8239 = vpack.c.b16 %v7826, %v7819
      %v8240 = vpack.c.b16 %v7834, %v7827
      %v8241 = vpack.c.b16 %v7835, %v7828
      %v8242 = vpack.c.b16 %v7836, %v7829
      %v8243 = vpack.c.b16 %v7837, %v7830
      %v8244 = vpack.c.b16 %v7838, %v7831
      %v8245 = vpack.c.b16 %v7839, %v7832
      %v8246 = vpack.c.b16 %v7840, %v7833
      %v8247 = vpack.c.b16 %v7848, %v7841
      %v8248 = vpack.c.b16 %v7849, %v7842
      %v8249 = vpack.c.b16 %v7850, %v7843
      %v8250 = vpack.c.b16 %v7851, %v7844
      %v8251 = vpack.c.b16 %v7852, %v7845
      %v8252 = vpack.c.b16 %v7853, %v7846
      %v8253 = vpack.c.b16 %v7854, %v7847
      %v8254 = vpack.c.b16 %v7862, %v7855
      %v8255 = vpack.c.b16 %v7863, %v7856
      %v8256 = vpack.c.b16 %v7864, %v7857
      %v8257 = vpack.c.b16 %v7865, %v7858
      %v8258 = vpack.c.b16 %v7866, %v7859
      %v8259 = vpack.c.b16 %v7867, %v7860
      %v8260 = vpack.c.b16 %v7868, %v7861
      %v8261 = vpack.c.b16 %v7876, %v7869
      %v8262 = vpack.c.b16 %v7877, %v7870
      %v8263 = vpack.c.b16 %v7878, %v7871
      %v8264 = vpack.c.b16 %v7879, %v7872
      %v8265 = vpack.c.b16 %v7880, %v7873
      %v8266 = vpack.c.b16 %v7881, %v7874
      %v8267 = vpack.c.b16 %v7882, %v7875
      %v8268 = vpack.c.b16 %v7890, %v7883
      %v8269 = vpack.c.b16 %v7891, %v7884
      %v8270 = vpack.c.b16 %v7892, %v7885
      %v8271 = vpack.c.b16 %v7893, %v7886
      %v8272 = vpack.c.b16 %v7894, %v7887
      %v8273 = vpack.c.b16 %v7895, %v7888
      %v8274 = vpack.c.b16 %v7896, %v7889
      %v8275 = vpack.c.b16 %v7904, %v7897
      %v8276 = vpack.c.b16 %v7905, %v7898
      %v8277 = vpack.c.b16 %v7906, %v7899
      %v8278 = vpack.c.b16 %v7907, %v7900
      %v8279 = vpack.c.b16 %v7908, %v7901
      %v8280 = vpack.c.b16 %v7909, %v7902
      %v8281 = vpack.c.b16 %v7910, %v7903
      %v8282 = vpack.c.b16 %v7918, %v7911
      %v8283 = vpack.c.b16 %v7919, %v7912
      %v8284 = vpack.c.b16 %v7920, %v7913
      %v8285 = vpack.c.b16 %v7921, %v7914
      %v8286 = vpack.c.b16 %v7922, %v7915
      %v8287 = vpack.c.b16 %v7923, %v7916
      %v8288 = vpack.c.b16 %v7924, %v7917
      %v8289 = vpack.c.b16 %v7932, %v7925
      %v8290 = vpack.c.b16 %v7933, %v7926
      %v8291 = vpack.c.b16 %v7934, %v7927
      %v8292 = vpack.c.b16 %v7935, %v7928
      %v8293 = vpack.c.b16 %v7936, %v7929
      %v8294 = vpack.c.b16 %v7937, %v7930
      %v8295 = vpack.c.b16 %v7938, %v7931
      %v8296 = vpack.c.b16 %v7946, %v7939
      %v8297 = vpack.c.b16 %v7947, %v7940
      %v8298 = vpack.c.b16 %v7948, %v7941
      %v8299 = vpack.c.b16 %v7949, %v7942
      %v8300 = vpack.c.b16 %v7950, %v7943
      %v8301 = vpack.c.b16 %v7951, %v7944
      %v8302 = vpack.c.b16 %v7952, %v7945
      %v8303 = vpack.c.b16 %v7960, %v7953
      %v8304 = vpack.c.b16 %v7961, %v7954
      %v8305 = vpack.c.b16 %v7962, %v7955
      %v8306 = vpack.c.b16 %v7963, %v7956
      %v8307 = vpack.c.b16 %v7964, %v7957
      %v8308 = vpack.c.b16 %v7965, %v7958
      %v8309 = vpack.c.b16 %v7966, %v7959
      %v8310 = vpack.c.b16 %v7974, %v7967
      %v8311 = vpack.c.b16 %v7975, %v7968
      %v8312 = vpack.c.b16 %v7976, %v7969
      %v8313 = vpack.c.b16 %v7977, %v7970
      %v8314 = vpack.c.b16 %v7978, %v7971
      %v8315 = vpack.c.b16 %v7979, %v7972
      %v8316 = vpack.c.b16 %v7980, %v7973
      %v8317 = vpack.c.b16 %v7988, %v7981
      %v8318 = vpack.c.b16 %v7989, %v7982
      %v8319 = vpack.c.b16 %v7990, %v7983
      %v8320 = vpack.c.b16 %v7991, %v7984
      %v8321 = vpack.c.b16 %v7992, %v7985
      %v8322 = vpack.c.b16 %v7993, %v7986
      %v8323 = vpack.c.b16 %v7994, %v7987
      %v8324 = vpack.c.b16 %v8002, %v7995
      %v8325 = vpack.c.b16 %v8003, %v7996
      %v8326 = vpack.c.b16 %v8004, %v7997
      %v8327 = vpack.c.b16 %v8005, %v7998
      %v8328 = vpack.c.b16 %v8006, %v7999
      %v8329 = vpack.c.b16 %v8007, %v8000
      %v8330 = vpack.c.b16 %v8008, %v8001
      %v8331 = vpack.c.b16 %v8016, %v8009
      %v8332 = vpack.c.b16 %v8017, %v8010
      %v8333 = vpack.c.b16 %v8018, %v8011
      %v8334 = vpack.c.b16 %v8019, %v8012
      %v8335 = vpack.c.b16 %v8020, %v8013
      %v8336 = vpack.c.b16 %v8021, %v8014
      %v8337 = vpack.c.b16 %v8022, %v8015
      %v8338 = vpack.c.b16 %v8030, %v8023
      %v8339 = vpack.c.b16 %v8031, %v8024
      %v8340 = vpack.c.b16 %v8032, %v8025
      %v8341 = vpack.c.b16 %v8033, %v8026
      %v8342 = vpack.c.b16 %v8034, %v8027
      %v8343 = vpack.c.b16 %v8035, %v8028
      %v8344 = vpack.c.b16 %v8036, %v8029
      %v8345 = vpack.c.b16 %v8044, %v8037
      %v8346 = vpack.c.b16 %v8045, %v8038
      %v8347 = vpack.c.b16 %v8046, %v8039
      %v8348 = vpack.c.b16 %v8047, %v8040
      %v8349 = vpack.c.b16 %v8048, %v8041
      %v8350 = vpack.c.b16 %v8049, %v8042
      %v8351 = vpack.c.b16 %v8050, %v8043
      %v8352 = vpack.c.b16 %v8058, %v8051
      %v8353 = vpack.c.b16 %v8059, %v8052
      %v8354 = vpack.c.b16 %v8060, %v8053
      %v8355 = vpack.c.b16 %v8061, %v8054
      %v8356 = vpack.c.b16 %v8062, %v8055
      %v8357 = vpack.c.b16 %v8063, %v8056
      %v8358 = vpack.c.b16 %v8064, %v8057
      %v8359 = vpack.c.b16 %v8072, %v8065
      %v8360 = vpack.c.b16 %v8073, %v8066
      %v8361 = vpack.c.b16 %v8074, %v8067
      %v8362 = vpack.c.b16 %v8075, %v8068
      %v8363 = vpack.c.b16 %v8076, %v8069
      %v8364 = vpack.c.b16 %v8077, %v8070
      %v8365 = vpack.c.b16 %v8078, %v8071
      %v8366 = vpack.c.b16 %v8086, %v8079
      %v8367 = vpack.c.b16 %v8087, %v8080
      %v8368 = vpack.c.b16 %v8088, %v8081
      %v8369 = vpack.c.b16 %v8089, %v8082
      %v8370 = vpack.c.b16 %v8090, %v8083
      %v8371 = vpack.c.b16 %v8091, %v8084
      %v8372 = vpack.c.b16 %v8092, %v8085
      %v8373 = vpack.c.b16 %v8100, %v8093
      %v8374 = vpack.c.b16 %v8101, %v8094
      %v8375 = vpack.c.b16 %v8102, %v8095
      %v8376 = vpack.c.b16 %v8103, %v8096
      %v8377 = vpack.c.b16 %v8104, %v8097
      %v8378 = vpack.c.b16 %v8105, %v8098
      %v8379 = vpack.c.b16 %v8106, %v8099
      %v8380 = vpack.c.b16 %v8114, %v8107
      %v8381 = vpack.c.b16 %v8115, %v8108
      %v8382 = vpack.c.b16 %v8116, %v8109
      %v8383 = vpack.c.b16 %v8117, %v8110
      %v8384 = vpack.c.b16 %v8118, %v8111
      %v8385 = vpack.c.b16 %v8119, %v8112
      %v8386 = vpack.c.b16 %v8120, %v8113
      %v8387 = vpack.c.b16 %v8128, %v8121
      %v8388 = vpack.c.b16 %v8129, %v8122
      %v8389 = vpack.c.b16 %v8130, %v8123
      %v8390 = vpack.c.b16 %v8131, %v8124
      %v8391 = vpack.c.b16 %v8132, %v8125
      %v8392 = vpack.c.b16 %v8133, %v8126
      %v8393 = vpack.c.b16 %v8134, %v8127
      %v8394 = vpack.c.b16 %v8142, %v8135
      %v8395 = vpack.c.b16 %v8143, %v8136
      %v8396 = vpack.c.b16 %v8144, %v8137
      %v8397 = vpack.c.b16 %v8145, %v8138
      %v8398 = vpack.c.b16 %v8146, %v8139
      %v8399 = vpack.c.b16 %v8147, %v8140
      %v8400 = vpack.c.b16 %v8148, %v8141
      %v8401 = vpack.c.b16 %v8156, %v8149
      %v8402 = vpack.c.b16 %v8157, %v8150
      %v8403 = vpack.c.b16 %v8158, %v8151
      %v8404 = vpack.c.b16 %v8159, %v8152
      %v8405 = vpack.c.b16 %v8160, %v8153
      %v8406 = vpack.c.b16 %v8161, %v8154
      %v8407 = vpack.c.b16 %v8162, %v8155
      %v8408 = vpack.c.b16 %v8170, %v8163
      %v8409 = vpack.c.b16 %v8171, %v8164
      %v8410 = vpack.c.b16 %v8172, %v8165
      %v8411 = vpack.c.b16 %v8173, %v8166
      %v8412 = vpack.c.b16 %v8174, %v8167
      %v8413 = vpack.c.b16 %v8175, %v8168
      %v8414 = vpack.c.b16 %v8176, %v8169
      %v8415 = vpack.c.b16 %v8184, %v8177
      %v8416 = vpack.c.b16 %v8185, %v8178
      %v8417 = vpack.c.b16 %v8186, %v8179
      %v8418 = vpack.c.b16 %v8187, %v8180
      %v8419 = vpack.c.b16 %v8188, %v8181
      %v8420 = vpack.c.b16 %v8189, %v8182
      %v8421 = vpack.c.b16 %v8190, %v8183
      %v8422 = vpack.c.b16 %v8198, %v8191
      %v8423 = vpack.c.b16 %v8199, %v8192
      %v8424 = vpack.c.b16 %v8200, %v8193
      %v8425 = vpack.c.b16 %v8201, %v8194
      %v8426 = vpack.c.b16 %v8202, %v8195
      %v8427 = vpack.c.b16 %v8203, %v8196
      %v8428 = vpack.c.b16 %v8204, %v8197
      %8653 = vmatprep.subr.bf16.mxu0 %v8206
      %8654 = vmatpush1.bf16.msra.mxu0 %v8205
      %8655 = vmatprep.subr.bf16.mxu0 %v8213
      %8656 = vmatpush1.bf16.msra.mxu0 %v8212
      %8657 = vmatprep.subr.bf16.mxu0 %v8220
      %8658 = vmatpush1.bf16.msra.mxu0 %v8219
      %8659 = vmatprep.subr.bf16.mxu0 %v8227
      %8660 = vmatpush1.bf16.msra.mxu0 %v8226
      %8661 = vmatprep.subr.bf16.mxu0 %v8234
      %8662 = vmatpush1.bf16.msra.mxu0 %v8233
      %8663 = vmatprep.subr.bf16.mxu0 %v8241
      %8664 = vmatpush1.bf16.msra.mxu0 %v8240
      %8665 = vmatprep.subr.bf16.mxu0 %v8248
      %8666 = vmatpush1.bf16.msra.mxu0 %v8247
      %8667 = vmatprep.subr.bf16.mxu0 %v8255
      %8668 = vmatpush1.bf16.msra.mxu0 %v8254
      %8669 = vmatprep.subr.bf16.mxu0 %v8262
      %8670 = vmatpush1.bf16.msra.mxu0 %v8261
      %8671 = vmatprep.subr.bf16.mxu0 %v8269
      %8672 = vmatpush1.bf16.msra.mxu0 %v8268
      %8673 = vmatprep.subr.bf16.mxu0 %v8276
      %8674 = vmatpush1.bf16.msra.mxu0 %v8275
      %8675 = vmatprep.subr.bf16.mxu0 %v8283
      %8676 = vmatpush1.bf16.msra.mxu0 %v8282
      %8677 = vmatprep.subr.bf16.mxu0 %v8290
      %8678 = vmatpush1.bf16.msra.mxu0 %v8289
      %8679 = vmatprep.subr.bf16.mxu0 %v8297
      %8680 = vmatpush1.bf16.msra.mxu0 %v8296
      %8681 = vmatprep.subr.bf16.mxu0 %v8304
      %8682 = vmatpush1.bf16.msra.mxu0 %v8303
      %8683 = vmatprep.subr.bf16.mxu0 %v8311
      %8684 = vmatpush1.bf16.msra.mxu0 %v8310
      %8685 = vmatprep.mubr.bf16.mxu0 %v7145
      %8686 = vmatmul.mubr.bf16.gmra.mrb[0].mxu0 %v7144
      %v8687 = vpop.f32.mrb[0].mxu0
      %v8688 = vadd.f32 %v7469, %v8687
      %v8689 = vpop.f32.mrb[0].mxu0
      %v8690 = vadd.f32 %v7473, %v8689
      %v8691 = vpop.f32.mrb[0].mxu0
      %v8692 = vadd.f32 %v7469, %v8691
      %v8693 = vpop.f32.mrb[0].mxu0
      %v8694 = vadd.f32 %v7473, %v8693
      %8695 = vmatprep.mubr.bf16.mxu0 %v7149
      %8696 = vmatmul.mubr.bf16.gmra.mrb[0].mxu0 %v7148
      %v8697 = vpop.f32.mrb[0].mxu0
      %v8698 = vadd.f32 %v7469, %v8697
      %v8699 = vpop.f32.mrb[0].mxu0
      %v8700 = vadd.f32 %v7473, %v8699
      %v8701 = vpop.f32.mrb[0].mxu0
      %v8702 = vadd.f32 %v7469, %v8701
      %v8703 = vpop.f32.mrb[0].mxu0
      %v8704 = vadd.f32 %v7473, %v8703
      %8705 = vmatprep.mubr.bf16.mxu0 %v7153
      %8706 = vmatmul.mubr.bf16.gmra.mrb[0].mxu0 %v7152
      %v8707 = vpop.f32.mrb[0].mxu0
      %v8708 = vadd.f32 %v7469, %v8707
      %v8709 = vpop.f32.mrb[0].mxu0
      %v8710 = vadd.f32 %v7473, %v8709
      %v8711 = vpop.f32.mrb[0].mxu0
      %v8712 = vadd.f32 %v7469, %v8711
      %v8713 = vpop.f32.mrb[0].mxu0
      %v8714 = vadd.f32 %v7473, %v8713
      %8715 = vmatprep.mubr.bf16.mxu0 %v7157
      %8716 = vmatmul.mubr.bf16.gmra.mrb[0].mxu0 %v7156
      %v8717 = vpop.f32.mrb[0].mxu0
      %v8718 = vadd.f32 %v7469, %v8717
      %v8719 = vpop.f32.mrb[0].mxu0
      %v8720 = vadd.f32 %v7473, %v8719
      %v8721 = vpop.f32.mrb[0].mxu0
      %v8722 = vadd.f32 %v7469, %v8721
      %v8723 = vpop.f32.mrb[0].mxu0
      %v8724 = vadd.f32 %v7473, %v8723
      %8725 = vmatprep.mubr.bf16.mxu0 %v7161
      %8726 = vmatmul.mubr.bf16.gmra.mrb[0].mxu0 %v7160
      %v8727 = vpop.f32.mrb[0].mxu0
      %v8728 = vadd.f32 %v7469, %v8727
      %v8729 = vpop.f32.mrb[0].mxu0
      %v8730 = vadd.f32 %v7473, %v8729
      %v8731 = vpop.f32.mrb[0].mxu0
      %v8732 = vadd.f32 %v7469, %v8731
      %v8733 = vpop.f32.mrb[0].mxu0
      %v8734 = vadd.f32 %v7473, %v8733
      %8735 = vmatprep.mubr.bf16.mxu0 %v7165
      %8736 = vmatmul.mubr.bf16.gmra.mrb[0].mxu0 %v7164
      %v8737 = vpop.f32.mrb[0].mxu0
      %v8738 = vadd.f32 %v7469, %v8737
      %v8739 = vpop.f32.mrb[0].mxu0
      %v8740 = vadd.f32 %v7473, %v8739
      %v8741 = vpop.f32.mrb[0].mxu0
      %v8742 = vadd.f32 %v7469, %v8741
      %v8743 = vpop.f32.mrb[0].mxu0
      %v8744 = vadd.f32 %v7473, %v8743
      %8745 = vmatprep.mubr.bf16.mxu0 %v7169
      %8746 = vmatmul.mubr.bf16.gmra.mrb[0].mxu0 %v7168
      %v8747 = vpop.f32.mrb[0].mxu0
      %v8748 = vadd.f32 %v7469, %v8747
      %v8749 = vpop.f32.mrb[0].mxu0
      %v8750 = vadd.f32 %v7473, %v8749
      %v8751 = vpop.f32.mrb[0].mxu0
      %v8752 = vadd.f32 %v7469, %v8751
      %v8753 = vpop.f32.mrb[0].mxu0
      %v8754 = vadd.f32 %v7473, %v8753
      %8755 = vmatprep.mubr.bf16.mxu0 %v7173
      %8756 = vmatmul.mubr.bf16.gmra.mrb[0].mxu0 %v7172
      %v8757 = vpop.f32.mrb[0].mxu0
      %v8758 = vadd.f32 %v7469, %v8757
      %v8759 = vpop.f32.mrb[0].mxu0
      %v8760 = vadd.f32 %v7473, %v8759
      %v8761 = vpop.f32.mrb[0].mxu0
      %v8762 = vadd.f32 %v7469, %v8761
      %v8763 = vpop.f32.mrb[0].mxu0
      %v8764 = vadd.f32 %v7473, %v8763
      %8765 = vmatprep.mubr.bf16.mxu0 %v7177
      %8766 = vmatmul.mubr.bf16.gmra.mrb[0].mxu0 %v7176
      %v8767 = vpop.f32.mrb[0].mxu0
      %v8768 = vadd.f32 %v7469, %v8767
      %v8769 = vpop.f32.mrb[0].mxu0
      %v8770 = vadd.f32 %v7473, %v8769
      %v8771 = vpop.f32.mrb[0].mxu0
      %v8772 = vadd.f32 %v7469, %v8771
      %v8773 = vpop.f32.mrb[0].mxu0
      %v8774 = vadd.f32 %v7473, %v8773
      %8775 = vmatprep.mubr.bf16.mxu0 %v7181
      %8776 = vmatmul.mubr.bf16.gmra.mrb[0].mxu0 %v7180
      %v8777 = vpop.f32.mrb[0].mxu0
      %v8778 = vadd.f32 %v7469, %v8777
      %v8779 = vpop.f32.mrb[0].mxu0
      %v8780 = vadd.f32 %v7473, %v8779
      %v8781 = vpop.f32.mrb[0].mxu0
      %v8782 = vadd.f32 %v7469, %v8781
      %v8783 = vpop.f32.mrb[0].mxu0
      %v8784 = vadd.f32 %v7473, %v8783
      %8785 = vmatprep.mubr.bf16.mxu0 %v7185
      %8786 = vmatmul.mubr.bf16.gmra.mrb[0].mxu0 %v7184
      %v8787 = vpop.f32.mrb[0].mxu0
      %v8788 = vadd.f32 %v7469, %v8787
      %v8789 = vpop.f32.mrb[0].mxu0
      %v8790 = vadd.f32 %v7473, %v8789
      %v8791 = vpop.f32.mrb[0].mxu0
      %v8792 = vadd.f32 %v7469, %v8791
      %v8793 = vpop.f32.mrb[0].mxu0
      %v8794 = vadd.f32 %v7473, %v8793
      %8795 = vmatprep.mubr.bf16.mxu0 %v7189
      %8796 = vmatmul.mubr.bf16.gmra.mrb[0].mxu0 %v7188
      %v8797 = vpop.f32.mrb[0].mxu0
      %v8798 = vadd.f32 %v7469, %v8797
      %v8799 = vpop.f32.mrb[0].mxu0
      %v8800 = vadd.f32 %v7473, %v8799
      %v8801 = vpop.f32.mrb[0].mxu0
      %v8802 = vadd.f32 %v7469, %v8801
      %v8803 = vpop.f32.mrb[0].mxu0
      %v8804 = vadd.f32 %v7473, %v8803
      %8805 = vmatprep.mubr.bf16.mxu0 %v7193
      %8806 = vmatmul.mubr.bf16.gmra.mrb[0].mxu0 %v7192
      %v8807 = vpop.f32.mrb[0].mxu0
      %v8808 = vadd.f32 %v7469, %v8807
      %v8809 = vpop.f32.mrb[0].mxu0
      %v8810 = vadd.f32 %v7473, %v8809
      %v8811 = vpop.f32.mrb[0].mxu0
      %v8812 = vadd.f32 %v7469, %v8811
      %v8813 = vpop.f32.mrb[0].mxu0
      %v8814 = vadd.f32 %v7473, %v8813
      %8815 = vmatprep.mubr.bf16.mxu0 %v7197
      %8816 = vmatmul.mubr.bf16.gmra.mrb[0].mxu0 %v7196
      %v8817 = vpop.f32.mrb[0].mxu0
      %v8818 = vadd.f32 %v7469, %v8817
      %v8819 = vpop.f32.mrb[0].mxu0
      %v8820 = vadd.f32 %v7473, %v8819
      %v8821 = vpop.f32.mrb[0].mxu0
      %v8822 = vadd.f32 %v7469, %v8821
      %v8823 = vpop.f32.mrb[0].mxu0
      %v8824 = vadd.f32 %v7473, %v8823
      %8825 = vmatprep.mubr.bf16.mxu0 %v7201
      %8826 = vmatmul.mubr.bf16.gmra.mrb[0].mxu0 %v7200
      %v8827 = vpop.f32.mrb[0].mxu0
      %v8828 = vadd.f32 %v7469, %v8827
      %v8829 = vpop.f32.mrb[0].mxu0
      %v8830 = vadd.f32 %v7473, %v8829
      %v8831 = vpop.f32.mrb[0].mxu0
      %v8832 = vadd.f32 %v7469, %v8831
      %v8833 = vpop.f32.mrb[0].mxu0
      %v8834 = vadd.f32 %v7473, %v8833
      %8835 = vmatprep.mubr.bf16.mxu0 %v7205
      %8836 = vmatmul.mubr.bf16.gmra.mrb[0].mxu0 %v7204
      %v8837 = vpop.f32.mrb[0].mxu0
      %v8838 = vadd.f32 %v7469, %v8837
      %v8839 = vpop.f32.mrb[0].mxu0
      %v8840 = vadd.f32 %v7473, %v8839
      %v8841 = vpop.f32.mrb[0].mxu0
      %v8842 = vadd.f32 %v7469, %v8841
      %v8843 = vpop.f32.mrb[0].mxu0
      %v8844 = vadd.f32 %v7473, %v8843
      %8845 = vdwg.mxu0
      %8846 = vmatprep.subr.bf16.mxu0 %v8318
      %8847 = vmatpush1.bf16.msra.mxu0 %v8317
      %8848 = vmatprep.subr.bf16.mxu0 %v8325
      %8849 = vmatpush1.bf16.msra.mxu0 %v8324
      %8850 = vmatprep.subr.bf16.mxu0 %v8332
      %8851 = vmatpush1.bf16.msra.mxu0 %v8331
      %8852 = vmatprep.subr.bf16.mxu0 %v8339
      %8853 = vmatpush1.bf16.msra.mxu0 %v8338
      %8854 = vmatprep.subr.bf16.mxu0 %v8346
      %8855 = vmatpush1.bf16.msra.mxu0 %v8345
      %8856 = vmatprep.subr.bf16.mxu0 %v8353
      %8857 = vmatpush1.bf16.msra.mxu0 %v8352
      %8858 = vmatprep.subr.bf16.mxu0 %v8360
      %8859 = vmatpush1.bf16.msra.mxu0 %v8359
      %8860 = vmatprep.subr.bf16.mxu0 %v8367
      %8861 = vmatpush1.bf16.msra.mxu0 %v8366
      %8862 = vmatprep.subr.bf16.mxu0 %v8374
      %8863 = vmatpush1.bf16.msra.mxu0 %v8373
      %8864 = vmatprep.subr.bf16.mxu0 %v8381
      %8865 = vmatpush1.bf16.msra.mxu0 %v8380
      %8866 = vmatprep.subr.bf16.mxu0 %v8388
      %8867 = vmatpush1.bf16.msra.mxu0 %v8387
      %8868 = vmatprep.subr.bf16.mxu0 %v8395
      %8869 = vmatpush1.bf16.msra.mxu0 %v8394
      %8870 = vmatprep.subr.bf16.mxu0 %v8402
      %8871 = vmatpush1.bf16.msra.mxu0 %v8401
      %8872 = vmatprep.subr.bf16.mxu0 %v8409
      %8873 = vmatpush1.bf16.msra.mxu0 %v8408
      %8874 = vmatprep.subr.bf16.mxu0 %v8416
      %8875 = vmatpush1.bf16.msra.mxu0 %v8415
      %8876 = vmatprep.subr.bf16.mxu0 %v8423
      %8877 = vmatpush1.bf16.msra.mxu0 %v8422
      %8878 = vmatprep.mubr.bf16.mxu0 %v7147
      %8879 = vmatmul.mubr.bf16.gmra.mrb[0].mxu0 %v7146
      %v8880 = vpop.f32.mrb[0].mxu0
      %v8881 = vadd.f32 %v8688, %v8880
      %v8882 = vpop.f32.mrb[0].mxu0
      %v8883 = vadd.f32 %v8690, %v8882
      %v8884 = vpop.f32.mrb[0].mxu0
      %v8885 = vadd.f32 %v8692, %v8884
      %v8886 = vpop.f32.mrb[0].mxu0
      %v8887 = vadd.f32 %v8694, %v8886
      %8888 = vmatprep.mubr.bf16.mxu0 %v7151
      %8889 = vmatmul.mubr.bf16.gmra.mrb[0].mxu0 %v7150
      %v8890 = vpop.f32.mrb[0].mxu0
      %v8891 = vadd.f32 %v8698, %v8890
      %v8892 = vpop.f32.mrb[0].mxu0
      %v8893 = vadd.f32 %v8700, %v8892
      %v8894 = vpop.f32.mrb[0].mxu0
      %v8895 = vadd.f32 %v8702, %v8894
      %v8896 = vpop.f32.mrb[0].mxu0
      %v8897 = vadd.f32 %v8704, %v8896
      %8898 = vmatprep.mubr.bf16.mxu0 %v7155
      %8899 = vmatmul.mubr.bf16.gmra.mrb[0].mxu0 %v7154
      %v8900 = vpop.f32.mrb[0].mxu0
      %v8901 = vadd.f32 %v8708, %v8900
      %v8902 = vpop.f32.mrb[0].mxu0
      %v8903 = vadd.f32 %v8710, %v8902
      %v8904 = vpop.f32.mrb[0].mxu0
      %v8905 = vadd.f32 %v8712, %v8904
      %v8906 = vpop.f32.mrb[0].mxu0
      %v8907 = vadd.f32 %v8714, %v8906
      %8908 = vmatprep.mubr.bf16.mxu0 %v7159
      %8909 = vmatmul.mubr.bf16.gmra.mrb[0].mxu0 %v7158
      %v8910 = vpop.f32.mrb[0].mxu0
      %v8911 = vadd.f32 %v8718, %v8910
      %v8912 = vpop.f32.mrb[0].mxu0
      %v8913 = vadd.f32 %v8720, %v8912
      %v8914 = vpop.f32.mrb[0].mxu0
      %v8915 = vadd.f32 %v8722, %v8914
      %v8916 = vpop.f32.mrb[0].mxu0
      %v8917 = vadd.f32 %v8724, %v8916
      %8918 = vmatprep.mubr.bf16.mxu0 %v7163
      %8919 = vmatmul.mubr.bf16.gmra.mrb[0].mxu0 %v7162
      %v8920 = vpop.f32.mrb[0].mxu0
      %v8921 = vadd.f32 %v8728, %v8920
      %v8922 = vpop.f32.mrb[0].mxu0
      %v8923 = vadd.f32 %v8730, %v8922
      %v8924 = vpop.f32.mrb[0].mxu0
      %v8925 = vadd.f32 %v8732, %v8924
      %v8926 = vpop.f32.mrb[0].mxu0
      %v8927 = vadd.f32 %v8734, %v8926
      %8928 = vmatprep.mubr.bf16.mxu0 %v7167
      %8929 = vmatmul.mubr.bf16.gmra.mrb[0].mxu0 %v7166
      %v8930 = vpop.f32.mrb[0].mxu0
      %v8931 = vadd.f32 %v8738, %v8930
      %v8932 = vpop.f32.mrb[0].mxu0
      %v8933 = vadd.f32 %v8740, %v8932
      %v8934 = vpop.f32.mrb[0].mxu0
      %v8935 = vadd.f32 %v8742, %v8934
      %v8936 = vpop.f32.mrb[0].mxu0
      %v8937 = vadd.f32 %v8744, %v8936
      %8938 = vmatprep.mubr.bf16.mxu0 %v7171
      %8939 = vmatmul.mubr.bf16.gmra.mrb[0].mxu0 %v7170
      %v8940 = vpop.f32.mrb[0].mxu0
      %v8941 = vadd.f32 %v8748, %v8940
      %v8942 = vpop.f32.mrb[0].mxu0
      %v8943 = vadd.f32 %v8750, %v8942
      %v8944 = vpop.f32.mrb[0].mxu0
      %v8945 = vadd.f32 %v8752, %v8944
      %v8946 = vpop.f32.mrb[0].mxu0
      %v8947 = vadd.f32 %v8754, %v8946
      %8948 = vmatprep.mubr.bf16.mxu0 %v7175
      %8949 = vmatmul.mubr.bf16.gmra.mrb[0].mxu0 %v7174
      %v8950 = vpop.f32.mrb[0].mxu0
      %v8951 = vadd.f32 %v8758, %v8950
      %v8952 = vpop.f32.mrb[0].mxu0
      %v8953 = vadd.f32 %v8760, %v8952
      %v8954 = vpop.f32.mrb[0].mxu0
      %v8955 = vadd.f32 %v8762, %v8954
      %v8956 = vpop.f32.mrb[0].mxu0
      %v8957 = vadd.f32 %v8764, %v8956
      %8958 = vmatprep.mubr.bf16.mxu0 %v7179
      %8959 = vmatmul.mubr.bf16.gmra.mrb[0].mxu0 %v7178
      %v8960 = vpop.f32.mrb[0].mxu0
      %v8961 = vadd.f32 %v8768, %v8960
      %v8962 = vpop.f32.mrb[0].mxu0
      %v8963 = vadd.f32 %v8770, %v8962
      %v8964 = vpop.f32.mrb[0].mxu0
      %v8965 = vadd.f32 %v8772, %v8964
      %v8966 = vpop.f32.mrb[0].mxu0
      %v8967 = vadd.f32 %v8774, %v8966
      %8968 = vmatprep.mubr.bf16.mxu0 %v7183
      %8969 = vmatmul.mubr.bf16.gmra.mrb[0].mxu0 %v7182
      %v8970 = vpop.f32.mrb[0].mxu0
      %v8971 = vadd.f32 %v8778, %v8970
      %v8972 = vpop.f32.mrb[0].mxu0
      %v8973 = vadd.f32 %v8780, %v8972
      %v8974 = vpop.f32.mrb[0].mxu0
      %v8975 = vadd.f32 %v8782, %v8974
      %v8976 = vpop.f32.mrb[0].mxu0
      %v8977 = vadd.f32 %v8784, %v8976
      %8978 = vmatprep.mubr.bf16.mxu0 %v7187
      %8979 = vmatmul.mubr.bf16.gmra.mrb[0].mxu0 %v7186
      %v8980 = vpop.f32.mrb[0].mxu0
      %v8981 = vadd.f32 %v8788, %v8980
      %v8982 = vpop.f32.mrb[0].mxu0
      %v8983 = vadd.f32 %v8790, %v8982
      %v8984 = vpop.f32.mrb[0].mxu0
      %v8985 = vadd.f32 %v8792, %v8984
      %v8986 = vpop.f32.mrb[0].mxu0
      %v8987 = vadd.f32 %v8794, %v8986
      %8988 = vmatprep.mubr.bf16.mxu0 %v7191
      %8989 = vmatmul.mubr.bf16.gmra.mrb[0].mxu0 %v7190
      %v8990 = vpop.f32.mrb[0].mxu0
      %v8991 = vadd.f32 %v8798, %v8990
      %v8992 = vpop.f32.mrb[0].mxu0
      %v8993 = vadd.f32 %v8800, %v8992
      %v8994 = vpop.f32.mrb[0].mxu0
      %v8995 = vadd.f32 %v8802, %v8994
      %v8996 = vpop.f32.mrb[0].mxu0
      %v8997 = vadd.f32 %v8804, %v8996
      %8998 = vmatprep.mubr.bf16.mxu0 %v7195
      %8999 = vmatmul.mubr.bf16.gmra.mrb[0].mxu0 %v7194
      %v9000 = vpop.f32.mrb[0].mxu0
      %v9001 = vadd.f32 %v8808, %v9000
      %v9002 = vpop.f32.mrb[0].mxu0
      %v9003 = vadd.f32 %v8810, %v9002
      %v9004 = vpop.f32.mrb[0].mxu0
      %v9005 = vadd.f32 %v8812, %v9004
      %v9006 = vpop.f32.mrb[0].mxu0
      %v9007 = vadd.f32 %v8814, %v9006
      %9008 = vmatprep.mubr.bf16.mxu0 %v7199
      %9009 = vmatmul.mubr.bf16.gmra.mrb[0].mxu0 %v7198
      %v9010 = vpop.f32.mrb[0].mxu0
      %v9011 = vadd.f32 %v8818, %v9010
      %v9012 = vpop.f32.mrb[0].mxu0
      %v9013 = vadd.f32 %v8820, %v9012
      %v9014 = vpop.f32.mrb[0].mxu0
      %v9015 = vadd.f32 %v8822, %v9014
      %v9016 = vpop.f32.mrb[0].mxu0
      %v9017 = vadd.f32 %v8824, %v9016
      %9018 = vmatprep.mubr.bf16.mxu0 %v7203
      %9019 = vmatmul.mubr.bf16.gmra.mrb[0].mxu0 %v7202
      %v9020 = vpop.f32.mrb[0].mxu0
      %v9021 = vadd.f32 %v8828, %v9020
      %v9022 = vpop.f32.mrb[0].mxu0
      %v9023 = vadd.f32 %v8830, %v9022
      %v9024 = vpop.f32.mrb[0].mxu0
      %v9025 = vadd.f32 %v8832, %v9024
      %v9026 = vpop.f32.mrb[0].mxu0
      %v9027 = vadd.f32 %v8834, %v9026
      %9028 = vmatprep.mubr.bf16.mxu0 %v7207
      %9029 = vmatmul.mubr.bf16.gmra.mrb[0].mxu0 %v7206
      %v9030 = vpop.f32.mrb[0].mxu0
      %v9031 = vadd.f32 %v8838, %v9030
      %v9032 = vpop.f32.mrb[0].mxu0
      %v9033 = vadd.f32 %v8840, %v9032
      %v9034 = vpop.f32.mrb[0].mxu0
      %v9035 = vadd.f32 %v8842, %v9034
      %v9036 = vpop.f32.mrb[0].mxu0
      %v9037 = vadd.f32 %v8844, %v9036
      %9038 = vdwg.mxu0
      %9039 = vmatprep.subr.bf16.mxu0 %v8208
      %9040 = vmatpush1.bf16.msra.mxu0 %v8207
      %9041 = vmatprep.subr.bf16.mxu0 %v8215
      %9042 = vmatpush1.bf16.msra.mxu0 %v8214
      %9043 = vmatprep.subr.bf16.mxu0 %v8222
      %9044 = vmatpush1.bf16.msra.mxu0 %v8221
      %9045 = vmatprep.subr.bf16.mxu0 %v8229
      %9046 = vmatpush1.bf16.msra.mxu0 %v8228
      %9047 = vmatprep.subr.bf16.mxu0 %v8236
      %9048 = vmatpush1.bf16.msra.mxu0 %v8235
      %9049 = vmatprep.subr.bf16.mxu0 %v8243
      %9050 = vmatpush1.bf16.msra.mxu0 %v8242
      %9051 = vmatprep.subr.bf16.mxu0 %v8250
      %9052 = vmatpush1.bf16.msra.mxu0 %v8249
      %9053 = vmatprep.subr.bf16.mxu0 %v8257
      %9054 = vmatpush1.bf16.msra.mxu0 %v8256
      %9055 = vmatprep.subr.bf16.mxu0 %v8264
      %9056 = vmatpush1.bf16.msra.mxu0 %v8263
      %9057 = vmatprep.subr.bf16.mxu0 %v8271
      %9058 = vmatpush1.bf16.msra.mxu0 %v8270
      %9059 = vmatprep.subr.bf16.mxu0 %v8278
      %9060 = vmatpush1.bf16.msra.mxu0 %v8277
      %9061 = vmatprep.subr.bf16.mxu0 %v8285
      %9062 = vmatpush1.bf16.msra.mxu0 %v8284
      %9063 = vmatprep.subr.bf16.mxu0 %v8292
      %9064 = vmatpush1.bf16.msra.mxu0 %v8291
      %9065 = vmatprep.subr.bf16.mxu0 %v8299
      %9066 = vmatpush1.bf16.msra.mxu0 %v8298
      %9067 = vmatprep.subr.bf16.mxu0 %v8306
      %9068 = vmatpush1.bf16.msra.mxu0 %v8305
      %9069 = vmatprep.subr.bf16.mxu0 %v8313
      %9070 = vmatpush1.bf16.msra.mxu0 %v8312
      %9071 = vmatprep.mubr.bf16.mxu0 %v7145
      %9072 = vmatmul.mubr.bf16.gmra.mrb[0].mxu0 %v7144
      %v9073 = vpop.f32.mrb[0].mxu0
      %v9074 = vadd.f32 %v7477, %v9073
      %v9075 = vpop.f32.mrb[0].mxu0
      %v9076 = vadd.f32 %v7481, %v9075
      %v9077 = vpop.f32.mrb[0].mxu0
      %v9078 = vadd.f32 %v7477, %v9077
      %v9079 = vpop.f32.mrb[0].mxu0
      %v9080 = vadd.f32 %v7481, %v9079
      %9081 = vmatprep.mubr.bf16.mxu0 %v7149
      %9082 = vmatmul.mubr.bf16.gmra.mrb[0].mxu0 %v7148
      %v9083 = vpop.f32.mrb[0].mxu0
      %v9084 = vadd.f32 %v7477, %v9083
      %v9085 = vpop.f32.mrb[0].mxu0
      %v9086 = vadd.f32 %v7481, %v9085
      %v9087 = vpop.f32.mrb[0].mxu0
      %v9088 = vadd.f32 %v7477, %v9087
      %v9089 = vpop.f32.mrb[0].mxu0
      %v9090 = vadd.f32 %v7481, %v9089
      %9091 = vmatprep.mubr.bf16.mxu0 %v7153
      %9092 = vmatmul.mubr.bf16.gmra.mrb[0].mxu0 %v7152
      %v9093 = vpop.f32.mrb[0].mxu0
      %v9094 = vadd.f32 %v7477, %v9093
      %v9095 = vpop.f32.mrb[0].mxu0
      %v9096 = vadd.f32 %v7481, %v9095
      %v9097 = vpop.f32.mrb[0].mxu0
      %v9098 = vadd.f32 %v7477, %v9097
      %v9099 = vpop.f32.mrb[0].mxu0
      %v9100 = vadd.f32 %v7481, %v9099
      %9101 = vmatprep.mubr.bf16.mxu0 %v7157
      %9102 = vmatmul.mubr.bf16.gmra.mrb[0].mxu0 %v7156
      %v9103 = vpop.f32.mrb[0].mxu0
      %v9104 = vadd.f32 %v7477, %v9103
      %v9105 = vpop.f32.mrb[0].mxu0
      %v9106 = vadd.f32 %v7481, %v9105
      %v9107 = vpop.f32.mrb[0].mxu0
      %v9108 = vadd.f32 %v7477, %v9107
      %v9109 = vpop.f32.mrb[0].mxu0
      %v9110 = vadd.f32 %v7481, %v9109
      %9111 = vmatprep.mubr.bf16.mxu0 %v7161
      %9112 = vmatmul.mubr.bf16.gmra.mrb[0].mxu0 %v7160
      %v9113 = vpop.f32.mrb[0].mxu0
      %v9114 = vadd.f32 %v7477, %v9113
      %v9115 = vpop.f32.mrb[0].mxu0
      %v9116 = vadd.f32 %v7481, %v9115
      %v9117 = vpop.f32.mrb[0].mxu0
      %v9118 = vadd.f32 %v7477, %v9117
      %v9119 = vpop.f32.mrb[0].mxu0
      %v9120 = vadd.f32 %v7481, %v9119
      %9121 = vmatprep.mubr.bf16.mxu0 %v7165
      %9122 = vmatmul.mubr.bf16.gmra.mrb[0].mxu0 %v7164
      %v9123 = vpop.f32.mrb[0].mxu0
      %v9124 = vadd.f32 %v7477, %v9123
      %v9125 = vpop.f32.mrb[0].mxu0
      %v9126 = vadd.f32 %v7481, %v9125
      %v9127 = vpop.f32.mrb[0].mxu0
      %v9128 = vadd.f32 %v7477, %v9127
      %v9129 = vpop.f32.mrb[0].mxu0
      %v9130 = vadd.f32 %v7481, %v9129
      %9131 = vmatprep.mubr.bf16.mxu0 %v7169
      %9132 = vmatmul.mubr.bf16.gmra.mrb[0].mxu0 %v7168
      %v9133 = vpop.f32.mrb[0].mxu0
      %v9134 = vadd.f32 %v7477, %v9133
      %v9135 = vpop.f32.mrb[0].mxu0
      %v9136 = vadd.f32 %v7481, %v9135
      %v9137 = vpop.f32.mrb[0].mxu0
      %v9138 = vadd.f32 %v7477, %v9137
      %v9139 = vpop.f32.mrb[0].mxu0
      %v9140 = vadd.f32 %v7481, %v9139
      %9141 = vmatprep.mubr.bf16.mxu0 %v7173
      %9142 = vmatmul.mubr.bf16.gmra.mrb[0].mxu0 %v7172
      %v9143 = vpop.f32.mrb[0].mxu0
      %v9144 = vadd.f32 %v7477, %v9143
      %v9145 = vpop.f32.mrb[0].mxu0
      %v9146 = vadd.f32 %v7481, %v9145
      %v9147 = vpop.f32.mrb[0].mxu0
      %v9148 = vadd.f32 %v7477, %v9147
      %v9149 = vpop.f32.mrb[0].mxu0
      %v9150 = vadd.f32 %v7481, %v9149
      %9151 = vmatprep.mubr.bf16.mxu0 %v7177
      %9152 = vmatmul.mubr.bf16.gmra.mrb[0].mxu0 %v7176
      %v9153 = vpop.f32.mrb[0].mxu0
      %v9154 = vadd.f32 %v7477, %v9153
      %v9155 = vpop.f32.mrb[0].mxu0
      %v9156 = vadd.f32 %v7481, %v9155
      %v9157 = vpop.f32.mrb[0].mxu0
      %v9158 = vadd.f32 %v7477, %v9157
      %v9159 = vpop.f32.mrb[0].mxu0
      %v9160 = vadd.f32 %v7481, %v9159
      %9161 = vmatprep.mubr.bf16.mxu0 %v7181
      %9162 = vmatmul.mubr.bf16.gmra.mrb[0].mxu0 %v7180
      %v9163 = vpop.f32.mrb[0].mxu0
      %v9164 = vadd.f32 %v7477, %v9163
      %v9165 = vpop.f32.mrb[0].mxu0
      %v9166 = vadd.f32 %v7481, %v9165
      %v9167 = vpop.f32.mrb[0].mxu0
      %v9168 = vadd.f32 %v7477, %v9167
      %v9169 = vpop.f32.mrb[0].mxu0
      %v9170 = vadd.f32 %v7481, %v9169
      %9171 = vmatprep.mubr.bf16.mxu0 %v7185
      %9172 = vmatmul.mubr.bf16.gmra.mrb[0].mxu0 %v7184
      %v9173 = vpop.f32.mrb[0].mxu0
      %v9174 = vadd.f32 %v7477, %v9173
      %v9175 = vpop.f32.mrb[0].mxu0
      %v9176 = vadd.f32 %v7481, %v9175
      %v9177 = vpop.f32.mrb[0].mxu0
      %v9178 = vadd.f32 %v7477, %v9177
      %v9179 = vpop.f32.mrb[0].mxu0
      %v9180 = vadd.f32 %v7481, %v9179
      %9181 = vmatprep.mubr.bf16.mxu0 %v7189
      %9182 = vmatmul.mubr.bf16.gmra.mrb[0].mxu0 %v7188
      %v9183 = vpop.f32.mrb[0].mxu0
      %v9184 = vadd.f32 %v7477, %v9183
      %v9185 = vpop.f32.mrb[0].mxu0
      %v9186 = vadd.f32 %v7481, %v9185
      %v9187 = vpop.f32.mrb[0].mxu0
      %v9188 = vadd.f32 %v7477, %v9187
      %v9189 = vpop.f32.mrb[0].mxu0
      %v9190 = vadd.f32 %v7481, %v9189
      %9191 = vmatprep.mubr.bf16.mxu0 %v7193
      %9192 = vmatmul.mubr.bf16.gmra.mrb[0].mxu0 %v7192
      %v9193 = vpop.f32.mrb[0].mxu0
      %v9194 = vadd.f32 %v7477, %v9193
      %v9195 = vpop.f32.mrb[0].mxu0
      %v9196 = vadd.f32 %v7481, %v9195
      %v9197 = vpop.f32.mrb[0].mxu0
      %v9198 = vadd.f32 %v7477, %v9197
      %v9199 = vpop.f32.mrb[0].mxu0
      %v9200 = vadd.f32 %v7481, %v9199
      %9201 = vmatprep.mubr.bf16.mxu0 %v7197
      %9202 = vmatmul.mubr.bf16.gmra.mrb[0].mxu0 %v7196
      %v9203 = vpop.f32.mrb[0].mxu0
      %v9204 = vadd.f32 %v7477, %v9203
      %v9205 = vpop.f32.mrb[0].mxu0
      %v9206 = vadd.f32 %v7481, %v9205
      %v9207 = vpop.f32.mrb[0].mxu0
      %v9208 = vadd.f32 %v7477, %v9207
      %v9209 = vpop.f32.mrb[0].mxu0
      %v9210 = vadd.f32 %v7481, %v9209
      %9211 = vmatprep.mubr.bf16.mxu0 %v7201
      %9212 = vmatmul.mubr.bf16.gmra.mrb[0].mxu0 %v7200
      %v9213 = vpop.f32.mrb[0].mxu0
      %v9214 = vadd.f32 %v7477, %v9213
      %v9215 = vpop.f32.mrb[0].mxu0
      %v9216 = vadd.f32 %v7481, %v9215
      %v9217 = vpop.f32.mrb[0].mxu0
      %v9218 = vadd.f32 %v7477, %v9217
      %v9219 = vpop.f32.mrb[0].mxu0
      %v9220 = vadd.f32 %v7481, %v9219
      %9221 = vmatprep.mubr.bf16.mxu0 %v7205
      %9222 = vmatmul.mubr.bf16.gmra.mrb[0].mxu0 %v7204
      %v9223 = vpop.f32.mrb[0].mxu0
      %v9224 = vadd.f32 %v7477, %v9223
      %v9225 = vpop.f32.mrb[0].mxu0
      %v9226 = vadd.f32 %v7481, %v9225
      %v9227 = vpop.f32.mrb[0].mxu0
      %v9228 = vadd.f32 %v7477, %v9227
      %v9229 = vpop.f32.mrb[0].mxu0
      %v9230 = vadd.f32 %v7481, %v9229
      %9231 = vdwg.mxu0
      %9232 = vmatprep.subr.bf16.mxu0 %v8320
      %9233 = vmatpush1.bf16.msra.mxu0 %v8319
      %9234 = vmatprep.subr.bf16.mxu0 %v8327
      %9235 = vmatpush1.bf16.msra.mxu0 %v8326
      %9236 = vmatprep.subr.bf16.mxu0 %v8334
      %9237 = vmatpush1.bf16.msra.mxu0 %v8333
      %9238 = vmatprep.subr.bf16.mxu0 %v8341
      %9239 = vmatpush1.bf16.msra.mxu0 %v8340
      %9240 = vmatprep.subr.bf16.mxu0 %v8348
      %9241 = vmatpush1.bf16.msra.mxu0 %v8347
      %9242 = vmatprep.subr.bf16.mxu0 %v8355
      %9243 = vmatpush1.bf16.msra.mxu0 %v8354
      %9244 = vmatprep.subr.bf16.mxu0 %v8362
      %9245 = vmatpush1.bf16.msra.mxu0 %v8361
      %9246 = vmatprep.subr.bf16.mxu0 %v8369
      %9247 = vmatpush1.bf16.msra.mxu0 %v8368
      %9248 = vmatprep.subr.bf16.mxu0 %v8376
      %9249 = vmatpush1.bf16.msra.mxu0 %v8375
      %9250 = vmatprep.subr.bf16.mxu0 %v8383
      %9251 = vmatpush1.bf16.msra.mxu0 %v8382
      %9252 = vmatprep.subr.bf16.mxu0 %v8390
      %9253 = vmatpush1.bf16.msra.mxu0 %v8389
      %9254 = vmatprep.subr.bf16.mxu0 %v8397
      %9255 = vmatpush1.bf16.msra.mxu0 %v8396
      %9256 = vmatprep.subr.bf16.mxu0 %v8404
      %9257 = vmatpush1.bf16.msra.mxu0 %v8403
      %9258 = vmatprep.subr.bf16.mxu0 %v8411
      %9259 = vmatpush1.bf16.msra.mxu0 %v8410
      %9260 = vmatprep.subr.bf16.mxu0 %v8418
      %9261 = vmatpush1.bf16.msra.mxu0 %v8417
      %9262 = vmatprep.subr.bf16.mxu0 %v8425
      %9263 = vmatpush1.bf16.msra.mxu0 %v8424
      %9264 = vmatprep.mubr.bf16.mxu0 %v7147
      %9265 = vmatmul.mubr.bf16.gmra.mrb[0].mxu0 %v7146
      %v9266 = vpop.f32.mrb[0].mxu0
      %v9267 = vadd.f32 %v9074, %v9266
      %v9268 = vpop.f32.mrb[0].mxu0
      %v9269 = vadd.f32 %v9076, %v9268
      %v9270 = vpop.f32.mrb[0].mxu0
      %v9271 = vadd.f32 %v9078, %v9270
      %v9272 = vpop.f32.mrb[0].mxu0
      %v9273 = vadd.f32 %v9080, %v9272
      %9274 = vmatprep.mubr.bf16.mxu0 %v7151
      %9275 = vmatmul.mubr.bf16.gmra.mrb[0].mxu0 %v7150
      %v9276 = vpop.f32.mrb[0].mxu0
      %v9277 = vadd.f32 %v9084, %v9276
      %v9278 = vpop.f32.mrb[0].mxu0
      %v9279 = vadd.f32 %v9086, %v9278
      %v9280 = vpop.f32.mrb[0].mxu0
      %v9281 = vadd.f32 %v9088, %v9280
      %v9282 = vpop.f32.mrb[0].mxu0
      %v9283 = vadd.f32 %v9090, %v9282
      %9284 = vmatprep.mubr.bf16.mxu0 %v7155
      %9285 = vmatmul.mubr.bf16.gmra.mrb[0].mxu0 %v7154
      %v9286 = vpop.f32.mrb[0].mxu0
      %v9287 = vadd.f32 %v9094, %v9286
      %v9288 = vpop.f32.mrb[0].mxu0
      %v9289 = vadd.f32 %v9096, %v9288
      %v9290 = vpop.f32.mrb[0].mxu0
      %v9291 = vadd.f32 %v9098, %v9290
      %v9292 = vpop.f32.mrb[0].mxu0
      %v9293 = vadd.f32 %v9100, %v9292
      %9294 = vmatprep.mubr.bf16.mxu0 %v7159
      %9295 = vmatmul.mubr.bf16.gmra.mrb[0].mxu0 %v7158
      %v9296 = vpop.f32.mrb[0].mxu0
      %v9297 = vadd.f32 %v9104, %v9296
      %v9298 = vpop.f32.mrb[0].mxu0
      %v9299 = vadd.f32 %v9106, %v9298
      %v9300 = vpop.f32.mrb[0].mxu0
      %v9301 = vadd.f32 %v9108, %v9300
      %v9302 = vpop.f32.mrb[0].mxu0
      %v9303 = vadd.f32 %v9110, %v9302
      %9304 = vmatprep.mubr.bf16.mxu0 %v7163
      %9305 = vmatmul.mubr.bf16.gmra.mrb[0].mxu0 %v7162
      %v9306 = vpop.f32.mrb[0].mxu0
      %v9307 = vadd.f32 %v9114, %v9306
      %v9308 = vpop.f32.mrb[0].mxu0
      %v9309 = vadd.f32 %v9116, %v9308
      %v9310 = vpop.f32.mrb[0].mxu0
      %v9311 = vadd.f32 %v9118, %v9310
      %v9312 = vpop.f32.mrb[0].mxu0
      %v9313 = vadd.f32 %v9120, %v9312
      %9314 = vmatprep.mubr.bf16.mxu0 %v7167
      %9315 = vmatmul.mubr.bf16.gmra.mrb[0].mxu0 %v7166
      %v9316 = vpop.f32.mrb[0].mxu0
      %v9317 = vadd.f32 %v9124, %v9316
      %v9318 = vpop.f32.mrb[0].mxu0
      %v9319 = vadd.f32 %v9126, %v9318
      %v9320 = vpop.f32.mrb[0].mxu0
      %v9321 = vadd.f32 %v9128, %v9320
      %v9322 = vpop.f32.mrb[0].mxu0
      %v9323 = vadd.f32 %v9130, %v9322
      %9324 = vmatprep.mubr.bf16.mxu0 %v7171
      %9325 = vmatmul.mubr.bf16.gmra.mrb[0].mxu0 %v7170
      %v9326 = vpop.f32.mrb[0].mxu0
      %v9327 = vadd.f32 %v9134, %v9326
      %v9328 = vpop.f32.mrb[0].mxu0
      %v9329 = vadd.f32 %v9136, %v9328
      %v9330 = vpop.f32.mrb[0].mxu0
      %v9331 = vadd.f32 %v9138, %v9330
      %v9332 = vpop.f32.mrb[0].mxu0
      %v9333 = vadd.f32 %v9140, %v9332
      %9334 = vmatprep.mubr.bf16.mxu0 %v7175
      %9335 = vmatmul.mubr.bf16.gmra.mrb[0].mxu0 %v7174
      %v9336 = vpop.f32.mrb[0].mxu0
      %v9337 = vadd.f32 %v9144, %v9336
      %v9338 = vpop.f32.mrb[0].mxu0
      %v9339 = vadd.f32 %v9146, %v9338
      %v9340 = vpop.f32.mrb[0].mxu0
      %v9341 = vadd.f32 %v9148, %v9340
      %v9342 = vpop.f32.mrb[0].mxu0
      %v9343 = vadd.f32 %v9150, %v9342
      %9344 = vmatprep.mubr.bf16.mxu0 %v7179
      %9345 = vmatmul.mubr.bf16.gmra.mrb[0].mxu0 %v7178
      %v9346 = vpop.f32.mrb[0].mxu0
      %v9347 = vadd.f32 %v9154, %v9346
      %v9348 = vpop.f32.mrb[0].mxu0
      %v9349 = vadd.f32 %v9156, %v9348
      %v9350 = vpop.f32.mrb[0].mxu0
      %v9351 = vadd.f32 %v9158, %v9350
      %v9352 = vpop.f32.mrb[0].mxu0
      %v9353 = vadd.f32 %v9160, %v9352
      %9354 = vmatprep.mubr.bf16.mxu0 %v7183
      %9355 = vmatmul.mubr.bf16.gmra.mrb[0].mxu0 %v7182
      %v9356 = vpop.f32.mrb[0].mxu0
      %v9357 = vadd.f32 %v9164, %v9356
      %v9358 = vpop.f32.mrb[0].mxu0
      %v9359 = vadd.f32 %v9166, %v9358
      %v9360 = vpop.f32.mrb[0].mxu0
      %v9361 = vadd.f32 %v9168, %v9360
      %v9362 = vpop.f32.mrb[0].mxu0
      %v9363 = vadd.f32 %v9170, %v9362
      %9364 = vmatprep.mubr.bf16.mxu0 %v7187
      %9365 = vmatmul.mubr.bf16.gmra.mrb[0].mxu0 %v7186
      %v9366 = vpop.f32.mrb[0].mxu0
      %v9367 = vadd.f32 %v9174, %v9366
      %v9368 = vpop.f32.mrb[0].mxu0
      %v9369 = vadd.f32 %v9176, %v9368
      %v9370 = vpop.f32.mrb[0].mxu0
      %v9371 = vadd.f32 %v9178, %v9370
      %v9372 = vpop.f32.mrb[0].mxu0
      %v9373 = vadd.f32 %v9180, %v9372
      %9374 = vmatprep.mubr.bf16.mxu0 %v7191
      %9375 = vmatmul.mubr.bf16.gmra.mrb[0].mxu0 %v7190
      %v9376 = vpop.f32.mrb[0].mxu0
      %v9377 = vadd.f32 %v9184, %v9376
      %v9378 = vpop.f32.mrb[0].mxu0
      %v9379 = vadd.f32 %v9186, %v9378
      %v9380 = vpop.f32.mrb[0].mxu0
      %v9381 = vadd.f32 %v9188, %v9380
      %v9382 = vpop.f32.mrb[0].mxu0
      %v9383 = vadd.f32 %v9190, %v9382
      %9384 = vmatprep.mubr.bf16.mxu0 %v7195
      %9385 = vmatmul.mubr.bf16.gmra.mrb[0].mxu0 %v7194
      %v9386 = vpop.f32.mrb[0].mxu0
      %v9387 = vadd.f32 %v9194, %v9386
      %v9388 = vpop.f32.mrb[0].mxu0
      %v9389 = vadd.f32 %v9196, %v9388
      %v9390 = vpop.f32.mrb[0].mxu0
      %v9391 = vadd.f32 %v9198, %v9390
      %v9392 = vpop.f32.mrb[0].mxu0
      %v9393 = vadd.f32 %v9200, %v9392
      %9394 = vmatprep.mubr.bf16.mxu0 %v7199
      %9395 = vmatmul.mubr.bf16.gmra.mrb[0].mxu0 %v7198
      %v9396 = vpop.f32.mrb[0].mxu0
      %v9397 = vadd.f32 %v9204, %v9396
      %v9398 = vpop.f32.mrb[0].mxu0
      %v9399 = vadd.f32 %v9206, %v9398
      %v9400 = vpop.f32.mrb[0].mxu0
      %v9401 = vadd.f32 %v9208, %v9400
      %v9402 = vpop.f32.mrb[0].mxu0
      %v9403 = vadd.f32 %v9210, %v9402
      %9404 = vmatprep.mubr.bf16.mxu0 %v7203
      %9405 = vmatmul.mubr.bf16.gmra.mrb[0].mxu0 %v7202
      %v9406 = vpop.f32.mrb[0].mxu0
      %v9407 = vadd.f32 %v9214, %v9406
      %v9408 = vpop.f32.mrb[0].mxu0
      %v9409 = vadd.f32 %v9216, %v9408
      %v9410 = vpop.f32.mrb[0].mxu0
      %v9411 = vadd.f32 %v9218, %v9410
      %v9412 = vpop.f32.mrb[0].mxu0
      %v9413 = vadd.f32 %v9220, %v9412
      %9414 = vmatprep.mubr.bf16.mxu0 %v7207
      %9415 = vmatmul.mubr.bf16.gmra.mrb[0].mxu0 %v7206
      %v9416 = vpop.f32.mrb[0].mxu0
      %v9417 = vadd.f32 %v9224, %v9416
      %v9418 = vpop.f32.mrb[0].mxu0
      %v9419 = vadd.f32 %v9226, %v9418
      %v9420 = vpop.f32.mrb[0].mxu0
      %v9421 = vadd.f32 %v9228, %v9420
      %v9422 = vpop.f32.mrb[0].mxu0
      %v9423 = vadd.f32 %v9230, %v9422
      %9424 = vdwg.mxu0
      %9425 = vmatprep.subr.bf16.mxu0 %v8210
      %9426 = vmatpush1.bf16.msra.mxu0 %v8209
      %9427 = vmatprep.subr.bf16.mxu0 %v8217
      %9428 = vmatpush1.bf16.msra.mxu0 %v8216
      %9429 = vmatprep.subr.bf16.mxu0 %v8224
      %9430 = vmatpush1.bf16.msra.mxu0 %v8223
      %9431 = vmatprep.subr.bf16.mxu0 %v8231
      %9432 = vmatpush1.bf16.msra.mxu0 %v8230
      %9433 = vmatprep.subr.bf16.mxu0 %v8238
      %9434 = vmatpush1.bf16.msra.mxu0 %v8237
      %9435 = vmatprep.subr.bf16.mxu0 %v8245
      %9436 = vmatpush1.bf16.msra.mxu0 %v8244
      %9437 = vmatprep.subr.bf16.mxu0 %v8252
      %9438 = vmatpush1.bf16.msra.mxu0 %v8251
      %9439 = vmatprep.subr.bf16.mxu0 %v8259
      %9440 = vmatpush1.bf16.msra.mxu0 %v8258
      %9441 = vmatprep.subr.bf16.mxu0 %v8266
      %9442 = vmatpush1.bf16.msra.mxu0 %v8265
      %9443 = vmatprep.subr.bf16.mxu0 %v8273
      %9444 = vmatpush1.bf16.msra.mxu0 %v8272
      %9445 = vmatprep.subr.bf16.mxu0 %v8280
      %9446 = vmatpush1.bf16.msra.mxu0 %v8279
      %9447 = vmatprep.subr.bf16.mxu0 %v8287
      %9448 = vmatpush1.bf16.msra.mxu0 %v8286
      %9449 = vmatprep.subr.bf16.mxu0 %v8294
      %9450 = vmatpush1.bf16.msra.mxu0 %v8293
      %9451 = vmatprep.subr.bf16.mxu0 %v8301
      %9452 = vmatpush1.bf16.msra.mxu0 %v8300
      %9453 = vmatprep.subr.bf16.mxu0 %v8308
      %9454 = vmatpush1.bf16.msra.mxu0 %v8307
      %9455 = vmatprep.subr.bf16.mxu0 %v8315
      %9456 = vmatpush1.bf16.msra.mxu0 %v8314
      %9457 = vmatprep.mubr.bf16.mxu0 %v7145
      %9458 = vmatmul.mubr.bf16.gmra.mrb[0].mxu0 %v7144
      %v9459 = vpop.f32.mrb[0].mxu0
      %v9460 = vadd.f32 %v7485, %v9459
      %v9461 = vpop.f32.mrb[0].mxu0
      %v9462 = vadd.f32 %v7489, %v9461
      %v9463 = vpop.f32.mrb[0].mxu0
      %v9464 = vadd.f32 %v7485, %v9463
      %v9465 = vpop.f32.mrb[0].mxu0
      %v9466 = vadd.f32 %v7489, %v9465
      %9467 = vmatprep.mubr.bf16.mxu0 %v7149
      %9468 = vmatmul.mubr.bf16.gmra.mrb[0].mxu0 %v7148
      %v9469 = vpop.f32.mrb[0].mxu0
      %v9470 = vadd.f32 %v7485, %v9469
      %v9471 = vpop.f32.mrb[0].mxu0
      %v9472 = vadd.f32 %v7489, %v9471
      %v9473 = vpop.f32.mrb[0].mxu0
      %v9474 = vadd.f32 %v7485, %v9473
      %v9475 = vpop.f32.mrb[0].mxu0
      %v9476 = vadd.f32 %v7489, %v9475
      %9477 = vmatprep.mubr.bf16.mxu0 %v7153
      %9478 = vmatmul.mubr.bf16.gmra.mrb[0].mxu0 %v7152
      %v9479 = vpop.f32.mrb[0].mxu0
      %v9480 = vadd.f32 %v7485, %v9479
      %v9481 = vpop.f32.mrb[0].mxu0
      %v9482 = vadd.f32 %v7489, %v9481
      %v9483 = vpop.f32.mrb[0].mxu0
      %v9484 = vadd.f32 %v7485, %v9483
      %v9485 = vpop.f32.mrb[0].mxu0
      %v9486 = vadd.f32 %v7489, %v9485
      %9487 = vmatprep.mubr.bf16.mxu0 %v7157
      %9488 = vmatmul.mubr.bf16.gmra.mrb[0].mxu0 %v7156
      %v9489 = vpop.f32.mrb[0].mxu0
      %v9490 = vadd.f32 %v7485, %v9489
      %v9491 = vpop.f32.mrb[0].mxu0
      %v9492 = vadd.f32 %v7489, %v9491
      %v9493 = vpop.f32.mrb[0].mxu0
      %v9494 = vadd.f32 %v7485, %v9493
      %v9495 = vpop.f32.mrb[0].mxu0
      %v9496 = vadd.f32 %v7489, %v9495
      %9497 = vmatprep.mubr.bf16.mxu0 %v7161
      %9498 = vmatmul.mubr.bf16.gmra.mrb[0].mxu0 %v7160
      %v9499 = vpop.f32.mrb[0].mxu0
      %v9500 = vadd.f32 %v7485, %v9499
      %v9501 = vpop.f32.mrb[0].mxu0
      %v9502 = vadd.f32 %v7489, %v9501
      %v9503 = vpop.f32.mrb[0].mxu0
      %v9504 = vadd.f32 %v7485, %v9503
      %v9505 = vpop.f32.mrb[0].mxu0
      %v9506 = vadd.f32 %v7489, %v9505
      %9507 = vmatprep.mubr.bf16.mxu0 %v7165
      %9508 = vmatmul.mubr.bf16.gmra.mrb[0].mxu0 %v7164
      %v9509 = vpop.f32.mrb[0].mxu0
      %v9510 = vadd.f32 %v7485, %v9509
      %v9511 = vpop.f32.mrb[0].mxu0
      %v9512 = vadd.f32 %v7489, %v9511
      %v9513 = vpop.f32.mrb[0].mxu0
      %v9514 = vadd.f32 %v7485, %v9513
      %v9515 = vpop.f32.mrb[0].mxu0
      %v9516 = vadd.f32 %v7489, %v9515
      %9517 = vmatprep.mubr.bf16.mxu0 %v7169
      %9518 = vmatmul.mubr.bf16.gmra.mrb[0].mxu0 %v7168
      %v9519 = vpop.f32.mrb[0].mxu0
      %v9520 = vadd.f32 %v7485, %v9519
      %v9521 = vpop.f32.mrb[0].mxu0
      %v9522 = vadd.f32 %v7489, %v9521
      %v9523 = vpop.f32.mrb[0].mxu0
      %v9524 = vadd.f32 %v7485, %v9523
      %v9525 = vpop.f32.mrb[0].mxu0
      %v9526 = vadd.f32 %v7489, %v9525
      %9527 = vmatprep.mubr.bf16.mxu0 %v7173
      %9528 = vmatmul.mubr.bf16.gmra.mrb[0].mxu0 %v7172
      %v9529 = vpop.f32.mrb[0].mxu0
      %v9530 = vadd.f32 %v7485, %v9529
      %v9531 = vpop.f32.mrb[0].mxu0
      %v9532 = vadd.f32 %v7489, %v9531
      %v9533 = vpop.f32.mrb[0].mxu0
      %v9534 = vadd.f32 %v7485, %v9533
      %v9535 = vpop.f32.mrb[0].mxu0
      %v9536 = vadd.f32 %v7489, %v9535
      %9537 = vmatprep.mubr.bf16.mxu0 %v7177
      %9538 = vmatmul.mubr.bf16.gmra.mrb[0].mxu0 %v7176
      %v9539 = vpop.f32.mrb[0].mxu0
      %v9540 = vadd.f32 %v7485, %v9539
      %v9541 = vpop.f32.mrb[0].mxu0
      %v9542 = vadd.f32 %v7489, %v9541
      %v9543 = vpop.f32.mrb[0].mxu0
      %v9544 = vadd.f32 %v7485, %v9543
      %v9545 = vpop.f32.mrb[0].mxu0
      %v9546 = vadd.f32 %v7489, %v9545
      %9547 = vmatprep.mubr.bf16.mxu0 %v7181
      %9548 = vmatmul.mubr.bf16.gmra.mrb[0].mxu0 %v7180
      %v9549 = vpop.f32.mrb[0].mxu0
      %v9550 = vadd.f32 %v7485, %v9549
      %v9551 = vpop.f32.mrb[0].mxu0
      %v9552 = vadd.f32 %v7489, %v9551
      %v9553 = vpop.f32.mrb[0].mxu0
      %v9554 = vadd.f32 %v7485, %v9553
      %v9555 = vpop.f32.mrb[0].mxu0
      %v9556 = vadd.f32 %v7489, %v9555
      %9557 = vmatprep.mubr.bf16.mxu0 %v7185
      %9558 = vmatmul.mubr.bf16.gmra.mrb[0].mxu0 %v7184
      %v9559 = vpop.f32.mrb[0].mxu0
      %v9560 = vadd.f32 %v7485, %v9559
      %v9561 = vpop.f32.mrb[0].mxu0
      %v9562 = vadd.f32 %v7489, %v9561
      %v9563 = vpop.f32.mrb[0].mxu0
      %v9564 = vadd.f32 %v7485, %v9563
      %v9565 = vpop.f32.mrb[0].mxu0
      %v9566 = vadd.f32 %v7489, %v9565
      %9567 = vmatprep.mubr.bf16.mxu0 %v7189
      %9568 = vmatmul.mubr.bf16.gmra.mrb[0].mxu0 %v7188
      %v9569 = vpop.f32.mrb[0].mxu0
      %v9570 = vadd.f32 %v7485, %v9569
      %v9571 = vpop.f32.mrb[0].mxu0
      %v9572 = vadd.f32 %v7489, %v9571
      %v9573 = vpop.f32.mrb[0].mxu0
      %v9574 = vadd.f32 %v7485, %v9573
      %v9575 = vpop.f32.mrb[0].mxu0
      %v9576 = vadd.f32 %v7489, %v9575
      %9577 = vmatprep.mubr.bf16.mxu0 %v7193
      %9578 = vmatmul.mubr.bf16.gmra.mrb[0].mxu0 %v7192
      %v9579 = vpop.f32.mrb[0].mxu0
      %v9580 = vadd.f32 %v7485, %v9579
      %v9581 = vpop.f32.mrb[0].mxu0
      %v9582 = vadd.f32 %v7489, %v9581
      %v9583 = vpop.f32.mrb[0].mxu0
      %v9584 = vadd.f32 %v7485, %v9583
      %v9585 = vpop.f32.mrb[0].mxu0
      %v9586 = vadd.f32 %v7489, %v9585
      %9587 = vmatprep.mubr.bf16.mxu0 %v7197
      %9588 = vmatmul.mubr.bf16.gmra.mrb[0].mxu0 %v7196
      %v9589 = vpop.f32.mrb[0].mxu0
      %v9590 = vadd.f32 %v7485, %v9589
      %v9591 = vpop.f32.mrb[0].mxu0
      %v9592 = vadd.f32 %v7489, %v9591
      %v9593 = vpop.f32.mrb[0].mxu0
      %v9594 = vadd.f32 %v7485, %v9593
      %v9595 = vpop.f32.mrb[0].mxu0
      %v9596 = vadd.f32 %v7489, %v9595
      %9597 = vmatprep.mubr.bf16.mxu0 %v7201
      %9598 = vmatmul.mubr.bf16.gmra.mrb[0].mxu0 %v7200
      %v9599 = vpop.f32.mrb[0].mxu0
      %v9600 = vadd.f32 %v7485, %v9599
      %v9601 = vpop.f32.mrb[0].mxu0
      %v9602 = vadd.f32 %v7489, %v9601
      %v9603 = vpop.f32.mrb[0].mxu0
      %v9604 = vadd.f32 %v7485, %v9603
      %v9605 = vpop.f32.mrb[0].mxu0
      %v9606 = vadd.f32 %v7489, %v9605
      %9607 = vmatprep.mubr.bf16.mxu0 %v7205
      %9608 = vmatmul.mubr.bf16.gmra.mrb[0].mxu0 %v7204
      %v9609 = vpop.f32.mrb[0].mxu0
      %v9610 = vadd.f32 %v7485, %v9609
      %v9611 = vpop.f32.mrb[0].mxu0
      %v9612 = vadd.f32 %v7489, %v9611
      %v9613 = vpop.f32.mrb[0].mxu0
      %v9614 = vadd.f32 %v7485, %v9613
      %v9615 = vpop.f32.mrb[0].mxu0
      %v9616 = vadd.f32 %v7489, %v9615
      %9617 = vdwg.mxu0
      %9618 = vmatprep.subr.bf16.mxu0 %v8322
      %9619 = vmatpush1.bf16.msra.mxu0 %v8321
      %9620 = vmatprep.subr.bf16.mxu0 %v8329
      %9621 = vmatpush1.bf16.msra.mxu0 %v8328
      %9622 = vmatprep.subr.bf16.mxu0 %v8336
      %9623 = vmatpush1.bf16.msra.mxu0 %v8335
      %9624 = vmatprep.subr.bf16.mxu0 %v8343
      %9625 = vmatpush1.bf16.msra.mxu0 %v8342
      %9626 = vmatprep.subr.bf16.mxu0 %v8350
      %9627 = vmatpush1.bf16.msra.mxu0 %v8349
      %9628 = vmatprep.subr.bf16.mxu0 %v8357
      %9629 = vmatpush1.bf16.msra.mxu0 %v8356
      %9630 = vmatprep.subr.bf16.mxu0 %v8364
      %9631 = vmatpush1.bf16.msra.mxu0 %v8363
      %9632 = vmatprep.subr.bf16.mxu0 %v8371
      %9633 = vmatpush1.bf16.msra.mxu0 %v8370
      %9634 = vmatprep.subr.bf16.mxu0 %v8378
      %9635 = vmatpush1.bf16.msra.mxu0 %v8377
      %9636 = vmatprep.subr.bf16.mxu0 %v8385
      %9637 = vmatpush1.bf16.msra.mxu0 %v8384
      %9638 = vmatprep.subr.bf16.mxu0 %v8392
      %9639 = vmatpush1.bf16.msra.mxu0 %v8391
      %9640 = vmatprep.subr.bf16.mxu0 %v8399
      %9641 = vmatpush1.bf16.msra.mxu0 %v8398
      %9642 = vmatprep.subr.bf16.mxu0 %v8406
      %9643 = vmatpush1.bf16.msra.mxu0 %v8405
      %9644 = vmatprep.subr.bf16.mxu0 %v8413
      %9645 = vmatpush1.bf16.msra.mxu0 %v8412
      %9646 = vmatprep.subr.bf16.mxu0 %v8420
      %9647 = vmatpush1.bf16.msra.mxu0 %v8419
      %9648 = vmatprep.subr.bf16.mxu0 %v8427
      %9649 = vmatpush1.bf16.msra.mxu0 %v8426
      %9650 = vmatprep.mubr.bf16.mxu0 %v7147
      %9651 = vmatmul.mubr.bf16.gmra.mrb[0].mxu0 %v7146
      %v9652 = vpop.f32.mrb[0].mxu0
      %v9653 = vadd.f32 %v9460, %v9652
      %v9654 = vpop.f32.mrb[0].mxu0
      %v9655 = vadd.f32 %v9462, %v9654
      %v9656 = vpop.f32.mrb[0].mxu0
      %v9657 = vadd.f32 %v9464, %v9656
      %v9658 = vpop.f32.mrb[0].mxu0
      %v9659 = vadd.f32 %v9466, %v9658
      %9660 = vmatprep.mubr.bf16.mxu0 %v7151
      %9661 = vmatmul.mubr.bf16.gmra.mrb[0].mxu0 %v7150
      %v9662 = vpop.f32.mrb[0].mxu0
      %v9663 = vadd.f32 %v9470, %v9662
      %v9664 = vpop.f32.mrb[0].mxu0
      %v9665 = vadd.f32 %v9472, %v9664
      %v9666 = vpop.f32.mrb[0].mxu0
      %v9667 = vadd.f32 %v9474, %v9666
      %v9668 = vpop.f32.mrb[0].mxu0
      %v9669 = vadd.f32 %v9476, %v9668
      %9670 = vmatprep.mubr.bf16.mxu0 %v7155
      %9671 = vmatmul.mubr.bf16.gmra.mrb[0].mxu0 %v7154
      %v9672 = vpop.f32.mrb[0].mxu0
      %v9673 = vadd.f32 %v9480, %v9672
      %v9674 = vpop.f32.mrb[0].mxu0
      %v9675 = vadd.f32 %v9482, %v9674
      %v9676 = vpop.f32.mrb[0].mxu0
      %v9677 = vadd.f32 %v9484, %v9676
      %v9678 = vpop.f32.mrb[0].mxu0
      %v9679 = vadd.f32 %v9486, %v9678
      %9680 = vmatprep.mubr.bf16.mxu0 %v7159
      %9681 = vmatmul.mubr.bf16.gmra.mrb[0].mxu0 %v7158
      %v9682 = vpop.f32.mrb[0].mxu0
      %v9683 = vadd.f32 %v9490, %v9682
      %v9684 = vpop.f32.mrb[0].mxu0
      %v9685 = vadd.f32 %v9492, %v9684
      %v9686 = vpop.f32.mrb[0].mxu0
      %v9687 = vadd.f32 %v9494, %v9686
      %v9688 = vpop.f32.mrb[0].mxu0
      %v9689 = vadd.f32 %v9496, %v9688
      %9690 = vmatprep.mubr.bf16.mxu0 %v7163
      %9691 = vmatmul.mubr.bf16.gmra.mrb[0].mxu0 %v7162
      %v9692 = vpop.f32.mrb[0].mxu0
      %v9693 = vadd.f32 %v9500, %v9692
      %v9694 = vpop.f32.mrb[0].mxu0
      %v9695 = vadd.f32 %v9502, %v9694
      %v9696 = vpop.f32.mrb[0].mxu0
      %v9697 = vadd.f32 %v9504, %v9696
      %v9698 = vpop.f32.mrb[0].mxu0
      %v9699 = vadd.f32 %v9506, %v9698
      %9700 = vmatprep.mubr.bf16.mxu0 %v7167
      %9701 = vmatmul.mubr.bf16.gmra.mrb[0].mxu0 %v7166
      %v9702 = vpop.f32.mrb[0].mxu0
      %v9703 = vadd.f32 %v9510, %v9702
      %v9704 = vpop.f32.mrb[0].mxu0
      %v9705 = vadd.f32 %v9512, %v9704
      %v9706 = vpop.f32.mrb[0].mxu0
      %v9707 = vadd.f32 %v9514, %v9706
      %v9708 = vpop.f32.mrb[0].mxu0
      %v9709 = vadd.f32 %v9516, %v9708
      %9710 = vmatprep.mubr.bf16.mxu0 %v7171
      %9711 = vmatmul.mubr.bf16.gmra.mrb[0].mxu0 %v7170
      %v9712 = vpop.f32.mrb[0].mxu0
      %v9713 = vadd.f32 %v9520, %v9712
      %v9714 = vpop.f32.mrb[0].mxu0
      %v9715 = vadd.f32 %v9522, %v9714
      %v9716 = vpop.f32.mrb[0].mxu0
      %v9717 = vadd.f32 %v9524, %v9716
      %v9718 = vpop.f32.mrb[0].mxu0
      %v9719 = vadd.f32 %v9526, %v9718
      %9720 = vmatprep.mubr.bf16.mxu0 %v7175
      %9721 = vmatmul.mubr.bf16.gmra.mrb[0].mxu0 %v7174
      %v9722 = vpop.f32.mrb[0].mxu0
      %v9723 = vadd.f32 %v9530, %v9722
      %v9724 = vpop.f32.mrb[0].mxu0
      %v9725 = vadd.f32 %v9532, %v9724
      %v9726 = vpop.f32.mrb[0].mxu0
      %v9727 = vadd.f32 %v9534, %v9726
      %v9728 = vpop.f32.mrb[0].mxu0
      %v9729 = vadd.f32 %v9536, %v9728
      %9730 = vmatprep.mubr.bf16.mxu0 %v7179
      %9731 = vmatmul.mubr.bf16.gmra.mrb[0].mxu0 %v7178
      %v9732 = vpop.f32.mrb[0].mxu0
      %v9733 = vadd.f32 %v9540, %v9732
      %v9734 = vpop.f32.mrb[0].mxu0
      %v9735 = vadd.f32 %v9542, %v9734
      %v9736 = vpop.f32.mrb[0].mxu0
      %v9737 = vadd.f32 %v9544, %v9736
      %v9738 = vpop.f32.mrb[0].mxu0
      %v9739 = vadd.f32 %v9546, %v9738
      %9740 = vmatprep.mubr.bf16.mxu0 %v7183
      %9741 = vmatmul.mubr.bf16.gmra.mrb[0].mxu0 %v7182
      %v9742 = vpop.f32.mrb[0].mxu0
      %v9743 = vadd.f32 %v9550, %v9742
      %v9744 = vpop.f32.mrb[0].mxu0
      %v9745 = vadd.f32 %v9552, %v9744
      %v9746 = vpop.f32.mrb[0].mxu0
      %v9747 = vadd.f32 %v9554, %v9746
      %v9748 = vpop.f32.mrb[0].mxu0
      %v9749 = vadd.f32 %v9556, %v9748
      %9750 = vmatprep.mubr.bf16.mxu0 %v7187
      %9751 = vmatmul.mubr.bf16.gmra.mrb[0].mxu0 %v7186
      %v9752 = vpop.f32.mrb[0].mxu0
      %v9753 = vadd.f32 %v9560, %v9752
      %v9754 = vpop.f32.mrb[0].mxu0
      %v9755 = vadd.f32 %v9562, %v9754
      %v9756 = vpop.f32.mrb[0].mxu0
      %v9757 = vadd.f32 %v9564, %v9756
      %v9758 = vpop.f32.mrb[0].mxu0
      %v9759 = vadd.f32 %v9566, %v9758
      %9760 = vmatprep.mubr.bf16.mxu0 %v7191
      %9761 = vmatmul.mubr.bf16.gmra.mrb[0].mxu0 %v7190
      %v9762 = vpop.f32.mrb[0].mxu0
      %v9763 = vadd.f32 %v9570, %v9762
      %v9764 = vpop.f32.mrb[0].mxu0
      %v9765 = vadd.f32 %v9572, %v9764
      %v9766 = vpop.f32.mrb[0].mxu0
      %v9767 = vadd.f32 %v9574, %v9766
      %v9768 = vpop.f32.mrb[0].mxu0
      %v9769 = vadd.f32 %v9576, %v9768
      %9770 = vmatprep.mubr.bf16.mxu0 %v7195
      %9771 = vmatmul.mubr.bf16.gmra.mrb[0].mxu0 %v7194
      %v9772 = vpop.f32.mrb[0].mxu0
      %v9773 = vadd.f32 %v9580, %v9772
      %v9774 = vpop.f32.mrb[0].mxu0
      %v9775 = vadd.f32 %v9582, %v9774
      %v9776 = vpop.f32.mrb[0].mxu0
      %v9777 = vadd.f32 %v9584, %v9776
      %v9778 = vpop.f32.mrb[0].mxu0
      %v9779 = vadd.f32 %v9586, %v9778
      %9780 = vmatprep.mubr.bf16.mxu0 %v7199
      %9781 = vmatmul.mubr.bf16.gmra.mrb[0].mxu0 %v7198
      %v9782 = vpop.f32.mrb[0].mxu0
      %v9783 = vadd.f32 %v9590, %v9782
      %v9784 = vpop.f32.mrb[0].mxu0
      %v9785 = vadd.f32 %v9592, %v9784
      %v9786 = vpop.f32.mrb[0].mxu0
      %v9787 = vadd.f32 %v9594, %v9786
      %v9788 = vpop.f32.mrb[0].mxu0
      %v9789 = vadd.f32 %v9596, %v9788
      %9790 = vmatprep.mubr.bf16.mxu0 %v7203
      %9791 = vmatmul.mubr.bf16.gmra.mrb[0].mxu0 %v7202
      %v9792 = vpop.f32.mrb[0].mxu0
      %v9793 = vadd.f32 %v9600, %v9792
      %v9794 = vpop.f32.mrb[0].mxu0
      %v9795 = vadd.f32 %v9602, %v9794
      %v9796 = vpop.f32.mrb[0].mxu0
      %v9797 = vadd.f32 %v9604, %v9796
      %v9798 = vpop.f32.mrb[0].mxu0
      %v9799 = vadd.f32 %v9606, %v9798
      %9800 = vmatprep.mubr.bf16.mxu0 %v7207
      %9801 = vmatmul.mubr.bf16.gmra.mrb[0].mxu0 %v7206
      %v9802 = vpop.f32.mrb[0].mxu0
      %v9803 = vadd.f32 %v9610, %v9802
      %v9804 = vpop.f32.mrb[0].mxu0
      %v9805 = vadd.f32 %v9612, %v9804
      %v9806 = vpop.f32.mrb[0].mxu0
      %v9807 = vadd.f32 %v9614, %v9806
      %v9808 = vpop.f32.mrb[0].mxu0
      %v9809 = vadd.f32 %v9616, %v9808
      %9810 = vdwg.mxu0
      %9811 = vmatprep.subr.bf16.mxu0 0
      %9812 = vmatpush1.bf16.msra.mxu0 %v8211
      %9813 = vmatprep.subr.bf16.mxu0 0
      %9814 = vmatpush1.bf16.msra.mxu0 %v8218
      %9815 = vmatprep.subr.bf16.mxu0 0
      %9816 = vmatpush1.bf16.msra.mxu0 %v8225
      %9817 = vmatprep.subr.bf16.mxu0 0
      %9818 = vmatpush1.bf16.msra.mxu0 %v8232
      %9819 = vmatprep.subr.bf16.mxu0 0
      %9820 = vmatpush1.bf16.msra.mxu0 %v8239
      %9821 = vmatprep.subr.bf16.mxu0 0
      %9822 = vmatpush1.bf16.msra.mxu0 %v8246
      %9823 = vmatprep.subr.bf16.mxu0 0
      %9824 = vmatpush1.bf16.msra.mxu0 %v8253
      %9825 = vmatprep.subr.bf16.mxu0 0
      %9826 = vmatpush1.bf16.msra.mxu0 %v8260
      %9827 = vmatprep.subr.bf16.mxu0 0
      %9828 = vmatpush1.bf16.msra.mxu0 %v8267
      %9829 = vmatprep.subr.bf16.mxu0 0
      %9830 = vmatpush1.bf16.msra.mxu0 %v8274
      %9831 = vmatprep.subr.bf16.mxu0 0
      %9832 = vmatpush1.bf16.msra.mxu0 %v8281
      %9833 = vmatprep.subr.bf16.mxu0 0
      %9834 = vmatpush1.bf16.msra.mxu0 %v8288
      %9835 = vmatprep.subr.bf16.mxu0 0
      %9836 = vmatpush1.bf16.msra.mxu0 %v8295
      %9837 = vmatprep.subr.bf16.mxu0 0
      %9838 = vmatpush1.bf16.msra.mxu0 %v8302
      %9839 = vmatprep.subr.bf16.mxu0 0
      %9840 = vmatpush1.bf16.msra.mxu0 %v8309
      %9841 = vmatprep.subr.bf16.mxu0 0
      %9842 = vmatpush1.bf16.msra.mxu0 %v8316
      %9843 = vmatprep.mubr.bf16.mxu0 %v7145
      %9844 = vmatmul.mubr.bf16.gmra.mrb[0].mxu0 %v7144
      %v9845 = vpop.f32.mrb[0].mxu0
      %v9846 = vadd.f32 %v7493, %v9845
      %v9847 = vpop.f32.mrb[0].mxu0
      %v9848 = vpop.f32.mrb[0].mxu0
      %v9849 = vadd.f32 %v7493, %v9848
      %v9850 = vpop.f32.mrb[0].mxu0
      %9851 = vmatprep.mubr.bf16.mxu0 %v7149
      %9852 = vmatmul.mubr.bf16.gmra.mrb[0].mxu0 %v7148
      %v9853 = vpop.f32.mrb[0].mxu0
      %v9854 = vadd.f32 %v7493, %v9853
      %v9855 = vpop.f32.mrb[0].mxu0
      %v9856 = vpop.f32.mrb[0].mxu0
      %v9857 = vadd.f32 %v7493, %v9856
      %v9858 = vpop.f32.mrb[0].mxu0
      %9859 = vmatprep.mubr.bf16.mxu0 %v7153
      %9860 = vmatmul.mubr.bf16.gmra.mrb[0].mxu0 %v7152
      %v9861 = vpop.f32.mrb[0].mxu0
      %v9862 = vadd.f32 %v7493, %v9861
      %v9863 = vpop.f32.mrb[0].mxu0
      %v9864 = vpop.f32.mrb[0].mxu0
      %v9865 = vadd.f32 %v7493, %v9864
      %v9866 = vpop.f32.mrb[0].mxu0
      %9867 = vmatprep.mubr.bf16.mxu0 %v7157
      %9868 = vmatmul.mubr.bf16.gmra.mrb[0].mxu0 %v7156
      %v9869 = vpop.f32.mrb[0].mxu0
      %v9870 = vadd.f32 %v7493, %v9869
      %v9871 = vpop.f32.mrb[0].mxu0
      %v9872 = vpop.f32.mrb[0].mxu0
      %v9873 = vadd.f32 %v7493, %v9872
      %v9874 = vpop.f32.mrb[0].mxu0
      %9875 = vmatprep.mubr.bf16.mxu0 %v7161
      %9876 = vmatmul.mubr.bf16.gmra.mrb[0].mxu0 %v7160
      %v9877 = vpop.f32.mrb[0].mxu0
      %v9878 = vadd.f32 %v7493, %v9877
      %v9879 = vpop.f32.mrb[0].mxu0
      %v9880 = vpop.f32.mrb[0].mxu0
      %v9881 = vadd.f32 %v7493, %v9880
      %v9882 = vpop.f32.mrb[0].mxu0
      %9883 = vmatprep.mubr.bf16.mxu0 %v7165
      %9884 = vmatmul.mubr.bf16.gmra.mrb[0].mxu0 %v7164
      %v9885 = vpop.f32.mrb[0].mxu0
      %v9886 = vadd.f32 %v7493, %v9885
      %v9887 = vpop.f32.mrb[0].mxu0
      %v9888 = vpop.f32.mrb[0].mxu0
      %v9889 = vadd.f32 %v7493, %v9888
      %v9890 = vpop.f32.mrb[0].mxu0
      %9891 = vmatprep.mubr.bf16.mxu0 %v7169
      %9892 = vmatmul.mubr.bf16.gmra.mrb[0].mxu0 %v7168
      %v9893 = vpop.f32.mrb[0].mxu0
      %v9894 = vadd.f32 %v7493, %v9893
      %v9895 = vpop.f32.mrb[0].mxu0
      %v9896 = vpop.f32.mrb[0].mxu0
      %v9897 = vadd.f32 %v7493, %v9896
      %v9898 = vpop.f32.mrb[0].mxu0
      %9899 = vmatprep.mubr.bf16.mxu0 %v7173
      %9900 = vmatmul.mubr.bf16.gmra.mrb[0].mxu0 %v7172
      %v9901 = vpop.f32.mrb[0].mxu0
      %v9902 = vadd.f32 %v7493, %v9901
      %v9903 = vpop.f32.mrb[0].mxu0
      %v9904 = vpop.f32.mrb[0].mxu0
      %v9905 = vadd.f32 %v7493, %v9904
      %v9906 = vpop.f32.mrb[0].mxu0
      %9907 = vmatprep.mubr.bf16.mxu0 %v7177
      %9908 = vmatmul.mubr.bf16.gmra.mrb[0].mxu0 %v7176
      %v9909 = vpop.f32.mrb[0].mxu0
      %v9910 = vadd.f32 %v7493, %v9909
      %v9911 = vpop.f32.mrb[0].mxu0
      %v9912 = vpop.f32.mrb[0].mxu0
      %v9913 = vadd.f32 %v7493, %v9912
      %v9914 = vpop.f32.mrb[0].mxu0
      %9915 = vmatprep.mubr.bf16.mxu0 %v7181
      %9916 = vmatmul.mubr.bf16.gmra.mrb[0].mxu0 %v7180
      %v9917 = vpop.f32.mrb[0].mxu0
      %v9918 = vadd.f32 %v7493, %v9917
      %v9919 = vpop.f32.mrb[0].mxu0
      %v9920 = vpop.f32.mrb[0].mxu0
      %v9921 = vadd.f32 %v7493, %v9920
      %v9922 = vpop.f32.mrb[0].mxu0
      %9923 = vmatprep.mubr.bf16.mxu0 %v7185
      %9924 = vmatmul.mubr.bf16.gmra.mrb[0].mxu0 %v7184
      %v9925 = vpop.f32.mrb[0].mxu0
      %v9926 = vadd.f32 %v7493, %v9925
      %v9927 = vpop.f32.mrb[0].mxu0
      %v9928 = vpop.f32.mrb[0].mxu0
      %v9929 = vadd.f32 %v7493, %v9928
      %v9930 = vpop.f32.mrb[0].mxu0
      %9931 = vmatprep.mubr.bf16.mxu0 %v7189
      %9932 = vmatmul.mubr.bf16.gmra.mrb[0].mxu0 %v7188
      %v9933 = vpop.f32.mrb[0].mxu0
      %v9934 = vadd.f32 %v7493, %v9933
      %v9935 = vpop.f32.mrb[0].mxu0
      %v9936 = vpop.f32.mrb[0].mxu0
      %v9937 = vadd.f32 %v7493, %v9936
      %v9938 = vpop.f32.mrb[0].mxu0
      %9939 = vmatprep.mubr.bf16.mxu0 %v7193
      %9940 = vmatmul.mubr.bf16.gmra.mrb[0].mxu0 %v7192
      %v9941 = vpop.f32.mrb[0].mxu0
      %v9942 = vadd.f32 %v7493, %v9941
      %v9943 = vpop.f32.mrb[0].mxu0
      %v9944 = vpop.f32.mrb[0].mxu0
      %v9945 = vadd.f32 %v7493, %v9944
      %v9946 = vpop.f32.mrb[0].mxu0
      %9947 = vmatprep.mubr.bf16.mxu0 %v7197
      %9948 = vmatmul.mubr.bf16.gmra.mrb[0].mxu0 %v7196
      %v9949 = vpop.f32.mrb[0].mxu0
      %v9950 = vadd.f32 %v7493, %v9949
      %v9951 = vpop.f32.mrb[0].mxu0
      %v9952 = vpop.f32.mrb[0].mxu0
      %v9953 = vadd.f32 %v7493, %v9952
      %v9954 = vpop.f32.mrb[0].mxu0
      %9955 = vmatprep.mubr.bf16.mxu0 %v7201
      %9956 = vmatmul.mubr.bf16.gmra.mrb[0].mxu0 %v7200
      %v9957 = vpop.f32.mrb[0].mxu0
      %v9958 = vadd.f32 %v7493, %v9957
      %v9959 = vpop.f32.mrb[0].mxu0
      %v9960 = vpop.f32.mrb[0].mxu0
      %v9961 = vadd.f32 %v7493, %v9960
      %v9962 = vpop.f32.mrb[0].mxu0
      %9963 = vmatprep.mubr.bf16.mxu0 %v7205
      %9964 = vmatmul.mubr.bf16.gmra.mrb[0].mxu0 %v7204
      %v9965 = vpop.f32.mrb[0].mxu0
      %v9966 = vadd.f32 %v7493, %v9965
      %v9967 = vpop.f32.mrb[0].mxu0
      %v9968 = vpop.f32.mrb[0].mxu0
      %v9969 = vadd.f32 %v7493, %v9968
      %v9970 = vpop.f32.mrb[0].mxu0
      %9971 = vdwg.mxu0
      %9972 = vmatprep.subr.bf16.mxu0 0
      %9973 = vmatpush1.bf16.msra.mxu0 %v8323
      %9974 = vmatprep.subr.bf16.mxu0 0
      %9975 = vmatpush1.bf16.msra.mxu0 %v8330
      %9976 = vmatprep.subr.bf16.mxu0 0
      %9977 = vmatpush1.bf16.msra.mxu0 %v8337
      %9978 = vmatprep.subr.bf16.mxu0 0
      %9979 = vmatpush1.bf16.msra.mxu0 %v8344
      %9980 = vmatprep.subr.bf16.mxu0 0
      %9981 = vmatpush1.bf16.msra.mxu0 %v8351
      %9982 = vmatprep.subr.bf16.mxu0 0
      %9983 = vmatpush1.bf16.msra.mxu0 %v8358
      %9984 = vmatprep.subr.bf16.mxu0 0
      %9985 = vmatpush1.bf16.msra.mxu0 %v8365
      %9986 = vmatprep.subr.bf16.mxu0 0
      %9987 = vmatpush1.bf16.msra.mxu0 %v8372
      %9988 = vmatprep.subr.bf16.mxu0 0
      %9989 = vmatpush1.bf16.msra.mxu0 %v8379
      %9990 = vmatprep.subr.bf16.mxu0 0
      %9991 = vmatpush1.bf16.msra.mxu0 %v8386
      %9992 = vmatprep.subr.bf16.mxu0 0
      %9993 = vmatpush1.bf16.msra.mxu0 %v8393
      %9994 = vmatprep.subr.bf16.mxu0 0
      %9995 = vmatpush1.bf16.msra.mxu0 %v8400
      %9996 = vmatprep.subr.bf16.mxu0 0
      %9997 = vmatpush1.bf16.msra.mxu0 %v8407
      %9998 = vmatprep.subr.bf16.mxu0 0
      %9999 = vmatpush1.bf16.msra.mxu0 %v8414
      %10000 = vmatprep.subr.bf16.mxu0 0
      %10001 = vmatpush1.bf16.msra.mxu0 %v8421
      %10002 = vmatprep.subr.bf16.mxu0 0
      %10003 = vmatpush1.bf16.msra.mxu0 %v8428
      %10004 = vmatprep.mubr.bf16.mxu0 %v7147
      %10005 = vmatmul.mubr.bf16.gmra.mrb[0].mxu0 %v7146
      %v10006 = vpop.f32.mrb[0].mxu0
      %v10007 = vadd.f32 %v9846, %v10006
      %v10008 = vpop.f32.mrb[0].mxu0
      %v10009 = vpop.f32.mrb[0].mxu0
      %v10010 = vadd.f32 %v9849, %v10009
      %v10011 = vpop.f32.mrb[0].mxu0
      %10012 = vmatprep.mubr.bf16.mxu0 %v7151
      %10013 = vmatmul.mubr.bf16.gmra.mrb[0].mxu0 %v7150
      %v10014 = vpop.f32.mrb[0].mxu0
      %v10015 = vadd.f32 %v9854, %v10014
      %v10016 = vpop.f32.mrb[0].mxu0
      %v10017 = vpop.f32.mrb[0].mxu0
      %v10018 = vadd.f32 %v9857, %v10017
      %v10019 = vpop.f32.mrb[0].mxu0
      %10020 = vmatprep.mubr.bf16.mxu0 %v7155
      %10021 = vmatmul.mubr.bf16.gmra.mrb[0].mxu0 %v7154
      %v10022 = vpop.f32.mrb[0].mxu0
      %v10023 = vadd.f32 %v9862, %v10022
      %v10024 = vpop.f32.mrb[0].mxu0
      %v10025 = vpop.f32.mrb[0].mxu0
      %v10026 = vadd.f32 %v9865, %v10025
      %v10027 = vpop.f32.mrb[0].mxu0
      %10028 = vmatprep.mubr.bf16.mxu0 %v7159
      %10029 = vmatmul.mubr.bf16.gmra.mrb[0].mxu0 %v7158
      %v10030 = vpop.f32.mrb[0].mxu0
      %v10031 = vadd.f32 %v9870, %v10030
      %v10032 = vpop.f32.mrb[0].mxu0
      %v10033 = vpop.f32.mrb[0].mxu0
      %v10034 = vadd.f32 %v9873, %v10033
      %v10035 = vpop.f32.mrb[0].mxu0
      %10036 = vmatprep.mubr.bf16.mxu0 %v7163
      %10037 = vmatmul.mubr.bf16.gmra.mrb[0].mxu0 %v7162
      %v10038 = vpop.f32.mrb[0].mxu0
      %v10039 = vadd.f32 %v9878, %v10038
      %v10040 = vpop.f32.mrb[0].mxu0
      %v10041 = vpop.f32.mrb[0].mxu0
      %v10042 = vadd.f32 %v9881, %v10041
      %v10043 = vpop.f32.mrb[0].mxu0
      %10044 = vmatprep.mubr.bf16.mxu0 %v7167
      %10045 = vmatmul.mubr.bf16.gmra.mrb[0].mxu0 %v7166
      %v10046 = vpop.f32.mrb[0].mxu0
      %v10047 = vadd.f32 %v9886, %v10046
      %v10048 = vpop.f32.mrb[0].mxu0
      %v10049 = vpop.f32.mrb[0].mxu0
      %v10050 = vadd.f32 %v9889, %v10049
      %v10051 = vpop.f32.mrb[0].mxu0
      %10052 = vmatprep.mubr.bf16.mxu0 %v7171
      %10053 = vmatmul.mubr.bf16.gmra.mrb[0].mxu0 %v7170
      %v10054 = vpop.f32.mrb[0].mxu0
      %v10055 = vadd.f32 %v9894, %v10054
      %v10056 = vpop.f32.mrb[0].mxu0
      %v10057 = vpop.f32.mrb[0].mxu0
      %v10058 = vadd.f32 %v9897, %v10057
      %v10059 = vpop.f32.mrb[0].mxu0
      %10060 = vmatprep.mubr.bf16.mxu0 %v7175
      %10061 = vmatmul.mubr.bf16.gmra.mrb[0].mxu0 %v7174
      %v10062 = vpop.f32.mrb[0].mxu0
      %v10063 = vadd.f32 %v9902, %v10062
      %v10064 = vpop.f32.mrb[0].mxu0
      %v10065 = vpop.f32.mrb[0].mxu0
      %v10066 = vadd.f32 %v9905, %v10065
      %v10067 = vpop.f32.mrb[0].mxu0
      %10068 = vmatprep.mubr.bf16.mxu0 %v7179
      %10069 = vmatmul.mubr.bf16.gmra.mrb[0].mxu0 %v7178
      %v10070 = vpop.f32.mrb[0].mxu0
      %v10071 = vadd.f32 %v9910, %v10070
      %v10072 = vpop.f32.mrb[0].mxu0
      %v10073 = vpop.f32.mrb[0].mxu0
      %v10074 = vadd.f32 %v9913, %v10073
      %v10075 = vpop.f32.mrb[0].mxu0
      %10076 = vmatprep.mubr.bf16.mxu0 %v7183
      %10077 = vmatmul.mubr.bf16.gmra.mrb[0].mxu0 %v7182
      %v10078 = vpop.f32.mrb[0].mxu0
      %v10079 = vadd.f32 %v9918, %v10078
      %v10080 = vpop.f32.mrb[0].mxu0
      %v10081 = vpop.f32.mrb[0].mxu0
      %v10082 = vadd.f32 %v9921, %v10081
      %v10083 = vpop.f32.mrb[0].mxu0
      %10084 = vmatprep.mubr.bf16.mxu0 %v7187
      %10085 = vmatmul.mubr.bf16.gmra.mrb[0].mxu0 %v7186
      %v10086 = vpop.f32.mrb[0].mxu0
      %v10087 = vadd.f32 %v9926, %v10086
      %v10088 = vpop.f32.mrb[0].mxu0
      %v10089 = vpop.f32.mrb[0].mxu0
      %v10090 = vadd.f32 %v9929, %v10089
      %v10091 = vpop.f32.mrb[0].mxu0
      %10092 = vmatprep.mubr.bf16.mxu0 %v7191
      %10093 = vmatmul.mubr.bf16.gmra.mrb[0].mxu0 %v7190
      %v10094 = vpop.f32.mrb[0].mxu0
      %v10095 = vadd.f32 %v9934, %v10094
      %v10096 = vpop.f32.mrb[0].mxu0
      %v10097 = vpop.f32.mrb[0].mxu0
      %v10098 = vadd.f32 %v9937, %v10097
      %v10099 = vpop.f32.mrb[0].mxu0
      %10100 = vmatprep.mubr.bf16.mxu0 %v7195
      %10101 = vmatmul.mubr.bf16.gmra.mrb[0].mxu0 %v7194
      %v10102 = vpop.f32.mrb[0].mxu0
      %v10103 = vadd.f32 %v9942, %v10102
      %v10104 = vpop.f32.mrb[0].mxu0
      %v10105 = vpop.f32.mrb[0].mxu0
      %v10106 = vadd.f32 %v9945, %v10105
      %v10107 = vpop.f32.mrb[0].mxu0
      %10108 = vmatprep.mubr.bf16.mxu0 %v7199
      %10109 = vmatmul.mubr.bf16.gmra.mrb[0].mxu0 %v7198
      %v10110 = vpop.f32.mrb[0].mxu0
      %v10111 = vadd.f32 %v9950, %v10110
      %v10112 = vpop.f32.mrb[0].mxu0
      %v10113 = vpop.f32.mrb[0].mxu0
      %v10114 = vadd.f32 %v9953, %v10113
      %v10115 = vpop.f32.mrb[0].mxu0
      %10116 = vmatprep.mubr.bf16.mxu0 %v7203
      %10117 = vmatmul.mubr.bf16.gmra.mrb[0].mxu0 %v7202
      %v10118 = vpop.f32.mrb[0].mxu0
      %v10119 = vadd.f32 %v9958, %v10118
      %v10120 = vpop.f32.mrb[0].mxu0
      %v10121 = vpop.f32.mrb[0].mxu0
      %v10122 = vadd.f32 %v9961, %v10121
      %v10123 = vpop.f32.mrb[0].mxu0
      %10124 = vmatprep.mubr.bf16.mxu0 %v7207
      %10125 = vmatmul.mubr.bf16.gmra.mrb[0].mxu0 %v7206
      %v10126 = vpop.f32.mrb[0].mxu0
      %v10127 = vadd.f32 %v9966, %v10126
      %v10128 = vpop.f32.mrb[0].mxu0
      %v10129 = vpop.f32.mrb[0].mxu0
      %v10130 = vadd.f32 %v9969, %v10129
      %v10131 = vpop.f32.mrb[0].mxu0
      %10132 = vdwg.mxu0
      %v10133 = vtanh.pop %v8881
      %v10134 = vtanh.pop %v8883
      %v10135 = vtanh.pop %v9267
      %v10136 = vtanh.pop %v9269
      %v10137 = vtanh.pop %v9653
      %v10138 = vtanh.pop %v9655
      %v10139 = vtanh.pop %v10007
      %v10140 = vtanh.pop %v8885
      %v10141 = vtanh.pop %v8887
      %v10142 = vtanh.pop %v9271
      %v10143 = vtanh.pop %v9273
      %v10144 = vtanh.pop %v9657
      %v10145 = vtanh.pop %v9659
      %v10146 = vtanh.pop %v10010
      %v10147 = vtanh.pop %v8891
      %v10148 = vtanh.pop %v8893
      %v10149 = vtanh.pop %v9277
      %v10150 = vtanh.pop %v9279
      %v10151 = vtanh.pop %v9663
      %v10152 = vtanh.pop %v9665
      %v10153 = vtanh.pop %v10015
      %v10154 = vtanh.pop %v8895
      %v10155 = vtanh.pop %v8897
      %v10156 = vtanh.pop %v9281
      %v10157 = vtanh.pop %v9283
      %v10158 = vtanh.pop %v9667
      %v10159 = vtanh.pop %v9669
      %v10160 = vtanh.pop %v10018
      %v10161 = vtanh.pop %v8901
      %v10162 = vtanh.pop %v8903
      %v10163 = vtanh.pop %v9287
      %v10164 = vtanh.pop %v9289
      %v10165 = vtanh.pop %v9673
      %v10166 = vtanh.pop %v9675
      %v10167 = vtanh.pop %v10023
      %v10168 = vtanh.pop %v8905
      %v10169 = vtanh.pop %v8907
      %v10170 = vtanh.pop %v9291
      %v10171 = vtanh.pop %v9293
      %v10172 = vtanh.pop %v9677
      %v10173 = vtanh.pop %v9679
      %v10174 = vtanh.pop %v10026
      %v10175 = vtanh.pop %v8911
      %v10176 = vtanh.pop %v8913
      %v10177 = vtanh.pop %v9297
      %v10178 = vtanh.pop %v9299
      %v10179 = vtanh.pop %v9683
      %v10180 = vtanh.pop %v9685
      %v10181 = vtanh.pop %v10031
      %v10182 = vtanh.pop %v8915
      %v10183 = vtanh.pop %v8917
      %v10184 = vtanh.pop %v9301
      %v10185 = vtanh.pop %v9303
      %v10186 = vtanh.pop %v9687
      %v10187 = vtanh.pop %v9689
      %v10188 = vtanh.pop %v10034
      %v10189 = vtanh.pop %v8921
      %v10190 = vtanh.pop %v8923
      %v10191 = vtanh.pop %v9307
      %v10192 = vtanh.pop %v9309
      %v10193 = vtanh.pop %v9693
      %v10194 = vtanh.pop %v9695
      %v10195 = vtanh.pop %v10039
      %v10196 = vtanh.pop %v8925
      %v10197 = vtanh.pop %v8927
      %v10198 = vtanh.pop %v9311
      %v10199 = vtanh.pop %v9313
      %v10200 = vtanh.pop %v9697
      %v10201 = vtanh.pop %v9699
      %v10202 = vtanh.pop %v10042
      %v10203 = vtanh.pop %v8931
      %v10204 = vtanh.pop %v8933
      %v10205 = vtanh.pop %v9317
      %v10206 = vtanh.pop %v9319
      %v10207 = vtanh.pop %v9703
      %v10208 = vtanh.pop %v9705
      %v10209 = vtanh.pop %v10047
      %v10210 = vtanh.pop %v8935
      %v10211 = vtanh.pop %v8937
      %v10212 = vtanh.pop %v9321
      %v10213 = vtanh.pop %v9323
      %v10214 = vtanh.pop %v9707
      %v10215 = vtanh.pop %v9709
      %v10216 = vtanh.pop %v10050
      %v10217 = vtanh.pop %v8941
      %v10218 = vtanh.pop %v8943
      %v10219 = vtanh.pop %v9327
      %v10220 = vtanh.pop %v9329
      %v10221 = vtanh.pop %v9713
      %v10222 = vtanh.pop %v9715
      %v10223 = vtanh.pop %v10055
      %v10224 = vtanh.pop %v8945
      %v10225 = vtanh.pop %v8947
      %v10226 = vtanh.pop %v9331
      %v10227 = vtanh.pop %v9333
      %v10228 = vtanh.pop %v9717
      %v10229 = vtanh.pop %v9719
      %v10230 = vtanh.pop %v10058
      %v10231 = vtanh.pop %v8951
      %v10232 = vtanh.pop %v8953
      %v10233 = vtanh.pop %v9337
      %v10234 = vtanh.pop %v9339
      %v10235 = vtanh.pop %v9723
      %v10236 = vtanh.pop %v9725
      %v10237 = vtanh.pop %v10063
      %v10238 = vtanh.pop %v8955
      %v10239 = vtanh.pop %v8957
      %v10240 = vtanh.pop %v9341
      %v10241 = vtanh.pop %v9343
      %v10242 = vtanh.pop %v9727
      %v10243 = vtanh.pop %v9729
      %v10244 = vtanh.pop %v10066
      %v10245 = vtanh.pop %v8961
      %v10246 = vtanh.pop %v8963
      %v10247 = vtanh.pop %v9347
      %v10248 = vtanh.pop %v9349
      %v10249 = vtanh.pop %v9733
      %v10250 = vtanh.pop %v9735
      %v10251 = vtanh.pop %v10071
      %v10252 = vtanh.pop %v8965
      %v10253 = vtanh.pop %v8967
      %v10254 = vtanh.pop %v9351
      %v10255 = vtanh.pop %v9353
      %v10256 = vtanh.pop %v9737
      %v10257 = vtanh.pop %v9739
      %v10258 = vtanh.pop %v10074
      %v10259 = vtanh.pop %v8971
      %v10260 = vtanh.pop %v8973
      %v10261 = vtanh.pop %v9357
      %v10262 = vtanh.pop %v9359
      %v10263 = vtanh.pop %v9743
      %v10264 = vtanh.pop %v9745
      %v10265 = vtanh.pop %v10079
      %v10266 = vtanh.pop %v8975
      %v10267 = vtanh.pop %v8977
      %v10268 = vtanh.pop %v9361
      %v10269 = vtanh.pop %v9363
      %v10270 = vtanh.pop %v9747
      %v10271 = vtanh.pop %v9749
      %v10272 = vtanh.pop %v10082
      %v10273 = vtanh.pop %v8981
      %v10274 = vtanh.pop %v8983
      %v10275 = vtanh.pop %v9367
      %v10276 = vtanh.pop %v9369
      %v10277 = vtanh.pop %v9753
      %v10278 = vtanh.pop %v9755
      %v10279 = vtanh.pop %v10087
      %v10280 = vtanh.pop %v8985
      %v10281 = vtanh.pop %v8987
      %v10282 = vtanh.pop %v9371
      %v10283 = vtanh.pop %v9373
      %v10284 = vtanh.pop %v9757
      %v10285 = vtanh.pop %v9759
      %v10286 = vtanh.pop %v10090
      %v10287 = vtanh.pop %v8991
      %v10288 = vtanh.pop %v8993
      %v10289 = vtanh.pop %v9377
      %v10290 = vtanh.pop %v9379
      %v10291 = vtanh.pop %v9763
      %v10292 = vtanh.pop %v9765
      %v10293 = vtanh.pop %v10095
      %v10294 = vtanh.pop %v8995
      %v10295 = vtanh.pop %v8997
      %v10296 = vtanh.pop %v9381
      %v10297 = vtanh.pop %v9383
      %v10298 = vtanh.pop %v9767
      %v10299 = vtanh.pop %v9769
      %v10300 = vtanh.pop %v10098
      %v10301 = vtanh.pop %v9001
      %v10302 = vtanh.pop %v9003
      %v10303 = vtanh.pop %v9387
      %v10304 = vtanh.pop %v9389
      %v10305 = vtanh.pop %v9773
      %v10306 = vtanh.pop %v9775
      %v10307 = vtanh.pop %v10103
      %v10308 = vtanh.pop %v9005
      %v10309 = vtanh.pop %v9007
      %v10310 = vtanh.pop %v9391
      %v10311 = vtanh.pop %v9393
      %v10312 = vtanh.pop %v9777
      %v10313 = vtanh.pop %v9779
      %v10314 = vtanh.pop %v10106
      %v10315 = vtanh.pop %v9011
      %v10316 = vtanh.pop %v9013
      %v10317 = vtanh.pop %v9397
      %v10318 = vtanh.pop %v9399
      %v10319 = vtanh.pop %v9783
      %v10320 = vtanh.pop %v9785
      %v10321 = vtanh.pop %v10111
      %v10322 = vtanh.pop %v9015
      %v10323 = vtanh.pop %v9017
      %v10324 = vtanh.pop %v9401
      %v10325 = vtanh.pop %v9403
      %v10326 = vtanh.pop %v9787
      %v10327 = vtanh.pop %v9789
      %v10328 = vtanh.pop %v10114
      %v10329 = vtanh.pop %v9021
      %v10330 = vtanh.pop %v9023
      %v10331 = vtanh.pop %v9407
      %v10332 = vtanh.pop %v9409
      %v10333 = vtanh.pop %v9793
      %v10334 = vtanh.pop %v9795
      %v10335 = vtanh.pop %v10119
      %v10336 = vtanh.pop %v9025
      %v10337 = vtanh.pop %v9027
      %v10338 = vtanh.pop %v9411
      %v10339 = vtanh.pop %v9413
      %v10340 = vtanh.pop %v9797
      %v10341 = vtanh.pop %v9799
      %v10342 = vtanh.pop %v10122
      %v10343 = vtanh.pop %v9031
      %v10344 = vtanh.pop %v9033
      %v10345 = vtanh.pop %v9417
      %v10346 = vtanh.pop %v9419
      %v10347 = vtanh.pop %v9803
      %v10348 = vtanh.pop %v9805
      %v10349 = vtanh.pop %v10127
      %v10350 = vtanh.pop %v9035
      %v10351 = vtanh.pop %v9037
      %v10352 = vtanh.pop %v9421
      %v10353 = vtanh.pop %v9423
      %v10354 = vtanh.pop %v9807
      %v10355 = vtanh.pop %v9809
      %v10356 = vtanh.pop %v10130
      %v10357 = vpack.c.bf16 %v10140, %v10133
      %v10358 = vpack.c.bf16 %v10141, %v10134
      %v10359 = vpack.c.bf16 %v10142, %v10135
      %v10360 = vpack.c.bf16 %v10143, %v10136
      %v10361 = vpack.c.bf16 %v10144, %v10137
      %v10362 = vpack.c.bf16 %v10145, %v10138
      %v10363 = vpack.c.bf16 %v10146, %v10139
      %v10364 = vpack.c.bf16 %v10154, %v10147
      %v10365 = vpack.c.bf16 %v10155, %v10148
      %v10366 = vpack.c.bf16 %v10156, %v10149
      %v10367 = vpack.c.bf16 %v10157, %v10150
      %v10368 = vpack.c.bf16 %v10158, %v10151
      %v10369 = vpack.c.bf16 %v10159, %v10152
      %v10370 = vpack.c.bf16 %v10160, %v10153
      %v10371 = vpack.c.bf16 %v10168, %v10161
      %v10372 = vpack.c.bf16 %v10169, %v10162
      %v10373 = vpack.c.bf16 %v10170, %v10163
      %v10374 = vpack.c.bf16 %v10171, %v10164
      %v10375 = vpack.c.bf16 %v10172, %v10165
      %v10376 = vpack.c.bf16 %v10173, %v10166
      %v10377 = vpack.c.bf16 %v10174, %v10167
      %v10378 = vpack.c.bf16 %v10182, %v10175
      %v10379 = vpack.c.bf16 %v10183, %v10176
      %v10380 = vpack.c.bf16 %v10184, %v10177
      %v10381 = vpack.c.bf16 %v10185, %v10178
      %v10382 = vpack.c.bf16 %v10186, %v10179
      %v10383 = vpack.c.bf16 %v10187, %v10180
      %v10384 = vpack.c.bf16 %v10188, %v10181
      %v10385 = vpack.c.bf16 %v10196, %v10189
      %v10386 = vpack.c.bf16 %v10197, %v10190
      %v10387 = vpack.c.bf16 %v10198, %v10191
      %v10388 = vpack.c.bf16 %v10199, %v10192
      %v10389 = vpack.c.bf16 %v10200, %v10193
      %v10390 = vpack.c.bf16 %v10201, %v10194
      %v10391 = vpack.c.bf16 %v10202, %v10195
      %v10392 = vpack.c.bf16 %v10210, %v10203
      %v10393 = vpack.c.bf16 %v10211, %v10204
      %v10394 = vpack.c.bf16 %v10212, %v10205
      %v10395 = vpack.c.bf16 %v10213, %v10206
      %v10396 = vpack.c.bf16 %v10214, %v10207
      %v10397 = vpack.c.bf16 %v10215, %v10208
      %v10398 = vpack.c.bf16 %v10216, %v10209
      %v10399 = vpack.c.bf16 %v10224, %v10217
      %v10400 = vpack.c.bf16 %v10225, %v10218
      %v10401 = vpack.c.bf16 %v10226, %v10219
      %v10402 = vpack.c.bf16 %v10227, %v10220
      %v10403 = vpack.c.bf16 %v10228, %v10221
      %v10404 = vpack.c.bf16 %v10229, %v10222
      %v10405 = vpack.c.bf16 %v10230, %v10223
      %v10406 = vpack.c.bf16 %v10238, %v10231
      %v10407 = vpack.c.bf16 %v10239, %v10232
      %v10408 = vpack.c.bf16 %v10240, %v10233
      %v10409 = vpack.c.bf16 %v10241, %v10234
      %v10410 = vpack.c.bf16 %v10242, %v10235
      %v10411 = vpack.c.bf16 %v10243, %v10236
      %v10412 = vpack.c.bf16 %v10244, %v10237
      %v10413 = vpack.c.bf16 %v10252, %v10245
      %v10414 = vpack.c.bf16 %v10253, %v10246
      %v10415 = vpack.c.bf16 %v10254, %v10247
      %v10416 = vpack.c.bf16 %v10255, %v10248
      %v10417 = vpack.c.bf16 %v10256, %v10249
      %v10418 = vpack.c.bf16 %v10257, %v10250
      %v10419 = vpack.c.bf16 %v10258, %v10251
      %v10420 = vpack.c.bf16 %v10266, %v10259
      %v10421 = vpack.c.bf16 %v10267, %v10260
      %v10422 = vpack.c.bf16 %v10268, %v10261
      %v10423 = vpack.c.bf16 %v10269, %v10262
      %v10424 = vpack.c.bf16 %v10270, %v10263
      %v10425 = vpack.c.bf16 %v10271, %v10264
      %v10426 = vpack.c.bf16 %v10272, %v10265
      %v10427 = vpack.c.bf16 %v10280, %v10273
      %v10428 = vpack.c.bf16 %v10281, %v10274
      %v10429 = vpack.c.bf16 %v10282, %v10275
      %v10430 = vpack.c.bf16 %v10283, %v10276
      %v10431 = vpack.c.bf16 %v10284, %v10277
      %v10432 = vpack.c.bf16 %v10285, %v10278
      %v10433 = vpack.c.bf16 %v10286, %v10279
      %v10434 = vpack.c.bf16 %v10294, %v10287
      %v10435 = vpack.c.bf16 %v10295, %v10288
      %v10436 = vpack.c.bf16 %v10296, %v10289
      %v10437 = vpack.c.bf16 %v10297, %v10290
      %v10438 = vpack.c.bf16 %v10298, %v10291
      %v10439 = vpack.c.bf16 %v10299, %v10292
      %v10440 = vpack.c.bf16 %v10300, %v10293
      %v10441 = vpack.c.bf16 %v10308, %v10301
      %v10442 = vpack.c.bf16 %v10309, %v10302
      %v10443 = vpack.c.bf16 %v10310, %v10303
      %v10444 = vpack.c.bf16 %v10311, %v10304
      %v10445 = vpack.c.bf16 %v10312, %v10305
      %v10446 = vpack.c.bf16 %v10313, %v10306
      %v10447 = vpack.c.bf16 %v10314, %v10307
      %v10448 = vpack.c.bf16 %v10322, %v10315
      %v10449 = vpack.c.bf16 %v10323, %v10316
      %v10450 = vpack.c.bf16 %v10324, %v10317
      %v10451 = vpack.c.bf16 %v10325, %v10318
      %v10452 = vpack.c.bf16 %v10326, %v10319
      %v10453 = vpack.c.bf16 %v10327, %v10320
      %v10454 = vpack.c.bf16 %v10328, %v10321
      %v10455 = vpack.c.bf16 %v10336, %v10329
      %v10456 = vpack.c.bf16 %v10337, %v10330
      %v10457 = vpack.c.bf16 %v10338, %v10331
      %v10458 = vpack.c.bf16 %v10339, %v10332
      %v10459 = vpack.c.bf16 %v10340, %v10333
      %v10460 = vpack.c.bf16 %v10341, %v10334
      %v10461 = vpack.c.bf16 %v10342, %v10335
      %v10462 = vpack.c.bf16 %v10350, %v10343
      %v10463 = vpack.c.bf16 %v10351, %v10344
      %v10464 = vpack.c.bf16 %v10352, %v10345
      %v10465 = vpack.c.bf16 %v10353, %v10346
      %v10466 = vpack.c.bf16 %v10354, %v10347
      %v10467 = vpack.c.bf16 %v10355, %v10348
      %v10468 = vpack.c.bf16 %v10356, %v10349
      %v10581 = vunpack.c.l.b16 %v10357
      %v10582 = vunpack.c.l.b16 %v10358
      %v10583 = vunpack.c.l.b16 %v10359
      %v10584 = vunpack.c.l.b16 %v10360
      %v10585 = vunpack.c.l.b16 %v10361
      %v10586 = vunpack.c.l.b16 %v10362
      %v10587 = vunpack.c.l.b16 %v10363
      %v10588 = vunpack.c.h.b16 %v10357
      %v10589 = vunpack.c.h.b16 %v10358
      %v10590 = vunpack.c.h.b16 %v10359
      %v10591 = vunpack.c.h.b16 %v10360
      %v10592 = vunpack.c.h.b16 %v10361
      %v10593 = vunpack.c.h.b16 %v10362
      %v10594 = vunpack.c.h.b16 %v10363
      %v10595 = vunpack.c.l.b16 %v10364
      %v10596 = vunpack.c.l.b16 %v10365
      %v10597 = vunpack.c.l.b16 %v10366
      %v10598 = vunpack.c.l.b16 %v10367
      %v10599 = vunpack.c.l.b16 %v10368
      %v10600 = vunpack.c.l.b16 %v10369
      %v10601 = vunpack.c.l.b16 %v10370
      %v10602 = vunpack.c.h.b16 %v10364
      %v10603 = vunpack.c.h.b16 %v10365
      %v10604 = vunpack.c.h.b16 %v10366
      %v10605 = vunpack.c.h.b16 %v10367
      %v10606 = vunpack.c.h.b16 %v10368
      %v10607 = vunpack.c.h.b16 %v10369
      %v10608 = vunpack.c.h.b16 %v10370
      %v10609 = vunpack.c.l.b16 %v10371
      %v10610 = vunpack.c.l.b16 %v10372
      %v10611 = vunpack.c.l.b16 %v10373
      %v10612 = vunpack.c.l.b16 %v10374
      %v10613 = vunpack.c.l.b16 %v10375
      %v10614 = vunpack.c.l.b16 %v10376
      %v10615 = vunpack.c.l.b16 %v10377
      %v10616 = vunpack.c.h.b16 %v10371
      %v10617 = vunpack.c.h.b16 %v10372
      %v10618 = vunpack.c.h.b16 %v10373
      %v10619 = vunpack.c.h.b16 %v10374
      %v10620 = vunpack.c.h.b16 %v10375
      %v10621 = vunpack.c.h.b16 %v10376
      %v10622 = vunpack.c.h.b16 %v10377
      %v10623 = vunpack.c.l.b16 %v10378
      %v10624 = vunpack.c.l.b16 %v10379
      %v10625 = vunpack.c.l.b16 %v10380
      %v10626 = vunpack.c.l.b16 %v10381
      %v10627 = vunpack.c.l.b16 %v10382
      %v10628 = vunpack.c.l.b16 %v10383
      %v10629 = vunpack.c.l.b16 %v10384
      %v10630 = vunpack.c.h.b16 %v10378
      %v10631 = vunpack.c.h.b16 %v10379
      %v10632 = vunpack.c.h.b16 %v10380
      %v10633 = vunpack.c.h.b16 %v10381
      %v10634 = vunpack.c.h.b16 %v10382
      %v10635 = vunpack.c.h.b16 %v10383
      %v10636 = vunpack.c.h.b16 %v10384
      %v10637 = vunpack.c.l.b16 %v10385
      %v10638 = vunpack.c.l.b16 %v10386
      %v10639 = vunpack.c.l.b16 %v10387
      %v10640 = vunpack.c.l.b16 %v10388
      %v10641 = vunpack.c.l.b16 %v10389
      %v10642 = vunpack.c.l.b16 %v10390
      %v10643 = vunpack.c.l.b16 %v10391
      %v10644 = vunpack.c.h.b16 %v10385
      %v10645 = vunpack.c.h.b16 %v10386
      %v10646 = vunpack.c.h.b16 %v10387
      %v10647 = vunpack.c.h.b16 %v10388
      %v10648 = vunpack.c.h.b16 %v10389
      %v10649 = vunpack.c.h.b16 %v10390
      %v10650 = vunpack.c.h.b16 %v10391
      %v10651 = vunpack.c.l.b16 %v10392
      %v10652 = vunpack.c.l.b16 %v10393
      %v10653 = vunpack.c.l.b16 %v10394
      %v10654 = vunpack.c.l.b16 %v10395
      %v10655 = vunpack.c.l.b16 %v10396
      %v10656 = vunpack.c.l.b16 %v10397
      %v10657 = vunpack.c.l.b16 %v10398
      %v10658 = vunpack.c.h.b16 %v10392
      %v10659 = vunpack.c.h.b16 %v10393
      %v10660 = vunpack.c.h.b16 %v10394
      %v10661 = vunpack.c.h.b16 %v10395
      %v10662 = vunpack.c.h.b16 %v10396
      %v10663 = vunpack.c.h.b16 %v10397
      %v10664 = vunpack.c.h.b16 %v10398
      %v10665 = vunpack.c.l.b16 %v10399
      %v10666 = vunpack.c.l.b16 %v10400
      %v10667 = vunpack.c.l.b16 %v10401
      %v10668 = vunpack.c.l.b16 %v10402
      %v10669 = vunpack.c.l.b16 %v10403
      %v10670 = vunpack.c.l.b16 %v10404
      %v10671 = vunpack.c.l.b16 %v10405
      %v10672 = vunpack.c.h.b16 %v10399
      %v10673 = vunpack.c.h.b16 %v10400
      %v10674 = vunpack.c.h.b16 %v10401
      %v10675 = vunpack.c.h.b16 %v10402
      %v10676 = vunpack.c.h.b16 %v10403
      %v10677 = vunpack.c.h.b16 %v10404
      %v10678 = vunpack.c.h.b16 %v10405
      %v10679 = vunpack.c.l.b16 %v10406
      %v10680 = vunpack.c.l.b16 %v10407
      %v10681 = vunpack.c.l.b16 %v10408
      %v10682 = vunpack.c.l.b16 %v10409
      %v10683 = vunpack.c.l.b16 %v10410
      %v10684 = vunpack.c.l.b16 %v10411
      %v10685 = vunpack.c.l.b16 %v10412
      %v10686 = vunpack.c.h.b16 %v10406
      %v10687 = vunpack.c.h.b16 %v10407
      %v10688 = vunpack.c.h.b16 %v10408
      %v10689 = vunpack.c.h.b16 %v10409
      %v10690 = vunpack.c.h.b16 %v10410
      %v10691 = vunpack.c.h.b16 %v10411
      %v10692 = vunpack.c.h.b16 %v10412
      %v10693 = vunpack.c.l.b16 %v10413
      %v10694 = vunpack.c.l.b16 %v10414
      %v10695 = vunpack.c.l.b16 %v10415
      %v10696 = vunpack.c.l.b16 %v10416
      %v10697 = vunpack.c.l.b16 %v10417
      %v10698 = vunpack.c.l.b16 %v10418
      %v10699 = vunpack.c.l.b16 %v10419
      %v10700 = vunpack.c.h.b16 %v10413
      %v10701 = vunpack.c.h.b16 %v10414
      %v10702 = vunpack.c.h.b16 %v10415
      %v10703 = vunpack.c.h.b16 %v10416
      %v10704 = vunpack.c.h.b16 %v10417
      %v10705 = vunpack.c.h.b16 %v10418
      %v10706 = vunpack.c.h.b16 %v10419
      %v10707 = vunpack.c.l.b16 %v10420
      %v10708 = vunpack.c.l.b16 %v10421
      %v10709 = vunpack.c.l.b16 %v10422
      %v10710 = vunpack.c.l.b16 %v10423
      %v10711 = vunpack.c.l.b16 %v10424
      %v10712 = vunpack.c.l.b16 %v10425
      %v10713 = vunpack.c.l.b16 %v10426
      %v10714 = vunpack.c.h.b16 %v10420
      %v10715 = vunpack.c.h.b16 %v10421
      %v10716 = vunpack.c.h.b16 %v10422
      %v10717 = vunpack.c.h.b16 %v10423
      %v10718 = vunpack.c.h.b16 %v10424
      %v10719 = vunpack.c.h.b16 %v10425
      %v10720 = vunpack.c.h.b16 %v10426
      %v10721 = vunpack.c.l.b16 %v10427
      %v10722 = vunpack.c.l.b16 %v10428
      %v10723 = vunpack.c.l.b16 %v10429
      %v10724 = vunpack.c.l.b16 %v10430
      %v10725 = vunpack.c.l.b16 %v10431
      %v10726 = vunpack.c.l.b16 %v10432
      %v10727 = vunpack.c.l.b16 %v10433
      %v10728 = vunpack.c.h.b16 %v10427
      %v10729 = vunpack.c.h.b16 %v10428
      %v10730 = vunpack.c.h.b16 %v10429
      %v10731 = vunpack.c.h.b16 %v10430
      %v10732 = vunpack.c.h.b16 %v10431
      %v10733 = vunpack.c.h.b16 %v10432
      %v10734 = vunpack.c.h.b16 %v10433
      %v10735 = vunpack.c.l.b16 %v10434
      %v10736 = vunpack.c.l.b16 %v10435
      %v10737 = vunpack.c.l.b16 %v10436
      %v10738 = vunpack.c.l.b16 %v10437
      %v10739 = vunpack.c.l.b16 %v10438
      %v10740 = vunpack.c.l.b16 %v10439
      %v10741 = vunpack.c.l.b16 %v10440
      %v10742 = vunpack.c.h.b16 %v10434
      %v10743 = vunpack.c.h.b16 %v10435
      %v10744 = vunpack.c.h.b16 %v10436
      %v10745 = vunpack.c.h.b16 %v10437
      %v10746 = vunpack.c.h.b16 %v10438
      %v10747 = vunpack.c.h.b16 %v10439
      %v10748 = vunpack.c.h.b16 %v10440
      %v10749 = vunpack.c.l.b16 %v10441
      %v10750 = vunpack.c.l.b16 %v10442
      %v10751 = vunpack.c.l.b16 %v10443
      %v10752 = vunpack.c.l.b16 %v10444
      %v10753 = vunpack.c.l.b16 %v10445
      %v10754 = vunpack.c.l.b16 %v10446
      %v10755 = vunpack.c.l.b16 %v10447
      %v10756 = vunpack.c.h.b16 %v10441
      %v10757 = vunpack.c.h.b16 %v10442
      %v10758 = vunpack.c.h.b16 %v10443
      %v10759 = vunpack.c.h.b16 %v10444
      %v10760 = vunpack.c.h.b16 %v10445
      %v10761 = vunpack.c.h.b16 %v10446
      %v10762 = vunpack.c.h.b16 %v10447
      %v10763 = vunpack.c.l.b16 %v10448
      %v10764 = vunpack.c.l.b16 %v10449
      %v10765 = vunpack.c.l.b16 %v10450
      %v10766 = vunpack.c.l.b16 %v10451
      %v10767 = vunpack.c.l.b16 %v10452
      %v10768 = vunpack.c.l.b16 %v10453
      %v10769 = vunpack.c.l.b16 %v10454
      %v10770 = vunpack.c.h.b16 %v10448
      %v10771 = vunpack.c.h.b16 %v10449
      %v10772 = vunpack.c.h.b16 %v10450
      %v10773 = vunpack.c.h.b16 %v10451
      %v10774 = vunpack.c.h.b16 %v10452
      %v10775 = vunpack.c.h.b16 %v10453
      %v10776 = vunpack.c.h.b16 %v10454
      %v10777 = vunpack.c.l.b16 %v10455
      %v10778 = vunpack.c.l.b16 %v10456
      %v10779 = vunpack.c.l.b16 %v10457
      %v10780 = vunpack.c.l.b16 %v10458
      %v10781 = vunpack.c.l.b16 %v10459
      %v10782 = vunpack.c.l.b16 %v10460
      %v10783 = vunpack.c.l.b16 %v10461
      %v10784 = vunpack.c.h.b16 %v10455
      %v10785 = vunpack.c.h.b16 %v10456
      %v10786 = vunpack.c.h.b16 %v10457
      %v10787 = vunpack.c.h.b16 %v10458
      %v10788 = vunpack.c.h.b16 %v10459
      %v10789 = vunpack.c.h.b16 %v10460
      %v10790 = vunpack.c.h.b16 %v10461
      %v10791 = vunpack.c.l.b16 %v10462
      %v10792 = vunpack.c.l.b16 %v10463
      %v10793 = vunpack.c.l.b16 %v10464
      %v10794 = vunpack.c.l.b16 %v10465
      %v10795 = vunpack.c.l.b16 %v10466
      %v10796 = vunpack.c.l.b16 %v10467
      %v10797 = vunpack.c.l.b16 %v10468
      %v10798 = vunpack.c.h.b16 %v10462
      %v10799 = vunpack.c.h.b16 %v10463
      %v10800 = vunpack.c.h.b16 %v10464
      %v10801 = vunpack.c.h.b16 %v10465
      %v10802 = vunpack.c.h.b16 %v10466
      %v10803 = vunpack.c.h.b16 %v10467
      %v10804 = vunpack.c.h.b16 %v10468
      %v10805 = vpack.c.b16 %v10582, %v10581
      %v10806 = vpack.c.b16 %v10584, %v10583
      %v10807 = vpack.c.b16 %v10586, %v10585
      %v10808 = vpack.c.b16 %v10587, %v10587
      %v10809 = vpack.c.b16 %v10589, %v10588
      %v10810 = vpack.c.b16 %v10591, %v10590
      %v10811 = vpack.c.b16 %v10593, %v10592
      %v10812 = vpack.c.b16 %v10594, %v10594
      %v10813 = vpack.c.b16 %v10596, %v10595
      %v10814 = vpack.c.b16 %v10598, %v10597
      %v10815 = vpack.c.b16 %v10600, %v10599
      %v10816 = vpack.c.b16 %v10601, %v10601
      %v10817 = vpack.c.b16 %v10603, %v10602
      %v10818 = vpack.c.b16 %v10605, %v10604
      %v10819 = vpack.c.b16 %v10607, %v10606
      %v10820 = vpack.c.b16 %v10608, %v10608
      %v10821 = vpack.c.b16 %v10610, %v10609
      %v10822 = vpack.c.b16 %v10612, %v10611
      %v10823 = vpack.c.b16 %v10614, %v10613
      %v10824 = vpack.c.b16 %v10615, %v10615
      %v10825 = vpack.c.b16 %v10617, %v10616
      %v10826 = vpack.c.b16 %v10619, %v10618
      %v10827 = vpack.c.b16 %v10621, %v10620
      %v10828 = vpack.c.b16 %v10622, %v10622
      %v10829 = vpack.c.b16 %v10624, %v10623
      %v10830 = vpack.c.b16 %v10626, %v10625
      %v10831 = vpack.c.b16 %v10628, %v10627
      %v10832 = vpack.c.b16 %v10629, %v10629
      %v10833 = vpack.c.b16 %v10631, %v10630
      %v10834 = vpack.c.b16 %v10633, %v10632
      %v10835 = vpack.c.b16 %v10635, %v10634
      %v10836 = vpack.c.b16 %v10636, %v10636
      %v10837 = vpack.c.b16 %v10638, %v10637
      %v10838 = vpack.c.b16 %v10640, %v10639
      %v10839 = vpack.c.b16 %v10642, %v10641
      %v10840 = vpack.c.b16 %v10643, %v10643
      %v10841 = vpack.c.b16 %v10645, %v10644
      %v10842 = vpack.c.b16 %v10647, %v10646
      %v10843 = vpack.c.b16 %v10649, %v10648
      %v10844 = vpack.c.b16 %v10650, %v10650
      %v10845 = vpack.c.b16 %v10652, %v10651
      %v10846 = vpack.c.b16 %v10654, %v10653
      %v10847 = vpack.c.b16 %v10656, %v10655
      %v10848 = vpack.c.b16 %v10657, %v10657
      %v10849 = vpack.c.b16 %v10659, %v10658
      %v10850 = vpack.c.b16 %v10661, %v10660
      %v10851 = vpack.c.b16 %v10663, %v10662
      %v10852 = vpack.c.b16 %v10664, %v10664
      %v10853 = vpack.c.b16 %v10666, %v10665
      %v10854 = vpack.c.b16 %v10668, %v10667
      %v10855 = vpack.c.b16 %v10670, %v10669
      %v10856 = vpack.c.b16 %v10671, %v10671
      %v10857 = vpack.c.b16 %v10673, %v10672
      %v10858 = vpack.c.b16 %v10675, %v10674
      %v10859 = vpack.c.b16 %v10677, %v10676
      %v10860 = vpack.c.b16 %v10678, %v10678
      %v10861 = vpack.c.b16 %v10680, %v10679
      %v10862 = vpack.c.b16 %v10682, %v10681
      %v10863 = vpack.c.b16 %v10684, %v10683
      %v10864 = vpack.c.b16 %v10685, %v10685
      %v10865 = vpack.c.b16 %v10687, %v10686
      %v10866 = vpack.c.b16 %v10689, %v10688
      %v10867 = vpack.c.b16 %v10691, %v10690
      %v10868 = vpack.c.b16 %v10692, %v10692
      %v10869 = vpack.c.b16 %v10694, %v10693
      %v10870 = vpack.c.b16 %v10696, %v10695
      %v10871 = vpack.c.b16 %v10698, %v10697
      %v10872 = vpack.c.b16 %v10699, %v10699
      %v10873 = vpack.c.b16 %v10701, %v10700
      %v10874 = vpack.c.b16 %v10703, %v10702
      %v10875 = vpack.c.b16 %v10705, %v10704
      %v10876 = vpack.c.b16 %v10706, %v10706
      %v10877 = vpack.c.b16 %v10708, %v10707
      %v10878 = vpack.c.b16 %v10710, %v10709
      %v10879 = vpack.c.b16 %v10712, %v10711
      %v10880 = vpack.c.b16 %v10713, %v10713
      %v10881 = vpack.c.b16 %v10715, %v10714
      %v10882 = vpack.c.b16 %v10717, %v10716
      %v10883 = vpack.c.b16 %v10719, %v10718
      %v10884 = vpack.c.b16 %v10720, %v10720
      %v10885 = vpack.c.b16 %v10722, %v10721
      %v10886 = vpack.c.b16 %v10724, %v10723
      %v10887 = vpack.c.b16 %v10726, %v10725
      %v10888 = vpack.c.b16 %v10727, %v10727
      %v10889 = vpack.c.b16 %v10729, %v10728
      %v10890 = vpack.c.b16 %v10731, %v10730
      %v10891 = vpack.c.b16 %v10733, %v10732
      %v10892 = vpack.c.b16 %v10734, %v10734
      %v10893 = vpack.c.b16 %v10736, %v10735
      %v10894 = vpack.c.b16 %v10738, %v10737
      %v10895 = vpack.c.b16 %v10740, %v10739
      %v10896 = vpack.c.b16 %v10741, %v10741
      %v10897 = vpack.c.b16 %v10743, %v10742
      %v10898 = vpack.c.b16 %v10745, %v10744
      %v10899 = vpack.c.b16 %v10747, %v10746
      %v10900 = vpack.c.b16 %v10748, %v10748
      %v10901 = vpack.c.b16 %v10750, %v10749
      %v10902 = vpack.c.b16 %v10752, %v10751
      %v10903 = vpack.c.b16 %v10754, %v10753
      %v10904 = vpack.c.b16 %v10755, %v10755
      %v10905 = vpack.c.b16 %v10757, %v10756
      %v10906 = vpack.c.b16 %v10759, %v10758
      %v10907 = vpack.c.b16 %v10761, %v10760
      %v10908 = vpack.c.b16 %v10762, %v10762
      %v10909 = vpack.c.b16 %v10764, %v10763
      %v10910 = vpack.c.b16 %v10766, %v10765
      %v10911 = vpack.c.b16 %v10768, %v10767
      %v10912 = vpack.c.b16 %v10769, %v10769
      %v10913 = vpack.c.b16 %v10771, %v10770
      %v10914 = vpack.c.b16 %v10773, %v10772
      %v10915 = vpack.c.b16 %v10775, %v10774
      %v10916 = vpack.c.b16 %v10776, %v10776
      %v10917 = vpack.c.b16 %v10778, %v10777
      %v10918 = vpack.c.b16 %v10780, %v10779
      %v10919 = vpack.c.b16 %v10782, %v10781
      %v10920 = vpack.c.b16 %v10783, %v10783
      %v10921 = vpack.c.b16 %v10785, %v10784
      %v10922 = vpack.c.b16 %v10787, %v10786
      %v10923 = vpack.c.b16 %v10789, %v10788
      %v10924 = vpack.c.b16 %v10790, %v10790
      %v10925 = vpack.c.b16 %v10792, %v10791
      %v10926 = vpack.c.b16 %v10794, %v10793
      %v10927 = vpack.c.b16 %v10796, %v10795
      %v10928 = vpack.c.b16 %v10797, %v10797
      %v10929 = vpack.c.b16 %v10799, %v10798
      %v10930 = vpack.c.b16 %v10801, %v10800
      %v10931 = vpack.c.b16 %v10803, %v10802
      %v10932 = vpack.c.b16 %v10804, %v10804
      %11061 = vst [vmem:[%s531] sm:$0xff] %v10805
      %11062 = vst [vmem:[%s531 + $0x8] sm:$0xff] %v10806
      %11063 = vst [vmem:[%s531 + $0x10] sm:$0xff] %v10807
      %11064 = vst [vmem:[%s531 + $0x18] sm:$0xf] %v10808
      %11065 = vst [vmem:[%s531 + $0x1c] sm:$0xff] %v10809
      %11066 = vst [vmem:[%s531 + $0x24] sm:$0xff] %v10810
      %11067 = vst [vmem:[%s531 + $0x2c] sm:$0xff] %v10811
      %11068 = vst [vmem:[%s531 + $0x34] sm:$0xf] %v10812
      %11069 = vst [vmem:[%s531 + $0x38] sm:$0xff] %v10813
      %11070 = vst [vmem:[%s531 + $0x40] sm:$0xff] %v10814
      %11071 = vst [vmem:[%s531 + $0x48] sm:$0xff] %v10815
      %11072 = vst [vmem:[%s531 + $0x50] sm:$0xf] %v10816
      %11073 = vst [vmem:[%s531 + $0x54] sm:$0xff] %v10817
      %11074 = vst [vmem:[%s531 + $0x5c] sm:$0xff] %v10818
      %11075 = vst [vmem:[%s531 + $0x64] sm:$0xff] %v10819
      %11076 = vst [vmem:[%s531 + $0x6c] sm:$0xf] %v10820
      %11077 = vst [vmem:[%s531 + $0x70] sm:$0xff] %v10821
      %11078 = vst [vmem:[%s531 + $0x78] sm:$0xff] %v10822
      %11079 = vst [vmem:[%s531 + $0x80] sm:$0xff] %v10823
      %11080 = vst [vmem:[%s531 + $0x88] sm:$0xf] %v10824
      %11081 = vst [vmem:[%s531 + $0x8c] sm:$0xff] %v10825
      %11082 = vst [vmem:[%s531 + $0x94] sm:$0xff] %v10826
      %11083 = vst [vmem:[%s531 + $0x9c] sm:$0xff] %v10827
      %11084 = vst [vmem:[%s531 + $0xa4] sm:$0xf] %v10828
      %11085 = vst [vmem:[%s531 + $0xa8] sm:$0xff] %v10829
      %11086 = vst [vmem:[%s531 + $0xb0] sm:$0xff] %v10830
      %11087 = vst [vmem:[%s531 + $0xb8] sm:$0xff] %v10831
      %11088 = vst [vmem:[%s531 + $0xc0] sm:$0xf] %v10832
      %11089 = vst [vmem:[%s531 + $0xc4] sm:$0xff] %v10833
      %11090 = vst [vmem:[%s531 + $0xcc] sm:$0xff] %v10834
      %11091 = vst [vmem:[%s531 + $0xd4] sm:$0xff] %v10835
      %11092 = vst [vmem:[%s531 + $0xdc] sm:$0xf] %v10836
      %11093 = vst [vmem:[%s531 + $0xe0] sm:$0xff] %v10837
      %11094 = vst [vmem:[%s531 + $0xe8] sm:$0xff] %v10838
      %11095 = vst [vmem:[%s531 + $0xf0] sm:$0xff] %v10839
      %11096 = vst [vmem:[%s531 + $0xf8] sm:$0xf] %v10840
      %11097 = vst [vmem:[%s531 + $0xfc] sm:$0xff] %v10841
      %11098 = vst [vmem:[%s531 + $0x104] sm:$0xff] %v10842
      %11099 = vst [vmem:[%s531 + $0x10c] sm:$0xff] %v10843
      %11100 = vst [vmem:[%s531 + $0x114] sm:$0xf] %v10844
      %11101 = vst [vmem:[%s531 + $0x118] sm:$0xff] %v10845
      %11102 = vst [vmem:[%s531 + $0x120] sm:$0xff] %v10846
      %11103 = vst [vmem:[%s531 + $0x128] sm:$0xff] %v10847
      %11104 = vst [vmem:[%s531 + $0x130] sm:$0xf] %v10848
      %11105 = vst [vmem:[%s531 + $0x134] sm:$0xff] %v10849
      %11106 = vst [vmem:[%s531 + $0x13c] sm:$0xff] %v10850
      %11107 = vst [vmem:[%s531 + $0x144] sm:$0xff] %v10851
      %11108 = vst [vmem:[%s531 + $0x14c] sm:$0xf] %v10852
      %11109 = vst [vmem:[%s531 + $0x150] sm:$0xff] %v10853
      %11110 = vst [vmem:[%s531 + $0x158] sm:$0xff] %v10854
      %11111 = vst [vmem:[%s531 + $0x160] sm:$0xff] %v10855
      %11112 = vst [vmem:[%s531 + $0x168] sm:$0xf] %v10856
      %11113 = vst [vmem:[%s531 + $0x16c] sm:$0xff] %v10857
      %11114 = vst [vmem:[%s531 + $0x174] sm:$0xff] %v10858
      %11115 = vst [vmem:[%s531 + $0x17c] sm:$0xff] %v10859
      %11116 = vst [vmem:[%s531 + $0x184] sm:$0xf] %v10860
      %11117 = vst [vmem:[%s531 + $0x188] sm:$0xff] %v10861
      %11118 = vst [vmem:[%s531 + $0x190] sm:$0xff] %v10862
      %11119 = vst [vmem:[%s531 + $0x198] sm:$0xff] %v10863
      %11120 = vst [vmem:[%s531 + $0x1a0] sm:$0xf] %v10864
      %11121 = vst [vmem:[%s531 + $0x1a4] sm:$0xff] %v10865
      %11122 = vst [vmem:[%s531 + $0x1ac] sm:$0xff] %v10866
      %11123 = vst [vmem:[%s531 + $0x1b4] sm:$0xff] %v10867
      %11124 = vst [vmem:[%s531 + $0x1bc] sm:$0xf] %v10868
      %11125 = vst [vmem:[%s531 + $0x1c0] sm:$0xff] %v10869
      %11126 = vst [vmem:[%s531 + $0x1c8] sm:$0xff] %v10870
      %11127 = vst [vmem:[%s531 + $0x1d0] sm:$0xff] %v10871
      %11128 = vst [vmem:[%s531 + $0x1d8] sm:$0xf] %v10872
      %11129 = vst [vmem:[%s531 + $0x1dc] sm:$0xff] %v10873
      %11130 = vst [vmem:[%s531 + $0x1e4] sm:$0xff] %v10874
      %11131 = vst [vmem:[%s531 + $0x1ec] sm:$0xff] %v10875
      %11132 = vst [vmem:[%s531 + $0x1f4] sm:$0xf] %v10876
      %11133 = vst [vmem:[%s531 + $0x1f8] sm:$0xff] %v10877
      %11134 = vst [vmem:[%s531 + $0x200] sm:$0xff] %v10878
      %11135 = vst [vmem:[%s531 + $0x208] sm:$0xff] %v10879
      %11136 = vst [vmem:[%s531 + $0x210] sm:$0xf] %v10880
      %11137 = vst [vmem:[%s531 + $0x214] sm:$0xff] %v10881
      %11138 = vst [vmem:[%s531 + $0x21c] sm:$0xff] %v10882
      %11139 = vst [vmem:[%s531 + $0x224] sm:$0xff] %v10883
      %11140 = vst [vmem:[%s531 + $0x22c] sm:$0xf] %v10884
      %11141 = vst [vmem:[%s531 + $0x230] sm:$0xff] %v10885
      %11142 = vst [vmem:[%s531 + $0x238] sm:$0xff] %v10886
      %11143 = vst [vmem:[%s531 + $0x240] sm:$0xff] %v10887
      %11144 = vst [vmem:[%s531 + $0x248] sm:$0xf] %v10888
      %11145 = vst [vmem:[%s531 + $0x24c] sm:$0xff] %v10889
      %11146 = vst [vmem:[%s531 + $0x254] sm:$0xff] %v10890
      %11147 = vst [vmem:[%s531 + $0x25c] sm:$0xff] %v10891
      %11148 = vst [vmem:[%s531 + $0x264] sm:$0xf] %v10892
      %11149 = vst [vmem:[%s531 + $0x268] sm:$0xff] %v10893
      %11150 = vst [vmem:[%s531 + $0x270] sm:$0xff] %v10894
      %11151 = vst [vmem:[%s531 + $0x278] sm:$0xff] %v10895
      %11152 = vst [vmem:[%s531 + $0x280] sm:$0xf] %v10896
      %11153 = vst [vmem:[%s531 + $0x284] sm:$0xff] %v10897
      %11154 = vst [vmem:[%s531 + $0x28c] sm:$0xff] %v10898
      %11155 = vst [vmem:[%s531 + $0x294] sm:$0xff] %v10899
      %11156 = vst [vmem:[%s531 + $0x29c] sm:$0xf] %v10900
      %11157 = vst [vmem:[%s531 + $0x2a0] sm:$0xff] %v10901
      %11158 = vst [vmem:[%s531 + $0x2a8] sm:$0xff] %v10902
      %11159 = vst [vmem:[%s531 + $0x2b0] sm:$0xff] %v10903
      %11160 = vst [vmem:[%s531 + $0x2b8] sm:$0xf] %v10904
      %11161 = vst [vmem:[%s531 + $0x2bc] sm:$0xff] %v10905
      %11162 = vst [vmem:[%s531 + $0x2c4] sm:$0xff] %v10906
      %11163 = vst [vmem:[%s531 + $0x2cc] sm:$0xff] %v10907
      %11164 = vst [vmem:[%s531 + $0x2d4] sm:$0xf] %v10908
      %11165 = vst [vmem:[%s531 + $0x2d8] sm:$0xff] %v10909
      %11166 = vst [vmem:[%s531 + $0x2e0] sm:$0xff] %v10910
      %11167 = vst [vmem:[%s531 + $0x2e8] sm:$0xff] %v10911
      %11168 = vst [vmem:[%s531 + $0x2f0] sm:$0xf] %v10912
      %11169 = vst [vmem:[%s531 + $0x2f4] sm:$0xff] %v10913
      %11170 = vst [vmem:[%s531 + $0x2fc] sm:$0xff] %v10914
      %11171 = vst [vmem:[%s531 + $0x304] sm:$0xff] %v10915
      %11172 = vst [vmem:[%s531 + $0x30c] sm:$0xf] %v10916
      %11173 = vst [vmem:[%s531 + $0x310] sm:$0xff] %v10917
      %11174 = vst [vmem:[%s531 + $0x318] sm:$0xff] %v10918
      %11175 = vst [vmem:[%s531 + $0x320] sm:$0xff] %v10919
      %11176 = vst [vmem:[%s531 + $0x328] sm:$0xf] %v10920
      %11177 = vst [vmem:[%s531 + $0x32c] sm:$0xff] %v10921
      %11178 = vst [vmem:[%s531 + $0x334] sm:$0xff] %v10922
      %11179 = vst [vmem:[%s531 + $0x33c] sm:$0xff] %v10923
      %11180 = vst [vmem:[%s531 + $0x344] sm:$0xf] %v10924
      %11181 = vst [vmem:[%s531 + $0x348] sm:$0xff] %v10925
      %11182 = vst [vmem:[%s531 + $0x350] sm:$0xff] %v10926
      %11183 = vst [vmem:[%s531 + $0x358] sm:$0xff] %v10927
      %11184 = vst [vmem:[%s531 + $0x360] sm:$0xf] %v10928
      %11185 = vst [vmem:[%s531 + $0x364] sm:$0xff] %v10929
      %11186 = vst [vmem:[%s531 + $0x36c] sm:$0xff] %v10930
      %11187 = vst [vmem:[%s531 + $0x374] sm:$0xff] %v10931
      %11188 = vst [vmem:[%s531 + $0x37c] sm:$0xf] %v10932
      %11189 = vst [vmem:[%s537] sm:$0xff] %v5394
      %11190 = vst [vmem:[%s537 + $0x8] sm:$0xff] %v5397
      %11191 = vst [vmem:[%s537 + $0x10] sm:$0xff] %v5402
      %11192 = vst [vmem:[%s537 + $0x18] sm:$0xff] %v5405
      %11193 = vst [vmem:[%s537 + $0x20] sm:$0xff] %v5410
      %11194 = vst [vmem:[%s537 + $0x28] sm:$0xff] %v5413
      %11195 = vst [vmem:[%s537 + $0x30] sm:$0xff] %v5418
      %11196 = vst [vmem:[%s537 + $0x38] sm:$0xff] %v5421
      %11197 = vst [vmem:[%s537 + $0x40] sm:$0xff] %v5426
      %11198 = vst [vmem:[%s537 + $0x48] sm:$0xff] %v5429
      %11199 = vst [vmem:[%s537 + $0x50] sm:$0xff] %v5434
      %11200 = vst [vmem:[%s537 + $0x58] sm:$0xff] %v5437
      %11201 = vst [vmem:[%s537 + $0x60] sm:$0xff] %v5442
      %11202 = vst [vmem:[%s537 + $0x68] sm:$0xff] %v5445
      %11203 = vst [vmem:[%s537 + $0x70] sm:$0xff] %v5450
      %11204 = vst [vmem:[%s537 + $0x78] sm:$0xff] %v5453
      %11205 = vst [vmem:[%s537 + $0x80] sm:$0xff] %v5458
      %11206 = vst [vmem:[%s537 + $0x88] sm:$0xff] %v5461
      %11207 = vst [vmem:[%s537 + $0x90] sm:$0xff] %v5466
      %11208 = vst [vmem:[%s537 + $0x98] sm:$0xff] %v5469
      %11209 = vst [vmem:[%s537 + $0xa0] sm:$0xff] %v5474
      %11210 = vst [vmem:[%s537 + $0xa8] sm:$0xff] %v5477
      %11211 = vst [vmem:[%s537 + $0xb0] sm:$0xff] %v5482
      %11212 = vst [vmem:[%s537 + $0xb8] sm:$0xff] %v5485
      %11213 = vst [vmem:[%s537 + $0xc0] sm:$0xff] %v5490
      %11214 = vst [vmem:[%s537 + $0xc8] sm:$0xff] %v5493
      %11215 = vst [vmem:[%s537 + $0xd0] sm:$0xff] %v5498
      %11216 = vst [vmem:[%s537 + $0xd8] sm:$0xff] %v5501
      %11217 = vst [vmem:[%s537 + $0xe0] sm:$0xff] %v5506
      %11218 = vst [vmem:[%s537 + $0xe8] sm:$0xff] %v5509
      %11219 = vst [vmem:[%s537 + $0xf0] sm:$0xff] %v5514
      %11220 = vst [vmem:[%s537 + $0xf8] sm:$0xff] %v5517
      %s11221 = smul.u32 32, %s27
      %p11222 = scmp.lt.s32.totalorder %s11221, 63
      %s11223 = scalar_select %p11222, %s11221, 63
      %s11224 = smul.addr %s11223, 7
      %s11225 = smul.addr %s11224, 4
      %s11226 = scalar_lea.vmem %s14, %s11225
      %s11227 = smul.u32 32, %s27
      %p11228 = scmp.lt.s32.totalorder %s11227, 63
      %s11229 = scalar_select %p11228, %s11227, 63
      %s11230 = smul.addr %s11229, 8
      %s11231 = scalar_lea.vmem %s15, %s11230
      // Predicated region
      $region77: #{vae_forward.1} parent=75 // pred_check
        %p11232 = pneg %p349
      $region78: #{vae_forward.1} parent=75 // pred_check_branch
        %11234 = sbr.rel (%p11232) target = $region80
      $region79: #{vae_forward.1} parent=75 // pred_region
        %s11235 = smul.u32 32, %s27
      $region80: #{vae_forward.1} parent=75 // pred_fallthru
        _
      // Predicated region
      $region81: #{vae_forward.1} parent=75 // pred_check
        %p11236 = pneg %p375
      $region82: #{vae_forward.1} parent=75 // pred_check_branch
        %11238 = sbr.rel (%p11236) target = $region84
      $region83: #{vae_forward.1} parent=75 // pred_region
        %s11239 = smul.u32 32, %s27
      $region84: #{vae_forward.1} parent=75 // pred_fallthru
        _
    $region76: #{vae_forward.1} parent=5 // pred_fallthru
      _
    %p11240 = scmp.le.s32.totalorder 2, %s22
    // Predicated region
    $region85: #{vae_forward.1} parent=5 // pred_check
      %p11241 = pneg %p11240
    $region86: #{vae_forward.1} parent=5 // pred_check_branch
      %11243 = sbr.rel (%p11241) target = $region88
    $region87: #{vae_forward.1} parent=5 // pred_region
      %s11244 = ssub.s32 %s22, 2
      // Predicated region
      $region89: #{vae_forward.1} parent=87 // pred_check
        %p11245 = pneg %p355
      $region90: #{vae_forward.1} parent=87 // pred_check_branch
        %11247 = sbr.rel (%p11245) target = $region92
      $region91: #{vae_forward.1} parent=87 // pred_region
        %s11248 = smul.u32 32, %s28
        %p11249 = scmp.lt.s32.totalorder %s11248, 63
        %s11250 = scalar_select %p11249, %s11248, 63
        %s11251 = smul.addr %s11250, 7
        %s11252 = smul.addr %s11251, 4
        %s11253 = scalar_lea.vmem %s14, %s11252
      $region92: #{vae_forward.1} parent=87 // pred_fallthru
        _
      // Predicated region
      $region93: #{vae_forward.1} parent=87 // pred_check
        %p11254 = pneg %p381
      $region94: #{vae_forward.1} parent=87 // pred_check_branch
        %11256 = sbr.rel (%p11254) target = $region96
      $region95: #{vae_forward.1} parent=87 // pred_region
        %s11257 = smul.u32 32, %s28
        %p11258 = scmp.lt.s32.totalorder %s11257, 63
        %s11259 = scalar_select %p11258, %s11257, 63
        %s11260 = smul.addr %s11259, 8
        %s11261 = scalar_lea.vmem %s15, %s11260
      $region96: #{vae_forward.1} parent=87 // pred_fallthru
        _
    $region88: #{vae_forward.1} parent=5 // pred_fallthru
      _
  $region6: #{vae_forward.1} parent=0 // loop_footer
    %s26 = sadd.s32 1, %s22
  $region7: #{vae_forward.1} parent=0 // loop_footer_branch
    %21 = sbr.rel target = $region3
  $region8: #{vae_forward.1} parent=0 // loop_exit
    _

</llo_original>
